<compile_context>
chip_gen: v7x
topology: tpu7x:2x2x1
jax: 0.10.0
libtpu: 0.0.40
codegen_flags: <defaults>
</compile_context>

<pallas_src>
import functools

import jax
import jax.numpy as jnp
from jax import lax
from jax.experimental import pallas as pl
from jax.experimental.pallas import tpu as pltpu


# ---------------------------------------------------------------------------
# Pallas kernel
# ---------------------------------------------------------------------------
def _gat_kernel(x_ref, adj_ref, w0_ref, al0_ref, ar0_ref,
                w1_ref, al1_ref, ar1_ref, wout_ref, bout_ref,
                o_ref, h0_scr, h1_scr, *, heads, fp, negative_slope):
    """Fused forward: GATConv -> GATConv(residual) -> Linear."""
    adj = adj_ref[...]  # (N, N); adj[v, u] = 1.0 iff edge u -> v

    def gat_conv(h_in, w, al, ar, residual, out_scr):
        # h_in: (N, Din_p), w: (Din_p, heads*fp), al/ar: (heads, fp)
        feat = jnp.dot(h_in, w, preferred_element_type=jnp.float32)

        # Static (unrolled) loop over heads.
        for hh in range(heads):
            lo = hh * fp
            fh = feat[:, lo:lo + fp]                                   # (N, fp)

            # e_l indexed by source node -> lay it out along lanes via a
            # q·kᵀ-style dot_general; e_r indexed by destination -> sublanes.
            el = lax.dot_general(al[hh:hh + 1, :], fh,
                                 (((1,), (1,)), ((), ())),
                                 preferred_element_type=jnp.float32)   # (1, N)
            er = jnp.sum(fh * ar[hh:hh + 1, :], axis=1, keepdims=True)  # (N, 1)

            e = er + el                                                # (N, N): [dst, src]
            e = jnp.where(e >= 0.0, e, negative_slope * e)             # LeakyReLU
            e = jnp.where(adj > 0.0, e, -1e30)                         # mask non-edges

            # Edge softmax over incoming edges of each destination (lane axis).
            m = jnp.max(e, axis=1, keepdims=True)                      # (N, 1)
            p = jnp.exp(e - m) * adj
            s = jnp.sum(p, axis=1, keepdims=True)                      # (N, 1)
            alpha = p / s                                              # (N, N)

            # rst[v] = sum_u alpha[v, u] * feat[u]
            rst = jnp.dot(alpha, fh, preferred_element_type=jnp.float32)  # (N, fp)

            if residual:                    # identity residual (matching dims)
                rst = rst + h_in[:, lo:lo + fp]

            rst = jnp.where(rst > 0.0, rst, jnp.exp(rst) - 1.0)        # ELU
            out_scr[:, lo:lo + fp] = rst

    # Layer 0 (no residual), layer 1 (identity residual), final Linear.
    gat_conv(x_ref[...], w0_ref[...], al0_ref[...], ar0_ref[...], False, h0_scr)
    gat_conv(h0_scr[...], w1_ref[...], al1_ref[...], ar1_ref[...], True, h1_scr)
    o_ref[...] = jnp.dot(h1_scr[...], wout_ref[...],
                         preferred_element_type=jnp.float32) + bout_ref[...]


# ---------------------------------------------------------------------------
# Wrapper: lane padding + pallas_call
# ---------------------------------------------------------------------------
def _round_up(x, m):
    return (x + m - 1) // m * m


def _pad_params(params, *, heads, f, fp, in_dim, in_dim_p, num_classes, c_p):
    """Zero-pad all parameters into the lane-dense, per-head-blocked layout."""
    (w0, al0, ar0, w1, al1, ar1, w_out, b_out) = params

    def pad_head_cols(w):  # (X, heads*f) -> (X, heads*fp)
        x_dim = w.shape[0]
        w3 = jnp.pad(w.reshape(x_dim, heads, f), ((0, 0), (0, 0), (0, fp - f)))
        return w3.reshape(x_dim, heads * fp)

    def pad_head_rows(w):  # (heads*f, X) -> (heads*fp, X)
        x_dim = w.shape[1]
        w3 = jnp.pad(w.reshape(heads, f, x_dim), ((0, 0), (0, fp - f), (0, 0)))
        return w3.reshape(heads * fp, x_dim)

    def pad_attn(a):       # (heads, f) -> (heads, fp)
        return jnp.pad(a, ((0, 0), (0, fp - f)))

    w0_p = jnp.pad(pad_head_cols(w0), ((0, in_dim_p - in_dim), (0, 0)))
    w1_p = pad_head_cols(pad_head_rows(w1))
    w_out_p = jnp.pad(pad_head_rows(w_out), ((0, 0), (0, c_p - num_classes)))
    b_out_p = jnp.pad(b_out, (0, c_p - num_classes)).reshape(1, c_p)
    return (w0_p, pad_attn(al0), pad_attn(ar0),
            w1_p, pad_attn(al1), pad_attn(ar1),
            w_out_p, b_out_p)


def gat_pallas(x, adj_t, params, *, heads, f, num_classes, negative_slope,
               lane=128):
    n, in_dim = x.shape
    assert lane % heads == 0, "demo assumes lane % heads == 0"
    fp = max(f, lane // heads)            # padded per-head feature dim
    assert f <= fp
    in_dim_p = _round_up(in_dim, lane)
    c_p = _round_up(num_classes, lane)
    width = heads * fp

    x_p = jnp.pad(x, ((0, 0), (0, in_dim_p - in_dim)))
    pparams = _pad_params(params, heads=heads, f=f, fp=fp,
                          in_dim=in_dim, in_dim_p=in_dim_p,
                          num_classes=num_classes, c_p=c_p)

    kernel = functools.partial(_gat_kernel, heads=heads, fp=fp,
                               negative_slope=negative_slope)
    vmem = pl.BlockSpec(memory_space=pltpu.MemorySpace.VMEM)
    num_inputs = 2 + len(pparams)

    out_p = pl.pallas_call(
        kernel,
        out_shape=jax.ShapeDtypeStruct((n, c_p), jnp.float32),
        in_specs=[vmem] * num_inputs,
        out_specs=vmem,
        scratch_shapes=[pltpu.VMEM((n, width), jnp.float32),
                        pltpu.VMEM((n, width), jnp.float32)],
    )(x_p, adj_t, *pparams)
    return out_p[:, :num_classes]


# ---------------------------------------------------------------------------
# Parameter init + plain-JAX reference
# ---------------------------------------------------------------------------
def init_params(key, in_dim, f, heads, num_classes):
    h0, h1 = heads[0], heads[1]
    ks = jax.random.split(key, 8)

    def nrm(k, shape, scale):
        return scale * jax.random.normal(k, shape, jnp.float32)

    w0 = nrm(ks[0], (in_dim, h0 * f), 1.0 / jnp.sqrt(float(in_dim)))
    al0 = nrm(ks[1], (h0, f), 0.5)
    ar0 = nrm(ks[2], (h0, f), 0.5)
    w1 = nrm(ks[3], (h0 * f, h1 * f), 1.0 / jnp.sqrt(float(h0 * f)))
    al1 = nrm(ks[4], (h1, f), 0.5)
    ar1 = nrm(ks[5], (h1, f), 0.5)
    w_out = nrm(ks[6], (h1 * f, num_classes), 1.0 / jnp.sqrt(float(h1 * f)))
    b_out = nrm(ks[7], (num_classes,), 0.1)
    return (w0, al0, ar0, w1, al1, ar1, w_out, b_out)


def _gat_conv_ref(h, adj_t, w, al, ar, *, negative_slope, residual):
    n = h.shape[0]
    nh, f = al.shape
    feat = jnp.dot(h, w, precision=lax.Precision.HIGHEST).reshape(n, nh, f)
    el = jnp.sum(feat * al[None, :, :], axis=-1)        # (N, H), source-indexed
    er = jnp.sum(feat * ar[None, :, :], axis=-1)        # (N, H), dest-indexed
    e = er[:, None, :] + el[None, :, :]                  # (N_dst, N_src, H)
    e = jnp.where(e >= 0.0, e, negative_slope * e)
    e = jnp.where(adj_t[:, :, None] > 0.0, e, -1e30)
    m = jnp.max(e, axis=1, keepdims=True)
    p = jnp.exp(e - m) * adj_t[:, :, None]
    alpha = p / jnp.sum(p, axis=1, keepdims=True)
    rst = jnp.einsum('vuh,uhf->vhf', alpha, feat,
                     precision=lax.Precision.HIGHEST)
    if residual:
        rst = rst + h.reshape(n, nh, f)
    rst = jnp.where(rst > 0.0, rst, jnp.exp(rst) - 1.0)  # ELU
    return rst.reshape(n, nh * f)


def gat_reference(x, adj_t, params, *, negative_slope):
    (w0, al0, ar0, w1, al1, ar1, w_out, b_out) = params
    h = _gat_conv_ref(x, adj_t, w0, al0, ar0,
                      negative_slope=negative_slope, residual=False)
    h = _gat_conv_ref(h, adj_t, w1, al1, ar1,
                      negative_slope=negative_slope, residual=True)
    return jnp.dot(h, w_out, precision=lax.Precision.HIGHEST) + b_out[None, :]


# ---------------------------------------------------------------------------
# Demo / self-test
# ---------------------------------------------------------------------------
if __name__ == "__main__":
    # GAT config: num_layers=3 -> [GATConv, GATConv(residual), Linear]
    in_dim = 16
    num_hidden = 8            # per-head output features of each GATConv
    heads = (4, 4, 1)         # only heads[0], heads[1] are used by the forward
    num_classes = 4
    negative_slope = 0.2
    n_nodes = 128
    # TODO(synk): feat_drop / attn_drop implemented as identity (p=0, eval-mode forward).

    key = jax.random.PRNGKey(0)
    k_x, k_adj, k_p = jax.random.split(key, 3)

    x = jax.random.normal(k_x, (n_nodes, in_dim), jnp.float32)
    # Random directed graph with self-loops; adj_t[v, u] = 1 iff edge u -> v.
    adj_t = (jax.random.uniform(k_adj, (n_nodes, n_nodes)) < 0.08)
    adj_t = jnp.maximum(adj_t.astype(jnp.float32),
                        jnp.eye(n_nodes, dtype=jnp.float32))

    params = init_params(k_p, in_dim, num_hidden, heads, num_classes)

    out = gat_pallas(x, adj_t, params,
                     heads=heads[0], f=num_hidden, num_classes=num_classes,
                     negative_slope=negative_slope)
    out = jax.block_until_ready(out)

    ref = gat_reference(x, adj_t, params, negative_slope=negative_slope)
    assert out.shape == (n_nodes, num_classes)
    assert jnp.allclose(out, ref, atol=2e-3, rtol=2e-3), "mismatch vs reference"

    print("KERNEL_OK")
</pallas_src>

<mosaic_0001>
module attributes {stable_mosaic.version = 11 : i64} {
  func.func @_gat_kernel(%arg0: memref<128x128xf32, #tpu.memory_space<vmem>>, %arg1: memref<128x128xf32, #tpu.memory_space<vmem>>, %arg2: memref<128x128xf32, #tpu.memory_space<vmem>>, %arg3: memref<4x32xf32, #tpu.memory_space<vmem>>, %arg4: memref<4x32xf32, #tpu.memory_space<vmem>>, %arg5: memref<128x128xf32, #tpu.memory_space<vmem>>, %arg6: memref<4x32xf32, #tpu.memory_space<vmem>>, %arg7: memref<4x32xf32, #tpu.memory_space<vmem>>, %arg8: memref<128x128xf32, #tpu.memory_space<vmem>>, %arg9: memref<1x128xf32, #tpu.memory_space<vmem>>, %arg10: memref<128x128xf32, #tpu.memory_space<vmem>>, %arg11: memref<128x128xf32, #tpu.memory_space<vmem>>, %arg12: memref<128x128xf32, #tpu.memory_space<vmem>>) attributes {dimension_semantics = [], scalar_prefetch = 0 : i64, scratch_operands = 2 : i64, tpu.core_type = #tpu.core_type<tc>} {
    %c0 = arith.constant 0 : index
    %c0_0 = arith.constant 0 : index
    %0 = vector.load %arg1[%c0, %c0_0] : memref<128x128xf32, #tpu.memory_space<vmem>>, vector<128x128xf32>
    %c0_1 = arith.constant 0 : index
    %c0_2 = arith.constant 0 : index
    %1 = vector.load %arg0[%c0_1, %c0_2] : memref<128x128xf32, #tpu.memory_space<vmem>>, vector<128x128xf32>
    %c0_3 = arith.constant 0 : index
    %c0_4 = arith.constant 0 : index
    %2 = vector.load %arg2[%c0_3, %c0_4] : memref<128x128xf32, #tpu.memory_space<vmem>>, vector<128x128xf32>
    %c0_5 = arith.constant 0 : index
    %c0_6 = arith.constant 0 : index
    %3 = vector.load %arg3[%c0_5, %c0_6] : memref<4x32xf32, #tpu.memory_space<vmem>>, vector<4x32xf32>
    %c0_7 = arith.constant 0 : index
    %c0_8 = arith.constant 0 : index
    %4 = vector.load %arg4[%c0_7, %c0_8] : memref<4x32xf32, #tpu.memory_space<vmem>>, vector<4x32xf32>
    %cst = arith.constant dense<0.000000e+00> : vector<128x128xf32>
    %5 = tpu.matmul %1, %2, %cst {dimension_numbers = #tpu.dot_dimension_numbers<[1], [0], [0], [1], [0, 0, 1, 1], [], []>} : vector<128x128xf32>, vector<128x128xf32>, vector<128x128xf32> -> vector<128x128xf32>
    %6 = vector.extract_strided_slice %5 {offsets = [0, 0], sizes = [128, 32], strides = [1, 1]} : vector<128x128xf32> to vector<128x32xf32>
    %7 = vector.extract_strided_slice %3 {offsets = [0, 0], sizes = [1, 32], strides = [1, 1]} : vector<4x32xf32> to vector<1x32xf32>
    %cst_9 = arith.constant dense<0.000000e+00> : vector<1x128xf32>
    %8 = tpu.matmul %7, %6, %cst_9 {dimension_numbers = #tpu.dot_dimension_numbers<[1], [1], [0], [0], [0, 0, 1, 0], [], []>} : vector<1x32xf32>, vector<128x32xf32>, vector<1x128xf32> -> vector<1x128xf32>
    %9 = vector.extract_strided_slice %4 {offsets = [0, 0], sizes = [1, 32], strides = [1, 1]} : vector<4x32xf32> to vector<1x32xf32>
    %10 = vector.broadcast %9 : vector<1x32xf32> to vector<128x32xf32>
    %11 = arith.mulf %6, %10 : vector<128x32xf32>
    %cst_10 = arith.constant dense<0.000000e+00> : vector<128xf32>
    %12 = vector.multi_reduction <add>, %11, %cst_10 [1] : vector<128x32xf32> to vector<128xf32>
    %13 = vector.shape_cast %12 : vector<128xf32> to vector<128x1xf32>
    %14 = vector.broadcast %13 : vector<128x1xf32> to vector<128x128xf32>
    %15 = vector.broadcast %8 : vector<1x128xf32> to vector<128x128xf32>
    %16 = arith.addf %14, %15 : vector<128x128xf32>
    %cst_11 = arith.constant 0.000000e+00 : f32
    %17 = vector.broadcast %cst_11 : f32 to vector<128x128xf32>
    %18 = arith.cmpf oge, %16, %17 : vector<128x128xf32>
    %cst_12 = arith.constant 2.000000e-01 : f32
    %19 = vector.broadcast %cst_12 : f32 to vector<128x128xf32>
    %20 = arith.mulf %19, %16 : vector<128x128xf32>
    %21 = arith.select %18, %16, %20 : vector<128x128xi1>, vector<128x128xf32>
    %cst_13 = arith.constant 0.000000e+00 : f32
    %22 = vector.broadcast %cst_13 : f32 to vector<128x128xf32>
    %23 = arith.cmpf ogt, %0, %22 : vector<128x128xf32>
    %cst_14 = arith.constant -1.000000e+30 : f32
    %24 = vector.broadcast %cst_14 : f32 to vector<128x128xf32>
    %25 = arith.select %23, %21, %24 : vector<128x128xi1>, vector<128x128xf32>
    %cst_15 = arith.constant dense<0xFF800000> : vector<128xf32>
    %26 = vector.multi_reduction <maximumf>, %25, %cst_15 [1] : vector<128x128xf32> to vector<128xf32>
    %27 = vector.shape_cast %26 : vector<128xf32> to vector<128x1xf32>
    %28 = vector.broadcast %27 : vector<128x1xf32> to vector<128x128xf32>
    %29 = arith.subf %25, %28 : vector<128x128xf32>
    %30 = math.exp %29 : vector<128x128xf32>
    %31 = arith.mulf %30, %0 : vector<128x128xf32>
    %cst_16 = arith.constant dense<0.000000e+00> : vector<128xf32>
    %32 = vector.multi_reduction <add>, %31, %cst_16 [1] : vector<128x128xf32> to vector<128xf32>
    %33 = vector.shape_cast %32 : vector<128xf32> to vector<128x1xf32>
    %34 = vector.broadcast %33 : vector<128x1xf32> to vector<128x128xf32>
    %35 = arith.divf %31, %34 : vector<128x128xf32>
    %cst_17 = arith.constant dense<0.000000e+00> : vector<128x32xf32>
    %36 = tpu.matmul %35, %6, %cst_17 {dimension_numbers = #tpu.dot_dimension_numbers<[1], [0], [0], [1], [0, 0, 1, 1], [], []>} : vector<128x128xf32>, vector<128x32xf32>, vector<128x32xf32> -> vector<128x32xf32>
    %cst_18 = arith.constant 0.000000e+00 : f32
    %37 = vector.broadcast %cst_18 : f32 to vector<128x32xf32>
    %38 = arith.cmpf ogt, %36, %37 : vector<128x32xf32>
    %39 = math.exp %36 : vector<128x32xf32>
    %cst_19 = arith.constant 1.000000e+00 : f32
    %40 = vector.broadcast %cst_19 : f32 to vector<128x32xf32>
    %41 = arith.subf %39, %40 : vector<128x32xf32>
    %42 = arith.select %38, %36, %41 : vector<128x32xi1>, vector<128x32xf32>
    %c0_20 = arith.constant 0 : index
    %c0_21 = arith.constant 0 : index
    %43 = vector.load %arg11[%c0_20, %c0_21] : memref<128x128xf32, #tpu.memory_space<vmem>>, vector<128x32xf32>
    tpu.vector_store %arg11[%c0_20, %c0_21], %42 {strides = array<i32>} : memref<128x128xf32, #tpu.memory_space<vmem>>, vector<128x32xf32>,
    %44 = vector.extract_strided_slice %5 {offsets = [0, 32], sizes = [128, 32], strides = [1, 1]} : vector<128x128xf32> to vector<128x32xf32>
    %45 = vector.extract_strided_slice %3 {offsets = [1, 0], sizes = [1, 32], strides = [1, 1]} : vector<4x32xf32> to vector<1x32xf32>
    %cst_22 = arith.constant dense<0.000000e+00> : vector<1x128xf32>
    %46 = tpu.matmul %45, %44, %cst_22 {dimension_numbers = #tpu.dot_dimension_numbers<[1], [1], [0], [0], [0, 0, 1, 0], [], []>} : vector<1x32xf32>, vector<128x32xf32>, vector<1x128xf32> -> vector<1x128xf32>
    %47 = vector.extract_strided_slice %4 {offsets = [1, 0], sizes = [1, 32], strides = [1, 1]} : vector<4x32xf32> to vector<1x32xf32>
    %48 = vector.broadcast %47 : vector<1x32xf32> to vector<128x32xf32>
    %49 = arith.mulf %44, %48 : vector<128x32xf32>
    %cst_23 = arith.constant dense<0.000000e+00> : vector<128xf32>
    %50 = vector.multi_reduction <add>, %49, %cst_23 [1] : vector<128x32xf32> to vector<128xf32>
    %51 = vector.shape_cast %50 : vector<128xf32> to vector<128x1xf32>
    %52 = vector.broadcast %51 : vector<128x1xf32> to vector<128x128xf32>
    %53 = vector.broadcast %46 : vector<1x128xf32> to vector<128x128xf32>
    %54 = arith.addf %52, %53 : vector<128x128xf32>
    %cst_24 = arith.constant 0.000000e+00 : f32
    %55 = vector.broadcast %cst_24 : f32 to vector<128x128xf32>
    %56 = arith.cmpf oge, %54, %55 : vector<128x128xf32>
    %cst_25 = arith.constant 2.000000e-01 : f32
    %57 = vector.broadcast %cst_25 : f32 to vector<128x128xf32>
    %58 = arith.mulf %57, %54 : vector<128x128xf32>
    %59 = arith.select %56, %54, %58 : vector<128x128xi1>, vector<128x128xf32>
    %cst_26 = arith.constant 0.000000e+00 : f32
    %60 = vector.broadcast %cst_26 : f32 to vector<128x128xf32>
    %61 = arith.cmpf ogt, %0, %60 : vector<128x128xf32>
    %cst_27 = arith.constant -1.000000e+30 : f32
    %62 = vector.broadcast %cst_27 : f32 to vector<128x128xf32>
    %63 = arith.select %61, %59, %62 : vector<128x128xi1>, vector<128x128xf32>
    %cst_28 = arith.constant dense<0xFF800000> : vector<128xf32>
    %64 = vector.multi_reduction <maximumf>, %63, %cst_28 [1] : vector<128x128xf32> to vector<128xf32>
    %65 = vector.shape_cast %64 : vector<128xf32> to vector<128x1xf32>
    %66 = vector.broadcast %65 : vector<128x1xf32> to vector<128x128xf32>
    %67 = arith.subf %63, %66 : vector<128x128xf32>
    %68 = math.exp %67 : vector<128x128xf32>
    %69 = arith.mulf %68, %0 : vector<128x128xf32>
    %cst_29 = arith.constant dense<0.000000e+00> : vector<128xf32>
    %70 = vector.multi_reduction <add>, %69, %cst_29 [1] : vector<128x128xf32> to vector<128xf32>
    %71 = vector.shape_cast %70 : vector<128xf32> to vector<128x1xf32>
    %72 = vector.broadcast %71 : vector<128x1xf32> to vector<128x128xf32>
    %73 = arith.divf %69, %72 : vector<128x128xf32>
    %cst_30 = arith.constant dense<0.000000e+00> : vector<128x32xf32>
    %74 = tpu.matmul %73, %44, %cst_30 {dimension_numbers = #tpu.dot_dimension_numbers<[1], [0], [0], [1], [0, 0, 1, 1], [], []>} : vector<128x128xf32>, vector<128x32xf32>, vector<128x32xf32> -> vector<128x32xf32>
    %cst_31 = arith.constant 0.000000e+00 : f32
    %75 = vector.broadcast %cst_31 : f32 to vector<128x32xf32>
    %76 = arith.cmpf ogt, %74, %75 : vector<128x32xf32>
    %77 = math.exp %74 : vector<128x32xf32>
    %cst_32 = arith.constant 1.000000e+00 : f32
    %78 = vector.broadcast %cst_32 : f32 to vector<128x32xf32>
    %79 = arith.subf %77, %78 : vector<128x32xf32>
    %80 = arith.select %76, %74, %79 : vector<128x32xi1>, vector<128x32xf32>
    %c0_33 = arith.constant 0 : index
    %c32 = arith.constant 32 : index
    %81 = vector.load %arg11[%c0_33, %c32] : memref<128x128xf32, #tpu.memory_space<vmem>>, vector<128x32xf32>
    tpu.vector_store %arg11[%c0_33, %c32], %80 {strides = array<i32>} : memref<128x128xf32, #tpu.memory_space<vmem>>, vector<128x32xf32>,
    %82 = vector.extract_strided_slice %5 {offsets = [0, 64], sizes = [128, 32], strides = [1, 1]} : vector<128x128xf32> to vector<128x32xf32>
    %83 = vector.extract_strided_slice %3 {offsets = [2, 0], sizes = [1, 32], strides = [1, 1]} : vector<4x32xf32> to vector<1x32xf32>
    %cst_34 = arith.constant dense<0.000000e+00> : vector<1x128xf32>
    %84 = tpu.matmul %83, %82, %cst_34 {dimension_numbers = #tpu.dot_dimension_numbers<[1], [1], [0], [0], [0, 0, 1, 0], [], []>} : vector<1x32xf32>, vector<128x32xf32>, vector<1x128xf32> -> vector<1x128xf32>
    %85 = vector.extract_strided_slice %4 {offsets = [2, 0], sizes = [1, 32], strides = [1, 1]} : vector<4x32xf32> to vector<1x32xf32>
    %86 = vector.broadcast %85 : vector<1x32xf32> to vector<128x32xf32>
    %87 = arith.mulf %82, %86 : vector<128x32xf32>
    %cst_35 = arith.constant dense<0.000000e+00> : vector<128xf32>
    %88 = vector.multi_reduction <add>, %87, %cst_35 [1] : vector<128x32xf32> to vector<128xf32>
    %89 = vector.shape_cast %88 : vector<128xf32> to vector<128x1xf32>
    %90 = vector.broadcast %89 : vector<128x1xf32> to vector<128x128xf32>
    %91 = vector.broadcast %84 : vector<1x128xf32> to vector<128x128xf32>
    %92 = arith.addf %90, %91 : vector<128x128xf32>
    %cst_36 = arith.constant 0.000000e+00 : f32
    %93 = vector.broadcast %cst_36 : f32 to vector<128x128xf32>
    %94 = arith.cmpf oge, %92, %93 : vector<128x128xf32>
    %cst_37 = arith.constant 2.000000e-01 : f32
    %95 = vector.broadcast %cst_37 : f32 to vector<128x128xf32>
    %96 = arith.mulf %95, %92 : vector<128x128xf32>
    %97 = arith.select %94, %92, %96 : vector<128x128xi1>, vector<128x128xf32>
    %cst_38 = arith.constant 0.000000e+00 : f32
    %98 = vector.broadcast %cst_38 : f32 to vector<128x128xf32>
    %99 = arith.cmpf ogt, %0, %98 : vector<128x128xf32>
    %cst_39 = arith.constant -1.000000e+30 : f32
    %100 = vector.broadcast %cst_39 : f32 to vector<128x128xf32>
    %101 = arith.select %99, %97, %100 : vector<128x128xi1>, vector<128x128xf32>
    %cst_40 = arith.constant dense<0xFF800000> : vector<128xf32>
    %102 = vector.multi_reduction <maximumf>, %101, %cst_40 [1] : vector<128x128xf32> to vector<128xf32>
    %103 = vector.shape_cast %102 : vector<128xf32> to vector<128x1xf32>
    %104 = vector.broadcast %103 : vector<128x1xf32> to vector<128x128xf32>
    %105 = arith.subf %101, %104 : vector<128x128xf32>
    %106 = math.exp %105 : vector<128x128xf32>
    %107 = arith.mulf %106, %0 : vector<128x128xf32>
    %cst_41 = arith.constant dense<0.000000e+00> : vector<128xf32>
    %108 = vector.multi_reduction <add>, %107, %cst_41 [1] : vector<128x128xf32> to vector<128xf32>
    %109 = vector.shape_cast %108 : vector<128xf32> to vector<128x1xf32>
    %110 = vector.broadcast %109 : vector<128x1xf32> to vector<128x128xf32>
    %111 = arith.divf %107, %110 : vector<128x128xf32>
    %cst_42 = arith.constant dense<0.000000e+00> : vector<128x32xf32>
    %112 = tpu.matmul %111, %82, %cst_42 {dimension_numbers = #tpu.dot_dimension_numbers<[1], [0], [0], [1], [0, 0, 1, 1], [], []>} : vector<128x128xf32>, vector<128x32xf32>, vector<128x32xf32> -> vector<128x32xf32>
    %cst_43 = arith.constant 0.000000e+00 : f32
    %113 = vector.broadcast %cst_43 : f32 to vector<128x32xf32>
    %114 = arith.cmpf ogt, %112, %113 : vector<128x32xf32>
    %115 = math.exp %112 : vector<128x32xf32>
    %cst_44 = arith.constant 1.000000e+00 : f32
    %116 = vector.broadcast %cst_44 : f32 to vector<128x32xf32>
    %117 = arith.subf %115, %116 : vector<128x32xf32>
    %118 = arith.select %114, %112, %117 : vector<128x32xi1>, vector<128x32xf32>
    %c0_45 = arith.constant 0 : index
    %c64 = arith.constant 64 : index
    %119 = vector.load %arg11[%c0_45, %c64] : memref<128x128xf32, #tpu.memory_space<vmem>>, vector<128x32xf32>
    tpu.vector_store %arg11[%c0_45, %c64], %118 {strides = array<i32>} : memref<128x128xf32, #tpu.memory_space<vmem>>, vector<128x32xf32>,
    %120 = vector.extract_strided_slice %5 {offsets = [0, 96], sizes = [128, 32], strides = [1, 1]} : vector<128x128xf32> to vector<128x32xf32>
    %121 = vector.extract_strided_slice %3 {offsets = [3, 0], sizes = [1, 32], strides = [1, 1]} : vector<4x32xf32> to vector<1x32xf32>
    %cst_46 = arith.constant dense<0.000000e+00> : vector<1x128xf32>
    %122 = tpu.matmul %121, %120, %cst_46 {dimension_numbers = #tpu.dot_dimension_numbers<[1], [1], [0], [0], [0, 0, 1, 0], [], []>} : vector<1x32xf32>, vector<128x32xf32>, vector<1x128xf32> -> vector<1x128xf32>
    %123 = vector.extract_strided_slice %4 {offsets = [3, 0], sizes = [1, 32], strides = [1, 1]} : vector<4x32xf32> to vector<1x32xf32>
    %124 = vector.broadcast %123 : vector<1x32xf32> to vector<128x32xf32>
    %125 = arith.mulf %120, %124 : vector<128x32xf32>
    %cst_47 = arith.constant dense<0.000000e+00> : vector<128xf32>
    %126 = vector.multi_reduction <add>, %125, %cst_47 [1] : vector<128x32xf32> to vector<128xf32>
    %127 = vector.shape_cast %126 : vector<128xf32> to vector<128x1xf32>
    %128 = vector.broadcast %127 : vector<128x1xf32> to vector<128x128xf32>
    %129 = vector.broadcast %122 : vector<1x128xf32> to vector<128x128xf32>
    %130 = arith.addf %128, %129 : vector<128x128xf32>
    %cst_48 = arith.constant 0.000000e+00 : f32
    %131 = vector.broadcast %cst_48 : f32 to vector<128x128xf32>
    %132 = arith.cmpf oge, %130, %131 : vector<128x128xf32>
    %cst_49 = arith.constant 2.000000e-01 : f32
    %133 = vector.broadcast %cst_49 : f32 to vector<128x128xf32>
    %134 = arith.mulf %133, %130 : vector<128x128xf32>
    %135 = arith.select %132, %130, %134 : vector<128x128xi1>, vector<128x128xf32>
    %cst_50 = arith.constant 0.000000e+00 : f32
    %136 = vector.broadcast %cst_50 : f32 to vector<128x128xf32>
    %137 = arith.cmpf ogt, %0, %136 : vector<128x128xf32>
    %cst_51 = arith.constant -1.000000e+30 : f32
    %138 = vector.broadcast %cst_51 : f32 to vector<128x128xf32>
    %139 = arith.select %137, %135, %138 : vector<128x128xi1>, vector<128x128xf32>
    %cst_52 = arith.constant dense<0xFF800000> : vector<128xf32>
    %140 = vector.multi_reduction <maximumf>, %139, %cst_52 [1] : vector<128x128xf32> to vector<128xf32>
    %141 = vector.shape_cast %140 : vector<128xf32> to vector<128x1xf32>
    %142 = vector.broadcast %141 : vector<128x1xf32> to vector<128x128xf32>
    %143 = arith.subf %139, %142 : vector<128x128xf32>
    %144 = math.exp %143 : vector<128x128xf32>
    %145 = arith.mulf %144, %0 : vector<128x128xf32>
    %cst_53 = arith.constant dense<0.000000e+00> : vector<128xf32>
    %146 = vector.multi_reduction <add>, %145, %cst_53 [1] : vector<128x128xf32> to vector<128xf32>
    %147 = vector.shape_cast %146 : vector<128xf32> to vector<128x1xf32>
    %148 = vector.broadcast %147 : vector<128x1xf32> to vector<128x128xf32>
    %149 = arith.divf %145, %148 : vector<128x128xf32>
    %cst_54 = arith.constant dense<0.000000e+00> : vector<128x32xf32>
    %150 = tpu.matmul %149, %120, %cst_54 {dimension_numbers = #tpu.dot_dimension_numbers<[1], [0], [0], [1], [0, 0, 1, 1], [], []>} : vector<128x128xf32>, vector<128x32xf32>, vector<128x32xf32> -> vector<128x32xf32>
    %cst_55 = arith.constant 0.000000e+00 : f32
    %151 = vector.broadcast %cst_55 : f32 to vector<128x32xf32>
    %152 = arith.cmpf ogt, %150, %151 : vector<128x32xf32>
    %153 = math.exp %150 : vector<128x32xf32>
    %cst_56 = arith.constant 1.000000e+00 : f32
    %154 = vector.broadcast %cst_56 : f32 to vector<128x32xf32>
    %155 = arith.subf %153, %154 : vector<128x32xf32>
    %156 = arith.select %152, %150, %155 : vector<128x32xi1>, vector<128x32xf32>
    %c0_57 = arith.constant 0 : index
    %c96 = arith.constant 96 : index
    %157 = vector.load %arg11[%c0_57, %c96] : memref<128x128xf32, #tpu.memory_space<vmem>>, vector<128x32xf32>
    tpu.vector_store %arg11[%c0_57, %c96], %156 {strides = array<i32>} : memref<128x128xf32, #tpu.memory_space<vmem>>, vector<128x32xf32>,
    %c0_58 = arith.constant 0 : index
    %c0_59 = arith.constant 0 : index
    %158 = vector.load %arg11[%c0_58, %c0_59] : memref<128x128xf32, #tpu.memory_space<vmem>>, vector<128x128xf32>
    %c0_60 = arith.constant 0 : index
    %c0_61 = arith.constant 0 : index
    %159 = vector.load %arg5[%c0_60, %c0_61] : memref<128x128xf32, #tpu.memory_space<vmem>>, vector<128x128xf32>
    %c0_62 = arith.constant 0 : index
    %c0_63 = arith.constant 0 : index
    %160 = vector.load %arg6[%c0_62, %c0_63] : memref<4x32xf32, #tpu.memory_space<vmem>>, vector<4x32xf32>
    %c0_64 = arith.constant 0 : index
    %c0_65 = arith.constant 0 : index
    %161 = vector.load %arg7[%c0_64, %c0_65] : memref<4x32xf32, #tpu.memory_space<vmem>>, vector<4x32xf32>
    %cst_66 = arith.constant dense<0.000000e+00> : vector<128x128xf32>
    %162 = tpu.matmul %158, %159, %cst_66 {dimension_numbers = #tpu.dot_dimension_numbers<[1], [0], [0], [1], [0, 0, 1, 1], [], []>} : vector<128x128xf32>, vector<128x128xf32>, vector<128x128xf32> -> vector<128x128xf32>
    %163 = vector.extract_strided_slice %162 {offsets = [0, 0], sizes = [128, 32], strides = [1, 1]} : vector<128x128xf32> to vector<128x32xf32>
    %164 = vector.extract_strided_slice %160 {offsets = [0, 0], sizes = [1, 32], strides = [1, 1]} : vector<4x32xf32> to vector<1x32xf32>
    %cst_67 = arith.constant dense<0.000000e+00> : vector<1x128xf32>
    %165 = tpu.matmul %164, %163, %cst_67 {dimension_numbers = #tpu.dot_dimension_numbers<[1], [1], [0], [0], [0, 0, 1, 0], [], []>} : vector<1x32xf32>, vector<128x32xf32>, vector<1x128xf32> -> vector<1x128xf32>
    %166 = vector.extract_strided_slice %161 {offsets = [0, 0], sizes = [1, 32], strides = [1, 1]} : vector<4x32xf32> to vector<1x32xf32>
    %167 = vector.broadcast %166 : vector<1x32xf32> to vector<128x32xf32>
    %168 = arith.mulf %163, %167 : vector<128x32xf32>
    %cst_68 = arith.constant dense<0.000000e+00> : vector<128xf32>
    %169 = vector.multi_reduction <add>, %168, %cst_68 [1] : vector<128x32xf32> to vector<128xf32>
    %170 = vector.shape_cast %169 : vector<128xf32> to vector<128x1xf32>
    %171 = vector.broadcast %170 : vector<128x1xf32> to vector<128x128xf32>
    %172 = vector.broadcast %165 : vector<1x128xf32> to vector<128x128xf32>
    %173 = arith.addf %171, %172 : vector<128x128xf32>
    %cst_69 = arith.constant 0.000000e+00 : f32
    %174 = vector.broadcast %cst_69 : f32 to vector<128x128xf32>
    %175 = arith.cmpf oge, %173, %174 : vector<128x128xf32>
    %cst_70 = arith.constant 2.000000e-01 : f32
    %176 = vector.broadcast %cst_70 : f32 to vector<128x128xf32>
    %177 = arith.mulf %176, %173 : vector<128x128xf32>
    %178 = arith.select %175, %173, %177 : vector<128x128xi1>, vector<128x128xf32>
    %cst_71 = arith.constant 0.000000e+00 : f32
    %179 = vector.broadcast %cst_71 : f32 to vector<128x128xf32>
    %180 = arith.cmpf ogt, %0, %179 : vector<128x128xf32>
    %cst_72 = arith.constant -1.000000e+30 : f32
    %181 = vector.broadcast %cst_72 : f32 to vector<128x128xf32>
    %182 = arith.select %180, %178, %181 : vector<128x128xi1>, vector<128x128xf32>
    %cst_73 = arith.constant dense<0xFF800000> : vector<128xf32>
    %183 = vector.multi_reduction <maximumf>, %182, %cst_73 [1] : vector<128x128xf32> to vector<128xf32>
    %184 = vector.shape_cast %183 : vector<128xf32> to vector<128x1xf32>
    %185 = vector.broadcast %184 : vector<128x1xf32> to vector<128x128xf32>
    %186 = arith.subf %182, %185 : vector<128x128xf32>
    %187 = math.exp %186 : vector<128x128xf32>
    %188 = arith.mulf %187, %0 : vector<128x128xf32>
    %cst_74 = arith.constant dense<0.000000e+00> : vector<128xf32>
    %189 = vector.multi_reduction <add>, %188, %cst_74 [1] : vector<128x128xf32> to vector<128xf32>
    %190 = vector.shape_cast %189 : vector<128xf32> to vector<128x1xf32>
    %191 = vector.broadcast %190 : vector<128x1xf32> to vector<128x128xf32>
    %192 = arith.divf %188, %191 : vector<128x128xf32>
    %cst_75 = arith.constant dense<0.000000e+00> : vector<128x32xf32>
    %193 = tpu.matmul %192, %163, %cst_75 {dimension_numbers = #tpu.dot_dimension_numbers<[1], [0], [0], [1], [0, 0, 1, 1], [], []>} : vector<128x128xf32>, vector<128x32xf32>, vector<128x32xf32> -> vector<128x32xf32>
    %194 = vector.extract_strided_slice %158 {offsets = [0, 0], sizes = [128, 32], strides = [1, 1]} : vector<128x128xf32> to vector<128x32xf32>
    %195 = arith.addf %193, %194 : vector<128x32xf32>
    %cst_76 = arith.constant 0.000000e+00 : f32
    %196 = vector.broadcast %cst_76 : f32 to vector<128x32xf32>
    %197 = arith.cmpf ogt, %195, %196 : vector<128x32xf32>
    %198 = math.exp %195 : vector<128x32xf32>
    %cst_77 = arith.constant 1.000000e+00 : f32
    %199 = vector.broadcast %cst_77 : f32 to vector<128x32xf32>
    %200 = arith.subf %198, %199 : vector<128x32xf32>
    %201 = arith.select %197, %195, %200 : vector<128x32xi1>, vector<128x32xf32>
    %c0_78 = arith.constant 0 : index
    %c0_79 = arith.constant 0 : index
    %202 = vector.load %arg12[%c0_78, %c0_79] : memref<128x128xf32, #tpu.memory_space<vmem>>, vector<128x32xf32>
    tpu.vector_store %arg12[%c0_78, %c0_79], %201 {strides = array<i32>} : memref<128x128xf32, #tpu.memory_space<vmem>>, vector<128x32xf32>,
    %203 = vector.extract_strided_slice %162 {offsets = [0, 32], sizes = [128, 32], strides = [1, 1]} : vector<128x128xf32> to vector<128x32xf32>
    %204 = vector.extract_strided_slice %160 {offsets = [1, 0], sizes = [1, 32], strides = [1, 1]} : vector<4x32xf32> to vector<1x32xf32>
    %cst_80 = arith.constant dense<0.000000e+00> : vector<1x128xf32>
    %205 = tpu.matmul %204, %203, %cst_80 {dimension_numbers = #tpu.dot_dimension_numbers<[1], [1], [0], [0], [0, 0, 1, 0], [], []>} : vector<1x32xf32>, vector<128x32xf32>, vector<1x128xf32> -> vector<1x128xf32>
    %206 = vector.extract_strided_slice %161 {offsets = [1, 0], sizes = [1, 32], strides = [1, 1]} : vector<4x32xf32> to vector<1x32xf32>
    %207 = vector.broadcast %206 : vector<1x32xf32> to vector<128x32xf32>
    %208 = arith.mulf %203, %207 : vector<128x32xf32>
    %cst_81 = arith.constant dense<0.000000e+00> : vector<128xf32>
    %209 = vector.multi_reduction <add>, %208, %cst_81 [1] : vector<128x32xf32> to vector<128xf32>
    %210 = vector.shape_cast %209 : vector<128xf32> to vector<128x1xf32>
    %211 = vector.broadcast %210 : vector<128x1xf32> to vector<128x128xf32>
    %212 = vector.broadcast %205 : vector<1x128xf32> to vector<128x128xf32>
    %213 = arith.addf %211, %212 : vector<128x128xf32>
    %cst_82 = arith.constant 0.000000e+00 : f32
    %214 = vector.broadcast %cst_82 : f32 to vector<128x128xf32>
    %215 = arith.cmpf oge, %213, %214 : vector<128x128xf32>
    %cst_83 = arith.constant 2.000000e-01 : f32
    %216 = vector.broadcast %cst_83 : f32 to vector<128x128xf32>
    %217 = arith.mulf %216, %213 : vector<128x128xf32>
    %218 = arith.select %215, %213, %217 : vector<128x128xi1>, vector<128x128xf32>
    %cst_84 = arith.constant 0.000000e+00 : f32
    %219 = vector.broadcast %cst_84 : f32 to vector<128x128xf32>
    %220 = arith.cmpf ogt, %0, %219 : vector<128x128xf32>
    %cst_85 = arith.constant -1.000000e+30 : f32
    %221 = vector.broadcast %cst_85 : f32 to vector<128x128xf32>
    %222 = arith.select %220, %218, %221 : vector<128x128xi1>, vector<128x128xf32>
    %cst_86 = arith.constant dense<0xFF800000> : vector<128xf32>
    %223 = vector.multi_reduction <maximumf>, %222, %cst_86 [1] : vector<128x128xf32> to vector<128xf32>
    %224 = vector.shape_cast %223 : vector<128xf32> to vector<128x1xf32>
    %225 = vector.broadcast %224 : vector<128x1xf32> to vector<128x128xf32>
    %226 = arith.subf %222, %225 : vector<128x128xf32>
    %227 = math.exp %226 : vector<128x128xf32>
    %228 = arith.mulf %227, %0 : vector<128x128xf32>
    %cst_87 = arith.constant dense<0.000000e+00> : vector<128xf32>
    %229 = vector.multi_reduction <add>, %228, %cst_87 [1] : vector<128x128xf32> to vector<128xf32>
    %230 = vector.shape_cast %229 : vector<128xf32> to vector<128x1xf32>
    %231 = vector.broadcast %230 : vector<128x1xf32> to vector<128x128xf32>
    %232 = arith.divf %228, %231 : vector<128x128xf32>
    %cst_88 = arith.constant dense<0.000000e+00> : vector<128x32xf32>
    %233 = tpu.matmul %232, %203, %cst_88 {dimension_numbers = #tpu.dot_dimension_numbers<[1], [0], [0], [1], [0, 0, 1, 1], [], []>} : vector<128x128xf32>, vector<128x32xf32>, vector<128x32xf32> -> vector<128x32xf32>
    %234 = vector.extract_strided_slice %158 {offsets = [0, 32], sizes = [128, 32], strides = [1, 1]} : vector<128x128xf32> to vector<128x32xf32>
    %235 = arith.addf %233, %234 : vector<128x32xf32>
    %cst_89 = arith.constant 0.000000e+00 : f32
    %236 = vector.broadcast %cst_89 : f32 to vector<128x32xf32>
    %237 = arith.cmpf ogt, %235, %236 : vector<128x32xf32>
    %238 = math.exp %235 : vector<128x32xf32>
    %cst_90 = arith.constant 1.000000e+00 : f32
    %239 = vector.broadcast %cst_90 : f32 to vector<128x32xf32>
    %240 = arith.subf %238, %239 : vector<128x32xf32>
    %241 = arith.select %237, %235, %240 : vector<128x32xi1>, vector<128x32xf32>
    %c0_91 = arith.constant 0 : index
    %c32_92 = arith.constant 32 : index
    %242 = vector.load %arg12[%c0_91, %c32_92] : memref<128x128xf32, #tpu.memory_space<vmem>>, vector<128x32xf32>
    tpu.vector_store %arg12[%c0_91, %c32_92], %241 {strides = array<i32>} : memref<128x128xf32, #tpu.memory_space<vmem>>, vector<128x32xf32>,
    %243 = vector.extract_strided_slice %162 {offsets = [0, 64], sizes = [128, 32], strides = [1, 1]} : vector<128x128xf32> to vector<128x32xf32>
    %244 = vector.extract_strided_slice %160 {offsets = [2, 0], sizes = [1, 32], strides = [1, 1]} : vector<4x32xf32> to vector<1x32xf32>
    %cst_93 = arith.constant dense<0.000000e+00> : vector<1x128xf32>
    %245 = tpu.matmul %244, %243, %cst_93 {dimension_numbers = #tpu.dot_dimension_numbers<[1], [1], [0], [0], [0, 0, 1, 0], [], []>} : vector<1x32xf32>, vector<128x32xf32>, vector<1x128xf32> -> vector<1x128xf32>
    %246 = vector.extract_strided_slice %161 {offsets = [2, 0], sizes = [1, 32], strides = [1, 1]} : vector<4x32xf32> to vector<1x32xf32>
    %247 = vector.broadcast %246 : vector<1x32xf32> to vector<128x32xf32>
    %248 = arith.mulf %243, %247 : vector<128x32xf32>
    %cst_94 = arith.constant dense<0.000000e+00> : vector<128xf32>
    %249 = vector.multi_reduction <add>, %248, %cst_94 [1] : vector<128x32xf32> to vector<128xf32>
    %250 = vector.shape_cast %249 : vector<128xf32> to vector<128x1xf32>
    %251 = vector.broadcast %250 : vector<128x1xf32> to vector<128x128xf32>
    %252 = vector.broadcast %245 : vector<1x128xf32> to vector<128x128xf32>
    %253 = arith.addf %251, %252 : vector<128x128xf32>
    %cst_95 = arith.constant 0.000000e+00 : f32
    %254 = vector.broadcast %cst_95 : f32 to vector<128x128xf32>
    %255 = arith.cmpf oge, %253, %254 : vector<128x128xf32>
    %cst_96 = arith.constant 2.000000e-01 : f32
    %256 = vector.broadcast %cst_96 : f32 to vector<128x128xf32>
    %257 = arith.mulf %256, %253 : vector<128x128xf32>
    %258 = arith.select %255, %253, %257 : vector<128x128xi1>, vector<128x128xf32>
    %cst_97 = arith.constant 0.000000e+00 : f32
    %259 = vector.broadcast %cst_97 : f32 to vector<128x128xf32>
    %260 = arith.cmpf ogt, %0, %259 : vector<128x128xf32>
    %cst_98 = arith.constant -1.000000e+30 : f32
    %261 = vector.broadcast %cst_98 : f32 to vector<128x128xf32>
    %262 = arith.select %260, %258, %261 : vector<128x128xi1>, vector<128x128xf32>
    %cst_99 = arith.constant dense<0xFF800000> : vector<128xf32>
    %263 = vector.multi_reduction <maximumf>, %262, %cst_99 [1] : vector<128x128xf32> to vector<128xf32>
    %264 = vector.shape_cast %263 : vector<128xf32> to vector<128x1xf32>
    %265 = vector.broadcast %264 : vector<128x1xf32> to vector<128x128xf32>
    %266 = arith.subf %262, %265 : vector<128x128xf32>
    %267 = math.exp %266 : vector<128x128xf32>
    %268 = arith.mulf %267, %0 : vector<128x128xf32>
    %cst_100 = arith.constant dense<0.000000e+00> : vector<128xf32>
    %269 = vector.multi_reduction <add>, %268, %cst_100 [1] : vector<128x128xf32> to vector<128xf32>
    %270 = vector.shape_cast %269 : vector<128xf32> to vector<128x1xf32>
    %271 = vector.broadcast %270 : vector<128x1xf32> to vector<128x128xf32>
    %272 = arith.divf %268, %271 : vector<128x128xf32>
    %cst_101 = arith.constant dense<0.000000e+00> : vector<128x32xf32>
    %273 = tpu.matmul %272, %243, %cst_101 {dimension_numbers = #tpu.dot_dimension_numbers<[1], [0], [0], [1], [0, 0, 1, 1], [], []>} : vector<128x128xf32>, vector<128x32xf32>, vector<128x32xf32> -> vector<128x32xf32>
    %274 = vector.extract_strided_slice %158 {offsets = [0, 64], sizes = [128, 32], strides = [1, 1]} : vector<128x128xf32> to vector<128x32xf32>
    %275 = arith.addf %273, %274 : vector<128x32xf32>
    %cst_102 = arith.constant 0.000000e+00 : f32
    %276 = vector.broadcast %cst_102 : f32 to vector<128x32xf32>
    %277 = arith.cmpf ogt, %275, %276 : vector<128x32xf32>
    %278 = math.exp %275 : vector<128x32xf32>
    %cst_103 = arith.constant 1.000000e+00 : f32
    %279 = vector.broadcast %cst_103 : f32 to vector<128x32xf32>
    %280 = arith.subf %278, %279 : vector<128x32xf32>
    %281 = arith.select %277, %275, %280 : vector<128x32xi1>, vector<128x32xf32>
    %c0_104 = arith.constant 0 : index
    %c64_105 = arith.constant 64 : index
    %282 = vector.load %arg12[%c0_104, %c64_105] : memref<128x128xf32, #tpu.memory_space<vmem>>, vector<128x32xf32>
    tpu.vector_store %arg12[%c0_104, %c64_105], %281 {strides = array<i32>} : memref<128x128xf32, #tpu.memory_space<vmem>>, vector<128x32xf32>,
    %283 = vector.extract_strided_slice %162 {offsets = [0, 96], sizes = [128, 32], strides = [1, 1]} : vector<128x128xf32> to vector<128x32xf32>
    %284 = vector.extract_strided_slice %160 {offsets = [3, 0], sizes = [1, 32], strides = [1, 1]} : vector<4x32xf32> to vector<1x32xf32>
    %cst_106 = arith.constant dense<0.000000e+00> : vector<1x128xf32>
    %285 = tpu.matmul %284, %283, %cst_106 {dimension_numbers = #tpu.dot_dimension_numbers<[1], [1], [0], [0], [0, 0, 1, 0], [], []>} : vector<1x32xf32>, vector<128x32xf32>, vector<1x128xf32> -> vector<1x128xf32>
    %286 = vector.extract_strided_slice %161 {offsets = [3, 0], sizes = [1, 32], strides = [1, 1]} : vector<4x32xf32> to vector<1x32xf32>
    %287 = vector.broadcast %286 : vector<1x32xf32> to vector<128x32xf32>
    %288 = arith.mulf %283, %287 : vector<128x32xf32>
    %cst_107 = arith.constant dense<0.000000e+00> : vector<128xf32>
    %289 = vector.multi_reduction <add>, %288, %cst_107 [1] : vector<128x32xf32> to vector<128xf32>
    %290 = vector.shape_cast %289 : vector<128xf32> to vector<128x1xf32>
    %291 = vector.broadcast %290 : vector<128x1xf32> to vector<128x128xf32>
    %292 = vector.broadcast %285 : vector<1x128xf32> to vector<128x128xf32>
    %293 = arith.addf %291, %292 : vector<128x128xf32>
    %cst_108 = arith.constant 0.000000e+00 : f32
    %294 = vector.broadcast %cst_108 : f32 to vector<128x128xf32>
    %295 = arith.cmpf oge, %293, %294 : vector<128x128xf32>
    %cst_109 = arith.constant 2.000000e-01 : f32
    %296 = vector.broadcast %cst_109 : f32 to vector<128x128xf32>
    %297 = arith.mulf %296, %293 : vector<128x128xf32>
    %298 = arith.select %295, %293, %297 : vector<128x128xi1>, vector<128x128xf32>
    %cst_110 = arith.constant 0.000000e+00 : f32
    %299 = vector.broadcast %cst_110 : f32 to vector<128x128xf32>
    %300 = arith.cmpf ogt, %0, %299 : vector<128x128xf32>
    %cst_111 = arith.constant -1.000000e+30 : f32
    %301 = vector.broadcast %cst_111 : f32 to vector<128x128xf32>
    %302 = arith.select %300, %298, %301 : vector<128x128xi1>, vector<128x128xf32>
    %cst_112 = arith.constant dense<0xFF800000> : vector<128xf32>
    %303 = vector.multi_reduction <maximumf>, %302, %cst_112 [1] : vector<128x128xf32> to vector<128xf32>
    %304 = vector.shape_cast %303 : vector<128xf32> to vector<128x1xf32>
    %305 = vector.broadcast %304 : vector<128x1xf32> to vector<128x128xf32>
    %306 = arith.subf %302, %305 : vector<128x128xf32>
    %307 = math.exp %306 : vector<128x128xf32>
    %308 = arith.mulf %307, %0 : vector<128x128xf32>
    %cst_113 = arith.constant dense<0.000000e+00> : vector<128xf32>
    %309 = vector.multi_reduction <add>, %308, %cst_113 [1] : vector<128x128xf32> to vector<128xf32>
    %310 = vector.shape_cast %309 : vector<128xf32> to vector<128x1xf32>
    %311 = vector.broadcast %310 : vector<128x1xf32> to vector<128x128xf32>
    %312 = arith.divf %308, %311 : vector<128x128xf32>
    %cst_114 = arith.constant dense<0.000000e+00> : vector<128x32xf32>
    %313 = tpu.matmul %312, %283, %cst_114 {dimension_numbers = #tpu.dot_dimension_numbers<[1], [0], [0], [1], [0, 0, 1, 1], [], []>} : vector<128x128xf32>, vector<128x32xf32>, vector<128x32xf32> -> vector<128x32xf32>
    %314 = vector.extract_strided_slice %158 {offsets = [0, 96], sizes = [128, 32], strides = [1, 1]} : vector<128x128xf32> to vector<128x32xf32>
    %315 = arith.addf %313, %314 : vector<128x32xf32>
    %cst_115 = arith.constant 0.000000e+00 : f32
    %316 = vector.broadcast %cst_115 : f32 to vector<128x32xf32>
    %317 = arith.cmpf ogt, %315, %316 : vector<128x32xf32>
    %318 = math.exp %315 : vector<128x32xf32>
    %cst_116 = arith.constant 1.000000e+00 : f32
    %319 = vector.broadcast %cst_116 : f32 to vector<128x32xf32>
    %320 = arith.subf %318, %319 : vector<128x32xf32>
    %321 = arith.select %317, %315, %320 : vector<128x32xi1>, vector<128x32xf32>
    %c0_117 = arith.constant 0 : index
    %c96_118 = arith.constant 96 : index
    %322 = vector.load %arg12[%c0_117, %c96_118] : memref<128x128xf32, #tpu.memory_space<vmem>>, vector<128x32xf32>
    tpu.vector_store %arg12[%c0_117, %c96_118], %321 {strides = array<i32>} : memref<128x128xf32, #tpu.memory_space<vmem>>, vector<128x32xf32>,
    %c0_119 = arith.constant 0 : index
    %c0_120 = arith.constant 0 : index
    %323 = vector.load %arg12[%c0_119, %c0_120] : memref<128x128xf32, #tpu.memory_space<vmem>>, vector<128x128xf32>
    %c0_121 = arith.constant 0 : index
    %c0_122 = arith.constant 0 : index
    %324 = vector.load %arg8[%c0_121, %c0_122] : memref<128x128xf32, #tpu.memory_space<vmem>>, vector<128x128xf32>
    %cst_123 = arith.constant dense<0.000000e+00> : vector<128x128xf32>
    %325 = tpu.matmul %323, %324, %cst_123 {dimension_numbers = #tpu.dot_dimension_numbers<[1], [0], [0], [1], [0, 0, 1, 1], [], []>} : vector<128x128xf32>, vector<128x128xf32>, vector<128x128xf32> -> vector<128x128xf32>
    %c0_124 = arith.constant 0 : index
    %c0_125 = arith.constant 0 : index
    %326 = vector.load %arg9[%c0_124, %c0_125] : memref<1x128xf32, #tpu.memory_space<vmem>>, vector<1x128xf32>
    %327 = vector.broadcast %326 : vector<1x128xf32> to vector<128x128xf32>
    %328 = arith.addf %325, %327 : vector<128x128xf32>
    %c0_126 = arith.constant 0 : index
    %c0_127 = arith.constant 0 : index
    %329 = vector.load %arg10[%c0_126, %c0_127] : memref<128x128xf32, #tpu.memory_space<vmem>>, vector<128x128xf32>
    tpu.vector_store %arg10[%c0_126, %c0_127], %328 {strides = array<i32>} : memref<128x128xf32, #tpu.memory_space<vmem>>, vector<128x128xf32>,
    return
  }
}

</mosaic_0001>

<llo_original>
// kernel: tpu_custom_call.1
$region0: #{tpu_custom_call.1}
  #allocation0 [shape = 'u32[]', space=smem, size = 0x4, offset = 0x4, fixed_abs, tag = 'smem constant byte address 0x4 - core index']
  #allocation1 [shape = 'u32[144,128]{1,0:T(1,128)}', space=vmem, size = 0x12000, scoped, tag = 'internal scratch']
  #allocation2 [shape = 'f32[128,128]{1,0:T(8,128)}', space=vmem, size = 0x10000, scoped, tag = 'scratch operand']
  #allocation3 [shape = 'f32[128,128]{1,0:T(8,128)}', space=vmem, size = 0x10000, scoped, tag = 'scratch operand']
  %s0 = inlined_call_operand.hbm [shape: f32[128,128], index: 0, kind: input, shape index: {}]
  %s1 = inlined_call_operand.hbm [shape: f32[128,128], index: 1, kind: input, shape index: {}]
  %s2 = inlined_call_operand.hbm [shape: f32[128,128], index: 2, kind: input, shape index: {}]
  %s3 = inlined_call_operand.vmem [shape: f32[4,32], index: 3, kind: input, shape index: {}]
  %s4 = inlined_call_operand.vmem [shape: f32[4,32], index: 4, kind: input, shape index: {}]
  %s5 = inlined_call_operand.hbm [shape: f32[128,128], index: 5, kind: input, shape index: {}]
  %s6 = inlined_call_operand.vmem [shape: f32[4,32], index: 6, kind: input, shape index: {}]
  %s7 = inlined_call_operand.vmem [shape: f32[4,32], index: 7, kind: input, shape index: {}]
  %s8 = inlined_call_operand.hbm [shape: f32[128,128], index: 8, kind: input, shape index: {}]
  %s9 = inlined_call_operand.vmem [shape: f32[1,128], index: 9, kind: input, shape index: {}]
  %s10 = inlined_call_operand.hbm [shape: f32[128,128], index: 10, kind: output, shape index: {}]
  %s11 = sld [smem:[#allocation0]]
  $region70: #{tpu_custom_call.1} parent=0
    _
  %s13 = ssub.s32 1, %s11
  %s14 = scalar_select 0, %s13, %s11
  $region1: #{tpu_custom_call.1} parent=0
    #allocation4 [shape = 'u8[65536]{0}', space=vmem, size = 0x10000, scoped, tag = 'input window, operand 0, single buffered']
    #allocation5 [shape = 's32[1]{0}', space=sflag, size = 0x4, scoped, tag = 'scoped memory for tpu_custom_call.1']
    #allocation6 [shape = 's32[1]{0}', space=sflag, size = 0x4, scoped, tag = 'scoped memory for tpu_custom_call.1']
    #allocation7 [shape = 'u8[65536]{0}', space=vmem, size = 0x10000, scoped, tag = 'input window, operand 1, single buffered']
    #allocation8 [shape = 's32[1]{0}', space=sflag, size = 0x4, scoped, tag = 'scoped memory for tpu_custom_call.1']
    #allocation9 [shape = 'u8[65536]{0}', space=vmem, size = 0x10000, scoped, tag = 'input window, operand 2, single buffered']
    #allocation10 [shape = 'u8[65536]{0}', space=vmem, size = 0x10000, scoped, tag = 'input window, operand 5, single buffered']
    #allocation11 [shape = 's32[1]{0}', space=sflag, size = 0x4, scoped, tag = 'scoped memory for tpu_custom_call.1']
    #allocation12 [shape = 'u8[65536]{0}', space=vmem, size = 0x10000, scoped, tag = 'input window, operand 8, single buffered']
    #allocation13 [shape = 'u8[65536]{0}', space=vmem, size = 0x10000, scoped, tag = 'output window, operand 0, single buffered']
    %15 = vsyncpa [#allocation5], 0
    %16 = vsyncpa [#allocation8], 0
    %17 = vsyncpa [#allocation11], 0
    %18 = vsyncpa [#allocation6], 0
    // Predicated region
    $region2: #{tpu_custom_call.1} parent=1 // pred_check
      _
    $region3: #{tpu_custom_call.1} parent=1 // pred_check_branch
      %20 = sbr.rel (0) target = $region5
    $region4: #{tpu_custom_call.1} parent=1 // pred_region
      %s22 = ssub.s32 2048, 2048
      %23 = vsyncadd [#allocation5], %s22
      %s24 = sshll.u32 [#allocation4], 4
      %s25 = int_to_ptr.vmem [resolvable:$true] %s24
      %30 = dma.hbm_to_vmem [thread:$0]  %s0, 2048, %s25, [#allocation5], 128, 128, 8
    $region5: #{tpu_custom_call.1} parent=1 // pred_fallthru
      _
    // Predicated region
    $region6: #{tpu_custom_call.1} parent=1 // pred_check
      _
    $region7: #{tpu_custom_call.1} parent=1 // pred_check_branch
      %32 = sbr.rel (0) target = $region9
    $region8: #{tpu_custom_call.1} parent=1 // pred_region
      %s34 = ssub.s32 2048, 2048
      %35 = vsyncadd [#allocation8], %s34
      %s36 = sshll.u32 [#allocation7], 4
      %s37 = int_to_ptr.vmem [resolvable:$true] %s36
      %42 = dma.hbm_to_vmem [thread:$0]  %s1, 2048, %s37, [#allocation8], 128, 128, 8
    $region9: #{tpu_custom_call.1} parent=1 // pred_fallthru
      _
    // Predicated region
    $region10: #{tpu_custom_call.1} parent=1 // pred_check
      _
    $region11: #{tpu_custom_call.1} parent=1 // pred_check_branch
      %44 = sbr.rel (0) target = $region13
    $region12: #{tpu_custom_call.1} parent=1 // pred_region
      %s46 = ssub.s32 2048, 2048
      %47 = vsyncadd [#allocation8], %s46
      %s48 = sshll.u32 [#allocation9], 4
      %s49 = int_to_ptr.vmem [resolvable:$true] %s48
      %54 = dma.hbm_to_vmem [thread:$0]  %s2, 2048, %s49, [#allocation8], 128, 128, 8
    $region13: #{tpu_custom_call.1} parent=1 // pred_fallthru
      _
    // Predicated region
    $region14: #{tpu_custom_call.1} parent=1 // pred_check
      _
    $region15: #{tpu_custom_call.1} parent=1 // pred_check_branch
      %56 = sbr.rel (0) target = $region17
    $region16: #{tpu_custom_call.1} parent=1 // pred_region
      _
    $region17: #{tpu_custom_call.1} parent=1 // pred_fallthru
      _
    // Predicated region
    $region18: #{tpu_custom_call.1} parent=1 // pred_check
      _
    $region19: #{tpu_custom_call.1} parent=1 // pred_check_branch
      %58 = sbr.rel (0) target = $region21
    $region20: #{tpu_custom_call.1} parent=1 // pred_region
      _
    $region21: #{tpu_custom_call.1} parent=1 // pred_fallthru
      _
    // Predicated region
    $region22: #{tpu_custom_call.1} parent=1 // pred_check
      _
    $region23: #{tpu_custom_call.1} parent=1 // pred_check_branch
      %60 = sbr.rel (0) target = $region25
    $region24: #{tpu_custom_call.1} parent=1 // pred_region
      %s62 = ssub.s32 2048, 2048
      %63 = vsyncadd [#allocation11], %s62
      %s64 = sshll.u32 [#allocation10], 4
      %s65 = int_to_ptr.vmem [resolvable:$true] %s64
      %70 = dma.hbm_to_vmem [thread:$0]  %s5, 2048, %s65, [#allocation11], 128, 128, 8
    $region25: #{tpu_custom_call.1} parent=1 // pred_fallthru
      _
    // Predicated region
    $region26: #{tpu_custom_call.1} parent=1 // pred_check
      _
    $region27: #{tpu_custom_call.1} parent=1 // pred_check_branch
      %72 = sbr.rel (0) target = $region29
    $region28: #{tpu_custom_call.1} parent=1 // pred_region
      _
    $region29: #{tpu_custom_call.1} parent=1 // pred_fallthru
      _
    // Predicated region
    $region30: #{tpu_custom_call.1} parent=1 // pred_check
      _
    $region31: #{tpu_custom_call.1} parent=1 // pred_check_branch
      %74 = sbr.rel (0) target = $region33
    $region32: #{tpu_custom_call.1} parent=1 // pred_region
      _
    $region33: #{tpu_custom_call.1} parent=1 // pred_fallthru
      _
    // Predicated region
    $region34: #{tpu_custom_call.1} parent=1 // pred_check
      _
    $region35: #{tpu_custom_call.1} parent=1 // pred_check_branch
      %76 = sbr.rel (0) target = $region37
    $region36: #{tpu_custom_call.1} parent=1 // pred_region
      %s78 = ssub.s32 2048, 2048
      %79 = vsyncadd [#allocation11], %s78
      %s80 = sshll.u32 [#allocation12], 4
      %s81 = int_to_ptr.vmem [resolvable:$true] %s80
      %86 = dma.hbm_to_vmem [thread:$0]  %s8, 2048, %s81, [#allocation11], 128, 128, 8
    $region37: #{tpu_custom_call.1} parent=1 // pred_fallthru
      _
    // Predicated region
    $region38: #{tpu_custom_call.1} parent=1 // pred_check
      _
    $region39: #{tpu_custom_call.1} parent=1 // pred_check_branch
      %88 = sbr.rel (0) target = $region41
    $region40: #{tpu_custom_call.1} parent=1 // pred_region
      _
    $region41: #{tpu_custom_call.1} parent=1 // pred_fallthru
      _
    // Predicated region
    $region42: #{tpu_custom_call.1} parent=1 // pred_check
      _
    $region43: #{tpu_custom_call.1} parent=1 // pred_check_branch
      %90 = sbr.rel (0) target = $region45
    $region44: #{tpu_custom_call.1} parent=1 // pred_region
      %91 = dma.done [#allocation5], 2048
    $region45: #{tpu_custom_call.1} parent=1 // pred_fallthru
      _
    // Predicated region
    $region46: #{tpu_custom_call.1} parent=1 // pred_check
      _
    $region47: #{tpu_custom_call.1} parent=1 // pred_check_branch
      %93 = sbr.rel (0) target = $region49
    $region48: #{tpu_custom_call.1} parent=1 // pred_region
      %94 = dma.done [#allocation8], 2048
    $region49: #{tpu_custom_call.1} parent=1 // pred_fallthru
      _
    // Predicated region
    $region50: #{tpu_custom_call.1} parent=1 // pred_check
      _
    $region51: #{tpu_custom_call.1} parent=1 // pred_check_branch
      %96 = sbr.rel (0) target = $region53
    $region52: #{tpu_custom_call.1} parent=1 // pred_region
      %97 = dma.done [#allocation8], 2048
    $region53: #{tpu_custom_call.1} parent=1 // pred_fallthru
      _
    // Predicated region
    $region54: #{tpu_custom_call.1} parent=1 // pred_check
      _
    $region55: #{tpu_custom_call.1} parent=1 // pred_check_branch
      %99 = sbr.rel (0) target = $region57
    $region56: #{tpu_custom_call.1} parent=1 // pred_region
      %100 = dma.done [#allocation11], 2048
    $region57: #{tpu_custom_call.1} parent=1 // pred_fallthru
      _
    // Predicated region
    $region58: #{tpu_custom_call.1} parent=1 // pred_check
      _
    $region59: #{tpu_custom_call.1} parent=1 // pred_check_branch
      %102 = sbr.rel (0) target = $region61
    $region60: #{tpu_custom_call.1} parent=1 // pred_region
      %103 = dma.done [#allocation11], 2048
    $region61: #{tpu_custom_call.1} parent=1 // pred_fallthru
      _
    %v104 = vld [vmem:[#allocation7] sm:$0xff]
    %v105 = vld [vmem:[#allocation7 + $0x8] sm:$0xff]
    %v106 = vld [vmem:[#allocation7 + $0x10] sm:$0xff]
    %v107 = vld [vmem:[#allocation7 + $0x18] sm:$0xff]
    %v108 = vld [vmem:[#allocation7 + $0x20] sm:$0xff]
    %v109 = vld [vmem:[#allocation7 + $0x28] sm:$0xff]
    %v110 = vld [vmem:[#allocation7 + $0x30] sm:$0xff]
    %v111 = vld [vmem:[#allocation7 + $0x38] sm:$0xff]
    %v112 = vld [vmem:[#allocation7 + $0x40] sm:$0xff]
    %v113 = vld [vmem:[#allocation7 + $0x48] sm:$0xff]
    %v114 = vld [vmem:[#allocation7 + $0x50] sm:$0xff]
    %v115 = vld [vmem:[#allocation7 + $0x58] sm:$0xff]
    %v116 = vld [vmem:[#allocation7 + $0x60] sm:$0xff]
    %v117 = vld [vmem:[#allocation7 + $0x68] sm:$0xff]
    %v118 = vld [vmem:[#allocation7 + $0x70] sm:$0xff]
    %v119 = vld [vmem:[#allocation7 + $0x78] sm:$0xff]
    %v120 = vld [vmem:[#allocation4] sm:$0xff]
    %v121 = vld [vmem:[#allocation4 + $0x8] sm:$0xff]
    %v122 = vld [vmem:[#allocation4 + $0x10] sm:$0xff]
    %v123 = vld [vmem:[#allocation4 + $0x18] sm:$0xff]
    %v124 = vld [vmem:[#allocation4 + $0x20] sm:$0xff]
    %v125 = vld [vmem:[#allocation4 + $0x28] sm:$0xff]
    %v126 = vld [vmem:[#allocation4 + $0x30] sm:$0xff]
    %v127 = vld [vmem:[#allocation4 + $0x38] sm:$0xff]
    %v128 = vld [vmem:[#allocation4 + $0x40] sm:$0xff]
    %v129 = vld [vmem:[#allocation4 + $0x48] sm:$0xff]
    %v130 = vld [vmem:[#allocation4 + $0x50] sm:$0xff]
    %v131 = vld [vmem:[#allocation4 + $0x58] sm:$0xff]
    %v132 = vld [vmem:[#allocation4 + $0x60] sm:$0xff]
    %v133 = vld [vmem:[#allocation4 + $0x68] sm:$0xff]
    %v134 = vld [vmem:[#allocation4 + $0x70] sm:$0xff]
    %v135 = vld [vmem:[#allocation4 + $0x78] sm:$0xff]
    %v136 = vld [vmem:[#allocation9] sm:$0xff]
    %v137 = vld [vmem:[#allocation9 + $0x8] sm:$0xff]
    %v138 = vld [vmem:[#allocation9 + $0x10] sm:$0xff]
    %v139 = vld [vmem:[#allocation9 + $0x18] sm:$0xff]
    %v140 = vld [vmem:[#allocation9 + $0x20] sm:$0xff]
    %v141 = vld [vmem:[#allocation9 + $0x28] sm:$0xff]
    %v142 = vld [vmem:[#allocation9 + $0x30] sm:$0xff]
    %v143 = vld [vmem:[#allocation9 + $0x38] sm:$0xff]
    %v144 = vld [vmem:[#allocation9 + $0x40] sm:$0xff]
    %v145 = vld [vmem:[#allocation9 + $0x48] sm:$0xff]
    %v146 = vld [vmem:[#allocation9 + $0x50] sm:$0xff]
    %v147 = vld [vmem:[#allocation9 + $0x58] sm:$0xff]
    %v148 = vld [vmem:[#allocation9 + $0x60] sm:$0xff]
    %v149 = vld [vmem:[#allocation9 + $0x68] sm:$0xff]
    %v150 = vld [vmem:[#allocation9 + $0x70] sm:$0xff]
    %v151 = vld [vmem:[#allocation9 + $0x78] sm:$0xff]
    %v152 = vld [vmem:[%s3] sm:$0xf]
    %v153 = vld [vmem:[%s4] sm:$0xf]
    %154 = vmatprep.subr.mxu0 0.0
    %155 = vmatpush1.msra.mxu0 %v136
    %156 = vmatprep.subr.mxu0 0.0
    %157 = vmatpush1.msra.mxu0 %v137
    %158 = vmatprep.subr.mxu0 0.0
    %159 = vmatpush1.msra.mxu0 %v138
    %160 = vmatprep.subr.mxu0 0.0
    %161 = vmatpush1.msra.mxu0 %v139
    %162 = vmatprep.subr.mxu0 0.0
    %163 = vmatpush1.msra.mxu0 %v140
    %164 = vmatprep.subr.mxu0 0.0
    %165 = vmatpush1.msra.mxu0 %v141
    %166 = vmatprep.subr.mxu0 0.0
    %167 = vmatpush1.msra.mxu0 %v142
    %168 = vmatprep.subr.mxu0 0.0
    %169 = vmatpush1.msra.mxu0 %v143
    %170 = vmatprep.subr.mxu0 0.0
    %171 = vmatpush1.msra.mxu0 %v144
    %172 = vmatprep.subr.mxu0 0.0
    %173 = vmatpush1.msra.mxu0 %v145
    %174 = vmatprep.subr.mxu0 0.0
    %175 = vmatpush1.msra.mxu0 %v146
    %176 = vmatprep.subr.mxu0 0.0
    %177 = vmatpush1.msra.mxu0 %v147
    %178 = vmatprep.subr.mxu0 0.0
    %179 = vmatpush1.msra.mxu0 %v148
    %180 = vmatprep.subr.mxu0 0.0
    %181 = vmatpush1.msra.mxu0 %v149
    %182 = vmatprep.subr.mxu0 0.0
    %183 = vmatpush1.msra.mxu0 %v150
    %184 = vmatprep.subr.mxu0 0.0
    %185 = vmatpush1.msra.mxu0 %v151
    %186 = vmatprep.subr.mxu0 0.0
    %187 = vmatpush1.msra.mxu0 0.0
    %188 = vmatprep.subr.mxu0 0.0
    %189 = vmatpush1.msra.mxu0 0.0
    %190 = vmatprep.subr.mxu0 0.0
    %191 = vmatpush1.msra.mxu0 0.0
    %192 = vmatprep.subr.mxu0 0.0
    %193 = vmatpush1.msra.mxu0 0.0
    %194 = vmatprep.subr.mxu0 0.0
    %195 = vmatpush1.msra.mxu0 0.0
    %196 = vmatprep.subr.mxu0 0.0
    %197 = vmatpush1.msra.mxu0 0.0
    %198 = vmatprep.subr.mxu0 0.0
    %199 = vmatpush1.msra.mxu0 0.0
    %200 = vmatprep.subr.mxu0 0.0
    %201 = vmatpush1.msra.mxu0 0.0
    %202 = vmatprep.subr.mxu0 0.0
    %203 = vmatpush1.msra.mxu0 0.0
    %204 = vmatprep.subr.mxu0 0.0
    %205 = vmatpush1.msra.mxu0 0.0
    %206 = vmatprep.subr.mxu0 0.0
    %207 = vmatpush1.msra.mxu0 0.0
    %208 = vmatprep.subr.mxu0 0.0
    %209 = vmatpush1.msra.mxu0 0.0
    %210 = vmatprep.subr.mxu0 0.0
    %211 = vmatpush1.msra.mxu0 0.0
    %212 = vmatprep.subr.mxu0 0.0
    %213 = vmatpush1.msra.mxu0 0.0
    %214 = vmatprep.subr.mxu0 0.0
    %215 = vmatpush1.msra.mxu0 0.0
    %216 = vmatprep.subr.mxu0 0.0
    %217 = vmatpush1.msra.mxu0 0.0
    %218 = vmatprep.mubr.f32.mxu0 0.0
    %219 = vmatmul.mubr.f32.gmra.mrb[0].mxu0 %v120
    %v220 = vpop.f32.mrb[0].mxu0
    %v221 = vadd.f32 0.0, %v220
    %v222 = vpop.f32.mrb[0].mxu0
    %223 = vmatprep.mubr.f32.mxu0 0.0
    %224 = vmatmul.mubr.f32.gmra.mrb[0].mxu0 %v121
    %v225 = vpop.f32.mrb[0].mxu0
    %v226 = vadd.f32 0.0, %v225
    %v227 = vpop.f32.mrb[0].mxu0
    %228 = vmatprep.mubr.f32.mxu0 0.0
    %229 = vmatmul.mubr.f32.gmra.mrb[0].mxu0 %v122
    %v230 = vpop.f32.mrb[0].mxu0
    %v231 = vadd.f32 0.0, %v230
    %v232 = vpop.f32.mrb[0].mxu0
    %233 = vmatprep.mubr.f32.mxu0 0.0
    %234 = vmatmul.mubr.f32.gmra.mrb[0].mxu0 %v123
    %v235 = vpop.f32.mrb[0].mxu0
    %v236 = vadd.f32 0.0, %v235
    %v237 = vpop.f32.mrb[0].mxu0
    %238 = vmatprep.mubr.f32.mxu0 0.0
    %239 = vmatmul.mubr.f32.gmra.mrb[0].mxu0 %v124
    %v240 = vpop.f32.mrb[0].mxu0
    %v241 = vadd.f32 0.0, %v240
    %v242 = vpop.f32.mrb[0].mxu0
    %243 = vmatprep.mubr.f32.mxu0 0.0
    %244 = vmatmul.mubr.f32.gmra.mrb[0].mxu0 %v125
    %v245 = vpop.f32.mrb[0].mxu0
    %v246 = vadd.f32 0.0, %v245
    %v247 = vpop.f32.mrb[0].mxu0
    %248 = vmatprep.mubr.f32.mxu0 0.0
    %249 = vmatmul.mubr.f32.gmra.mrb[0].mxu0 %v126
    %v250 = vpop.f32.mrb[0].mxu0
    %v251 = vadd.f32 0.0, %v250
    %v252 = vpop.f32.mrb[0].mxu0
    %253 = vmatprep.mubr.f32.mxu0 0.0
    %254 = vmatmul.mubr.f32.gmra.mrb[0].mxu0 %v127
    %v255 = vpop.f32.mrb[0].mxu0
    %v256 = vadd.f32 0.0, %v255
    %v257 = vpop.f32.mrb[0].mxu0
    %258 = vmatprep.mubr.f32.mxu0 0.0
    %259 = vmatmul.mubr.f32.gmra.mrb[0].mxu0 %v128
    %v260 = vpop.f32.mrb[0].mxu0
    %v261 = vadd.f32 0.0, %v260
    %v262 = vpop.f32.mrb[0].mxu0
    %263 = vmatprep.mubr.f32.mxu0 0.0
    %264 = vmatmul.mubr.f32.gmra.mrb[0].mxu0 %v129
    %v265 = vpop.f32.mrb[0].mxu0
    %v266 = vadd.f32 0.0, %v265
    %v267 = vpop.f32.mrb[0].mxu0
    %268 = vmatprep.mubr.f32.mxu0 0.0
    %269 = vmatmul.mubr.f32.gmra.mrb[0].mxu0 %v130
    %v270 = vpop.f32.mrb[0].mxu0
    %v271 = vadd.f32 0.0, %v270
    %v272 = vpop.f32.mrb[0].mxu0
    %273 = vmatprep.mubr.f32.mxu0 0.0
    %274 = vmatmul.mubr.f32.gmra.mrb[0].mxu0 %v131
    %v275 = vpop.f32.mrb[0].mxu0
    %v276 = vadd.f32 0.0, %v275
    %v277 = vpop.f32.mrb[0].mxu0
    %278 = vmatprep.mubr.f32.mxu0 0.0
    %279 = vmatmul.mubr.f32.gmra.mrb[0].mxu0 %v132
    %v280 = vpop.f32.mrb[0].mxu0
    %v281 = vadd.f32 0.0, %v280
    %v282 = vpop.f32.mrb[0].mxu0
    %283 = vmatprep.mubr.f32.mxu0 0.0
    %284 = vmatmul.mubr.f32.gmra.mrb[0].mxu0 %v133
    %v285 = vpop.f32.mrb[0].mxu0
    %v286 = vadd.f32 0.0, %v285
    %v287 = vpop.f32.mrb[0].mxu0
    %288 = vmatprep.mubr.f32.mxu0 0.0
    %289 = vmatmul.mubr.f32.gmra.mrb[0].mxu0 %v134
    %v290 = vpop.f32.mrb[0].mxu0
    %v291 = vadd.f32 0.0, %v290
    %v292 = vpop.f32.mrb[0].mxu0
    %293 = vmatprep.mubr.f32.mxu0 0.0
    %294 = vmatmul.mubr.f32.gmra.mrb[0].mxu0 %v135
    %v295 = vpop.f32.mrb[0].mxu0
    %v296 = vadd.f32 0.0, %v295
    %v297 = vpop.f32.mrb[0].mxu0
    %298 = vdwg.mxu0
    %vm299 = vcmask 261120
    %v301 = vsel %vm299, %v152, 0
    %v304 = vsel %vm299, %v221, 0
    %v307 = vsel %vm299, %v226, 0
    %v310 = vsel %vm299, %v231, 0
    %v313 = vsel %vm299, %v236, 0
    %v316 = vsel %vm299, %v241, 0
    %v319 = vsel %vm299, %v246, 0
    %v322 = vsel %vm299, %v251, 0
    %v325 = vsel %vm299, %v256, 0
    %v328 = vsel %vm299, %v261, 0
    %v331 = vsel %vm299, %v266, 0
    %v334 = vsel %vm299, %v271, 0
    %v337 = vsel %vm299, %v276, 0
    %v340 = vsel %vm299, %v281, 0
    %v343 = vsel %vm299, %v286, 0
    %v346 = vsel %vm299, %v291, 0
    %v349 = vsel %vm299, %v296, 0
    %351 = vmatprep.subr.mxu0 0.0
    %352 = vmatpush1.xpose.msra.mxu0 %v304
    %353 = vmatprep.subr.mxu0 0.0
    %354 = vmatpush1.xpose.msra.mxu0 %v307
    %355 = vmatprep.subr.mxu0 0.0
    %356 = vmatpush1.xpose.msra.mxu0 %v310
    %357 = vmatprep.subr.mxu0 0.0
    %358 = vmatpush1.xpose.msra.mxu0 %v313
    %359 = vmatprep.subr.mxu0 0.0
    %360 = vmatpush1.xpose.msra.mxu0 %v316
    %361 = vmatprep.subr.mxu0 0.0
    %362 = vmatpush1.xpose.msra.mxu0 %v319
    %363 = vmatprep.subr.mxu0 0.0
    %364 = vmatpush1.xpose.msra.mxu0 %v322
    %365 = vmatprep.subr.mxu0 0.0
    %366 = vmatpush1.xpose.msra.mxu0 %v325
    %367 = vmatprep.subr.mxu0 0.0
    %368 = vmatpush1.xpose.msra.mxu0 %v328
    %369 = vmatprep.subr.mxu0 0.0
    %370 = vmatpush1.xpose.msra.mxu0 %v331
    %371 = vmatprep.subr.mxu0 0.0
    %372 = vmatpush1.xpose.msra.mxu0 %v334
    %373 = vmatprep.subr.mxu0 0.0
    %374 = vmatpush1.xpose.msra.mxu0 %v337
    %375 = vmatprep.subr.mxu0 0.0
    %376 = vmatpush1.xpose.msra.mxu0 %v340
    %377 = vmatprep.subr.mxu0 0.0
    %378 = vmatpush1.xpose.msra.mxu0 %v343
    %379 = vmatprep.subr.mxu0 0.0
    %380 = vmatpush1.xpose.msra.mxu0 %v346
    %381 = vmatprep.subr.mxu0 0.0
    %382 = vmatpush1.xpose.msra.mxu0 %v349
    %383 = vmatprep.subr.mxu0 0.0
    %384 = vmatpush1.xpose.msra.mxu0 0.0
    %385 = vmatprep.subr.mxu0 0.0
    %386 = vmatpush1.xpose.msra.mxu0 0.0
    %387 = vmatprep.subr.mxu0 0.0
    %388 = vmatpush1.xpose.msra.mxu0 0.0
    %389 = vmatprep.subr.mxu0 0.0
    %390 = vmatpush1.xpose.msra.mxu0 0.0
    %391 = vmatprep.subr.mxu0 0.0
    %392 = vmatpush1.xpose.msra.mxu0 0.0
    %393 = vmatprep.subr.mxu0 0.0
    %394 = vmatpush1.xpose.msra.mxu0 0.0
    %395 = vmatprep.subr.mxu0 0.0
    %396 = vmatpush1.xpose.msra.mxu0 0.0
    %397 = vmatprep.subr.mxu0 0.0
    %398 = vmatpush1.xpose.msra.mxu0 0.0
    %399 = vmatprep.subr.mxu0 0.0
    %400 = vmatpush1.xpose.msra.mxu0 0.0
    %401 = vmatprep.subr.mxu0 0.0
    %402 = vmatpush1.xpose.msra.mxu0 0.0
    %403 = vmatprep.subr.mxu0 0.0
    %404 = vmatpush1.xpose.msra.mxu0 0.0
    %405 = vmatprep.subr.mxu0 0.0
    %406 = vmatpush1.xpose.msra.mxu0 0.0
    %407 = vmatprep.subr.mxu0 0.0
    %408 = vmatpush1.xpose.msra.mxu0 0.0
    %409 = vmatprep.subr.mxu0 0.0
    %410 = vmatpush1.xpose.msra.mxu0 0.0
    %411 = vmatprep.subr.mxu0 0.0
    %412 = vmatpush1.xpose.msra.mxu0 0.0
    %413 = vmatprep.subr.mxu0 0.0
    %414 = vmatpush1.xpose.msra.mxu0 0.0
    %415 = vmatprep.mubr.f32.mxu0 0.0
    %416 = vmatmul.mubr.f32.gmra.mrb[0].mxu0 %v301
    %v417 = vpop.f32.mrb[0].mxu0
    %v418 = vadd.f32 0.0, %v417
    %v419 = vpop.f32.mrb[0].mxu0
    %420 = vdwg.mxu0
    %v421 = vlaneseq
    %v422 = vshrl.u32 %v421, 7
    %v423 = vsub.s32 0, %v422
    %v424 = vrot.slane %v153, %v423
    %v425 = vmul.f32 %v221, %v424
    %v426 = vmul.f32 %v226, %v424
    %v427 = vmul.f32 %v231, %v424
    %v428 = vmul.f32 %v236, %v424
    %v429 = vmul.f32 %v241, %v424
    %v430 = vmul.f32 %v246, %v424
    %v431 = vmul.f32 %v251, %v424
    %v432 = vmul.f32 %v256, %v424
    %v433 = vmul.f32 %v261, %v424
    %v434 = vmul.f32 %v266, %v424
    %v435 = vmul.f32 %v271, %v424
    %v436 = vmul.f32 %v276, %v424
    %v437 = vmul.f32 %v281, %v424
    %v438 = vmul.f32 %v286, %v424
    %v439 = vmul.f32 %v291, %v424
    %v440 = vmul.f32 %v296, %v424
    %v441 = vsel %vm299, %v425, 0.0
    %442 = vadd.xlane.f32.xlu0 %v441
    %v443 = vpop.xlane.xlu0 %442
    %v444 = vsel %vm299, %v426, 0.0
    %445 = vadd.xlane.f32.xlu0 %v444
    %v446 = vpop.xlane.xlu0 %445
    %v447 = vsel %vm299, %v427, 0.0
    %448 = vadd.xlane.f32.xlu0 %v447
    %v449 = vpop.xlane.xlu0 %448
    %v450 = vsel %vm299, %v428, 0.0
    %451 = vadd.xlane.f32.xlu0 %v450
    %v452 = vpop.xlane.xlu0 %451
    %v453 = vsel %vm299, %v429, 0.0
    %454 = vadd.xlane.f32.xlu0 %v453
    %v455 = vpop.xlane.xlu0 %454
    %v456 = vsel %vm299, %v430, 0.0
    %457 = vadd.xlane.f32.xlu0 %v456
    %v458 = vpop.xlane.xlu0 %457
    %v459 = vsel %vm299, %v431, 0.0
    %460 = vadd.xlane.f32.xlu0 %v459
    %v461 = vpop.xlane.xlu0 %460
    %v462 = vsel %vm299, %v432, 0.0
    %463 = vadd.xlane.f32.xlu0 %v462
    %v464 = vpop.xlane.xlu0 %463
    %v465 = vsel %vm299, %v433, 0.0
    %466 = vadd.xlane.f32.xlu0 %v465
    %v467 = vpop.xlane.xlu0 %466
    %v468 = vsel %vm299, %v434, 0.0
    %469 = vadd.xlane.f32.xlu0 %v468
    %v470 = vpop.xlane.xlu0 %469
    %v471 = vsel %vm299, %v435, 0.0
    %472 = vadd.xlane.f32.xlu0 %v471
    %v473 = vpop.xlane.xlu0 %472
    %v474 = vsel %vm299, %v436, 0.0
    %475 = vadd.xlane.f32.xlu0 %v474
    %v476 = vpop.xlane.xlu0 %475
    %v477 = vsel %vm299, %v437, 0.0
    %478 = vadd.xlane.f32.xlu0 %v477
    %v479 = vpop.xlane.xlu0 %478
    %v480 = vsel %vm299, %v438, 0.0
    %481 = vadd.xlane.f32.xlu0 %v480
    %v482 = vpop.xlane.xlu0 %481
    %v483 = vsel %vm299, %v439, 0.0
    %484 = vadd.xlane.f32.xlu0 %v483
    %v485 = vpop.xlane.xlu0 %484
    %v486 = vsel %vm299, %v440, 0.0
    %487 = vadd.xlane.f32.xlu0 %v486
    %v488 = vpop.xlane.xlu0 %487
    %v489 = vlaneseq
    %v490 = vshrl.u32 %v489, 7
    %v491 = vsub.s32 0, %v490
    %v492 = vrot.slane %v418, %v491
    %v493 = vadd.f32 %v443, %v492
    %v494 = vadd.f32 %v446, %v492
    %v495 = vadd.f32 %v449, %v492
    %v496 = vadd.f32 %v452, %v492
    %v497 = vadd.f32 %v455, %v492
    %v498 = vadd.f32 %v458, %v492
    %v499 = vadd.f32 %v461, %v492
    %v500 = vadd.f32 %v464, %v492
    %v501 = vadd.f32 %v467, %v492
    %v502 = vadd.f32 %v470, %v492
    %v503 = vadd.f32 %v473, %v492
    %v504 = vadd.f32 %v476, %v492
    %v505 = vadd.f32 %v479, %v492
    %v506 = vadd.f32 %v482, %v492
    %v507 = vadd.f32 %v485, %v492
    %v508 = vadd.f32 %v488, %v492
    %vm509 = vcmp.ge.f32.partialorder %v493, 0.0
    %vm510 = vcmp.ge.f32.partialorder %v494, 0.0
    %vm511 = vcmp.ge.f32.partialorder %v495, 0.0
    %vm512 = vcmp.ge.f32.partialorder %v496, 0.0
    %vm513 = vcmp.ge.f32.partialorder %v497, 0.0
    %vm514 = vcmp.ge.f32.partialorder %v498, 0.0
    %vm515 = vcmp.ge.f32.partialorder %v499, 0.0
    %vm516 = vcmp.ge.f32.partialorder %v500, 0.0
    %vm517 = vcmp.ge.f32.partialorder %v501, 0.0
    %vm518 = vcmp.ge.f32.partialorder %v502, 0.0
    %vm519 = vcmp.ge.f32.partialorder %v503, 0.0
    %vm520 = vcmp.ge.f32.partialorder %v504, 0.0
    %vm521 = vcmp.ge.f32.partialorder %v505, 0.0
    %vm522 = vcmp.ge.f32.partialorder %v506, 0.0
    %vm523 = vcmp.ge.f32.partialorder %v507, 0.0
    %vm524 = vcmp.ge.f32.partialorder %v508, 0.0
    %v525 = vmul.f32 %v493, 0.2
    %v526 = vmul.f32 %v494, 0.2
    %v527 = vmul.f32 %v495, 0.2
    %v528 = vmul.f32 %v496, 0.2
    %v529 = vmul.f32 %v497, 0.2
    %v530 = vmul.f32 %v498, 0.2
    %v531 = vmul.f32 %v499, 0.2
    %v532 = vmul.f32 %v500, 0.2
    %v533 = vmul.f32 %v501, 0.2
    %v534 = vmul.f32 %v502, 0.2
    %v535 = vmul.f32 %v503, 0.2
    %v536 = vmul.f32 %v504, 0.2
    %v537 = vmul.f32 %v505, 0.2
    %v538 = vmul.f32 %v506, 0.2
    %v539 = vmul.f32 %v507, 0.2
    %v540 = vmul.f32 %v508, 0.2
    %v541 = vsel %vm509, %v493, %v525
    %v542 = vsel %vm510, %v494, %v526
    %v543 = vsel %vm511, %v495, %v527
    %v544 = vsel %vm512, %v496, %v528
    %v545 = vsel %vm513, %v497, %v529
    %v546 = vsel %vm514, %v498, %v530
    %v547 = vsel %vm515, %v499, %v531
    %v548 = vsel %vm516, %v500, %v532
    %v549 = vsel %vm517, %v501, %v533
    %v550 = vsel %vm518, %v502, %v534
    %v551 = vsel %vm519, %v503, %v535
    %v552 = vsel %vm520, %v504, %v536
    %v553 = vsel %vm521, %v505, %v537
    %v554 = vsel %vm522, %v506, %v538
    %v555 = vsel %vm523, %v507, %v539
    %v556 = vsel %vm524, %v508, %v540
    %vm557 = vcmp.gt.f32.partialorder %v104, 0.0
    %vm558 = vcmp.gt.f32.partialorder %v105, 0.0
    %vm559 = vcmp.gt.f32.partialorder %v106, 0.0
    %vm560 = vcmp.gt.f32.partialorder %v107, 0.0
    %vm561 = vcmp.gt.f32.partialorder %v108, 0.0
    %vm562 = vcmp.gt.f32.partialorder %v109, 0.0
    %vm563 = vcmp.gt.f32.partialorder %v110, 0.0
    %vm564 = vcmp.gt.f32.partialorder %v111, 0.0
    %vm565 = vcmp.gt.f32.partialorder %v112, 0.0
    %vm566 = vcmp.gt.f32.partialorder %v113, 0.0
    %vm567 = vcmp.gt.f32.partialorder %v114, 0.0
    %vm568 = vcmp.gt.f32.partialorder %v115, 0.0
    %vm569 = vcmp.gt.f32.partialorder %v116, 0.0
    %vm570 = vcmp.gt.f32.partialorder %v117, 0.0
    %vm571 = vcmp.gt.f32.partialorder %v118, 0.0
    %vm572 = vcmp.gt.f32.partialorder %v119, 0.0
    %v573 = vsel %vm557, %v541, -1e+30
    %v574 = vsel %vm558, %v542, -1e+30
    %v575 = vsel %vm559, %v543, -1e+30
    %v576 = vsel %vm560, %v544, -1e+30
    %v577 = vsel %vm561, %v545, -1e+30
    %v578 = vsel %vm562, %v546, -1e+30
    %v579 = vsel %vm563, %v547, -1e+30
    %v580 = vsel %vm564, %v548, -1e+30
    %v581 = vsel %vm565, %v549, -1e+30
    %v582 = vsel %vm566, %v550, -1e+30
    %v583 = vsel %vm567, %v551, -1e+30
    %v584 = vsel %vm568, %v552, -1e+30
    %v585 = vsel %vm569, %v553, -1e+30
    %v586 = vsel %vm570, %v554, -1e+30
    %v587 = vsel %vm571, %v555, -1e+30
    %v588 = vsel %vm572, %v556, -1e+30
    %589 = vmax.xlane.f32.xlu0 %v573
    %v590 = vpop.xlane.xlu0 %589
    %591 = vmax.xlane.f32.xlu0 %v574
    %v592 = vpop.xlane.xlu0 %591
    %593 = vmax.xlane.f32.xlu0 %v575
    %v594 = vpop.xlane.xlu0 %593
    %595 = vmax.xlane.f32.xlu0 %v576
    %v596 = vpop.xlane.xlu0 %595
    %597 = vmax.xlane.f32.xlu0 %v577
    %v598 = vpop.xlane.xlu0 %597
    %599 = vmax.xlane.f32.xlu0 %v578
    %v600 = vpop.xlane.xlu0 %599
    %601 = vmax.xlane.f32.xlu0 %v579
    %v602 = vpop.xlane.xlu0 %601
    %603 = vmax.xlane.f32.xlu0 %v580
    %v604 = vpop.xlane.xlu0 %603
    %605 = vmax.xlane.f32.xlu0 %v581
    %v606 = vpop.xlane.xlu0 %605
    %607 = vmax.xlane.f32.xlu0 %v582
    %v608 = vpop.xlane.xlu0 %607
    %609 = vmax.xlane.f32.xlu0 %v583
    %v610 = vpop.xlane.xlu0 %609
    %611 = vmax.xlane.f32.xlu0 %v584
    %v612 = vpop.xlane.xlu0 %611
    %613 = vmax.xlane.f32.xlu0 %v585
    %v614 = vpop.xlane.xlu0 %613
    %615 = vmax.xlane.f32.xlu0 %v586
    %v616 = vpop.xlane.xlu0 %615
    %617 = vmax.xlane.f32.xlu0 %v587
    %v618 = vpop.xlane.xlu0 %617
    %619 = vmax.xlane.f32.xlu0 %v588
    %v620 = vpop.xlane.xlu0 %619
    %v621 = vsub.f32 %v573, %v590
    %v622 = vsub.f32 %v574, %v592
    %v623 = vsub.f32 %v575, %v594
    %v624 = vsub.f32 %v576, %v596
    %v625 = vsub.f32 %v577, %v598
    %v626 = vsub.f32 %v578, %v600
    %v627 = vsub.f32 %v579, %v602
    %v628 = vsub.f32 %v580, %v604
    %v629 = vsub.f32 %v581, %v606
    %v630 = vsub.f32 %v582, %v608
    %v631 = vsub.f32 %v583, %v610
    %v632 = vsub.f32 %v584, %v612
    %v633 = vsub.f32 %v585, %v614
    %v634 = vsub.f32 %v586, %v616
    %v635 = vsub.f32 %v587, %v618
    %v636 = vsub.f32 %v588, %v620
    %v637 = vmul.f32 %v621, 1.442695
    %v638 = vpow.pop %v637
    %v639 = vmul.f32 %v622, 1.442695
    %v640 = vpow.pop %v639
    %v641 = vmul.f32 %v623, 1.442695
    %v642 = vpow.pop %v641
    %v643 = vmul.f32 %v624, 1.442695
    %v644 = vpow.pop %v643
    %v645 = vmul.f32 %v625, 1.442695
    %v646 = vpow.pop %v645
    %v647 = vmul.f32 %v626, 1.442695
    %v648 = vpow.pop %v647
    %v649 = vmul.f32 %v627, 1.442695
    %v650 = vpow.pop %v649
    %v651 = vmul.f32 %v628, 1.442695
    %v652 = vpow.pop %v651
    %v653 = vmul.f32 %v629, 1.442695
    %v654 = vpow.pop %v653
    %v655 = vmul.f32 %v630, 1.442695
    %v656 = vpow.pop %v655
    %v657 = vmul.f32 %v631, 1.442695
    %v658 = vpow.pop %v657
    %v659 = vmul.f32 %v632, 1.442695
    %v660 = vpow.pop %v659
    %v661 = vmul.f32 %v633, 1.442695
    %v662 = vpow.pop %v661
    %v663 = vmul.f32 %v634, 1.442695
    %v664 = vpow.pop %v663
    %v665 = vmul.f32 %v635, 1.442695
    %v666 = vpow.pop %v665
    %v667 = vmul.f32 %v636, 1.442695
    %v668 = vpow.pop %v667
    %v669 = vmul.f32 %v638, %v104
    %v670 = vmul.f32 %v640, %v105
    %v671 = vmul.f32 %v642, %v106
    %v672 = vmul.f32 %v644, %v107
    %v673 = vmul.f32 %v646, %v108
    %v674 = vmul.f32 %v648, %v109
    %v675 = vmul.f32 %v650, %v110
    %v676 = vmul.f32 %v652, %v111
    %v677 = vmul.f32 %v654, %v112
    %v678 = vmul.f32 %v656, %v113
    %v679 = vmul.f32 %v658, %v114
    %v680 = vmul.f32 %v660, %v115
    %v681 = vmul.f32 %v662, %v116
    %v682 = vmul.f32 %v664, %v117
    %v683 = vmul.f32 %v666, %v118
    %v684 = vmul.f32 %v668, %v119
    %685 = vadd.xlane.f32.xlu0 %v669
    %v686 = vpop.xlane.xlu0 %685
    %687 = vadd.xlane.f32.xlu0 %v670
    %v688 = vpop.xlane.xlu0 %687
    %689 = vadd.xlane.f32.xlu0 %v671
    %v690 = vpop.xlane.xlu0 %689
    %691 = vadd.xlane.f32.xlu0 %v672
    %v692 = vpop.xlane.xlu0 %691
    %693 = vadd.xlane.f32.xlu0 %v673
    %v694 = vpop.xlane.xlu0 %693
    %695 = vadd.xlane.f32.xlu0 %v674
    %v696 = vpop.xlane.xlu0 %695
    %697 = vadd.xlane.f32.xlu0 %v675
    %v698 = vpop.xlane.xlu0 %697
    %699 = vadd.xlane.f32.xlu0 %v676
    %v700 = vpop.xlane.xlu0 %699
    %701 = vadd.xlane.f32.xlu0 %v677
    %v702 = vpop.xlane.xlu0 %701
    %703 = vadd.xlane.f32.xlu0 %v678
    %v704 = vpop.xlane.xlu0 %703
    %705 = vadd.xlane.f32.xlu0 %v679
    %v706 = vpop.xlane.xlu0 %705
    %707 = vadd.xlane.f32.xlu0 %v680
    %v708 = vpop.xlane.xlu0 %707
    %709 = vadd.xlane.f32.xlu0 %v681
    %v710 = vpop.xlane.xlu0 %709
    %711 = vadd.xlane.f32.xlu0 %v682
    %v712 = vpop.xlane.xlu0 %711
    %713 = vadd.xlane.f32.xlu0 %v683
    %v714 = vpop.xlane.xlu0 %713
    %715 = vadd.xlane.f32.xlu0 %v684
    %v716 = vpop.xlane.xlu0 %715
    %v717 = vrcp.pop %v686
    %v718 = vmul.f32 %v669, %v717
    %v719 = vrcp.pop %v688
    %v720 = vmul.f32 %v670, %v719
    %v721 = vrcp.pop %v690
    %v722 = vmul.f32 %v671, %v721
    %v723 = vrcp.pop %v692
    %v724 = vmul.f32 %v672, %v723
    %v725 = vrcp.pop %v694
    %v726 = vmul.f32 %v673, %v725
    %v727 = vrcp.pop %v696
    %v728 = vmul.f32 %v674, %v727
    %v729 = vrcp.pop %v698
    %v730 = vmul.f32 %v675, %v729
    %v731 = vrcp.pop %v700
    %v732 = vmul.f32 %v676, %v731
    %v733 = vrcp.pop %v702
    %v734 = vmul.f32 %v677, %v733
    %v735 = vrcp.pop %v704
    %v736 = vmul.f32 %v678, %v735
    %v737 = vrcp.pop %v706
    %v738 = vmul.f32 %v679, %v737
    %v739 = vrcp.pop %v708
    %v740 = vmul.f32 %v680, %v739
    %v741 = vrcp.pop %v710
    %v742 = vmul.f32 %v681, %v741
    %v743 = vrcp.pop %v712
    %v744 = vmul.f32 %v682, %v743
    %v745 = vrcp.pop %v714
    %v746 = vmul.f32 %v683, %v745
    %v747 = vrcp.pop %v716
    %v748 = vmul.f32 %v684, %v747
    %749 = vmatprep.subr.mxu0 0.0
    %750 = vmatpush1.msra.mxu0 %v221
    %751 = vmatprep.subr.mxu0 0.0
    %752 = vmatpush1.msra.mxu0 %v226
    %753 = vmatprep.subr.mxu0 0.0
    %754 = vmatpush1.msra.mxu0 %v231
    %755 = vmatprep.subr.mxu0 0.0
    %756 = vmatpush1.msra.mxu0 %v236
    %757 = vmatprep.subr.mxu0 0.0
    %758 = vmatpush1.msra.mxu0 %v241
    %759 = vmatprep.subr.mxu0 0.0
    %760 = vmatpush1.msra.mxu0 %v246
    %761 = vmatprep.subr.mxu0 0.0
    %762 = vmatpush1.msra.mxu0 %v251
    %763 = vmatprep.subr.mxu0 0.0
    %764 = vmatpush1.msra.mxu0 %v256
    %765 = vmatprep.subr.mxu0 0.0
    %766 = vmatpush1.msra.mxu0 %v261
    %767 = vmatprep.subr.mxu0 0.0
    %768 = vmatpush1.msra.mxu0 %v266
    %769 = vmatprep.subr.mxu0 0.0
    %770 = vmatpush1.msra.mxu0 %v271
    %771 = vmatprep.subr.mxu0 0.0
    %772 = vmatpush1.msra.mxu0 %v276
    %773 = vmatprep.subr.mxu0 0.0
    %774 = vmatpush1.msra.mxu0 %v281
    %775 = vmatprep.subr.mxu0 0.0
    %776 = vmatpush1.msra.mxu0 %v286
    %777 = vmatprep.subr.mxu0 0.0
    %778 = vmatpush1.msra.mxu0 %v291
    %779 = vmatprep.subr.mxu0 0.0
    %780 = vmatpush1.msra.mxu0 %v296
    %781 = vmatprep.subr.mxu0 0.0
    %782 = vmatpush1.msra.mxu0 0.0
    %783 = vmatprep.subr.mxu0 0.0
    %784 = vmatpush1.msra.mxu0 0.0
    %785 = vmatprep.subr.mxu0 0.0
    %786 = vmatpush1.msra.mxu0 0.0
    %787 = vmatprep.subr.mxu0 0.0
    %788 = vmatpush1.msra.mxu0 0.0
    %789 = vmatprep.subr.mxu0 0.0
    %790 = vmatpush1.msra.mxu0 0.0
    %791 = vmatprep.subr.mxu0 0.0
    %792 = vmatpush1.msra.mxu0 0.0
    %793 = vmatprep.subr.mxu0 0.0
    %794 = vmatpush1.msra.mxu0 0.0
    %795 = vmatprep.subr.mxu0 0.0
    %796 = vmatpush1.msra.mxu0 0.0
    %797 = vmatprep.subr.mxu0 0.0
    %798 = vmatpush1.msra.mxu0 0.0
    %799 = vmatprep.subr.mxu0 0.0
    %800 = vmatpush1.msra.mxu0 0.0
    %801 = vmatprep.subr.mxu0 0.0
    %802 = vmatpush1.msra.mxu0 0.0
    %803 = vmatprep.subr.mxu0 0.0
    %804 = vmatpush1.msra.mxu0 0.0
    %805 = vmatprep.subr.mxu0 0.0
    %806 = vmatpush1.msra.mxu0 0.0
    %807 = vmatprep.subr.mxu0 0.0
    %808 = vmatpush1.msra.mxu0 0.0
    %809 = vmatprep.subr.mxu0 0.0
    %810 = vmatpush1.msra.mxu0 0.0
    %811 = vmatprep.subr.mxu0 0.0
    %812 = vmatpush1.msra.mxu0 0.0
    %813 = vmatprep.mubr.f32.mxu0 0.0
    %814 = vmatmul.mubr.f32.gmra.mrb[0].mxu0 %v718
    %v815 = vpop.f32.mrb[0].mxu0
    %v816 = vadd.f32 0.0, %v815
    %v817 = vpop.f32.mrb[0].mxu0
    %818 = vmatprep.mubr.f32.mxu0 0.0
    %819 = vmatmul.mubr.f32.gmra.mrb[0].mxu0 %v720
    %v820 = vpop.f32.mrb[0].mxu0
    %v821 = vadd.f32 0.0, %v820
    %v822 = vpop.f32.mrb[0].mxu0
    %823 = vmatprep.mubr.f32.mxu0 0.0
    %824 = vmatmul.mubr.f32.gmra.mrb[0].mxu0 %v722
    %v825 = vpop.f32.mrb[0].mxu0
    %v826 = vadd.f32 0.0, %v825
    %v827 = vpop.f32.mrb[0].mxu0
    %828 = vmatprep.mubr.f32.mxu0 0.0
    %829 = vmatmul.mubr.f32.gmra.mrb[0].mxu0 %v724
    %v830 = vpop.f32.mrb[0].mxu0
    %v831 = vadd.f32 0.0, %v830
    %v832 = vpop.f32.mrb[0].mxu0
    %833 = vmatprep.mubr.f32.mxu0 0.0
    %834 = vmatmul.mubr.f32.gmra.mrb[0].mxu0 %v726
    %v835 = vpop.f32.mrb[0].mxu0
    %v836 = vadd.f32 0.0, %v835
    %v837 = vpop.f32.mrb[0].mxu0
    %838 = vmatprep.mubr.f32.mxu0 0.0
    %839 = vmatmul.mubr.f32.gmra.mrb[0].mxu0 %v728
    %v840 = vpop.f32.mrb[0].mxu0
    %v841 = vadd.f32 0.0, %v840
    %v842 = vpop.f32.mrb[0].mxu0
    %843 = vmatprep.mubr.f32.mxu0 0.0
    %844 = vmatmul.mubr.f32.gmra.mrb[0].mxu0 %v730
    %v845 = vpop.f32.mrb[0].mxu0
    %v846 = vadd.f32 0.0, %v845
    %v847 = vpop.f32.mrb[0].mxu0
    %848 = vmatprep.mubr.f32.mxu0 0.0
    %849 = vmatmul.mubr.f32.gmra.mrb[0].mxu0 %v732
    %v850 = vpop.f32.mrb[0].mxu0
    %v851 = vadd.f32 0.0, %v850
    %v852 = vpop.f32.mrb[0].mxu0
    %853 = vmatprep.mubr.f32.mxu0 0.0
    %854 = vmatmul.mubr.f32.gmra.mrb[0].mxu0 %v734
    %v855 = vpop.f32.mrb[0].mxu0
    %v856 = vadd.f32 0.0, %v855
    %v857 = vpop.f32.mrb[0].mxu0
    %858 = vmatprep.mubr.f32.mxu0 0.0
    %859 = vmatmul.mubr.f32.gmra.mrb[0].mxu0 %v736
    %v860 = vpop.f32.mrb[0].mxu0
    %v861 = vadd.f32 0.0, %v860
    %v862 = vpop.f32.mrb[0].mxu0
    %863 = vmatprep.mubr.f32.mxu0 0.0
    %864 = vmatmul.mubr.f32.gmra.mrb[0].mxu0 %v738
    %v865 = vpop.f32.mrb[0].mxu0
    %v866 = vadd.f32 0.0, %v865
    %v867 = vpop.f32.mrb[0].mxu0
    %868 = vmatprep.mubr.f32.mxu0 0.0
    %869 = vmatmul.mubr.f32.gmra.mrb[0].mxu0 %v740
    %v870 = vpop.f32.mrb[0].mxu0
    %v871 = vadd.f32 0.0, %v870
    %v872 = vpop.f32.mrb[0].mxu0
    %873 = vmatprep.mubr.f32.mxu0 0.0
    %874 = vmatmul.mubr.f32.gmra.mrb[0].mxu0 %v742
    %v875 = vpop.f32.mrb[0].mxu0
    %v876 = vadd.f32 0.0, %v875
    %v877 = vpop.f32.mrb[0].mxu0
    %878 = vmatprep.mubr.f32.mxu0 0.0
    %879 = vmatmul.mubr.f32.gmra.mrb[0].mxu0 %v744
    %v880 = vpop.f32.mrb[0].mxu0
    %v881 = vadd.f32 0.0, %v880
    %v882 = vpop.f32.mrb[0].mxu0
    %883 = vmatprep.mubr.f32.mxu0 0.0
    %884 = vmatmul.mubr.f32.gmra.mrb[0].mxu0 %v746
    %v885 = vpop.f32.mrb[0].mxu0
    %v886 = vadd.f32 0.0, %v885
    %v887 = vpop.f32.mrb[0].mxu0
    %888 = vmatprep.mubr.f32.mxu0 0.0
    %889 = vmatmul.mubr.f32.gmra.mrb[0].mxu0 %v748
    %v890 = vpop.f32.mrb[0].mxu0
    %v891 = vadd.f32 0.0, %v890
    %v892 = vpop.f32.mrb[0].mxu0
    %893 = vdwg.mxu0
    %vm894 = vcmp.gt.f32.partialorder %v816, 0.0
    %vm895 = vcmp.gt.f32.partialorder %v821, 0.0
    %vm896 = vcmp.gt.f32.partialorder %v826, 0.0
    %vm897 = vcmp.gt.f32.partialorder %v831, 0.0
    %vm898 = vcmp.gt.f32.partialorder %v836, 0.0
    %vm899 = vcmp.gt.f32.partialorder %v841, 0.0
    %vm900 = vcmp.gt.f32.partialorder %v846, 0.0
    %vm901 = vcmp.gt.f32.partialorder %v851, 0.0
    %vm902 = vcmp.gt.f32.partialorder %v856, 0.0
    %vm903 = vcmp.gt.f32.partialorder %v861, 0.0
    %vm904 = vcmp.gt.f32.partialorder %v866, 0.0
    %vm905 = vcmp.gt.f32.partialorder %v871, 0.0
    %vm906 = vcmp.gt.f32.partialorder %v876, 0.0
    %vm907 = vcmp.gt.f32.partialorder %v881, 0.0
    %vm908 = vcmp.gt.f32.partialorder %v886, 0.0
    %vm909 = vcmp.gt.f32.partialorder %v891, 0.0
    %v910 = vmul.f32 %v816, 1.442695
    %v911 = vpow.pop %v910
    %v912 = vmul.f32 %v821, 1.442695
    %v913 = vpow.pop %v912
    %v914 = vmul.f32 %v826, 1.442695
    %v915 = vpow.pop %v914
    %v916 = vmul.f32 %v831, 1.442695
    %v917 = vpow.pop %v916
    %v918 = vmul.f32 %v836, 1.442695
    %v919 = vpow.pop %v918
    %v920 = vmul.f32 %v841, 1.442695
    %v921 = vpow.pop %v920
    %v922 = vmul.f32 %v846, 1.442695
    %v923 = vpow.pop %v922
    %v924 = vmul.f32 %v851, 1.442695
    %v925 = vpow.pop %v924
    %v926 = vmul.f32 %v856, 1.442695
    %v927 = vpow.pop %v926
    %v928 = vmul.f32 %v861, 1.442695
    %v929 = vpow.pop %v928
    %v930 = vmul.f32 %v866, 1.442695
    %v931 = vpow.pop %v930
    %v932 = vmul.f32 %v871, 1.442695
    %v933 = vpow.pop %v932
    %v934 = vmul.f32 %v876, 1.442695
    %v935 = vpow.pop %v934
    %v936 = vmul.f32 %v881, 1.442695
    %v937 = vpow.pop %v936
    %v938 = vmul.f32 %v886, 1.442695
    %v939 = vpow.pop %v938
    %v940 = vmul.f32 %v891, 1.442695
    %v941 = vpow.pop %v940
    %v942 = vsub.f32 %v911, 1.0
    %v943 = vsub.f32 %v913, 1.0
    %v944 = vsub.f32 %v915, 1.0
    %v945 = vsub.f32 %v917, 1.0
    %v946 = vsub.f32 %v919, 1.0
    %v947 = vsub.f32 %v921, 1.0
    %v948 = vsub.f32 %v923, 1.0
    %v949 = vsub.f32 %v925, 1.0
    %v950 = vsub.f32 %v927, 1.0
    %v951 = vsub.f32 %v929, 1.0
    %v952 = vsub.f32 %v931, 1.0
    %v953 = vsub.f32 %v933, 1.0
    %v954 = vsub.f32 %v935, 1.0
    %v955 = vsub.f32 %v937, 1.0
    %v956 = vsub.f32 %v939, 1.0
    %v957 = vsub.f32 %v941, 1.0
    %v958 = vsel %vm894, %v816, %v942
    %v959 = vsel %vm895, %v821, %v943
    %v960 = vsel %vm896, %v826, %v944
    %v961 = vsel %vm897, %v831, %v945
    %v962 = vsel %vm898, %v836, %v946
    %v963 = vsel %vm899, %v841, %v947
    %v964 = vsel %vm900, %v846, %v948
    %v965 = vsel %vm901, %v851, %v949
    %v966 = vsel %vm902, %v856, %v950
    %v967 = vsel %vm903, %v861, %v951
    %v968 = vsel %vm904, %v866, %v952
    %v969 = vsel %vm905, %v871, %v953
    %v970 = vsel %vm906, %v876, %v954
    %v971 = vsel %vm907, %v881, %v955
    %v972 = vsel %vm908, %v886, %v956
    %v973 = vsel %vm909, %v891, %v957
    %974 = vst.msk [vmem:[#allocation2] sm:$0xff] %vm299, %v958
    %975 = vst.msk [vmem:[#allocation2 + $0x8] sm:$0xff] %vm299, %v959
    %976 = vst.msk [vmem:[#allocation2 + $0x10] sm:$0xff] %vm299, %v960
    %977 = vst.msk [vmem:[#allocation2 + $0x18] sm:$0xff] %vm299, %v961
    %978 = vst.msk [vmem:[#allocation2 + $0x20] sm:$0xff] %vm299, %v962
    %979 = vst.msk [vmem:[#allocation2 + $0x28] sm:$0xff] %vm299, %v963
    %980 = vst.msk [vmem:[#allocation2 + $0x30] sm:$0xff] %vm299, %v964
    %981 = vst.msk [vmem:[#allocation2 + $0x38] sm:$0xff] %vm299, %v965
    %982 = vst.msk [vmem:[#allocation2 + $0x40] sm:$0xff] %vm299, %v966
    %983 = vst.msk [vmem:[#allocation2 + $0x48] sm:$0xff] %vm299, %v967
    %984 = vst.msk [vmem:[#allocation2 + $0x50] sm:$0xff] %vm299, %v968
    %985 = vst.msk [vmem:[#allocation2 + $0x58] sm:$0xff] %vm299, %v969
    %986 = vst.msk [vmem:[#allocation2 + $0x60] sm:$0xff] %vm299, %v970
    %987 = vst.msk [vmem:[#allocation2 + $0x68] sm:$0xff] %vm299, %v971
    %988 = vst.msk [vmem:[#allocation2 + $0x70] sm:$0xff] %vm299, %v972
    %989 = vst.msk [vmem:[#allocation2 + $0x78] sm:$0xff] %vm299, %v973
    %v990 = vrot.slane %v152, 1
    %991 = vrot.lane.b32.xlu0 %v221, 96
    %v992 = vpop.permute.xlu0 %991
    %993 = vrot.lane.b32.xlu0 %v226, 96
    %v994 = vpop.permute.xlu0 %993
    %995 = vrot.lane.b32.xlu0 %v231, 96
    %v996 = vpop.permute.xlu0 %995
    %997 = vrot.lane.b32.xlu0 %v236, 96
    %v998 = vpop.permute.xlu0 %997
    %999 = vrot.lane.b32.xlu0 %v241, 96
    %v1000 = vpop.permute.xlu0 %999
    %1001 = vrot.lane.b32.xlu0 %v246, 96
    %v1002 = vpop.permute.xlu0 %1001
    %1003 = vrot.lane.b32.xlu0 %v251, 96
    %v1004 = vpop.permute.xlu0 %1003
    %1005 = vrot.lane.b32.xlu0 %v256, 96
    %v1006 = vpop.permute.xlu0 %1005
    %1007 = vrot.lane.b32.xlu0 %v261, 96
    %v1008 = vpop.permute.xlu0 %1007
    %1009 = vrot.lane.b32.xlu0 %v266, 96
    %v1010 = vpop.permute.xlu0 %1009
    %1011 = vrot.lane.b32.xlu0 %v271, 96
    %v1012 = vpop.permute.xlu0 %1011
    %1013 = vrot.lane.b32.xlu0 %v276, 96
    %v1014 = vpop.permute.xlu0 %1013
    %1015 = vrot.lane.b32.xlu0 %v281, 96
    %v1016 = vpop.permute.xlu0 %1015
    %1017 = vrot.lane.b32.xlu0 %v286, 96
    %v1018 = vpop.permute.xlu0 %1017
    %1019 = vrot.lane.b32.xlu0 %v291, 96
    %v1020 = vpop.permute.xlu0 %1019
    %1021 = vrot.lane.b32.xlu0 %v296, 96
    %v1022 = vpop.permute.xlu0 %1021
    %v1023 = vsel %vm299, %v990, 0
    %v1025 = vsel %vm299, %v992, 0
    %v1027 = vsel %vm299, %v994, 0
    %v1029 = vsel %vm299, %v996, 0
    %v1031 = vsel %vm299, %v998, 0
    %v1033 = vsel %vm299, %v1000, 0
    %v1035 = vsel %vm299, %v1002, 0
    %v1037 = vsel %vm299, %v1004, 0
    %v1039 = vsel %vm299, %v1006, 0
    %v1041 = vsel %vm299, %v1008, 0
    %v1043 = vsel %vm299, %v1010, 0
    %v1045 = vsel %vm299, %v1012, 0
    %v1047 = vsel %vm299, %v1014, 0
    %v1049 = vsel %vm299, %v1016, 0
    %v1051 = vsel %vm299, %v1018, 0
    %v1053 = vsel %vm299, %v1020, 0
    %v1055 = vsel %vm299, %v1022, 0
    %1057 = vmatprep.subr.mxu0 0.0
    %1058 = vmatpush1.xpose.msra.mxu0 %v1025
    %1059 = vmatprep.subr.mxu0 0.0
    %1060 = vmatpush1.xpose.msra.mxu0 %v1027
    %1061 = vmatprep.subr.mxu0 0.0
    %1062 = vmatpush1.xpose.msra.mxu0 %v1029
    %1063 = vmatprep.subr.mxu0 0.0
    %1064 = vmatpush1.xpose.msra.mxu0 %v1031
    %1065 = vmatprep.subr.mxu0 0.0
    %1066 = vmatpush1.xpose.msra.mxu0 %v1033
    %1067 = vmatprep.subr.mxu0 0.0
    %1068 = vmatpush1.xpose.msra.mxu0 %v1035
    %1069 = vmatprep.subr.mxu0 0.0
    %1070 = vmatpush1.xpose.msra.mxu0 %v1037
    %1071 = vmatprep.subr.mxu0 0.0
    %1072 = vmatpush1.xpose.msra.mxu0 %v1039
    %1073 = vmatprep.subr.mxu0 0.0
    %1074 = vmatpush1.xpose.msra.mxu0 %v1041
    %1075 = vmatprep.subr.mxu0 0.0
    %1076 = vmatpush1.xpose.msra.mxu0 %v1043
    %1077 = vmatprep.subr.mxu0 0.0
    %1078 = vmatpush1.xpose.msra.mxu0 %v1045
    %1079 = vmatprep.subr.mxu0 0.0
    %1080 = vmatpush1.xpose.msra.mxu0 %v1047
    %1081 = vmatprep.subr.mxu0 0.0
    %1082 = vmatpush1.xpose.msra.mxu0 %v1049
    %1083 = vmatprep.subr.mxu0 0.0
    %1084 = vmatpush1.xpose.msra.mxu0 %v1051
    %1085 = vmatprep.subr.mxu0 0.0
    %1086 = vmatpush1.xpose.msra.mxu0 %v1053
    %1087 = vmatprep.subr.mxu0 0.0
    %1088 = vmatpush1.xpose.msra.mxu0 %v1055
    %1089 = vmatprep.subr.mxu0 0.0
    %1090 = vmatpush1.xpose.msra.mxu0 0.0
    %1091 = vmatprep.subr.mxu0 0.0
    %1092 = vmatpush1.xpose.msra.mxu0 0.0
    %1093 = vmatprep.subr.mxu0 0.0
    %1094 = vmatpush1.xpose.msra.mxu0 0.0
    %1095 = vmatprep.subr.mxu0 0.0
    %1096 = vmatpush1.xpose.msra.mxu0 0.0
    %1097 = vmatprep.subr.mxu0 0.0
    %1098 = vmatpush1.xpose.msra.mxu0 0.0
    %1099 = vmatprep.subr.mxu0 0.0
    %1100 = vmatpush1.xpose.msra.mxu0 0.0
    %1101 = vmatprep.subr.mxu0 0.0
    %1102 = vmatpush1.xpose.msra.mxu0 0.0
    %1103 = vmatprep.subr.mxu0 0.0
    %1104 = vmatpush1.xpose.msra.mxu0 0.0
    %1105 = vmatprep.subr.mxu0 0.0
    %1106 = vmatpush1.xpose.msra.mxu0 0.0
    %1107 = vmatprep.subr.mxu0 0.0
    %1108 = vmatpush1.xpose.msra.mxu0 0.0
    %1109 = vmatprep.subr.mxu0 0.0
    %1110 = vmatpush1.xpose.msra.mxu0 0.0
    %1111 = vmatprep.subr.mxu0 0.0
    %1112 = vmatpush1.xpose.msra.mxu0 0.0
    %1113 = vmatprep.subr.mxu0 0.0
    %1114 = vmatpush1.xpose.msra.mxu0 0.0
    %1115 = vmatprep.subr.mxu0 0.0
    %1116 = vmatpush1.xpose.msra.mxu0 0.0
    %1117 = vmatprep.subr.mxu0 0.0
    %1118 = vmatpush1.xpose.msra.mxu0 0.0
    %1119 = vmatprep.subr.mxu0 0.0
    %1120 = vmatpush1.xpose.msra.mxu0 0.0
    %1121 = vmatprep.mubr.f32.mxu0 0.0
    %1122 = vmatmul.mubr.f32.gmra.mrb[0].mxu0 %v1023
    %v1123 = vpop.f32.mrb[0].mxu0
    %v1124 = vadd.f32 0.0, %v1123
    %v1125 = vpop.f32.mrb[0].mxu0
    %1126 = vdwg.mxu0
    %v1127 = vlaneseq
    %v1128 = vshrl.u32 %v1127, 7
    %v1129 = vsub.s32 1, %v1128
    %v1130 = vrot.slane %v153, %v1129
    %1132 = vrot.lane.b32.xlu0 %v1130, 32
    %v1133 = vpop.permute.xlu0 %1132
    %v1135 = vmul.f32 %v221, %v1133
    %v1136 = vmul.f32 %v226, %v1133
    %v1137 = vmul.f32 %v231, %v1133
    %v1138 = vmul.f32 %v236, %v1133
    %v1139 = vmul.f32 %v241, %v1133
    %v1140 = vmul.f32 %v246, %v1133
    %v1141 = vmul.f32 %v251, %v1133
    %v1142 = vmul.f32 %v256, %v1133
    %v1143 = vmul.f32 %v261, %v1133
    %v1144 = vmul.f32 %v266, %v1133
    %v1145 = vmul.f32 %v271, %v1133
    %v1146 = vmul.f32 %v276, %v1133
    %v1147 = vmul.f32 %v281, %v1133
    %v1148 = vmul.f32 %v286, %v1133
    %v1149 = vmul.f32 %v291, %v1133
    %v1150 = vmul.f32 %v296, %v1133
    %1167 = vrot.lane.b32.xlu0 %v1135, 96
    %v1168 = vpop.permute.xlu0 %1167
    %1169 = vrot.lane.b32.xlu0 %v1136, 96
    %v1170 = vpop.permute.xlu0 %1169
    %1171 = vrot.lane.b32.xlu0 %v1137, 96
    %v1172 = vpop.permute.xlu0 %1171
    %1173 = vrot.lane.b32.xlu0 %v1138, 96
    %v1174 = vpop.permute.xlu0 %1173
    %1175 = vrot.lane.b32.xlu0 %v1139, 96
    %v1176 = vpop.permute.xlu0 %1175
    %1177 = vrot.lane.b32.xlu0 %v1140, 96
    %v1178 = vpop.permute.xlu0 %1177
    %1179 = vrot.lane.b32.xlu0 %v1141, 96
    %v1180 = vpop.permute.xlu0 %1179
    %1181 = vrot.lane.b32.xlu0 %v1142, 96
    %v1182 = vpop.permute.xlu0 %1181
    %1183 = vrot.lane.b32.xlu0 %v1143, 96
    %v1184 = vpop.permute.xlu0 %1183
    %1185 = vrot.lane.b32.xlu0 %v1144, 96
    %v1186 = vpop.permute.xlu0 %1185
    %1187 = vrot.lane.b32.xlu0 %v1145, 96
    %v1188 = vpop.permute.xlu0 %1187
    %1189 = vrot.lane.b32.xlu0 %v1146, 96
    %v1190 = vpop.permute.xlu0 %1189
    %1191 = vrot.lane.b32.xlu0 %v1147, 96
    %v1192 = vpop.permute.xlu0 %1191
    %1193 = vrot.lane.b32.xlu0 %v1148, 96
    %v1194 = vpop.permute.xlu0 %1193
    %1195 = vrot.lane.b32.xlu0 %v1149, 96
    %v1196 = vpop.permute.xlu0 %1195
    %1197 = vrot.lane.b32.xlu0 %v1150, 96
    %v1198 = vpop.permute.xlu0 %1197
    %v1215 = vsel %vm299, %v1168, 0.0
    %1216 = vadd.xlane.f32.xlu0 %v1215
    %v1217 = vpop.xlane.xlu0 %1216
    %v1218 = vsel %vm299, %v1170, 0.0
    %1219 = vadd.xlane.f32.xlu0 %v1218
    %v1220 = vpop.xlane.xlu0 %1219
    %v1221 = vsel %vm299, %v1172, 0.0
    %1222 = vadd.xlane.f32.xlu0 %v1221
    %v1223 = vpop.xlane.xlu0 %1222
    %v1224 = vsel %vm299, %v1174, 0.0
    %1225 = vadd.xlane.f32.xlu0 %v1224
    %v1226 = vpop.xlane.xlu0 %1225
    %v1227 = vsel %vm299, %v1176, 0.0
    %1228 = vadd.xlane.f32.xlu0 %v1227
    %v1229 = vpop.xlane.xlu0 %1228
    %v1230 = vsel %vm299, %v1178, 0.0
    %1231 = vadd.xlane.f32.xlu0 %v1230
    %v1232 = vpop.xlane.xlu0 %1231
    %v1233 = vsel %vm299, %v1180, 0.0
    %1234 = vadd.xlane.f32.xlu0 %v1233
    %v1235 = vpop.xlane.xlu0 %1234
    %v1236 = vsel %vm299, %v1182, 0.0
    %1237 = vadd.xlane.f32.xlu0 %v1236
    %v1238 = vpop.xlane.xlu0 %1237
    %v1239 = vsel %vm299, %v1184, 0.0
    %1240 = vadd.xlane.f32.xlu0 %v1239
    %v1241 = vpop.xlane.xlu0 %1240
    %v1242 = vsel %vm299, %v1186, 0.0
    %1243 = vadd.xlane.f32.xlu0 %v1242
    %v1244 = vpop.xlane.xlu0 %1243
    %v1245 = vsel %vm299, %v1188, 0.0
    %1246 = vadd.xlane.f32.xlu0 %v1245
    %v1247 = vpop.xlane.xlu0 %1246
    %v1248 = vsel %vm299, %v1190, 0.0
    %1249 = vadd.xlane.f32.xlu0 %v1248
    %v1250 = vpop.xlane.xlu0 %1249
    %v1251 = vsel %vm299, %v1192, 0.0
    %1252 = vadd.xlane.f32.xlu0 %v1251
    %v1253 = vpop.xlane.xlu0 %1252
    %v1254 = vsel %vm299, %v1194, 0.0
    %1255 = vadd.xlane.f32.xlu0 %v1254
    %v1256 = vpop.xlane.xlu0 %1255
    %v1257 = vsel %vm299, %v1196, 0.0
    %1258 = vadd.xlane.f32.xlu0 %v1257
    %v1259 = vpop.xlane.xlu0 %1258
    %v1260 = vsel %vm299, %v1198, 0.0
    %1261 = vadd.xlane.f32.xlu0 %v1260
    %v1262 = vpop.xlane.xlu0 %1261
    %v1263 = vlaneseq
    %v1264 = vshrl.u32 %v1263, 7
    %v1265 = vsub.s32 0, %v1264
    %v1266 = vrot.slane %v1124, %v1265
    %v1267 = vadd.f32 %v1217, %v1266
    %v1268 = vadd.f32 %v1220, %v1266
    %v1269 = vadd.f32 %v1223, %v1266
    %v1270 = vadd.f32 %v1226, %v1266
    %v1271 = vadd.f32 %v1229, %v1266
    %v1272 = vadd.f32 %v1232, %v1266
    %v1273 = vadd.f32 %v1235, %v1266
    %v1274 = vadd.f32 %v1238, %v1266
    %v1275 = vadd.f32 %v1241, %v1266
    %v1276 = vadd.f32 %v1244, %v1266
    %v1277 = vadd.f32 %v1247, %v1266
    %v1278 = vadd.f32 %v1250, %v1266
    %v1279 = vadd.f32 %v1253, %v1266
    %v1280 = vadd.f32 %v1256, %v1266
    %v1281 = vadd.f32 %v1259, %v1266
    %v1282 = vadd.f32 %v1262, %v1266
    %vm1283 = vcmp.ge.f32.partialorder %v1267, 0.0
    %vm1284 = vcmp.ge.f32.partialorder %v1268, 0.0
    %vm1285 = vcmp.ge.f32.partialorder %v1269, 0.0
    %vm1286 = vcmp.ge.f32.partialorder %v1270, 0.0
    %vm1287 = vcmp.ge.f32.partialorder %v1271, 0.0
    %vm1288 = vcmp.ge.f32.partialorder %v1272, 0.0
    %vm1289 = vcmp.ge.f32.partialorder %v1273, 0.0
    %vm1290 = vcmp.ge.f32.partialorder %v1274, 0.0
    %vm1291 = vcmp.ge.f32.partialorder %v1275, 0.0
    %vm1292 = vcmp.ge.f32.partialorder %v1276, 0.0
    %vm1293 = vcmp.ge.f32.partialorder %v1277, 0.0
    %vm1294 = vcmp.ge.f32.partialorder %v1278, 0.0
    %vm1295 = vcmp.ge.f32.partialorder %v1279, 0.0
    %vm1296 = vcmp.ge.f32.partialorder %v1280, 0.0
    %vm1297 = vcmp.ge.f32.partialorder %v1281, 0.0
    %vm1298 = vcmp.ge.f32.partialorder %v1282, 0.0
    %v1299 = vmul.f32 %v1267, 0.2
    %v1300 = vmul.f32 %v1268, 0.2
    %v1301 = vmul.f32 %v1269, 0.2
    %v1302 = vmul.f32 %v1270, 0.2
    %v1303 = vmul.f32 %v1271, 0.2
    %v1304 = vmul.f32 %v1272, 0.2
    %v1305 = vmul.f32 %v1273, 0.2
    %v1306 = vmul.f32 %v1274, 0.2
    %v1307 = vmul.f32 %v1275, 0.2
    %v1308 = vmul.f32 %v1276, 0.2
    %v1309 = vmul.f32 %v1277, 0.2
    %v1310 = vmul.f32 %v1278, 0.2
    %v1311 = vmul.f32 %v1279, 0.2
    %v1312 = vmul.f32 %v1280, 0.2
    %v1313 = vmul.f32 %v1281, 0.2
    %v1314 = vmul.f32 %v1282, 0.2
    %v1315 = vsel %vm1283, %v1267, %v1299
    %v1316 = vsel %vm1284, %v1268, %v1300
    %v1317 = vsel %vm1285, %v1269, %v1301
    %v1318 = vsel %vm1286, %v1270, %v1302
    %v1319 = vsel %vm1287, %v1271, %v1303
    %v1320 = vsel %vm1288, %v1272, %v1304
    %v1321 = vsel %vm1289, %v1273, %v1305
    %v1322 = vsel %vm1290, %v1274, %v1306
    %v1323 = vsel %vm1291, %v1275, %v1307
    %v1324 = vsel %vm1292, %v1276, %v1308
    %v1325 = vsel %vm1293, %v1277, %v1309
    %v1326 = vsel %vm1294, %v1278, %v1310
    %v1327 = vsel %vm1295, %v1279, %v1311
    %v1328 = vsel %vm1296, %v1280, %v1312
    %v1329 = vsel %vm1297, %v1281, %v1313
    %v1330 = vsel %vm1298, %v1282, %v1314
    %v1331 = vsel %vm557, %v1315, -1e+30
    %v1332 = vsel %vm558, %v1316, -1e+30
    %v1333 = vsel %vm559, %v1317, -1e+30
    %v1334 = vsel %vm560, %v1318, -1e+30
    %v1335 = vsel %vm561, %v1319, -1e+30
    %v1336 = vsel %vm562, %v1320, -1e+30
    %v1337 = vsel %vm563, %v1321, -1e+30
    %v1338 = vsel %vm564, %v1322, -1e+30
    %v1339 = vsel %vm565, %v1323, -1e+30
    %v1340 = vsel %vm566, %v1324, -1e+30
    %v1341 = vsel %vm567, %v1325, -1e+30
    %v1342 = vsel %vm568, %v1326, -1e+30
    %v1343 = vsel %vm569, %v1327, -1e+30
    %v1344 = vsel %vm570, %v1328, -1e+30
    %v1345 = vsel %vm571, %v1329, -1e+30
    %v1346 = vsel %vm572, %v1330, -1e+30
    %1347 = vmax.xlane.f32.xlu0 %v1331
    %v1348 = vpop.xlane.xlu0 %1347
    %1349 = vmax.xlane.f32.xlu0 %v1332
    %v1350 = vpop.xlane.xlu0 %1349
    %1351 = vmax.xlane.f32.xlu0 %v1333
    %v1352 = vpop.xlane.xlu0 %1351
    %1353 = vmax.xlane.f32.xlu0 %v1334
    %v1354 = vpop.xlane.xlu0 %1353
    %1355 = vmax.xlane.f32.xlu0 %v1335
    %v1356 = vpop.xlane.xlu0 %1355
    %1357 = vmax.xlane.f32.xlu0 %v1336
    %v1358 = vpop.xlane.xlu0 %1357
    %1359 = vmax.xlane.f32.xlu0 %v1337
    %v1360 = vpop.xlane.xlu0 %1359
    %1361 = vmax.xlane.f32.xlu0 %v1338
    %v1362 = vpop.xlane.xlu0 %1361
    %1363 = vmax.xlane.f32.xlu0 %v1339
    %v1364 = vpop.xlane.xlu0 %1363
    %1365 = vmax.xlane.f32.xlu0 %v1340
    %v1366 = vpop.xlane.xlu0 %1365
    %1367 = vmax.xlane.f32.xlu0 %v1341
    %v1368 = vpop.xlane.xlu0 %1367
    %1369 = vmax.xlane.f32.xlu0 %v1342
    %v1370 = vpop.xlane.xlu0 %1369
    %1371 = vmax.xlane.f32.xlu0 %v1343
    %v1372 = vpop.xlane.xlu0 %1371
    %1373 = vmax.xlane.f32.xlu0 %v1344
    %v1374 = vpop.xlane.xlu0 %1373
    %1375 = vmax.xlane.f32.xlu0 %v1345
    %v1376 = vpop.xlane.xlu0 %1375
    %1377 = vmax.xlane.f32.xlu0 %v1346
    %v1378 = vpop.xlane.xlu0 %1377
    %v1379 = vsub.f32 %v1331, %v1348
    %v1380 = vsub.f32 %v1332, %v1350
    %v1381 = vsub.f32 %v1333, %v1352
    %v1382 = vsub.f32 %v1334, %v1354
    %v1383 = vsub.f32 %v1335, %v1356
    %v1384 = vsub.f32 %v1336, %v1358
    %v1385 = vsub.f32 %v1337, %v1360
    %v1386 = vsub.f32 %v1338, %v1362
    %v1387 = vsub.f32 %v1339, %v1364
    %v1388 = vsub.f32 %v1340, %v1366
    %v1389 = vsub.f32 %v1341, %v1368
    %v1390 = vsub.f32 %v1342, %v1370
    %v1391 = vsub.f32 %v1343, %v1372
    %v1392 = vsub.f32 %v1344, %v1374
    %v1393 = vsub.f32 %v1345, %v1376
    %v1394 = vsub.f32 %v1346, %v1378
    %v1395 = vmul.f32 %v1379, 1.442695
    %v1396 = vpow.pop %v1395
    %v1397 = vmul.f32 %v1380, 1.442695
    %v1398 = vpow.pop %v1397
    %v1399 = vmul.f32 %v1381, 1.442695
    %v1400 = vpow.pop %v1399
    %v1401 = vmul.f32 %v1382, 1.442695
    %v1402 = vpow.pop %v1401
    %v1403 = vmul.f32 %v1383, 1.442695
    %v1404 = vpow.pop %v1403
    %v1405 = vmul.f32 %v1384, 1.442695
    %v1406 = vpow.pop %v1405
    %v1407 = vmul.f32 %v1385, 1.442695
    %v1408 = vpow.pop %v1407
    %v1409 = vmul.f32 %v1386, 1.442695
    %v1410 = vpow.pop %v1409
    %v1411 = vmul.f32 %v1387, 1.442695
    %v1412 = vpow.pop %v1411
    %v1413 = vmul.f32 %v1388, 1.442695
    %v1414 = vpow.pop %v1413
    %v1415 = vmul.f32 %v1389, 1.442695
    %v1416 = vpow.pop %v1415
    %v1417 = vmul.f32 %v1390, 1.442695
    %v1418 = vpow.pop %v1417
    %v1419 = vmul.f32 %v1391, 1.442695
    %v1420 = vpow.pop %v1419
    %v1421 = vmul.f32 %v1392, 1.442695
    %v1422 = vpow.pop %v1421
    %v1423 = vmul.f32 %v1393, 1.442695
    %v1424 = vpow.pop %v1423
    %v1425 = vmul.f32 %v1394, 1.442695
    %v1426 = vpow.pop %v1425
    %v1427 = vmul.f32 %v1396, %v104
    %v1428 = vmul.f32 %v1398, %v105
    %v1429 = vmul.f32 %v1400, %v106
    %v1430 = vmul.f32 %v1402, %v107
    %v1431 = vmul.f32 %v1404, %v108
    %v1432 = vmul.f32 %v1406, %v109
    %v1433 = vmul.f32 %v1408, %v110
    %v1434 = vmul.f32 %v1410, %v111
    %v1435 = vmul.f32 %v1412, %v112
    %v1436 = vmul.f32 %v1414, %v113
    %v1437 = vmul.f32 %v1416, %v114
    %v1438 = vmul.f32 %v1418, %v115
    %v1439 = vmul.f32 %v1420, %v116
    %v1440 = vmul.f32 %v1422, %v117
    %v1441 = vmul.f32 %v1424, %v118
    %v1442 = vmul.f32 %v1426, %v119
    %1443 = vadd.xlane.f32.xlu0 %v1427
    %v1444 = vpop.xlane.xlu0 %1443
    %1445 = vadd.xlane.f32.xlu0 %v1428
    %v1446 = vpop.xlane.xlu0 %1445
    %1447 = vadd.xlane.f32.xlu0 %v1429
    %v1448 = vpop.xlane.xlu0 %1447
    %1449 = vadd.xlane.f32.xlu0 %v1430
    %v1450 = vpop.xlane.xlu0 %1449
    %1451 = vadd.xlane.f32.xlu0 %v1431
    %v1452 = vpop.xlane.xlu0 %1451
    %1453 = vadd.xlane.f32.xlu0 %v1432
    %v1454 = vpop.xlane.xlu0 %1453
    %1455 = vadd.xlane.f32.xlu0 %v1433
    %v1456 = vpop.xlane.xlu0 %1455
    %1457 = vadd.xlane.f32.xlu0 %v1434
    %v1458 = vpop.xlane.xlu0 %1457
    %1459 = vadd.xlane.f32.xlu0 %v1435
    %v1460 = vpop.xlane.xlu0 %1459
    %1461 = vadd.xlane.f32.xlu0 %v1436
    %v1462 = vpop.xlane.xlu0 %1461
    %1463 = vadd.xlane.f32.xlu0 %v1437
    %v1464 = vpop.xlane.xlu0 %1463
    %1465 = vadd.xlane.f32.xlu0 %v1438
    %v1466 = vpop.xlane.xlu0 %1465
    %1467 = vadd.xlane.f32.xlu0 %v1439
    %v1468 = vpop.xlane.xlu0 %1467
    %1469 = vadd.xlane.f32.xlu0 %v1440
    %v1470 = vpop.xlane.xlu0 %1469
    %1471 = vadd.xlane.f32.xlu0 %v1441
    %v1472 = vpop.xlane.xlu0 %1471
    %1473 = vadd.xlane.f32.xlu0 %v1442
    %v1474 = vpop.xlane.xlu0 %1473
    %v1475 = vrcp.pop %v1444
    %v1476 = vmul.f32 %v1427, %v1475
    %v1477 = vrcp.pop %v1446
    %v1478 = vmul.f32 %v1428, %v1477
    %v1479 = vrcp.pop %v1448
    %v1480 = vmul.f32 %v1429, %v1479
    %v1481 = vrcp.pop %v1450
    %v1482 = vmul.f32 %v1430, %v1481
    %v1483 = vrcp.pop %v1452
    %v1484 = vmul.f32 %v1431, %v1483
    %v1485 = vrcp.pop %v1454
    %v1486 = vmul.f32 %v1432, %v1485
    %v1487 = vrcp.pop %v1456
    %v1488 = vmul.f32 %v1433, %v1487
    %v1489 = vrcp.pop %v1458
    %v1490 = vmul.f32 %v1434, %v1489
    %v1491 = vrcp.pop %v1460
    %v1492 = vmul.f32 %v1435, %v1491
    %v1493 = vrcp.pop %v1462
    %v1494 = vmul.f32 %v1436, %v1493
    %v1495 = vrcp.pop %v1464
    %v1496 = vmul.f32 %v1437, %v1495
    %v1497 = vrcp.pop %v1466
    %v1498 = vmul.f32 %v1438, %v1497
    %v1499 = vrcp.pop %v1468
    %v1500 = vmul.f32 %v1439, %v1499
    %v1501 = vrcp.pop %v1470
    %v1502 = vmul.f32 %v1440, %v1501
    %v1503 = vrcp.pop %v1472
    %v1504 = vmul.f32 %v1441, %v1503
    %v1505 = vrcp.pop %v1474
    %v1506 = vmul.f32 %v1442, %v1505
    %1523 = vmatprep.subr.mxu0 0.0
    %1524 = vmatpush1.msra.mxu0 %v992
    %1525 = vmatprep.subr.mxu0 0.0
    %1526 = vmatpush1.msra.mxu0 %v994
    %1527 = vmatprep.subr.mxu0 0.0
    %1528 = vmatpush1.msra.mxu0 %v996
    %1529 = vmatprep.subr.mxu0 0.0
    %1530 = vmatpush1.msra.mxu0 %v998
    %1531 = vmatprep.subr.mxu0 0.0
    %1532 = vmatpush1.msra.mxu0 %v1000
    %1533 = vmatprep.subr.mxu0 0.0
    %1534 = vmatpush1.msra.mxu0 %v1002
    %1535 = vmatprep.subr.mxu0 0.0
    %1536 = vmatpush1.msra.mxu0 %v1004
    %1537 = vmatprep.subr.mxu0 0.0
    %1538 = vmatpush1.msra.mxu0 %v1006
    %1539 = vmatprep.subr.mxu0 0.0
    %1540 = vmatpush1.msra.mxu0 %v1008
    %1541 = vmatprep.subr.mxu0 0.0
    %1542 = vmatpush1.msra.mxu0 %v1010
    %1543 = vmatprep.subr.mxu0 0.0
    %1544 = vmatpush1.msra.mxu0 %v1012
    %1545 = vmatprep.subr.mxu0 0.0
    %1546 = vmatpush1.msra.mxu0 %v1014
    %1547 = vmatprep.subr.mxu0 0.0
    %1548 = vmatpush1.msra.mxu0 %v1016
    %1549 = vmatprep.subr.mxu0 0.0
    %1550 = vmatpush1.msra.mxu0 %v1018
    %1551 = vmatprep.subr.mxu0 0.0
    %1552 = vmatpush1.msra.mxu0 %v1020
    %1553 = vmatprep.subr.mxu0 0.0
    %1554 = vmatpush1.msra.mxu0 %v1022
    %1555 = vmatprep.subr.mxu0 0.0
    %1556 = vmatpush1.msra.mxu0 0.0
    %1557 = vmatprep.subr.mxu0 0.0
    %1558 = vmatpush1.msra.mxu0 0.0
    %1559 = vmatprep.subr.mxu0 0.0
    %1560 = vmatpush1.msra.mxu0 0.0
    %1561 = vmatprep.subr.mxu0 0.0
    %1562 = vmatpush1.msra.mxu0 0.0
    %1563 = vmatprep.subr.mxu0 0.0
    %1564 = vmatpush1.msra.mxu0 0.0
    %1565 = vmatprep.subr.mxu0 0.0
    %1566 = vmatpush1.msra.mxu0 0.0
    %1567 = vmatprep.subr.mxu0 0.0
    %1568 = vmatpush1.msra.mxu0 0.0
    %1569 = vmatprep.subr.mxu0 0.0
    %1570 = vmatpush1.msra.mxu0 0.0
    %1571 = vmatprep.subr.mxu0 0.0
    %1572 = vmatpush1.msra.mxu0 0.0
    %1573 = vmatprep.subr.mxu0 0.0
    %1574 = vmatpush1.msra.mxu0 0.0
    %1575 = vmatprep.subr.mxu0 0.0
    %1576 = vmatpush1.msra.mxu0 0.0
    %1577 = vmatprep.subr.mxu0 0.0
    %1578 = vmatpush1.msra.mxu0 0.0
    %1579 = vmatprep.subr.mxu0 0.0
    %1580 = vmatpush1.msra.mxu0 0.0
    %1581 = vmatprep.subr.mxu0 0.0
    %1582 = vmatpush1.msra.mxu0 0.0
    %1583 = vmatprep.subr.mxu0 0.0
    %1584 = vmatpush1.msra.mxu0 0.0
    %1585 = vmatprep.subr.mxu0 0.0
    %1586 = vmatpush1.msra.mxu0 0.0
    %1587 = vmatprep.mubr.f32.mxu0 0.0
    %1588 = vmatmul.mubr.f32.gmra.mrb[0].mxu0 %v1476
    %v1589 = vpop.f32.mrb[0].mxu0
    %v1590 = vadd.f32 0.0, %v1589
    %v1591 = vpop.f32.mrb[0].mxu0
    %1592 = vmatprep.mubr.f32.mxu0 0.0
    %1593 = vmatmul.mubr.f32.gmra.mrb[0].mxu0 %v1478
    %v1594 = vpop.f32.mrb[0].mxu0
    %v1595 = vadd.f32 0.0, %v1594
    %v1596 = vpop.f32.mrb[0].mxu0
    %1597 = vmatprep.mubr.f32.mxu0 0.0
    %1598 = vmatmul.mubr.f32.gmra.mrb[0].mxu0 %v1480
    %v1599 = vpop.f32.mrb[0].mxu0
    %v1600 = vadd.f32 0.0, %v1599
    %v1601 = vpop.f32.mrb[0].mxu0
    %1602 = vmatprep.mubr.f32.mxu0 0.0
    %1603 = vmatmul.mubr.f32.gmra.mrb[0].mxu0 %v1482
    %v1604 = vpop.f32.mrb[0].mxu0
    %v1605 = vadd.f32 0.0, %v1604
    %v1606 = vpop.f32.mrb[0].mxu0
    %1607 = vmatprep.mubr.f32.mxu0 0.0
    %1608 = vmatmul.mubr.f32.gmra.mrb[0].mxu0 %v1484
    %v1609 = vpop.f32.mrb[0].mxu0
    %v1610 = vadd.f32 0.0, %v1609
    %v1611 = vpop.f32.mrb[0].mxu0
    %1612 = vmatprep.mubr.f32.mxu0 0.0
    %1613 = vmatmul.mubr.f32.gmra.mrb[0].mxu0 %v1486
    %v1614 = vpop.f32.mrb[0].mxu0
    %v1615 = vadd.f32 0.0, %v1614
    %v1616 = vpop.f32.mrb[0].mxu0
    %1617 = vmatprep.mubr.f32.mxu0 0.0
    %1618 = vmatmul.mubr.f32.gmra.mrb[0].mxu0 %v1488
    %v1619 = vpop.f32.mrb[0].mxu0
    %v1620 = vadd.f32 0.0, %v1619
    %v1621 = vpop.f32.mrb[0].mxu0
    %1622 = vmatprep.mubr.f32.mxu0 0.0
    %1623 = vmatmul.mubr.f32.gmra.mrb[0].mxu0 %v1490
    %v1624 = vpop.f32.mrb[0].mxu0
    %v1625 = vadd.f32 0.0, %v1624
    %v1626 = vpop.f32.mrb[0].mxu0
    %1627 = vmatprep.mubr.f32.mxu0 0.0
    %1628 = vmatmul.mubr.f32.gmra.mrb[0].mxu0 %v1492
    %v1629 = vpop.f32.mrb[0].mxu0
    %v1630 = vadd.f32 0.0, %v1629
    %v1631 = vpop.f32.mrb[0].mxu0
    %1632 = vmatprep.mubr.f32.mxu0 0.0
    %1633 = vmatmul.mubr.f32.gmra.mrb[0].mxu0 %v1494
    %v1634 = vpop.f32.mrb[0].mxu0
    %v1635 = vadd.f32 0.0, %v1634
    %v1636 = vpop.f32.mrb[0].mxu0
    %1637 = vmatprep.mubr.f32.mxu0 0.0
    %1638 = vmatmul.mubr.f32.gmra.mrb[0].mxu0 %v1496
    %v1639 = vpop.f32.mrb[0].mxu0
    %v1640 = vadd.f32 0.0, %v1639
    %v1641 = vpop.f32.mrb[0].mxu0
    %1642 = vmatprep.mubr.f32.mxu0 0.0
    %1643 = vmatmul.mubr.f32.gmra.mrb[0].mxu0 %v1498
    %v1644 = vpop.f32.mrb[0].mxu0
    %v1645 = vadd.f32 0.0, %v1644
    %v1646 = vpop.f32.mrb[0].mxu0
    %1647 = vmatprep.mubr.f32.mxu0 0.0
    %1648 = vmatmul.mubr.f32.gmra.mrb[0].mxu0 %v1500
    %v1649 = vpop.f32.mrb[0].mxu0
    %v1650 = vadd.f32 0.0, %v1649
    %v1651 = vpop.f32.mrb[0].mxu0
    %1652 = vmatprep.mubr.f32.mxu0 0.0
    %1653 = vmatmul.mubr.f32.gmra.mrb[0].mxu0 %v1502
    %v1654 = vpop.f32.mrb[0].mxu0
    %v1655 = vadd.f32 0.0, %v1654
    %v1656 = vpop.f32.mrb[0].mxu0
    %1657 = vmatprep.mubr.f32.mxu0 0.0
    %1658 = vmatmul.mubr.f32.gmra.mrb[0].mxu0 %v1504
    %v1659 = vpop.f32.mrb[0].mxu0
    %v1660 = vadd.f32 0.0, %v1659
    %v1661 = vpop.f32.mrb[0].mxu0
    %1662 = vmatprep.mubr.f32.mxu0 0.0
    %1663 = vmatmul.mubr.f32.gmra.mrb[0].mxu0 %v1506
    %v1664 = vpop.f32.mrb[0].mxu0
    %v1665 = vadd.f32 0.0, %v1664
    %v1666 = vpop.f32.mrb[0].mxu0
    %1667 = vdwg.mxu0
    %vm1668 = vcmp.gt.f32.partialorder %v1590, 0.0
    %vm1669 = vcmp.gt.f32.partialorder %v1595, 0.0
    %vm1670 = vcmp.gt.f32.partialorder %v1600, 0.0
    %vm1671 = vcmp.gt.f32.partialorder %v1605, 0.0
    %vm1672 = vcmp.gt.f32.partialorder %v1610, 0.0
    %vm1673 = vcmp.gt.f32.partialorder %v1615, 0.0
    %vm1674 = vcmp.gt.f32.partialorder %v1620, 0.0
    %vm1675 = vcmp.gt.f32.partialorder %v1625, 0.0
    %vm1676 = vcmp.gt.f32.partialorder %v1630, 0.0
    %vm1677 = vcmp.gt.f32.partialorder %v1635, 0.0
    %vm1678 = vcmp.gt.f32.partialorder %v1640, 0.0
    %vm1679 = vcmp.gt.f32.partialorder %v1645, 0.0
    %vm1680 = vcmp.gt.f32.partialorder %v1650, 0.0
    %vm1681 = vcmp.gt.f32.partialorder %v1655, 0.0
    %vm1682 = vcmp.gt.f32.partialorder %v1660, 0.0
    %vm1683 = vcmp.gt.f32.partialorder %v1665, 0.0
    %v1684 = vmul.f32 %v1590, 1.442695
    %v1685 = vpow.pop %v1684
    %v1686 = vmul.f32 %v1595, 1.442695
    %v1687 = vpow.pop %v1686
    %v1688 = vmul.f32 %v1600, 1.442695
    %v1689 = vpow.pop %v1688
    %v1690 = vmul.f32 %v1605, 1.442695
    %v1691 = vpow.pop %v1690
    %v1692 = vmul.f32 %v1610, 1.442695
    %v1693 = vpow.pop %v1692
    %v1694 = vmul.f32 %v1615, 1.442695
    %v1695 = vpow.pop %v1694
    %v1696 = vmul.f32 %v1620, 1.442695
    %v1697 = vpow.pop %v1696
    %v1698 = vmul.f32 %v1625, 1.442695
    %v1699 = vpow.pop %v1698
    %v1700 = vmul.f32 %v1630, 1.442695
    %v1701 = vpow.pop %v1700
    %v1702 = vmul.f32 %v1635, 1.442695
    %v1703 = vpow.pop %v1702
    %v1704 = vmul.f32 %v1640, 1.442695
    %v1705 = vpow.pop %v1704
    %v1706 = vmul.f32 %v1645, 1.442695
    %v1707 = vpow.pop %v1706
    %v1708 = vmul.f32 %v1650, 1.442695
    %v1709 = vpow.pop %v1708
    %v1710 = vmul.f32 %v1655, 1.442695
    %v1711 = vpow.pop %v1710
    %v1712 = vmul.f32 %v1660, 1.442695
    %v1713 = vpow.pop %v1712
    %v1714 = vmul.f32 %v1665, 1.442695
    %v1715 = vpow.pop %v1714
    %v1716 = vsub.f32 %v1685, 1.0
    %v1717 = vsub.f32 %v1687, 1.0
    %v1718 = vsub.f32 %v1689, 1.0
    %v1719 = vsub.f32 %v1691, 1.0
    %v1720 = vsub.f32 %v1693, 1.0
    %v1721 = vsub.f32 %v1695, 1.0
    %v1722 = vsub.f32 %v1697, 1.0
    %v1723 = vsub.f32 %v1699, 1.0
    %v1724 = vsub.f32 %v1701, 1.0
    %v1725 = vsub.f32 %v1703, 1.0
    %v1726 = vsub.f32 %v1705, 1.0
    %v1727 = vsub.f32 %v1707, 1.0
    %v1728 = vsub.f32 %v1709, 1.0
    %v1729 = vsub.f32 %v1711, 1.0
    %v1730 = vsub.f32 %v1713, 1.0
    %v1731 = vsub.f32 %v1715, 1.0
    %v1732 = vsel %vm1668, %v1590, %v1716
    %v1733 = vsel %vm1669, %v1595, %v1717
    %v1734 = vsel %vm1670, %v1600, %v1718
    %v1735 = vsel %vm1671, %v1605, %v1719
    %v1736 = vsel %vm1672, %v1610, %v1720
    %v1737 = vsel %vm1673, %v1615, %v1721
    %v1738 = vsel %vm1674, %v1620, %v1722
    %v1739 = vsel %vm1675, %v1625, %v1723
    %v1740 = vsel %vm1676, %v1630, %v1724
    %v1741 = vsel %vm1677, %v1635, %v1725
    %v1742 = vsel %vm1678, %v1640, %v1726
    %v1743 = vsel %vm1679, %v1645, %v1727
    %v1744 = vsel %vm1680, %v1650, %v1728
    %v1745 = vsel %vm1681, %v1655, %v1729
    %v1746 = vsel %vm1682, %v1660, %v1730
    %v1747 = vsel %vm1683, %v1665, %v1731
    %1764 = vrot.lane.b32.xlu0 %v1732, 32
    %v1765 = vpop.permute.xlu0 %1764
    %1766 = vrot.lane.b32.xlu0 %v1733, 32
    %v1767 = vpop.permute.xlu0 %1766
    %1768 = vrot.lane.b32.xlu0 %v1734, 32
    %v1769 = vpop.permute.xlu0 %1768
    %1770 = vrot.lane.b32.xlu0 %v1735, 32
    %v1771 = vpop.permute.xlu0 %1770
    %1772 = vrot.lane.b32.xlu0 %v1736, 32
    %v1773 = vpop.permute.xlu0 %1772
    %1774 = vrot.lane.b32.xlu0 %v1737, 32
    %v1775 = vpop.permute.xlu0 %1774
    %1776 = vrot.lane.b32.xlu0 %v1738, 32
    %v1777 = vpop.permute.xlu0 %1776
    %1778 = vrot.lane.b32.xlu0 %v1739, 32
    %v1779 = vpop.permute.xlu0 %1778
    %1780 = vrot.lane.b32.xlu0 %v1740, 32
    %v1781 = vpop.permute.xlu0 %1780
    %1782 = vrot.lane.b32.xlu0 %v1741, 32
    %v1783 = vpop.permute.xlu0 %1782
    %1784 = vrot.lane.b32.xlu0 %v1742, 32
    %v1785 = vpop.permute.xlu0 %1784
    %1786 = vrot.lane.b32.xlu0 %v1743, 32
    %v1787 = vpop.permute.xlu0 %1786
    %1788 = vrot.lane.b32.xlu0 %v1744, 32
    %v1789 = vpop.permute.xlu0 %1788
    %1790 = vrot.lane.b32.xlu0 %v1745, 32
    %v1791 = vpop.permute.xlu0 %1790
    %1792 = vrot.lane.b32.xlu0 %v1746, 32
    %v1793 = vpop.permute.xlu0 %1792
    %1794 = vrot.lane.b32.xlu0 %v1747, 32
    %v1795 = vpop.permute.xlu0 %1794
    %vm1812 = vcmask 523520
    %1813 = vst.msk [vmem:[#allocation2] sm:$0xff] %vm1812, %v1765
    %1814 = vst.msk [vmem:[#allocation2 + $0x8] sm:$0xff] %vm1812, %v1767
    %1815 = vst.msk [vmem:[#allocation2 + $0x10] sm:$0xff] %vm1812, %v1769
    %1816 = vst.msk [vmem:[#allocation2 + $0x18] sm:$0xff] %vm1812, %v1771
    %1817 = vst.msk [vmem:[#allocation2 + $0x20] sm:$0xff] %vm1812, %v1773
    %1818 = vst.msk [vmem:[#allocation2 + $0x28] sm:$0xff] %vm1812, %v1775
    %1819 = vst.msk [vmem:[#allocation2 + $0x30] sm:$0xff] %vm1812, %v1777
    %1820 = vst.msk [vmem:[#allocation2 + $0x38] sm:$0xff] %vm1812, %v1779
    %1821 = vst.msk [vmem:[#allocation2 + $0x40] sm:$0xff] %vm1812, %v1781
    %1822 = vst.msk [vmem:[#allocation2 + $0x48] sm:$0xff] %vm1812, %v1783
    %1823 = vst.msk [vmem:[#allocation2 + $0x50] sm:$0xff] %vm1812, %v1785
    %1824 = vst.msk [vmem:[#allocation2 + $0x58] sm:$0xff] %vm1812, %v1787
    %1825 = vst.msk [vmem:[#allocation2 + $0x60] sm:$0xff] %vm1812, %v1789
    %1826 = vst.msk [vmem:[#allocation2 + $0x68] sm:$0xff] %vm1812, %v1791
    %1827 = vst.msk [vmem:[#allocation2 + $0x70] sm:$0xff] %vm1812, %v1793
    %1828 = vst.msk [vmem:[#allocation2 + $0x78] sm:$0xff] %vm1812, %v1795
    %v1829 = vrot.slane %v152, 2
    %1830 = vrot.lane.b32.xlu0 %v221, 64
    %v1831 = vpop.permute.xlu0 %1830
    %1832 = vrot.lane.b32.xlu0 %v226, 64
    %v1833 = vpop.permute.xlu0 %1832
    %1834 = vrot.lane.b32.xlu0 %v231, 64
    %v1835 = vpop.permute.xlu0 %1834
    %1836 = vrot.lane.b32.xlu0 %v236, 64
    %v1837 = vpop.permute.xlu0 %1836
    %1838 = vrot.lane.b32.xlu0 %v241, 64
    %v1839 = vpop.permute.xlu0 %1838
    %1840 = vrot.lane.b32.xlu0 %v246, 64
    %v1841 = vpop.permute.xlu0 %1840
    %1842 = vrot.lane.b32.xlu0 %v251, 64
    %v1843 = vpop.permute.xlu0 %1842
    %1844 = vrot.lane.b32.xlu0 %v256, 64
    %v1845 = vpop.permute.xlu0 %1844
    %1846 = vrot.lane.b32.xlu0 %v261, 64
    %v1847 = vpop.permute.xlu0 %1846
    %1848 = vrot.lane.b32.xlu0 %v266, 64
    %v1849 = vpop.permute.xlu0 %1848
    %1850 = vrot.lane.b32.xlu0 %v271, 64
    %v1851 = vpop.permute.xlu0 %1850
    %1852 = vrot.lane.b32.xlu0 %v276, 64
    %v1853 = vpop.permute.xlu0 %1852
    %1854 = vrot.lane.b32.xlu0 %v281, 64
    %v1855 = vpop.permute.xlu0 %1854
    %1856 = vrot.lane.b32.xlu0 %v286, 64
    %v1857 = vpop.permute.xlu0 %1856
    %1858 = vrot.lane.b32.xlu0 %v291, 64
    %v1859 = vpop.permute.xlu0 %1858
    %1860 = vrot.lane.b32.xlu0 %v296, 64
    %v1861 = vpop.permute.xlu0 %1860
    %v1862 = vsel %vm299, %v1829, 0
    %v1864 = vsel %vm299, %v1831, 0
    %v1866 = vsel %vm299, %v1833, 0
    %v1868 = vsel %vm299, %v1835, 0
    %v1870 = vsel %vm299, %v1837, 0
    %v1872 = vsel %vm299, %v1839, 0
    %v1874 = vsel %vm299, %v1841, 0
    %v1876 = vsel %vm299, %v1843, 0
    %v1878 = vsel %vm299, %v1845, 0
    %v1880 = vsel %vm299, %v1847, 0
    %v1882 = vsel %vm299, %v1849, 0
    %v1884 = vsel %vm299, %v1851, 0
    %v1886 = vsel %vm299, %v1853, 0
    %v1888 = vsel %vm299, %v1855, 0
    %v1890 = vsel %vm299, %v1857, 0
    %v1892 = vsel %vm299, %v1859, 0
    %v1894 = vsel %vm299, %v1861, 0
    %1896 = vmatprep.subr.mxu0 0.0
    %1897 = vmatpush1.xpose.msra.mxu0 %v1864
    %1898 = vmatprep.subr.mxu0 0.0
    %1899 = vmatpush1.xpose.msra.mxu0 %v1866
    %1900 = vmatprep.subr.mxu0 0.0
    %1901 = vmatpush1.xpose.msra.mxu0 %v1868
    %1902 = vmatprep.subr.mxu0 0.0
    %1903 = vmatpush1.xpose.msra.mxu0 %v1870
    %1904 = vmatprep.subr.mxu0 0.0
    %1905 = vmatpush1.xpose.msra.mxu0 %v1872
    %1906 = vmatprep.subr.mxu0 0.0
    %1907 = vmatpush1.xpose.msra.mxu0 %v1874
    %1908 = vmatprep.subr.mxu0 0.0
    %1909 = vmatpush1.xpose.msra.mxu0 %v1876
    %1910 = vmatprep.subr.mxu0 0.0
    %1911 = vmatpush1.xpose.msra.mxu0 %v1878
    %1912 = vmatprep.subr.mxu0 0.0
    %1913 = vmatpush1.xpose.msra.mxu0 %v1880
    %1914 = vmatprep.subr.mxu0 0.0
    %1915 = vmatpush1.xpose.msra.mxu0 %v1882
    %1916 = vmatprep.subr.mxu0 0.0
    %1917 = vmatpush1.xpose.msra.mxu0 %v1884
    %1918 = vmatprep.subr.mxu0 0.0
    %1919 = vmatpush1.xpose.msra.mxu0 %v1886
    %1920 = vmatprep.subr.mxu0 0.0
    %1921 = vmatpush1.xpose.msra.mxu0 %v1888
    %1922 = vmatprep.subr.mxu0 0.0
    %1923 = vmatpush1.xpose.msra.mxu0 %v1890
    %1924 = vmatprep.subr.mxu0 0.0
    %1925 = vmatpush1.xpose.msra.mxu0 %v1892
    %1926 = vmatprep.subr.mxu0 0.0
    %1927 = vmatpush1.xpose.msra.mxu0 %v1894
    %1928 = vmatprep.subr.mxu0 0.0
    %1929 = vmatpush1.xpose.msra.mxu0 0.0
    %1930 = vmatprep.subr.mxu0 0.0
    %1931 = vmatpush1.xpose.msra.mxu0 0.0
    %1932 = vmatprep.subr.mxu0 0.0
    %1933 = vmatpush1.xpose.msra.mxu0 0.0
    %1934 = vmatprep.subr.mxu0 0.0
    %1935 = vmatpush1.xpose.msra.mxu0 0.0
    %1936 = vmatprep.subr.mxu0 0.0
    %1937 = vmatpush1.xpose.msra.mxu0 0.0
    %1938 = vmatprep.subr.mxu0 0.0
    %1939 = vmatpush1.xpose.msra.mxu0 0.0
    %1940 = vmatprep.subr.mxu0 0.0
    %1941 = vmatpush1.xpose.msra.mxu0 0.0
    %1942 = vmatprep.subr.mxu0 0.0
    %1943 = vmatpush1.xpose.msra.mxu0 0.0
    %1944 = vmatprep.subr.mxu0 0.0
    %1945 = vmatpush1.xpose.msra.mxu0 0.0
    %1946 = vmatprep.subr.mxu0 0.0
    %1947 = vmatpush1.xpose.msra.mxu0 0.0
    %1948 = vmatprep.subr.mxu0 0.0
    %1949 = vmatpush1.xpose.msra.mxu0 0.0
    %1950 = vmatprep.subr.mxu0 0.0
    %1951 = vmatpush1.xpose.msra.mxu0 0.0
    %1952 = vmatprep.subr.mxu0 0.0
    %1953 = vmatpush1.xpose.msra.mxu0 0.0
    %1954 = vmatprep.subr.mxu0 0.0
    %1955 = vmatpush1.xpose.msra.mxu0 0.0
    %1956 = vmatprep.subr.mxu0 0.0
    %1957 = vmatpush1.xpose.msra.mxu0 0.0
    %1958 = vmatprep.subr.mxu0 0.0
    %1959 = vmatpush1.xpose.msra.mxu0 0.0
    %1960 = vmatprep.mubr.f32.mxu0 0.0
    %1961 = vmatmul.mubr.f32.gmra.mrb[0].mxu0 %v1862
    %v1962 = vpop.f32.mrb[0].mxu0
    %v1963 = vadd.f32 0.0, %v1962
    %v1964 = vpop.f32.mrb[0].mxu0
    %1965 = vdwg.mxu0
    %v1966 = vlaneseq
    %v1967 = vshrl.u32 %v1966, 7
    %v1968 = vsub.s32 2, %v1967
    %v1969 = vrot.slane %v153, %v1968
    %1971 = vrot.lane.b32.xlu0 %v1969, 64
    %v1972 = vpop.permute.xlu0 %1971
    %v1974 = vmul.f32 %v221, %v1972
    %v1975 = vmul.f32 %v226, %v1972
    %v1976 = vmul.f32 %v231, %v1972
    %v1977 = vmul.f32 %v236, %v1972
    %v1978 = vmul.f32 %v241, %v1972
    %v1979 = vmul.f32 %v246, %v1972
    %v1980 = vmul.f32 %v251, %v1972
    %v1981 = vmul.f32 %v256, %v1972
    %v1982 = vmul.f32 %v261, %v1972
    %v1983 = vmul.f32 %v266, %v1972
    %v1984 = vmul.f32 %v271, %v1972
    %v1985 = vmul.f32 %v276, %v1972
    %v1986 = vmul.f32 %v281, %v1972
    %v1987 = vmul.f32 %v286, %v1972
    %v1988 = vmul.f32 %v291, %v1972
    %v1989 = vmul.f32 %v296, %v1972
    %2006 = vrot.lane.b32.xlu0 %v1974, 64
    %v2007 = vpop.permute.xlu0 %2006
    %2008 = vrot.lane.b32.xlu0 %v1975, 64
    %v2009 = vpop.permute.xlu0 %2008
    %2010 = vrot.lane.b32.xlu0 %v1976, 64
    %v2011 = vpop.permute.xlu0 %2010
    %2012 = vrot.lane.b32.xlu0 %v1977, 64
    %v2013 = vpop.permute.xlu0 %2012
    %2014 = vrot.lane.b32.xlu0 %v1978, 64
    %v2015 = vpop.permute.xlu0 %2014
    %2016 = vrot.lane.b32.xlu0 %v1979, 64
    %v2017 = vpop.permute.xlu0 %2016
    %2018 = vrot.lane.b32.xlu0 %v1980, 64
    %v2019 = vpop.permute.xlu0 %2018
    %2020 = vrot.lane.b32.xlu0 %v1981, 64
    %v2021 = vpop.permute.xlu0 %2020
    %2022 = vrot.lane.b32.xlu0 %v1982, 64
    %v2023 = vpop.permute.xlu0 %2022
    %2024 = vrot.lane.b32.xlu0 %v1983, 64
    %v2025 = vpop.permute.xlu0 %2024
    %2026 = vrot.lane.b32.xlu0 %v1984, 64
    %v2027 = vpop.permute.xlu0 %2026
    %2028 = vrot.lane.b32.xlu0 %v1985, 64
    %v2029 = vpop.permute.xlu0 %2028
    %2030 = vrot.lane.b32.xlu0 %v1986, 64
    %v2031 = vpop.permute.xlu0 %2030
    %2032 = vrot.lane.b32.xlu0 %v1987, 64
    %v2033 = vpop.permute.xlu0 %2032
    %2034 = vrot.lane.b32.xlu0 %v1988, 64
    %v2035 = vpop.permute.xlu0 %2034
    %2036 = vrot.lane.b32.xlu0 %v1989, 64
    %v2037 = vpop.permute.xlu0 %2036
    %v2054 = vsel %vm299, %v2007, 0.0
    %2055 = vadd.xlane.f32.xlu0 %v2054
    %v2056 = vpop.xlane.xlu0 %2055
    %v2057 = vsel %vm299, %v2009, 0.0
    %2058 = vadd.xlane.f32.xlu0 %v2057
    %v2059 = vpop.xlane.xlu0 %2058
    %v2060 = vsel %vm299, %v2011, 0.0
    %2061 = vadd.xlane.f32.xlu0 %v2060
    %v2062 = vpop.xlane.xlu0 %2061
    %v2063 = vsel %vm299, %v2013, 0.0
    %2064 = vadd.xlane.f32.xlu0 %v2063
    %v2065 = vpop.xlane.xlu0 %2064
    %v2066 = vsel %vm299, %v2015, 0.0
    %2067 = vadd.xlane.f32.xlu0 %v2066
    %v2068 = vpop.xlane.xlu0 %2067
    %v2069 = vsel %vm299, %v2017, 0.0
    %2070 = vadd.xlane.f32.xlu0 %v2069
    %v2071 = vpop.xlane.xlu0 %2070
    %v2072 = vsel %vm299, %v2019, 0.0
    %2073 = vadd.xlane.f32.xlu0 %v2072
    %v2074 = vpop.xlane.xlu0 %2073
    %v2075 = vsel %vm299, %v2021, 0.0
    %2076 = vadd.xlane.f32.xlu0 %v2075
    %v2077 = vpop.xlane.xlu0 %2076
    %v2078 = vsel %vm299, %v2023, 0.0
    %2079 = vadd.xlane.f32.xlu0 %v2078
    %v2080 = vpop.xlane.xlu0 %2079
    %v2081 = vsel %vm299, %v2025, 0.0
    %2082 = vadd.xlane.f32.xlu0 %v2081
    %v2083 = vpop.xlane.xlu0 %2082
    %v2084 = vsel %vm299, %v2027, 0.0
    %2085 = vadd.xlane.f32.xlu0 %v2084
    %v2086 = vpop.xlane.xlu0 %2085
    %v2087 = vsel %vm299, %v2029, 0.0
    %2088 = vadd.xlane.f32.xlu0 %v2087
    %v2089 = vpop.xlane.xlu0 %2088
    %v2090 = vsel %vm299, %v2031, 0.0
    %2091 = vadd.xlane.f32.xlu0 %v2090
    %v2092 = vpop.xlane.xlu0 %2091
    %v2093 = vsel %vm299, %v2033, 0.0
    %2094 = vadd.xlane.f32.xlu0 %v2093
    %v2095 = vpop.xlane.xlu0 %2094
    %v2096 = vsel %vm299, %v2035, 0.0
    %2097 = vadd.xlane.f32.xlu0 %v2096
    %v2098 = vpop.xlane.xlu0 %2097
    %v2099 = vsel %vm299, %v2037, 0.0
    %2100 = vadd.xlane.f32.xlu0 %v2099
    %v2101 = vpop.xlane.xlu0 %2100
    %v2102 = vlaneseq
    %v2103 = vshrl.u32 %v2102, 7
    %v2104 = vsub.s32 0, %v2103
    %v2105 = vrot.slane %v1963, %v2104
    %v2106 = vadd.f32 %v2056, %v2105
    %v2107 = vadd.f32 %v2059, %v2105
    %v2108 = vadd.f32 %v2062, %v2105
    %v2109 = vadd.f32 %v2065, %v2105
    %v2110 = vadd.f32 %v2068, %v2105
    %v2111 = vadd.f32 %v2071, %v2105
    %v2112 = vadd.f32 %v2074, %v2105
    %v2113 = vadd.f32 %v2077, %v2105
    %v2114 = vadd.f32 %v2080, %v2105
    %v2115 = vadd.f32 %v2083, %v2105
    %v2116 = vadd.f32 %v2086, %v2105
    %v2117 = vadd.f32 %v2089, %v2105
    %v2118 = vadd.f32 %v2092, %v2105
    %v2119 = vadd.f32 %v2095, %v2105
    %v2120 = vadd.f32 %v2098, %v2105
    %v2121 = vadd.f32 %v2101, %v2105
    %vm2122 = vcmp.ge.f32.partialorder %v2106, 0.0
    %vm2123 = vcmp.ge.f32.partialorder %v2107, 0.0
    %vm2124 = vcmp.ge.f32.partialorder %v2108, 0.0
    %vm2125 = vcmp.ge.f32.partialorder %v2109, 0.0
    %vm2126 = vcmp.ge.f32.partialorder %v2110, 0.0
    %vm2127 = vcmp.ge.f32.partialorder %v2111, 0.0
    %vm2128 = vcmp.ge.f32.partialorder %v2112, 0.0
    %vm2129 = vcmp.ge.f32.partialorder %v2113, 0.0
    %vm2130 = vcmp.ge.f32.partialorder %v2114, 0.0
    %vm2131 = vcmp.ge.f32.partialorder %v2115, 0.0
    %vm2132 = vcmp.ge.f32.partialorder %v2116, 0.0
    %vm2133 = vcmp.ge.f32.partialorder %v2117, 0.0
    %vm2134 = vcmp.ge.f32.partialorder %v2118, 0.0
    %vm2135 = vcmp.ge.f32.partialorder %v2119, 0.0
    %vm2136 = vcmp.ge.f32.partialorder %v2120, 0.0
    %vm2137 = vcmp.ge.f32.partialorder %v2121, 0.0
    %v2138 = vmul.f32 %v2106, 0.2
    %v2139 = vmul.f32 %v2107, 0.2
    %v2140 = vmul.f32 %v2108, 0.2
    %v2141 = vmul.f32 %v2109, 0.2
    %v2142 = vmul.f32 %v2110, 0.2
    %v2143 = vmul.f32 %v2111, 0.2
    %v2144 = vmul.f32 %v2112, 0.2
    %v2145 = vmul.f32 %v2113, 0.2
    %v2146 = vmul.f32 %v2114, 0.2
    %v2147 = vmul.f32 %v2115, 0.2
    %v2148 = vmul.f32 %v2116, 0.2
    %v2149 = vmul.f32 %v2117, 0.2
    %v2150 = vmul.f32 %v2118, 0.2
    %v2151 = vmul.f32 %v2119, 0.2
    %v2152 = vmul.f32 %v2120, 0.2
    %v2153 = vmul.f32 %v2121, 0.2
    %v2154 = vsel %vm2122, %v2106, %v2138
    %v2155 = vsel %vm2123, %v2107, %v2139
    %v2156 = vsel %vm2124, %v2108, %v2140
    %v2157 = vsel %vm2125, %v2109, %v2141
    %v2158 = vsel %vm2126, %v2110, %v2142
    %v2159 = vsel %vm2127, %v2111, %v2143
    %v2160 = vsel %vm2128, %v2112, %v2144
    %v2161 = vsel %vm2129, %v2113, %v2145
    %v2162 = vsel %vm2130, %v2114, %v2146
    %v2163 = vsel %vm2131, %v2115, %v2147
    %v2164 = vsel %vm2132, %v2116, %v2148
    %v2165 = vsel %vm2133, %v2117, %v2149
    %v2166 = vsel %vm2134, %v2118, %v2150
    %v2167 = vsel %vm2135, %v2119, %v2151
    %v2168 = vsel %vm2136, %v2120, %v2152
    %v2169 = vsel %vm2137, %v2121, %v2153
    %v2170 = vsel %vm557, %v2154, -1e+30
    %v2171 = vsel %vm558, %v2155, -1e+30
    %v2172 = vsel %vm559, %v2156, -1e+30
    %v2173 = vsel %vm560, %v2157, -1e+30
    %v2174 = vsel %vm561, %v2158, -1e+30
    %v2175 = vsel %vm562, %v2159, -1e+30
    %v2176 = vsel %vm563, %v2160, -1e+30
    %v2177 = vsel %vm564, %v2161, -1e+30
    %v2178 = vsel %vm565, %v2162, -1e+30
    %v2179 = vsel %vm566, %v2163, -1e+30
    %v2180 = vsel %vm567, %v2164, -1e+30
    %v2181 = vsel %vm568, %v2165, -1e+30
    %v2182 = vsel %vm569, %v2166, -1e+30
    %v2183 = vsel %vm570, %v2167, -1e+30
    %v2184 = vsel %vm571, %v2168, -1e+30
    %v2185 = vsel %vm572, %v2169, -1e+30
    %2186 = vmax.xlane.f32.xlu0 %v2170
    %v2187 = vpop.xlane.xlu0 %2186
    %2188 = vmax.xlane.f32.xlu0 %v2171
    %v2189 = vpop.xlane.xlu0 %2188
    %2190 = vmax.xlane.f32.xlu0 %v2172
    %v2191 = vpop.xlane.xlu0 %2190
    %2192 = vmax.xlane.f32.xlu0 %v2173
    %v2193 = vpop.xlane.xlu0 %2192
    %2194 = vmax.xlane.f32.xlu0 %v2174
    %v2195 = vpop.xlane.xlu0 %2194
    %2196 = vmax.xlane.f32.xlu0 %v2175
    %v2197 = vpop.xlane.xlu0 %2196
    %2198 = vmax.xlane.f32.xlu0 %v2176
    %v2199 = vpop.xlane.xlu0 %2198
    %2200 = vmax.xlane.f32.xlu0 %v2177
    %v2201 = vpop.xlane.xlu0 %2200
    %2202 = vmax.xlane.f32.xlu0 %v2178
    %v2203 = vpop.xlane.xlu0 %2202
    %2204 = vmax.xlane.f32.xlu0 %v2179
    %v2205 = vpop.xlane.xlu0 %2204
    %2206 = vmax.xlane.f32.xlu0 %v2180
    %v2207 = vpop.xlane.xlu0 %2206
    %2208 = vmax.xlane.f32.xlu0 %v2181
    %v2209 = vpop.xlane.xlu0 %2208
    %2210 = vmax.xlane.f32.xlu0 %v2182
    %v2211 = vpop.xlane.xlu0 %2210
    %2212 = vmax.xlane.f32.xlu0 %v2183
    %v2213 = vpop.xlane.xlu0 %2212
    %2214 = vmax.xlane.f32.xlu0 %v2184
    %v2215 = vpop.xlane.xlu0 %2214
    %2216 = vmax.xlane.f32.xlu0 %v2185
    %v2217 = vpop.xlane.xlu0 %2216
    %v2218 = vsub.f32 %v2170, %v2187
    %v2219 = vsub.f32 %v2171, %v2189
    %v2220 = vsub.f32 %v2172, %v2191
    %v2221 = vsub.f32 %v2173, %v2193
    %v2222 = vsub.f32 %v2174, %v2195
    %v2223 = vsub.f32 %v2175, %v2197
    %v2224 = vsub.f32 %v2176, %v2199
    %v2225 = vsub.f32 %v2177, %v2201
    %v2226 = vsub.f32 %v2178, %v2203
    %v2227 = vsub.f32 %v2179, %v2205
    %v2228 = vsub.f32 %v2180, %v2207
    %v2229 = vsub.f32 %v2181, %v2209
    %v2230 = vsub.f32 %v2182, %v2211
    %v2231 = vsub.f32 %v2183, %v2213
    %v2232 = vsub.f32 %v2184, %v2215
    %v2233 = vsub.f32 %v2185, %v2217
    %v2234 = vmul.f32 %v2218, 1.442695
    %v2235 = vpow.pop %v2234
    %v2236 = vmul.f32 %v2219, 1.442695
    %v2237 = vpow.pop %v2236
    %v2238 = vmul.f32 %v2220, 1.442695
    %v2239 = vpow.pop %v2238
    %v2240 = vmul.f32 %v2221, 1.442695
    %v2241 = vpow.pop %v2240
    %v2242 = vmul.f32 %v2222, 1.442695
    %v2243 = vpow.pop %v2242
    %v2244 = vmul.f32 %v2223, 1.442695
    %v2245 = vpow.pop %v2244
    %v2246 = vmul.f32 %v2224, 1.442695
    %v2247 = vpow.pop %v2246
    %v2248 = vmul.f32 %v2225, 1.442695
    %v2249 = vpow.pop %v2248
    %v2250 = vmul.f32 %v2226, 1.442695
    %v2251 = vpow.pop %v2250
    %v2252 = vmul.f32 %v2227, 1.442695
    %v2253 = vpow.pop %v2252
    %v2254 = vmul.f32 %v2228, 1.442695
    %v2255 = vpow.pop %v2254
    %v2256 = vmul.f32 %v2229, 1.442695
    %v2257 = vpow.pop %v2256
    %v2258 = vmul.f32 %v2230, 1.442695
    %v2259 = vpow.pop %v2258
    %v2260 = vmul.f32 %v2231, 1.442695
    %v2261 = vpow.pop %v2260
    %v2262 = vmul.f32 %v2232, 1.442695
    %v2263 = vpow.pop %v2262
    %v2264 = vmul.f32 %v2233, 1.442695
    %v2265 = vpow.pop %v2264
    %v2266 = vmul.f32 %v2235, %v104
    %v2267 = vmul.f32 %v2237, %v105
    %v2268 = vmul.f32 %v2239, %v106
    %v2269 = vmul.f32 %v2241, %v107
    %v2270 = vmul.f32 %v2243, %v108
    %v2271 = vmul.f32 %v2245, %v109
    %v2272 = vmul.f32 %v2247, %v110
    %v2273 = vmul.f32 %v2249, %v111
    %v2274 = vmul.f32 %v2251, %v112
    %v2275 = vmul.f32 %v2253, %v113
    %v2276 = vmul.f32 %v2255, %v114
    %v2277 = vmul.f32 %v2257, %v115
    %v2278 = vmul.f32 %v2259, %v116
    %v2279 = vmul.f32 %v2261, %v117
    %v2280 = vmul.f32 %v2263, %v118
    %v2281 = vmul.f32 %v2265, %v119
    %2282 = vadd.xlane.f32.xlu0 %v2266
    %v2283 = vpop.xlane.xlu0 %2282
    %2284 = vadd.xlane.f32.xlu0 %v2267
    %v2285 = vpop.xlane.xlu0 %2284
    %2286 = vadd.xlane.f32.xlu0 %v2268
    %v2287 = vpop.xlane.xlu0 %2286
    %2288 = vadd.xlane.f32.xlu0 %v2269
    %v2289 = vpop.xlane.xlu0 %2288
    %2290 = vadd.xlane.f32.xlu0 %v2270
    %v2291 = vpop.xlane.xlu0 %2290
    %2292 = vadd.xlane.f32.xlu0 %v2271
    %v2293 = vpop.xlane.xlu0 %2292
    %2294 = vadd.xlane.f32.xlu0 %v2272
    %v2295 = vpop.xlane.xlu0 %2294
    %2296 = vadd.xlane.f32.xlu0 %v2273
    %v2297 = vpop.xlane.xlu0 %2296
    %2298 = vadd.xlane.f32.xlu0 %v2274
    %v2299 = vpop.xlane.xlu0 %2298
    %2300 = vadd.xlane.f32.xlu0 %v2275
    %v2301 = vpop.xlane.xlu0 %2300
    %2302 = vadd.xlane.f32.xlu0 %v2276
    %v2303 = vpop.xlane.xlu0 %2302
    %2304 = vadd.xlane.f32.xlu0 %v2277
    %v2305 = vpop.xlane.xlu0 %2304
    %2306 = vadd.xlane.f32.xlu0 %v2278
    %v2307 = vpop.xlane.xlu0 %2306
    %2308 = vadd.xlane.f32.xlu0 %v2279
    %v2309 = vpop.xlane.xlu0 %2308
    %2310 = vadd.xlane.f32.xlu0 %v2280
    %v2311 = vpop.xlane.xlu0 %2310
    %2312 = vadd.xlane.f32.xlu0 %v2281
    %v2313 = vpop.xlane.xlu0 %2312
    %v2314 = vrcp.pop %v2283
    %v2315 = vmul.f32 %v2266, %v2314
    %v2316 = vrcp.pop %v2285
    %v2317 = vmul.f32 %v2267, %v2316
    %v2318 = vrcp.pop %v2287
    %v2319 = vmul.f32 %v2268, %v2318
    %v2320 = vrcp.pop %v2289
    %v2321 = vmul.f32 %v2269, %v2320
    %v2322 = vrcp.pop %v2291
    %v2323 = vmul.f32 %v2270, %v2322
    %v2324 = vrcp.pop %v2293
    %v2325 = vmul.f32 %v2271, %v2324
    %v2326 = vrcp.pop %v2295
    %v2327 = vmul.f32 %v2272, %v2326
    %v2328 = vrcp.pop %v2297
    %v2329 = vmul.f32 %v2273, %v2328
    %v2330 = vrcp.pop %v2299
    %v2331 = vmul.f32 %v2274, %v2330
    %v2332 = vrcp.pop %v2301
    %v2333 = vmul.f32 %v2275, %v2332
    %v2334 = vrcp.pop %v2303
    %v2335 = vmul.f32 %v2276, %v2334
    %v2336 = vrcp.pop %v2305
    %v2337 = vmul.f32 %v2277, %v2336
    %v2338 = vrcp.pop %v2307
    %v2339 = vmul.f32 %v2278, %v2338
    %v2340 = vrcp.pop %v2309
    %v2341 = vmul.f32 %v2279, %v2340
    %v2342 = vrcp.pop %v2311
    %v2343 = vmul.f32 %v2280, %v2342
    %v2344 = vrcp.pop %v2313
    %v2345 = vmul.f32 %v2281, %v2344
    %2362 = vmatprep.subr.mxu0 0.0
    %2363 = vmatpush1.msra.mxu0 %v1831
    %2364 = vmatprep.subr.mxu0 0.0
    %2365 = vmatpush1.msra.mxu0 %v1833
    %2366 = vmatprep.subr.mxu0 0.0
    %2367 = vmatpush1.msra.mxu0 %v1835
    %2368 = vmatprep.subr.mxu0 0.0
    %2369 = vmatpush1.msra.mxu0 %v1837
    %2370 = vmatprep.subr.mxu0 0.0
    %2371 = vmatpush1.msra.mxu0 %v1839
    %2372 = vmatprep.subr.mxu0 0.0
    %2373 = vmatpush1.msra.mxu0 %v1841
    %2374 = vmatprep.subr.mxu0 0.0
    %2375 = vmatpush1.msra.mxu0 %v1843
    %2376 = vmatprep.subr.mxu0 0.0
    %2377 = vmatpush1.msra.mxu0 %v1845
    %2378 = vmatprep.subr.mxu0 0.0
    %2379 = vmatpush1.msra.mxu0 %v1847
    %2380 = vmatprep.subr.mxu0 0.0
    %2381 = vmatpush1.msra.mxu0 %v1849
    %2382 = vmatprep.subr.mxu0 0.0
    %2383 = vmatpush1.msra.mxu0 %v1851
    %2384 = vmatprep.subr.mxu0 0.0
    %2385 = vmatpush1.msra.mxu0 %v1853
    %2386 = vmatprep.subr.mxu0 0.0
    %2387 = vmatpush1.msra.mxu0 %v1855
    %2388 = vmatprep.subr.mxu0 0.0
    %2389 = vmatpush1.msra.mxu0 %v1857
    %2390 = vmatprep.subr.mxu0 0.0
    %2391 = vmatpush1.msra.mxu0 %v1859
    %2392 = vmatprep.subr.mxu0 0.0
    %2393 = vmatpush1.msra.mxu0 %v1861
    %2394 = vmatprep.subr.mxu0 0.0
    %2395 = vmatpush1.msra.mxu0 0.0
    %2396 = vmatprep.subr.mxu0 0.0
    %2397 = vmatpush1.msra.mxu0 0.0
    %2398 = vmatprep.subr.mxu0 0.0
    %2399 = vmatpush1.msra.mxu0 0.0
    %2400 = vmatprep.subr.mxu0 0.0
    %2401 = vmatpush1.msra.mxu0 0.0
    %2402 = vmatprep.subr.mxu0 0.0
    %2403 = vmatpush1.msra.mxu0 0.0
    %2404 = vmatprep.subr.mxu0 0.0
    %2405 = vmatpush1.msra.mxu0 0.0
    %2406 = vmatprep.subr.mxu0 0.0
    %2407 = vmatpush1.msra.mxu0 0.0
    %2408 = vmatprep.subr.mxu0 0.0
    %2409 = vmatpush1.msra.mxu0 0.0
    %2410 = vmatprep.subr.mxu0 0.0
    %2411 = vmatpush1.msra.mxu0 0.0
    %2412 = vmatprep.subr.mxu0 0.0
    %2413 = vmatpush1.msra.mxu0 0.0
    %2414 = vmatprep.subr.mxu0 0.0
    %2415 = vmatpush1.msra.mxu0 0.0
    %2416 = vmatprep.subr.mxu0 0.0
    %2417 = vmatpush1.msra.mxu0 0.0
    %2418 = vmatprep.subr.mxu0 0.0
    %2419 = vmatpush1.msra.mxu0 0.0
    %2420 = vmatprep.subr.mxu0 0.0
    %2421 = vmatpush1.msra.mxu0 0.0
    %2422 = vmatprep.subr.mxu0 0.0
    %2423 = vmatpush1.msra.mxu0 0.0
    %2424 = vmatprep.subr.mxu0 0.0
    %2425 = vmatpush1.msra.mxu0 0.0
    %2426 = vmatprep.mubr.f32.mxu0 0.0
    %2427 = vmatmul.mubr.f32.gmra.mrb[0].mxu0 %v2315
    %v2428 = vpop.f32.mrb[0].mxu0
    %v2429 = vadd.f32 0.0, %v2428
    %v2430 = vpop.f32.mrb[0].mxu0
    %2431 = vmatprep.mubr.f32.mxu0 0.0
    %2432 = vmatmul.mubr.f32.gmra.mrb[0].mxu0 %v2317
    %v2433 = vpop.f32.mrb[0].mxu0
    %v2434 = vadd.f32 0.0, %v2433
    %v2435 = vpop.f32.mrb[0].mxu0
    %2436 = vmatprep.mubr.f32.mxu0 0.0
    %2437 = vmatmul.mubr.f32.gmra.mrb[0].mxu0 %v2319
    %v2438 = vpop.f32.mrb[0].mxu0
    %v2439 = vadd.f32 0.0, %v2438
    %v2440 = vpop.f32.mrb[0].mxu0
    %2441 = vmatprep.mubr.f32.mxu0 0.0
    %2442 = vmatmul.mubr.f32.gmra.mrb[0].mxu0 %v2321
    %v2443 = vpop.f32.mrb[0].mxu0
    %v2444 = vadd.f32 0.0, %v2443
    %v2445 = vpop.f32.mrb[0].mxu0
    %2446 = vmatprep.mubr.f32.mxu0 0.0
    %2447 = vmatmul.mubr.f32.gmra.mrb[0].mxu0 %v2323
    %v2448 = vpop.f32.mrb[0].mxu0
    %v2449 = vadd.f32 0.0, %v2448
    %v2450 = vpop.f32.mrb[0].mxu0
    %2451 = vmatprep.mubr.f32.mxu0 0.0
    %2452 = vmatmul.mubr.f32.gmra.mrb[0].mxu0 %v2325
    %v2453 = vpop.f32.mrb[0].mxu0
    %v2454 = vadd.f32 0.0, %v2453
    %v2455 = vpop.f32.mrb[0].mxu0
    %2456 = vmatprep.mubr.f32.mxu0 0.0
    %2457 = vmatmul.mubr.f32.gmra.mrb[0].mxu0 %v2327
    %v2458 = vpop.f32.mrb[0].mxu0
    %v2459 = vadd.f32 0.0, %v2458
    %v2460 = vpop.f32.mrb[0].mxu0
    %2461 = vmatprep.mubr.f32.mxu0 0.0
    %2462 = vmatmul.mubr.f32.gmra.mrb[0].mxu0 %v2329
    %v2463 = vpop.f32.mrb[0].mxu0
    %v2464 = vadd.f32 0.0, %v2463
    %v2465 = vpop.f32.mrb[0].mxu0
    %2466 = vmatprep.mubr.f32.mxu0 0.0
    %2467 = vmatmul.mubr.f32.gmra.mrb[0].mxu0 %v2331
    %v2468 = vpop.f32.mrb[0].mxu0
    %v2469 = vadd.f32 0.0, %v2468
    %v2470 = vpop.f32.mrb[0].mxu0
    %2471 = vmatprep.mubr.f32.mxu0 0.0
    %2472 = vmatmul.mubr.f32.gmra.mrb[0].mxu0 %v2333
    %v2473 = vpop.f32.mrb[0].mxu0
    %v2474 = vadd.f32 0.0, %v2473
    %v2475 = vpop.f32.mrb[0].mxu0
    %2476 = vmatprep.mubr.f32.mxu0 0.0
    %2477 = vmatmul.mubr.f32.gmra.mrb[0].mxu0 %v2335
    %v2478 = vpop.f32.mrb[0].mxu0
    %v2479 = vadd.f32 0.0, %v2478
    %v2480 = vpop.f32.mrb[0].mxu0
    %2481 = vmatprep.mubr.f32.mxu0 0.0
    %2482 = vmatmul.mubr.f32.gmra.mrb[0].mxu0 %v2337
    %v2483 = vpop.f32.mrb[0].mxu0
    %v2484 = vadd.f32 0.0, %v2483
    %v2485 = vpop.f32.mrb[0].mxu0
    %2486 = vmatprep.mubr.f32.mxu0 0.0
    %2487 = vmatmul.mubr.f32.gmra.mrb[0].mxu0 %v2339
    %v2488 = vpop.f32.mrb[0].mxu0
    %v2489 = vadd.f32 0.0, %v2488
    %v2490 = vpop.f32.mrb[0].mxu0
    %2491 = vmatprep.mubr.f32.mxu0 0.0
    %2492 = vmatmul.mubr.f32.gmra.mrb[0].mxu0 %v2341
    %v2493 = vpop.f32.mrb[0].mxu0
    %v2494 = vadd.f32 0.0, %v2493
    %v2495 = vpop.f32.mrb[0].mxu0
    %2496 = vmatprep.mubr.f32.mxu0 0.0
    %2497 = vmatmul.mubr.f32.gmra.mrb[0].mxu0 %v2343
    %v2498 = vpop.f32.mrb[0].mxu0
    %v2499 = vadd.f32 0.0, %v2498
    %v2500 = vpop.f32.mrb[0].mxu0
    %2501 = vmatprep.mubr.f32.mxu0 0.0
    %2502 = vmatmul.mubr.f32.gmra.mrb[0].mxu0 %v2345
    %v2503 = vpop.f32.mrb[0].mxu0
    %v2504 = vadd.f32 0.0, %v2503
    %v2505 = vpop.f32.mrb[0].mxu0
    %2506 = vdwg.mxu0
    %vm2507 = vcmp.gt.f32.partialorder %v2429, 0.0
    %vm2508 = vcmp.gt.f32.partialorder %v2434, 0.0
    %vm2509 = vcmp.gt.f32.partialorder %v2439, 0.0
    %vm2510 = vcmp.gt.f32.partialorder %v2444, 0.0
    %vm2511 = vcmp.gt.f32.partialorder %v2449, 0.0
    %vm2512 = vcmp.gt.f32.partialorder %v2454, 0.0
    %vm2513 = vcmp.gt.f32.partialorder %v2459, 0.0
    %vm2514 = vcmp.gt.f32.partialorder %v2464, 0.0
    %vm2515 = vcmp.gt.f32.partialorder %v2469, 0.0
    %vm2516 = vcmp.gt.f32.partialorder %v2474, 0.0
    %vm2517 = vcmp.gt.f32.partialorder %v2479, 0.0
    %vm2518 = vcmp.gt.f32.partialorder %v2484, 0.0
    %vm2519 = vcmp.gt.f32.partialorder %v2489, 0.0
    %vm2520 = vcmp.gt.f32.partialorder %v2494, 0.0
    %vm2521 = vcmp.gt.f32.partialorder %v2499, 0.0
    %vm2522 = vcmp.gt.f32.partialorder %v2504, 0.0
    %v2523 = vmul.f32 %v2429, 1.442695
    %v2524 = vpow.pop %v2523
    %v2525 = vmul.f32 %v2434, 1.442695
    %v2526 = vpow.pop %v2525
    %v2527 = vmul.f32 %v2439, 1.442695
    %v2528 = vpow.pop %v2527
    %v2529 = vmul.f32 %v2444, 1.442695
    %v2530 = vpow.pop %v2529
    %v2531 = vmul.f32 %v2449, 1.442695
    %v2532 = vpow.pop %v2531
    %v2533 = vmul.f32 %v2454, 1.442695
    %v2534 = vpow.pop %v2533
    %v2535 = vmul.f32 %v2459, 1.442695
    %v2536 = vpow.pop %v2535
    %v2537 = vmul.f32 %v2464, 1.442695
    %v2538 = vpow.pop %v2537
    %v2539 = vmul.f32 %v2469, 1.442695
    %v2540 = vpow.pop %v2539
    %v2541 = vmul.f32 %v2474, 1.442695
    %v2542 = vpow.pop %v2541
    %v2543 = vmul.f32 %v2479, 1.442695
    %v2544 = vpow.pop %v2543
    %v2545 = vmul.f32 %v2484, 1.442695
    %v2546 = vpow.pop %v2545
    %v2547 = vmul.f32 %v2489, 1.442695
    %v2548 = vpow.pop %v2547
    %v2549 = vmul.f32 %v2494, 1.442695
    %v2550 = vpow.pop %v2549
    %v2551 = vmul.f32 %v2499, 1.442695
    %v2552 = vpow.pop %v2551
    %v2553 = vmul.f32 %v2504, 1.442695
    %v2554 = vpow.pop %v2553
    %v2555 = vsub.f32 %v2524, 1.0
    %v2556 = vsub.f32 %v2526, 1.0
    %v2557 = vsub.f32 %v2528, 1.0
    %v2558 = vsub.f32 %v2530, 1.0
    %v2559 = vsub.f32 %v2532, 1.0
    %v2560 = vsub.f32 %v2534, 1.0
    %v2561 = vsub.f32 %v2536, 1.0
    %v2562 = vsub.f32 %v2538, 1.0
    %v2563 = vsub.f32 %v2540, 1.0
    %v2564 = vsub.f32 %v2542, 1.0
    %v2565 = vsub.f32 %v2544, 1.0
    %v2566 = vsub.f32 %v2546, 1.0
    %v2567 = vsub.f32 %v2548, 1.0
    %v2568 = vsub.f32 %v2550, 1.0
    %v2569 = vsub.f32 %v2552, 1.0
    %v2570 = vsub.f32 %v2554, 1.0
    %v2571 = vsel %vm2507, %v2429, %v2555
    %v2572 = vsel %vm2508, %v2434, %v2556
    %v2573 = vsel %vm2509, %v2439, %v2557
    %v2574 = vsel %vm2510, %v2444, %v2558
    %v2575 = vsel %vm2511, %v2449, %v2559
    %v2576 = vsel %vm2512, %v2454, %v2560
    %v2577 = vsel %vm2513, %v2459, %v2561
    %v2578 = vsel %vm2514, %v2464, %v2562
    %v2579 = vsel %vm2515, %v2469, %v2563
    %v2580 = vsel %vm2516, %v2474, %v2564
    %v2581 = vsel %vm2517, %v2479, %v2565
    %v2582 = vsel %vm2518, %v2484, %v2566
    %v2583 = vsel %vm2519, %v2489, %v2567
    %v2584 = vsel %vm2520, %v2494, %v2568
    %v2585 = vsel %vm2521, %v2499, %v2569
    %v2586 = vsel %vm2522, %v2504, %v2570
    %2603 = vrot.lane.b32.xlu0 %v2571, 64
    %v2604 = vpop.permute.xlu0 %2603
    %2605 = vrot.lane.b32.xlu0 %v2572, 64
    %v2606 = vpop.permute.xlu0 %2605
    %2607 = vrot.lane.b32.xlu0 %v2573, 64
    %v2608 = vpop.permute.xlu0 %2607
    %2609 = vrot.lane.b32.xlu0 %v2574, 64
    %v2610 = vpop.permute.xlu0 %2609
    %2611 = vrot.lane.b32.xlu0 %v2575, 64
    %v2612 = vpop.permute.xlu0 %2611
    %2613 = vrot.lane.b32.xlu0 %v2576, 64
    %v2614 = vpop.permute.xlu0 %2613
    %2615 = vrot.lane.b32.xlu0 %v2577, 64
    %v2616 = vpop.permute.xlu0 %2615
    %2617 = vrot.lane.b32.xlu0 %v2578, 64
    %v2618 = vpop.permute.xlu0 %2617
    %2619 = vrot.lane.b32.xlu0 %v2579, 64
    %v2620 = vpop.permute.xlu0 %2619
    %2621 = vrot.lane.b32.xlu0 %v2580, 64
    %v2622 = vpop.permute.xlu0 %2621
    %2623 = vrot.lane.b32.xlu0 %v2581, 64
    %v2624 = vpop.permute.xlu0 %2623
    %2625 = vrot.lane.b32.xlu0 %v2582, 64
    %v2626 = vpop.permute.xlu0 %2625
    %2627 = vrot.lane.b32.xlu0 %v2583, 64
    %v2628 = vpop.permute.xlu0 %2627
    %2629 = vrot.lane.b32.xlu0 %v2584, 64
    %v2630 = vpop.permute.xlu0 %2629
    %2631 = vrot.lane.b32.xlu0 %v2585, 64
    %v2632 = vpop.permute.xlu0 %2631
    %2633 = vrot.lane.b32.xlu0 %v2586, 64
    %v2634 = vpop.permute.xlu0 %2633
    %vm2651 = vcmask 785920
    %2652 = vst.msk [vmem:[#allocation2] sm:$0xff] %vm2651, %v2604
    %2653 = vst.msk [vmem:[#allocation2 + $0x8] sm:$0xff] %vm2651, %v2606
    %2654 = vst.msk [vmem:[#allocation2 + $0x10] sm:$0xff] %vm2651, %v2608
    %2655 = vst.msk [vmem:[#allocation2 + $0x18] sm:$0xff] %vm2651, %v2610
    %2656 = vst.msk [vmem:[#allocation2 + $0x20] sm:$0xff] %vm2651, %v2612
    %2657 = vst.msk [vmem:[#allocation2 + $0x28] sm:$0xff] %vm2651, %v2614
    %2658 = vst.msk [vmem:[#allocation2 + $0x30] sm:$0xff] %vm2651, %v2616
    %2659 = vst.msk [vmem:[#allocation2 + $0x38] sm:$0xff] %vm2651, %v2618
    %2660 = vst.msk [vmem:[#allocation2 + $0x40] sm:$0xff] %vm2651, %v2620
    %2661 = vst.msk [vmem:[#allocation2 + $0x48] sm:$0xff] %vm2651, %v2622
    %2662 = vst.msk [vmem:[#allocation2 + $0x50] sm:$0xff] %vm2651, %v2624
    %2663 = vst.msk [vmem:[#allocation2 + $0x58] sm:$0xff] %vm2651, %v2626
    %2664 = vst.msk [vmem:[#allocation2 + $0x60] sm:$0xff] %vm2651, %v2628
    %2665 = vst.msk [vmem:[#allocation2 + $0x68] sm:$0xff] %vm2651, %v2630
    %2666 = vst.msk [vmem:[#allocation2 + $0x70] sm:$0xff] %vm2651, %v2632
    %2667 = vst.msk [vmem:[#allocation2 + $0x78] sm:$0xff] %vm2651, %v2634
    %v2668 = vrot.slane %v152, 3
    %2669 = vrot.lane.b32.xlu0 %v221, 32
    %v2670 = vpop.permute.xlu0 %2669
    %2671 = vrot.lane.b32.xlu0 %v226, 32
    %v2672 = vpop.permute.xlu0 %2671
    %2673 = vrot.lane.b32.xlu0 %v231, 32
    %v2674 = vpop.permute.xlu0 %2673
    %2675 = vrot.lane.b32.xlu0 %v236, 32
    %v2676 = vpop.permute.xlu0 %2675
    %2677 = vrot.lane.b32.xlu0 %v241, 32
    %v2678 = vpop.permute.xlu0 %2677
    %2679 = vrot.lane.b32.xlu0 %v246, 32
    %v2680 = vpop.permute.xlu0 %2679
    %2681 = vrot.lane.b32.xlu0 %v251, 32
    %v2682 = vpop.permute.xlu0 %2681
    %2683 = vrot.lane.b32.xlu0 %v256, 32
    %v2684 = vpop.permute.xlu0 %2683
    %2685 = vrot.lane.b32.xlu0 %v261, 32
    %v2686 = vpop.permute.xlu0 %2685
    %2687 = vrot.lane.b32.xlu0 %v266, 32
    %v2688 = vpop.permute.xlu0 %2687
    %2689 = vrot.lane.b32.xlu0 %v271, 32
    %v2690 = vpop.permute.xlu0 %2689
    %2691 = vrot.lane.b32.xlu0 %v276, 32
    %v2692 = vpop.permute.xlu0 %2691
    %2693 = vrot.lane.b32.xlu0 %v281, 32
    %v2694 = vpop.permute.xlu0 %2693
    %2695 = vrot.lane.b32.xlu0 %v286, 32
    %v2696 = vpop.permute.xlu0 %2695
    %2697 = vrot.lane.b32.xlu0 %v291, 32
    %v2698 = vpop.permute.xlu0 %2697
    %2699 = vrot.lane.b32.xlu0 %v296, 32
    %v2700 = vpop.permute.xlu0 %2699
    %v2701 = vsel %vm299, %v2668, 0
    %v2703 = vsel %vm299, %v2670, 0
    %v2705 = vsel %vm299, %v2672, 0
    %v2707 = vsel %vm299, %v2674, 0
    %v2709 = vsel %vm299, %v2676, 0
    %v2711 = vsel %vm299, %v2678, 0
    %v2713 = vsel %vm299, %v2680, 0
    %v2715 = vsel %vm299, %v2682, 0
    %v2717 = vsel %vm299, %v2684, 0
    %v2719 = vsel %vm299, %v2686, 0
    %v2721 = vsel %vm299, %v2688, 0
    %v2723 = vsel %vm299, %v2690, 0
    %v2725 = vsel %vm299, %v2692, 0
    %v2727 = vsel %vm299, %v2694, 0
    %v2729 = vsel %vm299, %v2696, 0
    %v2731 = vsel %vm299, %v2698, 0
    %v2733 = vsel %vm299, %v2700, 0
    %2735 = vmatprep.subr.mxu0 0.0
    %2736 = vmatpush1.xpose.msra.mxu0 %v2703
    %2737 = vmatprep.subr.mxu0 0.0
    %2738 = vmatpush1.xpose.msra.mxu0 %v2705
    %2739 = vmatprep.subr.mxu0 0.0
    %2740 = vmatpush1.xpose.msra.mxu0 %v2707
    %2741 = vmatprep.subr.mxu0 0.0
    %2742 = vmatpush1.xpose.msra.mxu0 %v2709
    %2743 = vmatprep.subr.mxu0 0.0
    %2744 = vmatpush1.xpose.msra.mxu0 %v2711
    %2745 = vmatprep.subr.mxu0 0.0
    %2746 = vmatpush1.xpose.msra.mxu0 %v2713
    %2747 = vmatprep.subr.mxu0 0.0
    %2748 = vmatpush1.xpose.msra.mxu0 %v2715
    %2749 = vmatprep.subr.mxu0 0.0
    %2750 = vmatpush1.xpose.msra.mxu0 %v2717
    %2751 = vmatprep.subr.mxu0 0.0
    %2752 = vmatpush1.xpose.msra.mxu0 %v2719
    %2753 = vmatprep.subr.mxu0 0.0
    %2754 = vmatpush1.xpose.msra.mxu0 %v2721
    %2755 = vmatprep.subr.mxu0 0.0
    %2756 = vmatpush1.xpose.msra.mxu0 %v2723
    %2757 = vmatprep.subr.mxu0 0.0
    %2758 = vmatpush1.xpose.msra.mxu0 %v2725
    %2759 = vmatprep.subr.mxu0 0.0
    %2760 = vmatpush1.xpose.msra.mxu0 %v2727
    %2761 = vmatprep.subr.mxu0 0.0
    %2762 = vmatpush1.xpose.msra.mxu0 %v2729
    %2763 = vmatprep.subr.mxu0 0.0
    %2764 = vmatpush1.xpose.msra.mxu0 %v2731
    %2765 = vmatprep.subr.mxu0 0.0
    %2766 = vmatpush1.xpose.msra.mxu0 %v2733
    %2767 = vmatprep.subr.mxu0 0.0
    %2768 = vmatpush1.xpose.msra.mxu0 0.0
    %2769 = vmatprep.subr.mxu0 0.0
    %2770 = vmatpush1.xpose.msra.mxu0 0.0
    %2771 = vmatprep.subr.mxu0 0.0
    %2772 = vmatpush1.xpose.msra.mxu0 0.0
    %2773 = vmatprep.subr.mxu0 0.0
    %2774 = vmatpush1.xpose.msra.mxu0 0.0
    %2775 = vmatprep.subr.mxu0 0.0
    %2776 = vmatpush1.xpose.msra.mxu0 0.0
    %2777 = vmatprep.subr.mxu0 0.0
    %2778 = vmatpush1.xpose.msra.mxu0 0.0
    %2779 = vmatprep.subr.mxu0 0.0
    %2780 = vmatpush1.xpose.msra.mxu0 0.0
    %2781 = vmatprep.subr.mxu0 0.0
    %2782 = vmatpush1.xpose.msra.mxu0 0.0
    %2783 = vmatprep.subr.mxu0 0.0
    %2784 = vmatpush1.xpose.msra.mxu0 0.0
    %2785 = vmatprep.subr.mxu0 0.0
    %2786 = vmatpush1.xpose.msra.mxu0 0.0
    %2787 = vmatprep.subr.mxu0 0.0
    %2788 = vmatpush1.xpose.msra.mxu0 0.0
    %2789 = vmatprep.subr.mxu0 0.0
    %2790 = vmatpush1.xpose.msra.mxu0 0.0
    %2791 = vmatprep.subr.mxu0 0.0
    %2792 = vmatpush1.xpose.msra.mxu0 0.0
    %2793 = vmatprep.subr.mxu0 0.0
    %2794 = vmatpush1.xpose.msra.mxu0 0.0
    %2795 = vmatprep.subr.mxu0 0.0
    %2796 = vmatpush1.xpose.msra.mxu0 0.0
    %2797 = vmatprep.subr.mxu0 0.0
    %2798 = vmatpush1.xpose.msra.mxu0 0.0
    %2799 = vmatprep.mubr.f32.mxu0 0.0
    %2800 = vmatmul.mubr.f32.gmra.mrb[0].mxu0 %v2701
    %v2801 = vpop.f32.mrb[0].mxu0
    %v2802 = vadd.f32 0.0, %v2801
    %v2803 = vpop.f32.mrb[0].mxu0
    %2804 = vdwg.mxu0
    %v2805 = vlaneseq
    %v2806 = vshrl.u32 %v2805, 7
    %v2807 = vsub.s32 3, %v2806
    %v2808 = vrot.slane %v153, %v2807
    %2810 = vrot.lane.b32.xlu0 %v2808, 96
    %v2811 = vpop.permute.xlu0 %2810
    %v2813 = vmul.f32 %v221, %v2811
    %v2814 = vmul.f32 %v226, %v2811
    %v2815 = vmul.f32 %v231, %v2811
    %v2816 = vmul.f32 %v236, %v2811
    %v2817 = vmul.f32 %v241, %v2811
    %v2818 = vmul.f32 %v246, %v2811
    %v2819 = vmul.f32 %v251, %v2811
    %v2820 = vmul.f32 %v256, %v2811
    %v2821 = vmul.f32 %v261, %v2811
    %v2822 = vmul.f32 %v266, %v2811
    %v2823 = vmul.f32 %v271, %v2811
    %v2824 = vmul.f32 %v276, %v2811
    %v2825 = vmul.f32 %v281, %v2811
    %v2826 = vmul.f32 %v286, %v2811
    %v2827 = vmul.f32 %v291, %v2811
    %v2828 = vmul.f32 %v296, %v2811
    %2845 = vrot.lane.b32.xlu0 %v2813, 32
    %v2846 = vpop.permute.xlu0 %2845
    %2847 = vrot.lane.b32.xlu0 %v2814, 32
    %v2848 = vpop.permute.xlu0 %2847
    %2849 = vrot.lane.b32.xlu0 %v2815, 32
    %v2850 = vpop.permute.xlu0 %2849
    %2851 = vrot.lane.b32.xlu0 %v2816, 32
    %v2852 = vpop.permute.xlu0 %2851
    %2853 = vrot.lane.b32.xlu0 %v2817, 32
    %v2854 = vpop.permute.xlu0 %2853
    %2855 = vrot.lane.b32.xlu0 %v2818, 32
    %v2856 = vpop.permute.xlu0 %2855
    %2857 = vrot.lane.b32.xlu0 %v2819, 32
    %v2858 = vpop.permute.xlu0 %2857
    %2859 = vrot.lane.b32.xlu0 %v2820, 32
    %v2860 = vpop.permute.xlu0 %2859
    %2861 = vrot.lane.b32.xlu0 %v2821, 32
    %v2862 = vpop.permute.xlu0 %2861
    %2863 = vrot.lane.b32.xlu0 %v2822, 32
    %v2864 = vpop.permute.xlu0 %2863
    %2865 = vrot.lane.b32.xlu0 %v2823, 32
    %v2866 = vpop.permute.xlu0 %2865
    %2867 = vrot.lane.b32.xlu0 %v2824, 32
    %v2868 = vpop.permute.xlu0 %2867
    %2869 = vrot.lane.b32.xlu0 %v2825, 32
    %v2870 = vpop.permute.xlu0 %2869
    %2871 = vrot.lane.b32.xlu0 %v2826, 32
    %v2872 = vpop.permute.xlu0 %2871
    %2873 = vrot.lane.b32.xlu0 %v2827, 32
    %v2874 = vpop.permute.xlu0 %2873
    %2875 = vrot.lane.b32.xlu0 %v2828, 32
    %v2876 = vpop.permute.xlu0 %2875
    %v2893 = vsel %vm299, %v2846, 0.0
    %2894 = vadd.xlane.f32.xlu0 %v2893
    %v2895 = vpop.xlane.xlu0 %2894
    %v2896 = vsel %vm299, %v2848, 0.0
    %2897 = vadd.xlane.f32.xlu0 %v2896
    %v2898 = vpop.xlane.xlu0 %2897
    %v2899 = vsel %vm299, %v2850, 0.0
    %2900 = vadd.xlane.f32.xlu0 %v2899
    %v2901 = vpop.xlane.xlu0 %2900
    %v2902 = vsel %vm299, %v2852, 0.0
    %2903 = vadd.xlane.f32.xlu0 %v2902
    %v2904 = vpop.xlane.xlu0 %2903
    %v2905 = vsel %vm299, %v2854, 0.0
    %2906 = vadd.xlane.f32.xlu0 %v2905
    %v2907 = vpop.xlane.xlu0 %2906
    %v2908 = vsel %vm299, %v2856, 0.0
    %2909 = vadd.xlane.f32.xlu0 %v2908
    %v2910 = vpop.xlane.xlu0 %2909
    %v2911 = vsel %vm299, %v2858, 0.0
    %2912 = vadd.xlane.f32.xlu0 %v2911
    %v2913 = vpop.xlane.xlu0 %2912
    %v2914 = vsel %vm299, %v2860, 0.0
    %2915 = vadd.xlane.f32.xlu0 %v2914
    %v2916 = vpop.xlane.xlu0 %2915
    %v2917 = vsel %vm299, %v2862, 0.0
    %2918 = vadd.xlane.f32.xlu0 %v2917
    %v2919 = vpop.xlane.xlu0 %2918
    %v2920 = vsel %vm299, %v2864, 0.0
    %2921 = vadd.xlane.f32.xlu0 %v2920
    %v2922 = vpop.xlane.xlu0 %2921
    %v2923 = vsel %vm299, %v2866, 0.0
    %2924 = vadd.xlane.f32.xlu0 %v2923
    %v2925 = vpop.xlane.xlu0 %2924
    %v2926 = vsel %vm299, %v2868, 0.0
    %2927 = vadd.xlane.f32.xlu0 %v2926
    %v2928 = vpop.xlane.xlu0 %2927
    %v2929 = vsel %vm299, %v2870, 0.0
    %2930 = vadd.xlane.f32.xlu0 %v2929
    %v2931 = vpop.xlane.xlu0 %2930
    %v2932 = vsel %vm299, %v2872, 0.0
    %2933 = vadd.xlane.f32.xlu0 %v2932
    %v2934 = vpop.xlane.xlu0 %2933
    %v2935 = vsel %vm299, %v2874, 0.0
    %2936 = vadd.xlane.f32.xlu0 %v2935
    %v2937 = vpop.xlane.xlu0 %2936
    %v2938 = vsel %vm299, %v2876, 0.0
    %2939 = vadd.xlane.f32.xlu0 %v2938
    %v2940 = vpop.xlane.xlu0 %2939
    %v2941 = vlaneseq
    %v2942 = vshrl.u32 %v2941, 7
    %v2943 = vsub.s32 0, %v2942
    %v2944 = vrot.slane %v2802, %v2943
    %v2945 = vadd.f32 %v2895, %v2944
    %v2946 = vadd.f32 %v2898, %v2944
    %v2947 = vadd.f32 %v2901, %v2944
    %v2948 = vadd.f32 %v2904, %v2944
    %v2949 = vadd.f32 %v2907, %v2944
    %v2950 = vadd.f32 %v2910, %v2944
    %v2951 = vadd.f32 %v2913, %v2944
    %v2952 = vadd.f32 %v2916, %v2944
    %v2953 = vadd.f32 %v2919, %v2944
    %v2954 = vadd.f32 %v2922, %v2944
    %v2955 = vadd.f32 %v2925, %v2944
    %v2956 = vadd.f32 %v2928, %v2944
    %v2957 = vadd.f32 %v2931, %v2944
    %v2958 = vadd.f32 %v2934, %v2944
    %v2959 = vadd.f32 %v2937, %v2944
    %v2960 = vadd.f32 %v2940, %v2944
    %vm2961 = vcmp.ge.f32.partialorder %v2945, 0.0
    %vm2962 = vcmp.ge.f32.partialorder %v2946, 0.0
    %vm2963 = vcmp.ge.f32.partialorder %v2947, 0.0
    %vm2964 = vcmp.ge.f32.partialorder %v2948, 0.0
    %vm2965 = vcmp.ge.f32.partialorder %v2949, 0.0
    %vm2966 = vcmp.ge.f32.partialorder %v2950, 0.0
    %vm2967 = vcmp.ge.f32.partialorder %v2951, 0.0
    %vm2968 = vcmp.ge.f32.partialorder %v2952, 0.0
    %vm2969 = vcmp.ge.f32.partialorder %v2953, 0.0
    %vm2970 = vcmp.ge.f32.partialorder %v2954, 0.0
    %vm2971 = vcmp.ge.f32.partialorder %v2955, 0.0
    %vm2972 = vcmp.ge.f32.partialorder %v2956, 0.0
    %vm2973 = vcmp.ge.f32.partialorder %v2957, 0.0
    %vm2974 = vcmp.ge.f32.partialorder %v2958, 0.0
    %vm2975 = vcmp.ge.f32.partialorder %v2959, 0.0
    %vm2976 = vcmp.ge.f32.partialorder %v2960, 0.0
    %v2977 = vmul.f32 %v2945, 0.2
    %v2978 = vmul.f32 %v2946, 0.2
    %v2979 = vmul.f32 %v2947, 0.2
    %v2980 = vmul.f32 %v2948, 0.2
    %v2981 = vmul.f32 %v2949, 0.2
    %v2982 = vmul.f32 %v2950, 0.2
    %v2983 = vmul.f32 %v2951, 0.2
    %v2984 = vmul.f32 %v2952, 0.2
    %v2985 = vmul.f32 %v2953, 0.2
    %v2986 = vmul.f32 %v2954, 0.2
    %v2987 = vmul.f32 %v2955, 0.2
    %v2988 = vmul.f32 %v2956, 0.2
    %v2989 = vmul.f32 %v2957, 0.2
    %v2990 = vmul.f32 %v2958, 0.2
    %v2991 = vmul.f32 %v2959, 0.2
    %v2992 = vmul.f32 %v2960, 0.2
    %v2993 = vsel %vm2961, %v2945, %v2977
    %v2994 = vsel %vm2962, %v2946, %v2978
    %v2995 = vsel %vm2963, %v2947, %v2979
    %v2996 = vsel %vm2964, %v2948, %v2980
    %v2997 = vsel %vm2965, %v2949, %v2981
    %v2998 = vsel %vm2966, %v2950, %v2982
    %v2999 = vsel %vm2967, %v2951, %v2983
    %v3000 = vsel %vm2968, %v2952, %v2984
    %v3001 = vsel %vm2969, %v2953, %v2985
    %v3002 = vsel %vm2970, %v2954, %v2986
    %v3003 = vsel %vm2971, %v2955, %v2987
    %v3004 = vsel %vm2972, %v2956, %v2988
    %v3005 = vsel %vm2973, %v2957, %v2989
    %v3006 = vsel %vm2974, %v2958, %v2990
    %v3007 = vsel %vm2975, %v2959, %v2991
    %v3008 = vsel %vm2976, %v2960, %v2992
    %v3009 = vsel %vm557, %v2993, -1e+30
    %v3010 = vsel %vm558, %v2994, -1e+30
    %v3011 = vsel %vm559, %v2995, -1e+30
    %v3012 = vsel %vm560, %v2996, -1e+30
    %v3013 = vsel %vm561, %v2997, -1e+30
    %v3014 = vsel %vm562, %v2998, -1e+30
    %v3015 = vsel %vm563, %v2999, -1e+30
    %v3016 = vsel %vm564, %v3000, -1e+30
    %v3017 = vsel %vm565, %v3001, -1e+30
    %v3018 = vsel %vm566, %v3002, -1e+30
    %v3019 = vsel %vm567, %v3003, -1e+30
    %v3020 = vsel %vm568, %v3004, -1e+30
    %v3021 = vsel %vm569, %v3005, -1e+30
    %v3022 = vsel %vm570, %v3006, -1e+30
    %v3023 = vsel %vm571, %v3007, -1e+30
    %v3024 = vsel %vm572, %v3008, -1e+30
    %3025 = vmax.xlane.f32.xlu0 %v3009
    %v3026 = vpop.xlane.xlu0 %3025
    %3027 = vmax.xlane.f32.xlu0 %v3010
    %v3028 = vpop.xlane.xlu0 %3027
    %3029 = vmax.xlane.f32.xlu0 %v3011
    %v3030 = vpop.xlane.xlu0 %3029
    %3031 = vmax.xlane.f32.xlu0 %v3012
    %v3032 = vpop.xlane.xlu0 %3031
    %3033 = vmax.xlane.f32.xlu0 %v3013
    %v3034 = vpop.xlane.xlu0 %3033
    %3035 = vmax.xlane.f32.xlu0 %v3014
    %v3036 = vpop.xlane.xlu0 %3035
    %3037 = vmax.xlane.f32.xlu0 %v3015
    %v3038 = vpop.xlane.xlu0 %3037
    %3039 = vmax.xlane.f32.xlu0 %v3016
    %v3040 = vpop.xlane.xlu0 %3039
    %3041 = vmax.xlane.f32.xlu0 %v3017
    %v3042 = vpop.xlane.xlu0 %3041
    %3043 = vmax.xlane.f32.xlu0 %v3018
    %v3044 = vpop.xlane.xlu0 %3043
    %3045 = vmax.xlane.f32.xlu0 %v3019
    %v3046 = vpop.xlane.xlu0 %3045
    %3047 = vmax.xlane.f32.xlu0 %v3020
    %v3048 = vpop.xlane.xlu0 %3047
    %3049 = vmax.xlane.f32.xlu0 %v3021
    %v3050 = vpop.xlane.xlu0 %3049
    %3051 = vmax.xlane.f32.xlu0 %v3022
    %v3052 = vpop.xlane.xlu0 %3051
    %3053 = vmax.xlane.f32.xlu0 %v3023
    %v3054 = vpop.xlane.xlu0 %3053
    %3055 = vmax.xlane.f32.xlu0 %v3024
    %v3056 = vpop.xlane.xlu0 %3055
    %v3057 = vsub.f32 %v3009, %v3026
    %v3058 = vsub.f32 %v3010, %v3028
    %v3059 = vsub.f32 %v3011, %v3030
    %v3060 = vsub.f32 %v3012, %v3032
    %v3061 = vsub.f32 %v3013, %v3034
    %v3062 = vsub.f32 %v3014, %v3036
    %v3063 = vsub.f32 %v3015, %v3038
    %v3064 = vsub.f32 %v3016, %v3040
    %v3065 = vsub.f32 %v3017, %v3042
    %v3066 = vsub.f32 %v3018, %v3044
    %v3067 = vsub.f32 %v3019, %v3046
    %v3068 = vsub.f32 %v3020, %v3048
    %v3069 = vsub.f32 %v3021, %v3050
    %v3070 = vsub.f32 %v3022, %v3052
    %v3071 = vsub.f32 %v3023, %v3054
    %v3072 = vsub.f32 %v3024, %v3056
    %v3073 = vmul.f32 %v3057, 1.442695
    %v3074 = vpow.pop %v3073
    %v3075 = vmul.f32 %v3058, 1.442695
    %v3076 = vpow.pop %v3075
    %v3077 = vmul.f32 %v3059, 1.442695
    %v3078 = vpow.pop %v3077
    %v3079 = vmul.f32 %v3060, 1.442695
    %v3080 = vpow.pop %v3079
    %v3081 = vmul.f32 %v3061, 1.442695
    %v3082 = vpow.pop %v3081
    %v3083 = vmul.f32 %v3062, 1.442695
    %v3084 = vpow.pop %v3083
    %v3085 = vmul.f32 %v3063, 1.442695
    %v3086 = vpow.pop %v3085
    %v3087 = vmul.f32 %v3064, 1.442695
    %v3088 = vpow.pop %v3087
    %v3089 = vmul.f32 %v3065, 1.442695
    %v3090 = vpow.pop %v3089
    %v3091 = vmul.f32 %v3066, 1.442695
    %v3092 = vpow.pop %v3091
    %v3093 = vmul.f32 %v3067, 1.442695
    %v3094 = vpow.pop %v3093
    %v3095 = vmul.f32 %v3068, 1.442695
    %v3096 = vpow.pop %v3095
    %v3097 = vmul.f32 %v3069, 1.442695
    %v3098 = vpow.pop %v3097
    %v3099 = vmul.f32 %v3070, 1.442695
    %v3100 = vpow.pop %v3099
    %v3101 = vmul.f32 %v3071, 1.442695
    %v3102 = vpow.pop %v3101
    %v3103 = vmul.f32 %v3072, 1.442695
    %v3104 = vpow.pop %v3103
    %v3105 = vmul.f32 %v3074, %v104
    %v3106 = vmul.f32 %v3076, %v105
    %v3107 = vmul.f32 %v3078, %v106
    %v3108 = vmul.f32 %v3080, %v107
    %v3109 = vmul.f32 %v3082, %v108
    %v3110 = vmul.f32 %v3084, %v109
    %v3111 = vmul.f32 %v3086, %v110
    %v3112 = vmul.f32 %v3088, %v111
    %v3113 = vmul.f32 %v3090, %v112
    %v3114 = vmul.f32 %v3092, %v113
    %v3115 = vmul.f32 %v3094, %v114
    %v3116 = vmul.f32 %v3096, %v115
    %v3117 = vmul.f32 %v3098, %v116
    %v3118 = vmul.f32 %v3100, %v117
    %v3119 = vmul.f32 %v3102, %v118
    %v3120 = vmul.f32 %v3104, %v119
    %3121 = vadd.xlane.f32.xlu0 %v3105
    %v3122 = vpop.xlane.xlu0 %3121
    %3123 = vadd.xlane.f32.xlu0 %v3106
    %v3124 = vpop.xlane.xlu0 %3123
    %3125 = vadd.xlane.f32.xlu0 %v3107
    %v3126 = vpop.xlane.xlu0 %3125
    %3127 = vadd.xlane.f32.xlu0 %v3108
    %v3128 = vpop.xlane.xlu0 %3127
    %3129 = vadd.xlane.f32.xlu0 %v3109
    %v3130 = vpop.xlane.xlu0 %3129
    %3131 = vadd.xlane.f32.xlu0 %v3110
    %v3132 = vpop.xlane.xlu0 %3131
    %3133 = vadd.xlane.f32.xlu0 %v3111
    %v3134 = vpop.xlane.xlu0 %3133
    %3135 = vadd.xlane.f32.xlu0 %v3112
    %v3136 = vpop.xlane.xlu0 %3135
    %3137 = vadd.xlane.f32.xlu0 %v3113
    %v3138 = vpop.xlane.xlu0 %3137
    %3139 = vadd.xlane.f32.xlu0 %v3114
    %v3140 = vpop.xlane.xlu0 %3139
    %3141 = vadd.xlane.f32.xlu0 %v3115
    %v3142 = vpop.xlane.xlu0 %3141
    %3143 = vadd.xlane.f32.xlu0 %v3116
    %v3144 = vpop.xlane.xlu0 %3143
    %3145 = vadd.xlane.f32.xlu0 %v3117
    %v3146 = vpop.xlane.xlu0 %3145
    %3147 = vadd.xlane.f32.xlu0 %v3118
    %v3148 = vpop.xlane.xlu0 %3147
    %3149 = vadd.xlane.f32.xlu0 %v3119
    %v3150 = vpop.xlane.xlu0 %3149
    %3151 = vadd.xlane.f32.xlu0 %v3120
    %v3152 = vpop.xlane.xlu0 %3151
    %v3153 = vrcp.pop %v3122
    %v3154 = vmul.f32 %v3105, %v3153
    %v3155 = vrcp.pop %v3124
    %v3156 = vmul.f32 %v3106, %v3155
    %v3157 = vrcp.pop %v3126
    %v3158 = vmul.f32 %v3107, %v3157
    %v3159 = vrcp.pop %v3128
    %v3160 = vmul.f32 %v3108, %v3159
    %v3161 = vrcp.pop %v3130
    %v3162 = vmul.f32 %v3109, %v3161
    %v3163 = vrcp.pop %v3132
    %v3164 = vmul.f32 %v3110, %v3163
    %v3165 = vrcp.pop %v3134
    %v3166 = vmul.f32 %v3111, %v3165
    %v3167 = vrcp.pop %v3136
    %v3168 = vmul.f32 %v3112, %v3167
    %v3169 = vrcp.pop %v3138
    %v3170 = vmul.f32 %v3113, %v3169
    %v3171 = vrcp.pop %v3140
    %v3172 = vmul.f32 %v3114, %v3171
    %v3173 = vrcp.pop %v3142
    %v3174 = vmul.f32 %v3115, %v3173
    %v3175 = vrcp.pop %v3144
    %v3176 = vmul.f32 %v3116, %v3175
    %v3177 = vrcp.pop %v3146
    %v3178 = vmul.f32 %v3117, %v3177
    %v3179 = vrcp.pop %v3148
    %v3180 = vmul.f32 %v3118, %v3179
    %v3181 = vrcp.pop %v3150
    %v3182 = vmul.f32 %v3119, %v3181
    %v3183 = vrcp.pop %v3152
    %v3184 = vmul.f32 %v3120, %v3183
    %3201 = vmatprep.subr.mxu0 0.0
    %3202 = vmatpush1.msra.mxu0 %v2670
    %3203 = vmatprep.subr.mxu0 0.0
    %3204 = vmatpush1.msra.mxu0 %v2672
    %3205 = vmatprep.subr.mxu0 0.0
    %3206 = vmatpush1.msra.mxu0 %v2674
    %3207 = vmatprep.subr.mxu0 0.0
    %3208 = vmatpush1.msra.mxu0 %v2676
    %3209 = vmatprep.subr.mxu0 0.0
    %3210 = vmatpush1.msra.mxu0 %v2678
    %3211 = vmatprep.subr.mxu0 0.0
    %3212 = vmatpush1.msra.mxu0 %v2680
    %3213 = vmatprep.subr.mxu0 0.0
    %3214 = vmatpush1.msra.mxu0 %v2682
    %3215 = vmatprep.subr.mxu0 0.0
    %3216 = vmatpush1.msra.mxu0 %v2684
    %3217 = vmatprep.subr.mxu0 0.0
    %3218 = vmatpush1.msra.mxu0 %v2686
    %3219 = vmatprep.subr.mxu0 0.0
    %3220 = vmatpush1.msra.mxu0 %v2688
    %3221 = vmatprep.subr.mxu0 0.0
    %3222 = vmatpush1.msra.mxu0 %v2690
    %3223 = vmatprep.subr.mxu0 0.0
    %3224 = vmatpush1.msra.mxu0 %v2692
    %3225 = vmatprep.subr.mxu0 0.0
    %3226 = vmatpush1.msra.mxu0 %v2694
    %3227 = vmatprep.subr.mxu0 0.0
    %3228 = vmatpush1.msra.mxu0 %v2696
    %3229 = vmatprep.subr.mxu0 0.0
    %3230 = vmatpush1.msra.mxu0 %v2698
    %3231 = vmatprep.subr.mxu0 0.0
    %3232 = vmatpush1.msra.mxu0 %v2700
    %3233 = vmatprep.subr.mxu0 0.0
    %3234 = vmatpush1.msra.mxu0 0.0
    %3235 = vmatprep.subr.mxu0 0.0
    %3236 = vmatpush1.msra.mxu0 0.0
    %3237 = vmatprep.subr.mxu0 0.0
    %3238 = vmatpush1.msra.mxu0 0.0
    %3239 = vmatprep.subr.mxu0 0.0
    %3240 = vmatpush1.msra.mxu0 0.0
    %3241 = vmatprep.subr.mxu0 0.0
    %3242 = vmatpush1.msra.mxu0 0.0
    %3243 = vmatprep.subr.mxu0 0.0
    %3244 = vmatpush1.msra.mxu0 0.0
    %3245 = vmatprep.subr.mxu0 0.0
    %3246 = vmatpush1.msra.mxu0 0.0
    %3247 = vmatprep.subr.mxu0 0.0
    %3248 = vmatpush1.msra.mxu0 0.0
    %3249 = vmatprep.subr.mxu0 0.0
    %3250 = vmatpush1.msra.mxu0 0.0
    %3251 = vmatprep.subr.mxu0 0.0
    %3252 = vmatpush1.msra.mxu0 0.0
    %3253 = vmatprep.subr.mxu0 0.0
    %3254 = vmatpush1.msra.mxu0 0.0
    %3255 = vmatprep.subr.mxu0 0.0
    %3256 = vmatpush1.msra.mxu0 0.0
    %3257 = vmatprep.subr.mxu0 0.0
    %3258 = vmatpush1.msra.mxu0 0.0
    %3259 = vmatprep.subr.mxu0 0.0
    %3260 = vmatpush1.msra.mxu0 0.0
    %3261 = vmatprep.subr.mxu0 0.0
    %3262 = vmatpush1.msra.mxu0 0.0
    %3263 = vmatprep.subr.mxu0 0.0
    %3264 = vmatpush1.msra.mxu0 0.0
    %3265 = vmatprep.mubr.f32.mxu0 0.0
    %3266 = vmatmul.mubr.f32.gmra.mrb[0].mxu0 %v3154
    %v3267 = vpop.f32.mrb[0].mxu0
    %v3268 = vadd.f32 0.0, %v3267
    %v3269 = vpop.f32.mrb[0].mxu0
    %3270 = vmatprep.mubr.f32.mxu0 0.0
    %3271 = vmatmul.mubr.f32.gmra.mrb[0].mxu0 %v3156
    %v3272 = vpop.f32.mrb[0].mxu0
    %v3273 = vadd.f32 0.0, %v3272
    %v3274 = vpop.f32.mrb[0].mxu0
    %3275 = vmatprep.mubr.f32.mxu0 0.0
    %3276 = vmatmul.mubr.f32.gmra.mrb[0].mxu0 %v3158
    %v3277 = vpop.f32.mrb[0].mxu0
    %v3278 = vadd.f32 0.0, %v3277
    %v3279 = vpop.f32.mrb[0].mxu0
    %3280 = vmatprep.mubr.f32.mxu0 0.0
    %3281 = vmatmul.mubr.f32.gmra.mrb[0].mxu0 %v3160
    %v3282 = vpop.f32.mrb[0].mxu0
    %v3283 = vadd.f32 0.0, %v3282
    %v3284 = vpop.f32.mrb[0].mxu0
    %3285 = vmatprep.mubr.f32.mxu0 0.0
    %3286 = vmatmul.mubr.f32.gmra.mrb[0].mxu0 %v3162
    %v3287 = vpop.f32.mrb[0].mxu0
    %v3288 = vadd.f32 0.0, %v3287
    %v3289 = vpop.f32.mrb[0].mxu0
    %3290 = vmatprep.mubr.f32.mxu0 0.0
    %3291 = vmatmul.mubr.f32.gmra.mrb[0].mxu0 %v3164
    %v3292 = vpop.f32.mrb[0].mxu0
    %v3293 = vadd.f32 0.0, %v3292
    %v3294 = vpop.f32.mrb[0].mxu0
    %3295 = vmatprep.mubr.f32.mxu0 0.0
    %3296 = vmatmul.mubr.f32.gmra.mrb[0].mxu0 %v3166
    %v3297 = vpop.f32.mrb[0].mxu0
    %v3298 = vadd.f32 0.0, %v3297
    %v3299 = vpop.f32.mrb[0].mxu0
    %3300 = vmatprep.mubr.f32.mxu0 0.0
    %3301 = vmatmul.mubr.f32.gmra.mrb[0].mxu0 %v3168
    %v3302 = vpop.f32.mrb[0].mxu0
    %v3303 = vadd.f32 0.0, %v3302
    %v3304 = vpop.f32.mrb[0].mxu0
    %3305 = vmatprep.mubr.f32.mxu0 0.0
    %3306 = vmatmul.mubr.f32.gmra.mrb[0].mxu0 %v3170
    %v3307 = vpop.f32.mrb[0].mxu0
    %v3308 = vadd.f32 0.0, %v3307
    %v3309 = vpop.f32.mrb[0].mxu0
    %3310 = vmatprep.mubr.f32.mxu0 0.0
    %3311 = vmatmul.mubr.f32.gmra.mrb[0].mxu0 %v3172
    %v3312 = vpop.f32.mrb[0].mxu0
    %v3313 = vadd.f32 0.0, %v3312
    %v3314 = vpop.f32.mrb[0].mxu0
    %3315 = vmatprep.mubr.f32.mxu0 0.0
    %3316 = vmatmul.mubr.f32.gmra.mrb[0].mxu0 %v3174
    %v3317 = vpop.f32.mrb[0].mxu0
    %v3318 = vadd.f32 0.0, %v3317
    %v3319 = vpop.f32.mrb[0].mxu0
    %3320 = vmatprep.mubr.f32.mxu0 0.0
    %3321 = vmatmul.mubr.f32.gmra.mrb[0].mxu0 %v3176
    %v3322 = vpop.f32.mrb[0].mxu0
    %v3323 = vadd.f32 0.0, %v3322
    %v3324 = vpop.f32.mrb[0].mxu0
    %3325 = vmatprep.mubr.f32.mxu0 0.0
    %3326 = vmatmul.mubr.f32.gmra.mrb[0].mxu0 %v3178
    %v3327 = vpop.f32.mrb[0].mxu0
    %v3328 = vadd.f32 0.0, %v3327
    %v3329 = vpop.f32.mrb[0].mxu0
    %3330 = vmatprep.mubr.f32.mxu0 0.0
    %3331 = vmatmul.mubr.f32.gmra.mrb[0].mxu0 %v3180
    %v3332 = vpop.f32.mrb[0].mxu0
    %v3333 = vadd.f32 0.0, %v3332
    %v3334 = vpop.f32.mrb[0].mxu0
    %3335 = vmatprep.mubr.f32.mxu0 0.0
    %3336 = vmatmul.mubr.f32.gmra.mrb[0].mxu0 %v3182
    %v3337 = vpop.f32.mrb[0].mxu0
    %v3338 = vadd.f32 0.0, %v3337
    %v3339 = vpop.f32.mrb[0].mxu0
    %3340 = vmatprep.mubr.f32.mxu0 0.0
    %3341 = vmatmul.mubr.f32.gmra.mrb[0].mxu0 %v3184
    %v3342 = vpop.f32.mrb[0].mxu0
    %v3343 = vadd.f32 0.0, %v3342
    %v3344 = vpop.f32.mrb[0].mxu0
    %3345 = vdwg.mxu0
    %vm3346 = vcmp.gt.f32.partialorder %v3268, 0.0
    %vm3347 = vcmp.gt.f32.partialorder %v3273, 0.0
    %vm3348 = vcmp.gt.f32.partialorder %v3278, 0.0
    %vm3349 = vcmp.gt.f32.partialorder %v3283, 0.0
    %vm3350 = vcmp.gt.f32.partialorder %v3288, 0.0
    %vm3351 = vcmp.gt.f32.partialorder %v3293, 0.0
    %vm3352 = vcmp.gt.f32.partialorder %v3298, 0.0
    %vm3353 = vcmp.gt.f32.partialorder %v3303, 0.0
    %vm3354 = vcmp.gt.f32.partialorder %v3308, 0.0
    %vm3355 = vcmp.gt.f32.partialorder %v3313, 0.0
    %vm3356 = vcmp.gt.f32.partialorder %v3318, 0.0
    %vm3357 = vcmp.gt.f32.partialorder %v3323, 0.0
    %vm3358 = vcmp.gt.f32.partialorder %v3328, 0.0
    %vm3359 = vcmp.gt.f32.partialorder %v3333, 0.0
    %vm3360 = vcmp.gt.f32.partialorder %v3338, 0.0
    %vm3361 = vcmp.gt.f32.partialorder %v3343, 0.0
    %v3362 = vmul.f32 %v3268, 1.442695
    %v3363 = vpow.pop %v3362
    %v3364 = vmul.f32 %v3273, 1.442695
    %v3365 = vpow.pop %v3364
    %v3366 = vmul.f32 %v3278, 1.442695
    %v3367 = vpow.pop %v3366
    %v3368 = vmul.f32 %v3283, 1.442695
    %v3369 = vpow.pop %v3368
    %v3370 = vmul.f32 %v3288, 1.442695
    %v3371 = vpow.pop %v3370
    %v3372 = vmul.f32 %v3293, 1.442695
    %v3373 = vpow.pop %v3372
    %v3374 = vmul.f32 %v3298, 1.442695
    %v3375 = vpow.pop %v3374
    %v3376 = vmul.f32 %v3303, 1.442695
    %v3377 = vpow.pop %v3376
    %v3378 = vmul.f32 %v3308, 1.442695
    %v3379 = vpow.pop %v3378
    %v3380 = vmul.f32 %v3313, 1.442695
    %v3381 = vpow.pop %v3380
    %v3382 = vmul.f32 %v3318, 1.442695
    %v3383 = vpow.pop %v3382
    %v3384 = vmul.f32 %v3323, 1.442695
    %v3385 = vpow.pop %v3384
    %v3386 = vmul.f32 %v3328, 1.442695
    %v3387 = vpow.pop %v3386
    %v3388 = vmul.f32 %v3333, 1.442695
    %v3389 = vpow.pop %v3388
    %v3390 = vmul.f32 %v3338, 1.442695
    %v3391 = vpow.pop %v3390
    %v3392 = vmul.f32 %v3343, 1.442695
    %v3393 = vpow.pop %v3392
    %v3394 = vsub.f32 %v3363, 1.0
    %v3395 = vsub.f32 %v3365, 1.0
    %v3396 = vsub.f32 %v3367, 1.0
    %v3397 = vsub.f32 %v3369, 1.0
    %v3398 = vsub.f32 %v3371, 1.0
    %v3399 = vsub.f32 %v3373, 1.0
    %v3400 = vsub.f32 %v3375, 1.0
    %v3401 = vsub.f32 %v3377, 1.0
    %v3402 = vsub.f32 %v3379, 1.0
    %v3403 = vsub.f32 %v3381, 1.0
    %v3404 = vsub.f32 %v3383, 1.0
    %v3405 = vsub.f32 %v3385, 1.0
    %v3406 = vsub.f32 %v3387, 1.0
    %v3407 = vsub.f32 %v3389, 1.0
    %v3408 = vsub.f32 %v3391, 1.0
    %v3409 = vsub.f32 %v3393, 1.0
    %v3410 = vsel %vm3346, %v3268, %v3394
    %v3411 = vsel %vm3347, %v3273, %v3395
    %v3412 = vsel %vm3348, %v3278, %v3396
    %v3413 = vsel %vm3349, %v3283, %v3397
    %v3414 = vsel %vm3350, %v3288, %v3398
    %v3415 = vsel %vm3351, %v3293, %v3399
    %v3416 = vsel %vm3352, %v3298, %v3400
    %v3417 = vsel %vm3353, %v3303, %v3401
    %v3418 = vsel %vm3354, %v3308, %v3402
    %v3419 = vsel %vm3355, %v3313, %v3403
    %v3420 = vsel %vm3356, %v3318, %v3404
    %v3421 = vsel %vm3357, %v3323, %v3405
    %v3422 = vsel %vm3358, %v3328, %v3406
    %v3423 = vsel %vm3359, %v3333, %v3407
    %v3424 = vsel %vm3360, %v3338, %v3408
    %v3425 = vsel %vm3361, %v3343, %v3409
    %3442 = vrot.lane.b32.xlu0 %v3410, 96
    %v3443 = vpop.permute.xlu0 %3442
    %3444 = vrot.lane.b32.xlu0 %v3411, 96
    %v3445 = vpop.permute.xlu0 %3444
    %3446 = vrot.lane.b32.xlu0 %v3412, 96
    %v3447 = vpop.permute.xlu0 %3446
    %3448 = vrot.lane.b32.xlu0 %v3413, 96
    %v3449 = vpop.permute.xlu0 %3448
    %3450 = vrot.lane.b32.xlu0 %v3414, 96
    %v3451 = vpop.permute.xlu0 %3450
    %3452 = vrot.lane.b32.xlu0 %v3415, 96
    %v3453 = vpop.permute.xlu0 %3452
    %3454 = vrot.lane.b32.xlu0 %v3416, 96
    %v3455 = vpop.permute.xlu0 %3454
    %3456 = vrot.lane.b32.xlu0 %v3417, 96
    %v3457 = vpop.permute.xlu0 %3456
    %3458 = vrot.lane.b32.xlu0 %v3418, 96
    %v3459 = vpop.permute.xlu0 %3458
    %3460 = vrot.lane.b32.xlu0 %v3419, 96
    %v3461 = vpop.permute.xlu0 %3460
    %3462 = vrot.lane.b32.xlu0 %v3420, 96
    %v3463 = vpop.permute.xlu0 %3462
    %3464 = vrot.lane.b32.xlu0 %v3421, 96
    %v3465 = vpop.permute.xlu0 %3464
    %3466 = vrot.lane.b32.xlu0 %v3422, 96
    %v3467 = vpop.permute.xlu0 %3466
    %3468 = vrot.lane.b32.xlu0 %v3423, 96
    %v3469 = vpop.permute.xlu0 %3468
    %3470 = vrot.lane.b32.xlu0 %v3424, 96
    %v3471 = vpop.permute.xlu0 %3470
    %3472 = vrot.lane.b32.xlu0 %v3425, 96
    %v3473 = vpop.permute.xlu0 %3472
    %vm3490 = vcmask 1048320
    %3491 = vst.msk [vmem:[#allocation2] sm:$0xff] %vm3490, %v3443
    %3492 = vst.msk [vmem:[#allocation2 + $0x8] sm:$0xff] %vm3490, %v3445
    %3493 = vst.msk [vmem:[#allocation2 + $0x10] sm:$0xff] %vm3490, %v3447
    %3494 = vst.msk [vmem:[#allocation2 + $0x18] sm:$0xff] %vm3490, %v3449
    %3495 = vst.msk [vmem:[#allocation2 + $0x20] sm:$0xff] %vm3490, %v3451
    %3496 = vst.msk [vmem:[#allocation2 + $0x28] sm:$0xff] %vm3490, %v3453
    %3497 = vst.msk [vmem:[#allocation2 + $0x30] sm:$0xff] %vm3490, %v3455
    %3498 = vst.msk [vmem:[#allocation2 + $0x38] sm:$0xff] %vm3490, %v3457
    %3499 = vst.msk [vmem:[#allocation2 + $0x40] sm:$0xff] %vm3490, %v3459
    %3500 = vst.msk [vmem:[#allocation2 + $0x48] sm:$0xff] %vm3490, %v3461
    %3501 = vst.msk [vmem:[#allocation2 + $0x50] sm:$0xff] %vm3490, %v3463
    %3502 = vst.msk [vmem:[#allocation2 + $0x58] sm:$0xff] %vm3490, %v3465
    %3503 = vst.msk [vmem:[#allocation2 + $0x60] sm:$0xff] %vm3490, %v3467
    %3504 = vst.msk [vmem:[#allocation2 + $0x68] sm:$0xff] %vm3490, %v3469
    %3505 = vst.msk [vmem:[#allocation2 + $0x70] sm:$0xff] %vm3490, %v3471
    %3506 = vst.msk [vmem:[#allocation2 + $0x78] sm:$0xff] %vm3490, %v3473
    %v3507 = vld [vmem:[#allocation2] sm:$0xff]
    %v3508 = vld [vmem:[#allocation2 + $0x8] sm:$0xff]
    %v3509 = vld [vmem:[#allocation2 + $0x10] sm:$0xff]
    %v3510 = vld [vmem:[#allocation2 + $0x18] sm:$0xff]
    %v3511 = vld [vmem:[#allocation2 + $0x20] sm:$0xff]
    %v3512 = vld [vmem:[#allocation2 + $0x28] sm:$0xff]
    %v3513 = vld [vmem:[#allocation2 + $0x30] sm:$0xff]
    %v3514 = vld [vmem:[#allocation2 + $0x38] sm:$0xff]
    %v3515 = vld [vmem:[#allocation2 + $0x40] sm:$0xff]
    %v3516 = vld [vmem:[#allocation2 + $0x48] sm:$0xff]
    %v3517 = vld [vmem:[#allocation2 + $0x50] sm:$0xff]
    %v3518 = vld [vmem:[#allocation2 + $0x58] sm:$0xff]
    %v3519 = vld [vmem:[#allocation2 + $0x60] sm:$0xff]
    %v3520 = vld [vmem:[#allocation2 + $0x68] sm:$0xff]
    %v3521 = vld [vmem:[#allocation2 + $0x70] sm:$0xff]
    %v3522 = vld [vmem:[#allocation2 + $0x78] sm:$0xff]
    %v3523 = vld [vmem:[#allocation10] sm:$0xff]
    %v3524 = vld [vmem:[#allocation10 + $0x8] sm:$0xff]
    %v3525 = vld [vmem:[#allocation10 + $0x10] sm:$0xff]
    %v3526 = vld [vmem:[#allocation10 + $0x18] sm:$0xff]
    %v3527 = vld [vmem:[#allocation10 + $0x20] sm:$0xff]
    %v3528 = vld [vmem:[#allocation10 + $0x28] sm:$0xff]
    %v3529 = vld [vmem:[#allocation10 + $0x30] sm:$0xff]
    %v3530 = vld [vmem:[#allocation10 + $0x38] sm:$0xff]
    %v3531 = vld [vmem:[#allocation10 + $0x40] sm:$0xff]
    %v3532 = vld [vmem:[#allocation10 + $0x48] sm:$0xff]
    %v3533 = vld [vmem:[#allocation10 + $0x50] sm:$0xff]
    %v3534 = vld [vmem:[#allocation10 + $0x58] sm:$0xff]
    %v3535 = vld [vmem:[#allocation10 + $0x60] sm:$0xff]
    %v3536 = vld [vmem:[#allocation10 + $0x68] sm:$0xff]
    %v3537 = vld [vmem:[#allocation10 + $0x70] sm:$0xff]
    %v3538 = vld [vmem:[#allocation10 + $0x78] sm:$0xff]
    %v3539 = vld [vmem:[%s6] sm:$0xf]
    %v3540 = vld [vmem:[%s7] sm:$0xf]
    %3541 = vmatprep.subr.mxu0 0.0
    %3542 = vmatpush1.msra.mxu0 %v3523
    %3543 = vmatprep.subr.mxu0 0.0
    %3544 = vmatpush1.msra.mxu0 %v3524
    %3545 = vmatprep.subr.mxu0 0.0
    %3546 = vmatpush1.msra.mxu0 %v3525
    %3547 = vmatprep.subr.mxu0 0.0
    %3548 = vmatpush1.msra.mxu0 %v3526
    %3549 = vmatprep.subr.mxu0 0.0
    %3550 = vmatpush1.msra.mxu0 %v3527
    %3551 = vmatprep.subr.mxu0 0.0
    %3552 = vmatpush1.msra.mxu0 %v3528
    %3553 = vmatprep.subr.mxu0 0.0
    %3554 = vmatpush1.msra.mxu0 %v3529
    %3555 = vmatprep.subr.mxu0 0.0
    %3556 = vmatpush1.msra.mxu0 %v3530
    %3557 = vmatprep.subr.mxu0 0.0
    %3558 = vmatpush1.msra.mxu0 %v3531
    %3559 = vmatprep.subr.mxu0 0.0
    %3560 = vmatpush1.msra.mxu0 %v3532
    %3561 = vmatprep.subr.mxu0 0.0
    %3562 = vmatpush1.msra.mxu0 %v3533
    %3563 = vmatprep.subr.mxu0 0.0
    %3564 = vmatpush1.msra.mxu0 %v3534
    %3565 = vmatprep.subr.mxu0 0.0
    %3566 = vmatpush1.msra.mxu0 %v3535
    %3567 = vmatprep.subr.mxu0 0.0
    %3568 = vmatpush1.msra.mxu0 %v3536
    %3569 = vmatprep.subr.mxu0 0.0
    %3570 = vmatpush1.msra.mxu0 %v3537
    %3571 = vmatprep.subr.mxu0 0.0
    %3572 = vmatpush1.msra.mxu0 %v3538
    %3573 = vmatprep.subr.mxu0 0.0
    %3574 = vmatpush1.msra.mxu0 0.0
    %3575 = vmatprep.subr.mxu0 0.0
    %3576 = vmatpush1.msra.mxu0 0.0
    %3577 = vmatprep.subr.mxu0 0.0
    %3578 = vmatpush1.msra.mxu0 0.0
    %3579 = vmatprep.subr.mxu0 0.0
    %3580 = vmatpush1.msra.mxu0 0.0
    %3581 = vmatprep.subr.mxu0 0.0
    %3582 = vmatpush1.msra.mxu0 0.0
    %3583 = vmatprep.subr.mxu0 0.0
    %3584 = vmatpush1.msra.mxu0 0.0
    %3585 = vmatprep.subr.mxu0 0.0
    %3586 = vmatpush1.msra.mxu0 0.0
    %3587 = vmatprep.subr.mxu0 0.0
    %3588 = vmatpush1.msra.mxu0 0.0
    %3589 = vmatprep.subr.mxu0 0.0
    %3590 = vmatpush1.msra.mxu0 0.0
    %3591 = vmatprep.subr.mxu0 0.0
    %3592 = vmatpush1.msra.mxu0 0.0
    %3593 = vmatprep.subr.mxu0 0.0
    %3594 = vmatpush1.msra.mxu0 0.0
    %3595 = vmatprep.subr.mxu0 0.0
    %3596 = vmatpush1.msra.mxu0 0.0
    %3597 = vmatprep.subr.mxu0 0.0
    %3598 = vmatpush1.msra.mxu0 0.0
    %3599 = vmatprep.subr.mxu0 0.0
    %3600 = vmatpush1.msra.mxu0 0.0
    %3601 = vmatprep.subr.mxu0 0.0
    %3602 = vmatpush1.msra.mxu0 0.0
    %3603 = vmatprep.subr.mxu0 0.0
    %3604 = vmatpush1.msra.mxu0 0.0
    %3605 = vmatprep.mubr.f32.mxu0 0.0
    %3606 = vmatmul.mubr.f32.gmra.mrb[0].mxu0 %v3507
    %v3607 = vpop.f32.mrb[0].mxu0
    %v3608 = vadd.f32 0.0, %v3607
    %v3609 = vpop.f32.mrb[0].mxu0
    %3610 = vmatprep.mubr.f32.mxu0 0.0
    %3611 = vmatmul.mubr.f32.gmra.mrb[0].mxu0 %v3508
    %v3612 = vpop.f32.mrb[0].mxu0
    %v3613 = vadd.f32 0.0, %v3612
    %v3614 = vpop.f32.mrb[0].mxu0
    %3615 = vmatprep.mubr.f32.mxu0 0.0
    %3616 = vmatmul.mubr.f32.gmra.mrb[0].mxu0 %v3509
    %v3617 = vpop.f32.mrb[0].mxu0
    %v3618 = vadd.f32 0.0, %v3617
    %v3619 = vpop.f32.mrb[0].mxu0
    %3620 = vmatprep.mubr.f32.mxu0 0.0
    %3621 = vmatmul.mubr.f32.gmra.mrb[0].mxu0 %v3510
    %v3622 = vpop.f32.mrb[0].mxu0
    %v3623 = vadd.f32 0.0, %v3622
    %v3624 = vpop.f32.mrb[0].mxu0
    %3625 = vmatprep.mubr.f32.mxu0 0.0
    %3626 = vmatmul.mubr.f32.gmra.mrb[0].mxu0 %v3511
    %v3627 = vpop.f32.mrb[0].mxu0
    %v3628 = vadd.f32 0.0, %v3627
    %v3629 = vpop.f32.mrb[0].mxu0
    %3630 = vmatprep.mubr.f32.mxu0 0.0
    %3631 = vmatmul.mubr.f32.gmra.mrb[0].mxu0 %v3512
    %v3632 = vpop.f32.mrb[0].mxu0
    %v3633 = vadd.f32 0.0, %v3632
    %v3634 = vpop.f32.mrb[0].mxu0
    %3635 = vmatprep.mubr.f32.mxu0 0.0
    %3636 = vmatmul.mubr.f32.gmra.mrb[0].mxu0 %v3513
    %v3637 = vpop.f32.mrb[0].mxu0
    %v3638 = vadd.f32 0.0, %v3637
    %v3639 = vpop.f32.mrb[0].mxu0
    %3640 = vmatprep.mubr.f32.mxu0 0.0
    %3641 = vmatmul.mubr.f32.gmra.mrb[0].mxu0 %v3514
    %v3642 = vpop.f32.mrb[0].mxu0
    %v3643 = vadd.f32 0.0, %v3642
    %v3644 = vpop.f32.mrb[0].mxu0
    %3645 = vmatprep.mubr.f32.mxu0 0.0
    %3646 = vmatmul.mubr.f32.gmra.mrb[0].mxu0 %v3515
    %v3647 = vpop.f32.mrb[0].mxu0
    %v3648 = vadd.f32 0.0, %v3647
    %v3649 = vpop.f32.mrb[0].mxu0
    %3650 = vmatprep.mubr.f32.mxu0 0.0
    %3651 = vmatmul.mubr.f32.gmra.mrb[0].mxu0 %v3516
    %v3652 = vpop.f32.mrb[0].mxu0
    %v3653 = vadd.f32 0.0, %v3652
    %v3654 = vpop.f32.mrb[0].mxu0
    %3655 = vmatprep.mubr.f32.mxu0 0.0
    %3656 = vmatmul.mubr.f32.gmra.mrb[0].mxu0 %v3517
    %v3657 = vpop.f32.mrb[0].mxu0
    %v3658 = vadd.f32 0.0, %v3657
    %v3659 = vpop.f32.mrb[0].mxu0
    %3660 = vmatprep.mubr.f32.mxu0 0.0
    %3661 = vmatmul.mubr.f32.gmra.mrb[0].mxu0 %v3518
    %v3662 = vpop.f32.mrb[0].mxu0
    %v3663 = vadd.f32 0.0, %v3662
    %v3664 = vpop.f32.mrb[0].mxu0
    %3665 = vmatprep.mubr.f32.mxu0 0.0
    %3666 = vmatmul.mubr.f32.gmra.mrb[0].mxu0 %v3519
    %v3667 = vpop.f32.mrb[0].mxu0
    %v3668 = vadd.f32 0.0, %v3667
    %v3669 = vpop.f32.mrb[0].mxu0
    %3670 = vmatprep.mubr.f32.mxu0 0.0
    %3671 = vmatmul.mubr.f32.gmra.mrb[0].mxu0 %v3520
    %v3672 = vpop.f32.mrb[0].mxu0
    %v3673 = vadd.f32 0.0, %v3672
    %v3674 = vpop.f32.mrb[0].mxu0
    %3675 = vmatprep.mubr.f32.mxu0 0.0
    %3676 = vmatmul.mubr.f32.gmra.mrb[0].mxu0 %v3521
    %v3677 = vpop.f32.mrb[0].mxu0
    %v3678 = vadd.f32 0.0, %v3677
    %v3679 = vpop.f32.mrb[0].mxu0
    %3680 = vmatprep.mubr.f32.mxu0 0.0
    %3681 = vmatmul.mubr.f32.gmra.mrb[0].mxu0 %v3522
    %v3682 = vpop.f32.mrb[0].mxu0
    %v3683 = vadd.f32 0.0, %v3682
    %v3684 = vpop.f32.mrb[0].mxu0
    %3685 = vdwg.mxu0
    %v3687 = vsel %vm299, %v3539, 0
    %v3690 = vsel %vm299, %v3608, 0
    %v3693 = vsel %vm299, %v3613, 0
    %v3696 = vsel %vm299, %v3618, 0
    %v3699 = vsel %vm299, %v3623, 0
    %v3702 = vsel %vm299, %v3628, 0
    %v3705 = vsel %vm299, %v3633, 0
    %v3708 = vsel %vm299, %v3638, 0
    %v3711 = vsel %vm299, %v3643, 0
    %v3714 = vsel %vm299, %v3648, 0
    %v3717 = vsel %vm299, %v3653, 0
    %v3720 = vsel %vm299, %v3658, 0
    %v3723 = vsel %vm299, %v3663, 0
    %v3726 = vsel %vm299, %v3668, 0
    %v3729 = vsel %vm299, %v3673, 0
    %v3732 = vsel %vm299, %v3678, 0
    %v3735 = vsel %vm299, %v3683, 0
    %3737 = vmatprep.subr.mxu0 0.0
    %3738 = vmatpush1.xpose.msra.mxu0 %v3690
    %3739 = vmatprep.subr.mxu0 0.0
    %3740 = vmatpush1.xpose.msra.mxu0 %v3693
    %3741 = vmatprep.subr.mxu0 0.0
    %3742 = vmatpush1.xpose.msra.mxu0 %v3696
    %3743 = vmatprep.subr.mxu0 0.0
    %3744 = vmatpush1.xpose.msra.mxu0 %v3699
    %3745 = vmatprep.subr.mxu0 0.0
    %3746 = vmatpush1.xpose.msra.mxu0 %v3702
    %3747 = vmatprep.subr.mxu0 0.0
    %3748 = vmatpush1.xpose.msra.mxu0 %v3705
    %3749 = vmatprep.subr.mxu0 0.0
    %3750 = vmatpush1.xpose.msra.mxu0 %v3708
    %3751 = vmatprep.subr.mxu0 0.0
    %3752 = vmatpush1.xpose.msra.mxu0 %v3711
    %3753 = vmatprep.subr.mxu0 0.0
    %3754 = vmatpush1.xpose.msra.mxu0 %v3714
    %3755 = vmatprep.subr.mxu0 0.0
    %3756 = vmatpush1.xpose.msra.mxu0 %v3717
    %3757 = vmatprep.subr.mxu0 0.0
    %3758 = vmatpush1.xpose.msra.mxu0 %v3720
    %3759 = vmatprep.subr.mxu0 0.0
    %3760 = vmatpush1.xpose.msra.mxu0 %v3723
    %3761 = vmatprep.subr.mxu0 0.0
    %3762 = vmatpush1.xpose.msra.mxu0 %v3726
    %3763 = vmatprep.subr.mxu0 0.0
    %3764 = vmatpush1.xpose.msra.mxu0 %v3729
    %3765 = vmatprep.subr.mxu0 0.0
    %3766 = vmatpush1.xpose.msra.mxu0 %v3732
    %3767 = vmatprep.subr.mxu0 0.0
    %3768 = vmatpush1.xpose.msra.mxu0 %v3735
    %3769 = vmatprep.subr.mxu0 0.0
    %3770 = vmatpush1.xpose.msra.mxu0 0.0
    %3771 = vmatprep.subr.mxu0 0.0
    %3772 = vmatpush1.xpose.msra.mxu0 0.0
    %3773 = vmatprep.subr.mxu0 0.0
    %3774 = vmatpush1.xpose.msra.mxu0 0.0
    %3775 = vmatprep.subr.mxu0 0.0
    %3776 = vmatpush1.xpose.msra.mxu0 0.0
    %3777 = vmatprep.subr.mxu0 0.0
    %3778 = vmatpush1.xpose.msra.mxu0 0.0
    %3779 = vmatprep.subr.mxu0 0.0
    %3780 = vmatpush1.xpose.msra.mxu0 0.0
    %3781 = vmatprep.subr.mxu0 0.0
    %3782 = vmatpush1.xpose.msra.mxu0 0.0
    %3783 = vmatprep.subr.mxu0 0.0
    %3784 = vmatpush1.xpose.msra.mxu0 0.0
    %3785 = vmatprep.subr.mxu0 0.0
    %3786 = vmatpush1.xpose.msra.mxu0 0.0
    %3787 = vmatprep.subr.mxu0 0.0
    %3788 = vmatpush1.xpose.msra.mxu0 0.0
    %3789 = vmatprep.subr.mxu0 0.0
    %3790 = vmatpush1.xpose.msra.mxu0 0.0
    %3791 = vmatprep.subr.mxu0 0.0
    %3792 = vmatpush1.xpose.msra.mxu0 0.0
    %3793 = vmatprep.subr.mxu0 0.0
    %3794 = vmatpush1.xpose.msra.mxu0 0.0
    %3795 = vmatprep.subr.mxu0 0.0
    %3796 = vmatpush1.xpose.msra.mxu0 0.0
    %3797 = vmatprep.subr.mxu0 0.0
    %3798 = vmatpush1.xpose.msra.mxu0 0.0
    %3799 = vmatprep.subr.mxu0 0.0
    %3800 = vmatpush1.xpose.msra.mxu0 0.0
    %3801 = vmatprep.mubr.f32.mxu0 0.0
    %3802 = vmatmul.mubr.f32.gmra.mrb[0].mxu0 %v3687
    %v3803 = vpop.f32.mrb[0].mxu0
    %v3804 = vadd.f32 0.0, %v3803
    %v3805 = vpop.f32.mrb[0].mxu0
    %3806 = vdwg.mxu0
    %v3807 = vlaneseq
    %v3808 = vshrl.u32 %v3807, 7
    %v3809 = vsub.s32 0, %v3808
    %v3810 = vrot.slane %v3540, %v3809
    %v3811 = vmul.f32 %v3608, %v3810
    %v3812 = vmul.f32 %v3613, %v3810
    %v3813 = vmul.f32 %v3618, %v3810
    %v3814 = vmul.f32 %v3623, %v3810
    %v3815 = vmul.f32 %v3628, %v3810
    %v3816 = vmul.f32 %v3633, %v3810
    %v3817 = vmul.f32 %v3638, %v3810
    %v3818 = vmul.f32 %v3643, %v3810
    %v3819 = vmul.f32 %v3648, %v3810
    %v3820 = vmul.f32 %v3653, %v3810
    %v3821 = vmul.f32 %v3658, %v3810
    %v3822 = vmul.f32 %v3663, %v3810
    %v3823 = vmul.f32 %v3668, %v3810
    %v3824 = vmul.f32 %v3673, %v3810
    %v3825 = vmul.f32 %v3678, %v3810
    %v3826 = vmul.f32 %v3683, %v3810
    %v3827 = vsel %vm299, %v3811, 0.0
    %3828 = vadd.xlane.f32.xlu0 %v3827
    %v3829 = vpop.xlane.xlu0 %3828
    %v3830 = vsel %vm299, %v3812, 0.0
    %3831 = vadd.xlane.f32.xlu0 %v3830
    %v3832 = vpop.xlane.xlu0 %3831
    %v3833 = vsel %vm299, %v3813, 0.0
    %3834 = vadd.xlane.f32.xlu0 %v3833
    %v3835 = vpop.xlane.xlu0 %3834
    %v3836 = vsel %vm299, %v3814, 0.0
    %3837 = vadd.xlane.f32.xlu0 %v3836
    %v3838 = vpop.xlane.xlu0 %3837
    %v3839 = vsel %vm299, %v3815, 0.0
    %3840 = vadd.xlane.f32.xlu0 %v3839
    %v3841 = vpop.xlane.xlu0 %3840
    %v3842 = vsel %vm299, %v3816, 0.0
    %3843 = vadd.xlane.f32.xlu0 %v3842
    %v3844 = vpop.xlane.xlu0 %3843
    %v3845 = vsel %vm299, %v3817, 0.0
    %3846 = vadd.xlane.f32.xlu0 %v3845
    %v3847 = vpop.xlane.xlu0 %3846
    %v3848 = vsel %vm299, %v3818, 0.0
    %3849 = vadd.xlane.f32.xlu0 %v3848
    %v3850 = vpop.xlane.xlu0 %3849
    %v3851 = vsel %vm299, %v3819, 0.0
    %3852 = vadd.xlane.f32.xlu0 %v3851
    %v3853 = vpop.xlane.xlu0 %3852
    %v3854 = vsel %vm299, %v3820, 0.0
    %3855 = vadd.xlane.f32.xlu0 %v3854
    %v3856 = vpop.xlane.xlu0 %3855
    %v3857 = vsel %vm299, %v3821, 0.0
    %3858 = vadd.xlane.f32.xlu0 %v3857
    %v3859 = vpop.xlane.xlu0 %3858
    %v3860 = vsel %vm299, %v3822, 0.0
    %3861 = vadd.xlane.f32.xlu0 %v3860
    %v3862 = vpop.xlane.xlu0 %3861
    %v3863 = vsel %vm299, %v3823, 0.0
    %3864 = vadd.xlane.f32.xlu0 %v3863
    %v3865 = vpop.xlane.xlu0 %3864
    %v3866 = vsel %vm299, %v3824, 0.0
    %3867 = vadd.xlane.f32.xlu0 %v3866
    %v3868 = vpop.xlane.xlu0 %3867
    %v3869 = vsel %vm299, %v3825, 0.0
    %3870 = vadd.xlane.f32.xlu0 %v3869
    %v3871 = vpop.xlane.xlu0 %3870
    %v3872 = vsel %vm299, %v3826, 0.0
    %3873 = vadd.xlane.f32.xlu0 %v3872
    %v3874 = vpop.xlane.xlu0 %3873
    %v3875 = vlaneseq
    %v3876 = vshrl.u32 %v3875, 7
    %v3877 = vsub.s32 0, %v3876
    %v3878 = vrot.slane %v3804, %v3877
    %v3879 = vadd.f32 %v3829, %v3878
    %v3880 = vadd.f32 %v3832, %v3878
    %v3881 = vadd.f32 %v3835, %v3878
    %v3882 = vadd.f32 %v3838, %v3878
    %v3883 = vadd.f32 %v3841, %v3878
    %v3884 = vadd.f32 %v3844, %v3878
    %v3885 = vadd.f32 %v3847, %v3878
    %v3886 = vadd.f32 %v3850, %v3878
    %v3887 = vadd.f32 %v3853, %v3878
    %v3888 = vadd.f32 %v3856, %v3878
    %v3889 = vadd.f32 %v3859, %v3878
    %v3890 = vadd.f32 %v3862, %v3878
    %v3891 = vadd.f32 %v3865, %v3878
    %v3892 = vadd.f32 %v3868, %v3878
    %v3893 = vadd.f32 %v3871, %v3878
    %v3894 = vadd.f32 %v3874, %v3878
    %vm3895 = vcmp.ge.f32.partialorder %v3879, 0.0
    %vm3896 = vcmp.ge.f32.partialorder %v3880, 0.0
    %vm3897 = vcmp.ge.f32.partialorder %v3881, 0.0
    %vm3898 = vcmp.ge.f32.partialorder %v3882, 0.0
    %vm3899 = vcmp.ge.f32.partialorder %v3883, 0.0
    %vm3900 = vcmp.ge.f32.partialorder %v3884, 0.0
    %vm3901 = vcmp.ge.f32.partialorder %v3885, 0.0
    %vm3902 = vcmp.ge.f32.partialorder %v3886, 0.0
    %vm3903 = vcmp.ge.f32.partialorder %v3887, 0.0
    %vm3904 = vcmp.ge.f32.partialorder %v3888, 0.0
    %vm3905 = vcmp.ge.f32.partialorder %v3889, 0.0
    %vm3906 = vcmp.ge.f32.partialorder %v3890, 0.0
    %vm3907 = vcmp.ge.f32.partialorder %v3891, 0.0
    %vm3908 = vcmp.ge.f32.partialorder %v3892, 0.0
    %vm3909 = vcmp.ge.f32.partialorder %v3893, 0.0
    %vm3910 = vcmp.ge.f32.partialorder %v3894, 0.0
    %v3911 = vmul.f32 %v3879, 0.2
    %v3912 = vmul.f32 %v3880, 0.2
    %v3913 = vmul.f32 %v3881, 0.2
    %v3914 = vmul.f32 %v3882, 0.2
    %v3915 = vmul.f32 %v3883, 0.2
    %v3916 = vmul.f32 %v3884, 0.2
    %v3917 = vmul.f32 %v3885, 0.2
    %v3918 = vmul.f32 %v3886, 0.2
    %v3919 = vmul.f32 %v3887, 0.2
    %v3920 = vmul.f32 %v3888, 0.2
    %v3921 = vmul.f32 %v3889, 0.2
    %v3922 = vmul.f32 %v3890, 0.2
    %v3923 = vmul.f32 %v3891, 0.2
    %v3924 = vmul.f32 %v3892, 0.2
    %v3925 = vmul.f32 %v3893, 0.2
    %v3926 = vmul.f32 %v3894, 0.2
    %v3927 = vsel %vm3895, %v3879, %v3911
    %v3928 = vsel %vm3896, %v3880, %v3912
    %v3929 = vsel %vm3897, %v3881, %v3913
    %v3930 = vsel %vm3898, %v3882, %v3914
    %v3931 = vsel %vm3899, %v3883, %v3915
    %v3932 = vsel %vm3900, %v3884, %v3916
    %v3933 = vsel %vm3901, %v3885, %v3917
    %v3934 = vsel %vm3902, %v3886, %v3918
    %v3935 = vsel %vm3903, %v3887, %v3919
    %v3936 = vsel %vm3904, %v3888, %v3920
    %v3937 = vsel %vm3905, %v3889, %v3921
    %v3938 = vsel %vm3906, %v3890, %v3922
    %v3939 = vsel %vm3907, %v3891, %v3923
    %v3940 = vsel %vm3908, %v3892, %v3924
    %v3941 = vsel %vm3909, %v3893, %v3925
    %v3942 = vsel %vm3910, %v3894, %v3926
    %v3943 = vsel %vm557, %v3927, -1e+30
    %v3944 = vsel %vm558, %v3928, -1e+30
    %v3945 = vsel %vm559, %v3929, -1e+30
    %v3946 = vsel %vm560, %v3930, -1e+30
    %v3947 = vsel %vm561, %v3931, -1e+30
    %v3948 = vsel %vm562, %v3932, -1e+30
    %v3949 = vsel %vm563, %v3933, -1e+30
    %v3950 = vsel %vm564, %v3934, -1e+30
    %v3951 = vsel %vm565, %v3935, -1e+30
    %v3952 = vsel %vm566, %v3936, -1e+30
    %v3953 = vsel %vm567, %v3937, -1e+30
    %v3954 = vsel %vm568, %v3938, -1e+30
    %v3955 = vsel %vm569, %v3939, -1e+30
    %v3956 = vsel %vm570, %v3940, -1e+30
    %v3957 = vsel %vm571, %v3941, -1e+30
    %v3958 = vsel %vm572, %v3942, -1e+30
    %3959 = vmax.xlane.f32.xlu0 %v3943
    %v3960 = vpop.xlane.xlu0 %3959
    %3961 = vmax.xlane.f32.xlu0 %v3944
    %v3962 = vpop.xlane.xlu0 %3961
    %3963 = vmax.xlane.f32.xlu0 %v3945
    %v3964 = vpop.xlane.xlu0 %3963
    %3965 = vmax.xlane.f32.xlu0 %v3946
    %v3966 = vpop.xlane.xlu0 %3965
    %3967 = vmax.xlane.f32.xlu0 %v3947
    %v3968 = vpop.xlane.xlu0 %3967
    %3969 = vmax.xlane.f32.xlu0 %v3948
    %v3970 = vpop.xlane.xlu0 %3969
    %3971 = vmax.xlane.f32.xlu0 %v3949
    %v3972 = vpop.xlane.xlu0 %3971
    %3973 = vmax.xlane.f32.xlu0 %v3950
    %v3974 = vpop.xlane.xlu0 %3973
    %3975 = vmax.xlane.f32.xlu0 %v3951
    %v3976 = vpop.xlane.xlu0 %3975
    %3977 = vmax.xlane.f32.xlu0 %v3952
    %v3978 = vpop.xlane.xlu0 %3977
    %3979 = vmax.xlane.f32.xlu0 %v3953
    %v3980 = vpop.xlane.xlu0 %3979
    %3981 = vmax.xlane.f32.xlu0 %v3954
    %v3982 = vpop.xlane.xlu0 %3981
    %3983 = vmax.xlane.f32.xlu0 %v3955
    %v3984 = vpop.xlane.xlu0 %3983
    %3985 = vmax.xlane.f32.xlu0 %v3956
    %v3986 = vpop.xlane.xlu0 %3985
    %3987 = vmax.xlane.f32.xlu0 %v3957
    %v3988 = vpop.xlane.xlu0 %3987
    %3989 = vmax.xlane.f32.xlu0 %v3958
    %v3990 = vpop.xlane.xlu0 %3989
    %v3991 = vsub.f32 %v3943, %v3960
    %v3992 = vsub.f32 %v3944, %v3962
    %v3993 = vsub.f32 %v3945, %v3964
    %v3994 = vsub.f32 %v3946, %v3966
    %v3995 = vsub.f32 %v3947, %v3968
    %v3996 = vsub.f32 %v3948, %v3970
    %v3997 = vsub.f32 %v3949, %v3972
    %v3998 = vsub.f32 %v3950, %v3974
    %v3999 = vsub.f32 %v3951, %v3976
    %v4000 = vsub.f32 %v3952, %v3978
    %v4001 = vsub.f32 %v3953, %v3980
    %v4002 = vsub.f32 %v3954, %v3982
    %v4003 = vsub.f32 %v3955, %v3984
    %v4004 = vsub.f32 %v3956, %v3986
    %v4005 = vsub.f32 %v3957, %v3988
    %v4006 = vsub.f32 %v3958, %v3990
    %v4007 = vmul.f32 %v3991, 1.442695
    %v4008 = vpow.pop %v4007
    %v4009 = vmul.f32 %v3992, 1.442695
    %v4010 = vpow.pop %v4009
    %v4011 = vmul.f32 %v3993, 1.442695
    %v4012 = vpow.pop %v4011
    %v4013 = vmul.f32 %v3994, 1.442695
    %v4014 = vpow.pop %v4013
    %v4015 = vmul.f32 %v3995, 1.442695
    %v4016 = vpow.pop %v4015
    %v4017 = vmul.f32 %v3996, 1.442695
    %v4018 = vpow.pop %v4017
    %v4019 = vmul.f32 %v3997, 1.442695
    %v4020 = vpow.pop %v4019
    %v4021 = vmul.f32 %v3998, 1.442695
    %v4022 = vpow.pop %v4021
    %v4023 = vmul.f32 %v3999, 1.442695
    %v4024 = vpow.pop %v4023
    %v4025 = vmul.f32 %v4000, 1.442695
    %v4026 = vpow.pop %v4025
    %v4027 = vmul.f32 %v4001, 1.442695
    %v4028 = vpow.pop %v4027
    %v4029 = vmul.f32 %v4002, 1.442695
    %v4030 = vpow.pop %v4029
    %v4031 = vmul.f32 %v4003, 1.442695
    %v4032 = vpow.pop %v4031
    %v4033 = vmul.f32 %v4004, 1.442695
    %v4034 = vpow.pop %v4033
    %v4035 = vmul.f32 %v4005, 1.442695
    %v4036 = vpow.pop %v4035
    %v4037 = vmul.f32 %v4006, 1.442695
    %v4038 = vpow.pop %v4037
    %v4039 = vmul.f32 %v4008, %v104
    %v4040 = vmul.f32 %v4010, %v105
    %v4041 = vmul.f32 %v4012, %v106
    %v4042 = vmul.f32 %v4014, %v107
    %v4043 = vmul.f32 %v4016, %v108
    %v4044 = vmul.f32 %v4018, %v109
    %v4045 = vmul.f32 %v4020, %v110
    %v4046 = vmul.f32 %v4022, %v111
    %v4047 = vmul.f32 %v4024, %v112
    %v4048 = vmul.f32 %v4026, %v113
    %v4049 = vmul.f32 %v4028, %v114
    %v4050 = vmul.f32 %v4030, %v115
    %v4051 = vmul.f32 %v4032, %v116
    %v4052 = vmul.f32 %v4034, %v117
    %v4053 = vmul.f32 %v4036, %v118
    %v4054 = vmul.f32 %v4038, %v119
    %4055 = vadd.xlane.f32.xlu0 %v4039
    %v4056 = vpop.xlane.xlu0 %4055
    %4057 = vadd.xlane.f32.xlu0 %v4040
    %v4058 = vpop.xlane.xlu0 %4057
    %4059 = vadd.xlane.f32.xlu0 %v4041
    %v4060 = vpop.xlane.xlu0 %4059
    %4061 = vadd.xlane.f32.xlu0 %v4042
    %v4062 = vpop.xlane.xlu0 %4061
    %4063 = vadd.xlane.f32.xlu0 %v4043
    %v4064 = vpop.xlane.xlu0 %4063
    %4065 = vadd.xlane.f32.xlu0 %v4044
    %v4066 = vpop.xlane.xlu0 %4065
    %4067 = vadd.xlane.f32.xlu0 %v4045
    %v4068 = vpop.xlane.xlu0 %4067
    %4069 = vadd.xlane.f32.xlu0 %v4046
    %v4070 = vpop.xlane.xlu0 %4069
    %4071 = vadd.xlane.f32.xlu0 %v4047
    %v4072 = vpop.xlane.xlu0 %4071
    %4073 = vadd.xlane.f32.xlu0 %v4048
    %v4074 = vpop.xlane.xlu0 %4073
    %4075 = vadd.xlane.f32.xlu0 %v4049
    %v4076 = vpop.xlane.xlu0 %4075
    %4077 = vadd.xlane.f32.xlu0 %v4050
    %v4078 = vpop.xlane.xlu0 %4077
    %4079 = vadd.xlane.f32.xlu0 %v4051
    %v4080 = vpop.xlane.xlu0 %4079
    %4081 = vadd.xlane.f32.xlu0 %v4052
    %v4082 = vpop.xlane.xlu0 %4081
    %4083 = vadd.xlane.f32.xlu0 %v4053
    %v4084 = vpop.xlane.xlu0 %4083
    %4085 = vadd.xlane.f32.xlu0 %v4054
    %v4086 = vpop.xlane.xlu0 %4085
    %v4087 = vrcp.pop %v4056
    %v4088 = vmul.f32 %v4039, %v4087
    %v4089 = vrcp.pop %v4058
    %v4090 = vmul.f32 %v4040, %v4089
    %v4091 = vrcp.pop %v4060
    %v4092 = vmul.f32 %v4041, %v4091
    %v4093 = vrcp.pop %v4062
    %v4094 = vmul.f32 %v4042, %v4093
    %v4095 = vrcp.pop %v4064
    %v4096 = vmul.f32 %v4043, %v4095
    %v4097 = vrcp.pop %v4066
    %v4098 = vmul.f32 %v4044, %v4097
    %v4099 = vrcp.pop %v4068
    %v4100 = vmul.f32 %v4045, %v4099
    %v4101 = vrcp.pop %v4070
    %v4102 = vmul.f32 %v4046, %v4101
    %v4103 = vrcp.pop %v4072
    %v4104 = vmul.f32 %v4047, %v4103
    %v4105 = vrcp.pop %v4074
    %v4106 = vmul.f32 %v4048, %v4105
    %v4107 = vrcp.pop %v4076
    %v4108 = vmul.f32 %v4049, %v4107
    %v4109 = vrcp.pop %v4078
    %v4110 = vmul.f32 %v4050, %v4109
    %v4111 = vrcp.pop %v4080
    %v4112 = vmul.f32 %v4051, %v4111
    %v4113 = vrcp.pop %v4082
    %v4114 = vmul.f32 %v4052, %v4113
    %v4115 = vrcp.pop %v4084
    %v4116 = vmul.f32 %v4053, %v4115
    %v4117 = vrcp.pop %v4086
    %v4118 = vmul.f32 %v4054, %v4117
    %4119 = vmatprep.subr.mxu0 0.0
    %4120 = vmatpush1.msra.mxu0 %v3608
    %4121 = vmatprep.subr.mxu0 0.0
    %4122 = vmatpush1.msra.mxu0 %v3613
    %4123 = vmatprep.subr.mxu0 0.0
    %4124 = vmatpush1.msra.mxu0 %v3618
    %4125 = vmatprep.subr.mxu0 0.0
    %4126 = vmatpush1.msra.mxu0 %v3623
    %4127 = vmatprep.subr.mxu0 0.0
    %4128 = vmatpush1.msra.mxu0 %v3628
    %4129 = vmatprep.subr.mxu0 0.0
    %4130 = vmatpush1.msra.mxu0 %v3633
    %4131 = vmatprep.subr.mxu0 0.0
    %4132 = vmatpush1.msra.mxu0 %v3638
    %4133 = vmatprep.subr.mxu0 0.0
    %4134 = vmatpush1.msra.mxu0 %v3643
    %4135 = vmatprep.subr.mxu0 0.0
    %4136 = vmatpush1.msra.mxu0 %v3648
    %4137 = vmatprep.subr.mxu0 0.0
    %4138 = vmatpush1.msra.mxu0 %v3653
    %4139 = vmatprep.subr.mxu0 0.0
    %4140 = vmatpush1.msra.mxu0 %v3658
    %4141 = vmatprep.subr.mxu0 0.0
    %4142 = vmatpush1.msra.mxu0 %v3663
    %4143 = vmatprep.subr.mxu0 0.0
    %4144 = vmatpush1.msra.mxu0 %v3668
    %4145 = vmatprep.subr.mxu0 0.0
    %4146 = vmatpush1.msra.mxu0 %v3673
    %4147 = vmatprep.subr.mxu0 0.0
    %4148 = vmatpush1.msra.mxu0 %v3678
    %4149 = vmatprep.subr.mxu0 0.0
    %4150 = vmatpush1.msra.mxu0 %v3683
    %4151 = vmatprep.subr.mxu0 0.0
    %4152 = vmatpush1.msra.mxu0 0.0
    %4153 = vmatprep.subr.mxu0 0.0
    %4154 = vmatpush1.msra.mxu0 0.0
    %4155 = vmatprep.subr.mxu0 0.0
    %4156 = vmatpush1.msra.mxu0 0.0
    %4157 = vmatprep.subr.mxu0 0.0
    %4158 = vmatpush1.msra.mxu0 0.0
    %4159 = vmatprep.subr.mxu0 0.0
    %4160 = vmatpush1.msra.mxu0 0.0
    %4161 = vmatprep.subr.mxu0 0.0
    %4162 = vmatpush1.msra.mxu0 0.0
    %4163 = vmatprep.subr.mxu0 0.0
    %4164 = vmatpush1.msra.mxu0 0.0
    %4165 = vmatprep.subr.mxu0 0.0
    %4166 = vmatpush1.msra.mxu0 0.0
    %4167 = vmatprep.subr.mxu0 0.0
    %4168 = vmatpush1.msra.mxu0 0.0
    %4169 = vmatprep.subr.mxu0 0.0
    %4170 = vmatpush1.msra.mxu0 0.0
    %4171 = vmatprep.subr.mxu0 0.0
    %4172 = vmatpush1.msra.mxu0 0.0
    %4173 = vmatprep.subr.mxu0 0.0
    %4174 = vmatpush1.msra.mxu0 0.0
    %4175 = vmatprep.subr.mxu0 0.0
    %4176 = vmatpush1.msra.mxu0 0.0
    %4177 = vmatprep.subr.mxu0 0.0
    %4178 = vmatpush1.msra.mxu0 0.0
    %4179 = vmatprep.subr.mxu0 0.0
    %4180 = vmatpush1.msra.mxu0 0.0
    %4181 = vmatprep.subr.mxu0 0.0
    %4182 = vmatpush1.msra.mxu0 0.0
    %4183 = vmatprep.mubr.f32.mxu0 0.0
    %4184 = vmatmul.mubr.f32.gmra.mrb[0].mxu0 %v4088
    %v4185 = vpop.f32.mrb[0].mxu0
    %v4186 = vadd.f32 %v3507, %v4185
    %v4187 = vpop.f32.mrb[0].mxu0
    %4188 = vmatprep.mubr.f32.mxu0 0.0
    %4189 = vmatmul.mubr.f32.gmra.mrb[0].mxu0 %v4090
    %v4190 = vpop.f32.mrb[0].mxu0
    %v4191 = vadd.f32 %v3508, %v4190
    %v4192 = vpop.f32.mrb[0].mxu0
    %4193 = vmatprep.mubr.f32.mxu0 0.0
    %4194 = vmatmul.mubr.f32.gmra.mrb[0].mxu0 %v4092
    %v4195 = vpop.f32.mrb[0].mxu0
    %v4196 = vadd.f32 %v3509, %v4195
    %v4197 = vpop.f32.mrb[0].mxu0
    %4198 = vmatprep.mubr.f32.mxu0 0.0
    %4199 = vmatmul.mubr.f32.gmra.mrb[0].mxu0 %v4094
    %v4200 = vpop.f32.mrb[0].mxu0
    %v4201 = vadd.f32 %v3510, %v4200
    %v4202 = vpop.f32.mrb[0].mxu0
    %4203 = vmatprep.mubr.f32.mxu0 0.0
    %4204 = vmatmul.mubr.f32.gmra.mrb[0].mxu0 %v4096
    %v4205 = vpop.f32.mrb[0].mxu0
    %v4206 = vadd.f32 %v3511, %v4205
    %v4207 = vpop.f32.mrb[0].mxu0
    %4208 = vmatprep.mubr.f32.mxu0 0.0
    %4209 = vmatmul.mubr.f32.gmra.mrb[0].mxu0 %v4098
    %v4210 = vpop.f32.mrb[0].mxu0
    %v4211 = vadd.f32 %v3512, %v4210
    %v4212 = vpop.f32.mrb[0].mxu0
    %4213 = vmatprep.mubr.f32.mxu0 0.0
    %4214 = vmatmul.mubr.f32.gmra.mrb[0].mxu0 %v4100
    %v4215 = vpop.f32.mrb[0].mxu0
    %v4216 = vadd.f32 %v3513, %v4215
    %v4217 = vpop.f32.mrb[0].mxu0
    %4218 = vmatprep.mubr.f32.mxu0 0.0
    %4219 = vmatmul.mubr.f32.gmra.mrb[0].mxu0 %v4102
    %v4220 = vpop.f32.mrb[0].mxu0
    %v4221 = vadd.f32 %v3514, %v4220
    %v4222 = vpop.f32.mrb[0].mxu0
    %4223 = vmatprep.mubr.f32.mxu0 0.0
    %4224 = vmatmul.mubr.f32.gmra.mrb[0].mxu0 %v4104
    %v4225 = vpop.f32.mrb[0].mxu0
    %v4226 = vadd.f32 %v3515, %v4225
    %v4227 = vpop.f32.mrb[0].mxu0
    %4228 = vmatprep.mubr.f32.mxu0 0.0
    %4229 = vmatmul.mubr.f32.gmra.mrb[0].mxu0 %v4106
    %v4230 = vpop.f32.mrb[0].mxu0
    %v4231 = vadd.f32 %v3516, %v4230
    %v4232 = vpop.f32.mrb[0].mxu0
    %4233 = vmatprep.mubr.f32.mxu0 0.0
    %4234 = vmatmul.mubr.f32.gmra.mrb[0].mxu0 %v4108
    %v4235 = vpop.f32.mrb[0].mxu0
    %v4236 = vadd.f32 %v3517, %v4235
    %v4237 = vpop.f32.mrb[0].mxu0
    %4238 = vmatprep.mubr.f32.mxu0 0.0
    %4239 = vmatmul.mubr.f32.gmra.mrb[0].mxu0 %v4110
    %v4240 = vpop.f32.mrb[0].mxu0
    %v4241 = vadd.f32 %v3518, %v4240
    %v4242 = vpop.f32.mrb[0].mxu0
    %4243 = vmatprep.mubr.f32.mxu0 0.0
    %4244 = vmatmul.mubr.f32.gmra.mrb[0].mxu0 %v4112
    %v4245 = vpop.f32.mrb[0].mxu0
    %v4246 = vadd.f32 %v3519, %v4245
    %v4247 = vpop.f32.mrb[0].mxu0
    %4248 = vmatprep.mubr.f32.mxu0 0.0
    %4249 = vmatmul.mubr.f32.gmra.mrb[0].mxu0 %v4114
    %v4250 = vpop.f32.mrb[0].mxu0
    %v4251 = vadd.f32 %v3520, %v4250
    %v4252 = vpop.f32.mrb[0].mxu0
    %4253 = vmatprep.mubr.f32.mxu0 0.0
    %4254 = vmatmul.mubr.f32.gmra.mrb[0].mxu0 %v4116
    %v4255 = vpop.f32.mrb[0].mxu0
    %v4256 = vadd.f32 %v3521, %v4255
    %v4257 = vpop.f32.mrb[0].mxu0
    %4258 = vmatprep.mubr.f32.mxu0 0.0
    %4259 = vmatmul.mubr.f32.gmra.mrb[0].mxu0 %v4118
    %v4260 = vpop.f32.mrb[0].mxu0
    %v4261 = vadd.f32 %v3522, %v4260
    %v4262 = vpop.f32.mrb[0].mxu0
    %4263 = vdwg.mxu0
    %vm4264 = vcmp.gt.f32.partialorder %v4186, 0.0
    %vm4265 = vcmp.gt.f32.partialorder %v4191, 0.0
    %vm4266 = vcmp.gt.f32.partialorder %v4196, 0.0
    %vm4267 = vcmp.gt.f32.partialorder %v4201, 0.0
    %vm4268 = vcmp.gt.f32.partialorder %v4206, 0.0
    %vm4269 = vcmp.gt.f32.partialorder %v4211, 0.0
    %vm4270 = vcmp.gt.f32.partialorder %v4216, 0.0
    %vm4271 = vcmp.gt.f32.partialorder %v4221, 0.0
    %vm4272 = vcmp.gt.f32.partialorder %v4226, 0.0
    %vm4273 = vcmp.gt.f32.partialorder %v4231, 0.0
    %vm4274 = vcmp.gt.f32.partialorder %v4236, 0.0
    %vm4275 = vcmp.gt.f32.partialorder %v4241, 0.0
    %vm4276 = vcmp.gt.f32.partialorder %v4246, 0.0
    %vm4277 = vcmp.gt.f32.partialorder %v4251, 0.0
    %vm4278 = vcmp.gt.f32.partialorder %v4256, 0.0
    %vm4279 = vcmp.gt.f32.partialorder %v4261, 0.0
    %v4280 = vmul.f32 %v4186, 1.442695
    %v4281 = vpow.pop %v4280
    %v4282 = vmul.f32 %v4191, 1.442695
    %v4283 = vpow.pop %v4282
    %v4284 = vmul.f32 %v4196, 1.442695
    %v4285 = vpow.pop %v4284
    %v4286 = vmul.f32 %v4201, 1.442695
    %v4287 = vpow.pop %v4286
    %v4288 = vmul.f32 %v4206, 1.442695
    %v4289 = vpow.pop %v4288
    %v4290 = vmul.f32 %v4211, 1.442695
    %v4291 = vpow.pop %v4290
    %v4292 = vmul.f32 %v4216, 1.442695
    %v4293 = vpow.pop %v4292
    %v4294 = vmul.f32 %v4221, 1.442695
    %v4295 = vpow.pop %v4294
    %v4296 = vmul.f32 %v4226, 1.442695
    %v4297 = vpow.pop %v4296
    %v4298 = vmul.f32 %v4231, 1.442695
    %v4299 = vpow.pop %v4298
    %v4300 = vmul.f32 %v4236, 1.442695
    %v4301 = vpow.pop %v4300
    %v4302 = vmul.f32 %v4241, 1.442695
    %v4303 = vpow.pop %v4302
    %v4304 = vmul.f32 %v4246, 1.442695
    %v4305 = vpow.pop %v4304
    %v4306 = vmul.f32 %v4251, 1.442695
    %v4307 = vpow.pop %v4306
    %v4308 = vmul.f32 %v4256, 1.442695
    %v4309 = vpow.pop %v4308
    %v4310 = vmul.f32 %v4261, 1.442695
    %v4311 = vpow.pop %v4310
    %v4312 = vsub.f32 %v4281, 1.0
    %v4313 = vsub.f32 %v4283, 1.0
    %v4314 = vsub.f32 %v4285, 1.0
    %v4315 = vsub.f32 %v4287, 1.0
    %v4316 = vsub.f32 %v4289, 1.0
    %v4317 = vsub.f32 %v4291, 1.0
    %v4318 = vsub.f32 %v4293, 1.0
    %v4319 = vsub.f32 %v4295, 1.0
    %v4320 = vsub.f32 %v4297, 1.0
    %v4321 = vsub.f32 %v4299, 1.0
    %v4322 = vsub.f32 %v4301, 1.0
    %v4323 = vsub.f32 %v4303, 1.0
    %v4324 = vsub.f32 %v4305, 1.0
    %v4325 = vsub.f32 %v4307, 1.0
    %v4326 = vsub.f32 %v4309, 1.0
    %v4327 = vsub.f32 %v4311, 1.0
    %v4328 = vsel %vm4264, %v4186, %v4312
    %v4329 = vsel %vm4265, %v4191, %v4313
    %v4330 = vsel %vm4266, %v4196, %v4314
    %v4331 = vsel %vm4267, %v4201, %v4315
    %v4332 = vsel %vm4268, %v4206, %v4316
    %v4333 = vsel %vm4269, %v4211, %v4317
    %v4334 = vsel %vm4270, %v4216, %v4318
    %v4335 = vsel %vm4271, %v4221, %v4319
    %v4336 = vsel %vm4272, %v4226, %v4320
    %v4337 = vsel %vm4273, %v4231, %v4321
    %v4338 = vsel %vm4274, %v4236, %v4322
    %v4339 = vsel %vm4275, %v4241, %v4323
    %v4340 = vsel %vm4276, %v4246, %v4324
    %v4341 = vsel %vm4277, %v4251, %v4325
    %v4342 = vsel %vm4278, %v4256, %v4326
    %v4343 = vsel %vm4279, %v4261, %v4327
    %4344 = vst.msk [vmem:[#allocation3] sm:$0xff] %vm299, %v4328
    %4345 = vst.msk [vmem:[#allocation3 + $0x8] sm:$0xff] %vm299, %v4329
    %4346 = vst.msk [vmem:[#allocation3 + $0x10] sm:$0xff] %vm299, %v4330
    %4347 = vst.msk [vmem:[#allocation3 + $0x18] sm:$0xff] %vm299, %v4331
    %4348 = vst.msk [vmem:[#allocation3 + $0x20] sm:$0xff] %vm299, %v4332
    %4349 = vst.msk [vmem:[#allocation3 + $0x28] sm:$0xff] %vm299, %v4333
    %4350 = vst.msk [vmem:[#allocation3 + $0x30] sm:$0xff] %vm299, %v4334
    %4351 = vst.msk [vmem:[#allocation3 + $0x38] sm:$0xff] %vm299, %v4335
    %4352 = vst.msk [vmem:[#allocation3 + $0x40] sm:$0xff] %vm299, %v4336
    %4353 = vst.msk [vmem:[#allocation3 + $0x48] sm:$0xff] %vm299, %v4337
    %4354 = vst.msk [vmem:[#allocation3 + $0x50] sm:$0xff] %vm299, %v4338
    %4355 = vst.msk [vmem:[#allocation3 + $0x58] sm:$0xff] %vm299, %v4339
    %4356 = vst.msk [vmem:[#allocation3 + $0x60] sm:$0xff] %vm299, %v4340
    %4357 = vst.msk [vmem:[#allocation3 + $0x68] sm:$0xff] %vm299, %v4341
    %4358 = vst.msk [vmem:[#allocation3 + $0x70] sm:$0xff] %vm299, %v4342
    %4359 = vst.msk [vmem:[#allocation3 + $0x78] sm:$0xff] %vm299, %v4343
    %v4360 = vrot.slane %v3539, 1
    %4361 = vrot.lane.b32.xlu0 %v3608, 96
    %v4362 = vpop.permute.xlu0 %4361
    %4363 = vrot.lane.b32.xlu0 %v3613, 96
    %v4364 = vpop.permute.xlu0 %4363
    %4365 = vrot.lane.b32.xlu0 %v3618, 96
    %v4366 = vpop.permute.xlu0 %4365
    %4367 = vrot.lane.b32.xlu0 %v3623, 96
    %v4368 = vpop.permute.xlu0 %4367
    %4369 = vrot.lane.b32.xlu0 %v3628, 96
    %v4370 = vpop.permute.xlu0 %4369
    %4371 = vrot.lane.b32.xlu0 %v3633, 96
    %v4372 = vpop.permute.xlu0 %4371
    %4373 = vrot.lane.b32.xlu0 %v3638, 96
    %v4374 = vpop.permute.xlu0 %4373
    %4375 = vrot.lane.b32.xlu0 %v3643, 96
    %v4376 = vpop.permute.xlu0 %4375
    %4377 = vrot.lane.b32.xlu0 %v3648, 96
    %v4378 = vpop.permute.xlu0 %4377
    %4379 = vrot.lane.b32.xlu0 %v3653, 96
    %v4380 = vpop.permute.xlu0 %4379
    %4381 = vrot.lane.b32.xlu0 %v3658, 96
    %v4382 = vpop.permute.xlu0 %4381
    %4383 = vrot.lane.b32.xlu0 %v3663, 96
    %v4384 = vpop.permute.xlu0 %4383
    %4385 = vrot.lane.b32.xlu0 %v3668, 96
    %v4386 = vpop.permute.xlu0 %4385
    %4387 = vrot.lane.b32.xlu0 %v3673, 96
    %v4388 = vpop.permute.xlu0 %4387
    %4389 = vrot.lane.b32.xlu0 %v3678, 96
    %v4390 = vpop.permute.xlu0 %4389
    %4391 = vrot.lane.b32.xlu0 %v3683, 96
    %v4392 = vpop.permute.xlu0 %4391
    %v4393 = vsel %vm299, %v4360, 0
    %v4395 = vsel %vm299, %v4362, 0
    %v4397 = vsel %vm299, %v4364, 0
    %v4399 = vsel %vm299, %v4366, 0
    %v4401 = vsel %vm299, %v4368, 0
    %v4403 = vsel %vm299, %v4370, 0
    %v4405 = vsel %vm299, %v4372, 0
    %v4407 = vsel %vm299, %v4374, 0
    %v4409 = vsel %vm299, %v4376, 0
    %v4411 = vsel %vm299, %v4378, 0
    %v4413 = vsel %vm299, %v4380, 0
    %v4415 = vsel %vm299, %v4382, 0
    %v4417 = vsel %vm299, %v4384, 0
    %v4419 = vsel %vm299, %v4386, 0
    %v4421 = vsel %vm299, %v4388, 0
    %v4423 = vsel %vm299, %v4390, 0
    %v4425 = vsel %vm299, %v4392, 0
    %4427 = vmatprep.subr.mxu0 0.0
    %4428 = vmatpush1.xpose.msra.mxu0 %v4395
    %4429 = vmatprep.subr.mxu0 0.0
    %4430 = vmatpush1.xpose.msra.mxu0 %v4397
    %4431 = vmatprep.subr.mxu0 0.0
    %4432 = vmatpush1.xpose.msra.mxu0 %v4399
    %4433 = vmatprep.subr.mxu0 0.0
    %4434 = vmatpush1.xpose.msra.mxu0 %v4401
    %4435 = vmatprep.subr.mxu0 0.0
    %4436 = vmatpush1.xpose.msra.mxu0 %v4403
    %4437 = vmatprep.subr.mxu0 0.0
    %4438 = vmatpush1.xpose.msra.mxu0 %v4405
    %4439 = vmatprep.subr.mxu0 0.0
    %4440 = vmatpush1.xpose.msra.mxu0 %v4407
    %4441 = vmatprep.subr.mxu0 0.0
    %4442 = vmatpush1.xpose.msra.mxu0 %v4409
    %4443 = vmatprep.subr.mxu0 0.0
    %4444 = vmatpush1.xpose.msra.mxu0 %v4411
    %4445 = vmatprep.subr.mxu0 0.0
    %4446 = vmatpush1.xpose.msra.mxu0 %v4413
    %4447 = vmatprep.subr.mxu0 0.0
    %4448 = vmatpush1.xpose.msra.mxu0 %v4415
    %4449 = vmatprep.subr.mxu0 0.0
    %4450 = vmatpush1.xpose.msra.mxu0 %v4417
    %4451 = vmatprep.subr.mxu0 0.0
    %4452 = vmatpush1.xpose.msra.mxu0 %v4419
    %4453 = vmatprep.subr.mxu0 0.0
    %4454 = vmatpush1.xpose.msra.mxu0 %v4421
    %4455 = vmatprep.subr.mxu0 0.0
    %4456 = vmatpush1.xpose.msra.mxu0 %v4423
    %4457 = vmatprep.subr.mxu0 0.0
    %4458 = vmatpush1.xpose.msra.mxu0 %v4425
    %4459 = vmatprep.subr.mxu0 0.0
    %4460 = vmatpush1.xpose.msra.mxu0 0.0
    %4461 = vmatprep.subr.mxu0 0.0
    %4462 = vmatpush1.xpose.msra.mxu0 0.0
    %4463 = vmatprep.subr.mxu0 0.0
    %4464 = vmatpush1.xpose.msra.mxu0 0.0
    %4465 = vmatprep.subr.mxu0 0.0
    %4466 = vmatpush1.xpose.msra.mxu0 0.0
    %4467 = vmatprep.subr.mxu0 0.0
    %4468 = vmatpush1.xpose.msra.mxu0 0.0
    %4469 = vmatprep.subr.mxu0 0.0
    %4470 = vmatpush1.xpose.msra.mxu0 0.0
    %4471 = vmatprep.subr.mxu0 0.0
    %4472 = vmatpush1.xpose.msra.mxu0 0.0
    %4473 = vmatprep.subr.mxu0 0.0
    %4474 = vmatpush1.xpose.msra.mxu0 0.0
    %4475 = vmatprep.subr.mxu0 0.0
    %4476 = vmatpush1.xpose.msra.mxu0 0.0
    %4477 = vmatprep.subr.mxu0 0.0
    %4478 = vmatpush1.xpose.msra.mxu0 0.0
    %4479 = vmatprep.subr.mxu0 0.0
    %4480 = vmatpush1.xpose.msra.mxu0 0.0
    %4481 = vmatprep.subr.mxu0 0.0
    %4482 = vmatpush1.xpose.msra.mxu0 0.0
    %4483 = vmatprep.subr.mxu0 0.0
    %4484 = vmatpush1.xpose.msra.mxu0 0.0
    %4485 = vmatprep.subr.mxu0 0.0
    %4486 = vmatpush1.xpose.msra.mxu0 0.0
    %4487 = vmatprep.subr.mxu0 0.0
    %4488 = vmatpush1.xpose.msra.mxu0 0.0
    %4489 = vmatprep.subr.mxu0 0.0
    %4490 = vmatpush1.xpose.msra.mxu0 0.0
    %4491 = vmatprep.mubr.f32.mxu0 0.0
    %4492 = vmatmul.mubr.f32.gmra.mrb[0].mxu0 %v4393
    %v4493 = vpop.f32.mrb[0].mxu0
    %v4494 = vadd.f32 0.0, %v4493
    %v4495 = vpop.f32.mrb[0].mxu0
    %4496 = vdwg.mxu0
    %v4497 = vlaneseq
    %v4498 = vshrl.u32 %v4497, 7
    %v4499 = vsub.s32 1, %v4498
    %v4500 = vrot.slane %v3540, %v4499
    %4502 = vrot.lane.b32.xlu0 %v4500, 32
    %v4503 = vpop.permute.xlu0 %4502
    %v4505 = vmul.f32 %v3608, %v4503
    %v4506 = vmul.f32 %v3613, %v4503
    %v4507 = vmul.f32 %v3618, %v4503
    %v4508 = vmul.f32 %v3623, %v4503
    %v4509 = vmul.f32 %v3628, %v4503
    %v4510 = vmul.f32 %v3633, %v4503
    %v4511 = vmul.f32 %v3638, %v4503
    %v4512 = vmul.f32 %v3643, %v4503
    %v4513 = vmul.f32 %v3648, %v4503
    %v4514 = vmul.f32 %v3653, %v4503
    %v4515 = vmul.f32 %v3658, %v4503
    %v4516 = vmul.f32 %v3663, %v4503
    %v4517 = vmul.f32 %v3668, %v4503
    %v4518 = vmul.f32 %v3673, %v4503
    %v4519 = vmul.f32 %v3678, %v4503
    %v4520 = vmul.f32 %v3683, %v4503
    %4537 = vrot.lane.b32.xlu0 %v4505, 96
    %v4538 = vpop.permute.xlu0 %4537
    %4539 = vrot.lane.b32.xlu0 %v4506, 96
    %v4540 = vpop.permute.xlu0 %4539
    %4541 = vrot.lane.b32.xlu0 %v4507, 96
    %v4542 = vpop.permute.xlu0 %4541
    %4543 = vrot.lane.b32.xlu0 %v4508, 96
    %v4544 = vpop.permute.xlu0 %4543
    %4545 = vrot.lane.b32.xlu0 %v4509, 96
    %v4546 = vpop.permute.xlu0 %4545
    %4547 = vrot.lane.b32.xlu0 %v4510, 96
    %v4548 = vpop.permute.xlu0 %4547
    %4549 = vrot.lane.b32.xlu0 %v4511, 96
    %v4550 = vpop.permute.xlu0 %4549
    %4551 = vrot.lane.b32.xlu0 %v4512, 96
    %v4552 = vpop.permute.xlu0 %4551
    %4553 = vrot.lane.b32.xlu0 %v4513, 96
    %v4554 = vpop.permute.xlu0 %4553
    %4555 = vrot.lane.b32.xlu0 %v4514, 96
    %v4556 = vpop.permute.xlu0 %4555
    %4557 = vrot.lane.b32.xlu0 %v4515, 96
    %v4558 = vpop.permute.xlu0 %4557
    %4559 = vrot.lane.b32.xlu0 %v4516, 96
    %v4560 = vpop.permute.xlu0 %4559
    %4561 = vrot.lane.b32.xlu0 %v4517, 96
    %v4562 = vpop.permute.xlu0 %4561
    %4563 = vrot.lane.b32.xlu0 %v4518, 96
    %v4564 = vpop.permute.xlu0 %4563
    %4565 = vrot.lane.b32.xlu0 %v4519, 96
    %v4566 = vpop.permute.xlu0 %4565
    %4567 = vrot.lane.b32.xlu0 %v4520, 96
    %v4568 = vpop.permute.xlu0 %4567
    %v4585 = vsel %vm299, %v4538, 0.0
    %4586 = vadd.xlane.f32.xlu0 %v4585
    %v4587 = vpop.xlane.xlu0 %4586
    %v4588 = vsel %vm299, %v4540, 0.0
    %4589 = vadd.xlane.f32.xlu0 %v4588
    %v4590 = vpop.xlane.xlu0 %4589
    %v4591 = vsel %vm299, %v4542, 0.0
    %4592 = vadd.xlane.f32.xlu0 %v4591
    %v4593 = vpop.xlane.xlu0 %4592
    %v4594 = vsel %vm299, %v4544, 0.0
    %4595 = vadd.xlane.f32.xlu0 %v4594
    %v4596 = vpop.xlane.xlu0 %4595
    %v4597 = vsel %vm299, %v4546, 0.0
    %4598 = vadd.xlane.f32.xlu0 %v4597
    %v4599 = vpop.xlane.xlu0 %4598
    %v4600 = vsel %vm299, %v4548, 0.0
    %4601 = vadd.xlane.f32.xlu0 %v4600
    %v4602 = vpop.xlane.xlu0 %4601
    %v4603 = vsel %vm299, %v4550, 0.0
    %4604 = vadd.xlane.f32.xlu0 %v4603
    %v4605 = vpop.xlane.xlu0 %4604
    %v4606 = vsel %vm299, %v4552, 0.0
    %4607 = vadd.xlane.f32.xlu0 %v4606
    %v4608 = vpop.xlane.xlu0 %4607
    %v4609 = vsel %vm299, %v4554, 0.0
    %4610 = vadd.xlane.f32.xlu0 %v4609
    %v4611 = vpop.xlane.xlu0 %4610
    %v4612 = vsel %vm299, %v4556, 0.0
    %4613 = vadd.xlane.f32.xlu0 %v4612
    %v4614 = vpop.xlane.xlu0 %4613
    %v4615 = vsel %vm299, %v4558, 0.0
    %4616 = vadd.xlane.f32.xlu0 %v4615
    %v4617 = vpop.xlane.xlu0 %4616
    %v4618 = vsel %vm299, %v4560, 0.0
    %4619 = vadd.xlane.f32.xlu0 %v4618
    %v4620 = vpop.xlane.xlu0 %4619
    %v4621 = vsel %vm299, %v4562, 0.0
    %4622 = vadd.xlane.f32.xlu0 %v4621
    %v4623 = vpop.xlane.xlu0 %4622
    %v4624 = vsel %vm299, %v4564, 0.0
    %4625 = vadd.xlane.f32.xlu0 %v4624
    %v4626 = vpop.xlane.xlu0 %4625
    %v4627 = vsel %vm299, %v4566, 0.0
    %4628 = vadd.xlane.f32.xlu0 %v4627
    %v4629 = vpop.xlane.xlu0 %4628
    %v4630 = vsel %vm299, %v4568, 0.0
    %4631 = vadd.xlane.f32.xlu0 %v4630
    %v4632 = vpop.xlane.xlu0 %4631
    %v4633 = vlaneseq
    %v4634 = vshrl.u32 %v4633, 7
    %v4635 = vsub.s32 0, %v4634
    %v4636 = vrot.slane %v4494, %v4635
    %v4637 = vadd.f32 %v4587, %v4636
    %v4638 = vadd.f32 %v4590, %v4636
    %v4639 = vadd.f32 %v4593, %v4636
    %v4640 = vadd.f32 %v4596, %v4636
    %v4641 = vadd.f32 %v4599, %v4636
    %v4642 = vadd.f32 %v4602, %v4636
    %v4643 = vadd.f32 %v4605, %v4636
    %v4644 = vadd.f32 %v4608, %v4636
    %v4645 = vadd.f32 %v4611, %v4636
    %v4646 = vadd.f32 %v4614, %v4636
    %v4647 = vadd.f32 %v4617, %v4636
    %v4648 = vadd.f32 %v4620, %v4636
    %v4649 = vadd.f32 %v4623, %v4636
    %v4650 = vadd.f32 %v4626, %v4636
    %v4651 = vadd.f32 %v4629, %v4636
    %v4652 = vadd.f32 %v4632, %v4636
    %vm4653 = vcmp.ge.f32.partialorder %v4637, 0.0
    %vm4654 = vcmp.ge.f32.partialorder %v4638, 0.0
    %vm4655 = vcmp.ge.f32.partialorder %v4639, 0.0
    %vm4656 = vcmp.ge.f32.partialorder %v4640, 0.0
    %vm4657 = vcmp.ge.f32.partialorder %v4641, 0.0
    %vm4658 = vcmp.ge.f32.partialorder %v4642, 0.0
    %vm4659 = vcmp.ge.f32.partialorder %v4643, 0.0
    %vm4660 = vcmp.ge.f32.partialorder %v4644, 0.0
    %vm4661 = vcmp.ge.f32.partialorder %v4645, 0.0
    %vm4662 = vcmp.ge.f32.partialorder %v4646, 0.0
    %vm4663 = vcmp.ge.f32.partialorder %v4647, 0.0
    %vm4664 = vcmp.ge.f32.partialorder %v4648, 0.0
    %vm4665 = vcmp.ge.f32.partialorder %v4649, 0.0
    %vm4666 = vcmp.ge.f32.partialorder %v4650, 0.0
    %vm4667 = vcmp.ge.f32.partialorder %v4651, 0.0
    %vm4668 = vcmp.ge.f32.partialorder %v4652, 0.0
    %v4669 = vmul.f32 %v4637, 0.2
    %v4670 = vmul.f32 %v4638, 0.2
    %v4671 = vmul.f32 %v4639, 0.2
    %v4672 = vmul.f32 %v4640, 0.2
    %v4673 = vmul.f32 %v4641, 0.2
    %v4674 = vmul.f32 %v4642, 0.2
    %v4675 = vmul.f32 %v4643, 0.2
    %v4676 = vmul.f32 %v4644, 0.2
    %v4677 = vmul.f32 %v4645, 0.2
    %v4678 = vmul.f32 %v4646, 0.2
    %v4679 = vmul.f32 %v4647, 0.2
    %v4680 = vmul.f32 %v4648, 0.2
    %v4681 = vmul.f32 %v4649, 0.2
    %v4682 = vmul.f32 %v4650, 0.2
    %v4683 = vmul.f32 %v4651, 0.2
    %v4684 = vmul.f32 %v4652, 0.2
    %v4685 = vsel %vm4653, %v4637, %v4669
    %v4686 = vsel %vm4654, %v4638, %v4670
    %v4687 = vsel %vm4655, %v4639, %v4671
    %v4688 = vsel %vm4656, %v4640, %v4672
    %v4689 = vsel %vm4657, %v4641, %v4673
    %v4690 = vsel %vm4658, %v4642, %v4674
    %v4691 = vsel %vm4659, %v4643, %v4675
    %v4692 = vsel %vm4660, %v4644, %v4676
    %v4693 = vsel %vm4661, %v4645, %v4677
    %v4694 = vsel %vm4662, %v4646, %v4678
    %v4695 = vsel %vm4663, %v4647, %v4679
    %v4696 = vsel %vm4664, %v4648, %v4680
    %v4697 = vsel %vm4665, %v4649, %v4681
    %v4698 = vsel %vm4666, %v4650, %v4682
    %v4699 = vsel %vm4667, %v4651, %v4683
    %v4700 = vsel %vm4668, %v4652, %v4684
    %v4701 = vsel %vm557, %v4685, -1e+30
    %v4702 = vsel %vm558, %v4686, -1e+30
    %v4703 = vsel %vm559, %v4687, -1e+30
    %v4704 = vsel %vm560, %v4688, -1e+30
    %v4705 = vsel %vm561, %v4689, -1e+30
    %v4706 = vsel %vm562, %v4690, -1e+30
    %v4707 = vsel %vm563, %v4691, -1e+30
    %v4708 = vsel %vm564, %v4692, -1e+30
    %v4709 = vsel %vm565, %v4693, -1e+30
    %v4710 = vsel %vm566, %v4694, -1e+30
    %v4711 = vsel %vm567, %v4695, -1e+30
    %v4712 = vsel %vm568, %v4696, -1e+30
    %v4713 = vsel %vm569, %v4697, -1e+30
    %v4714 = vsel %vm570, %v4698, -1e+30
    %v4715 = vsel %vm571, %v4699, -1e+30
    %v4716 = vsel %vm572, %v4700, -1e+30
    %4717 = vmax.xlane.f32.xlu0 %v4701
    %v4718 = vpop.xlane.xlu0 %4717
    %4719 = vmax.xlane.f32.xlu0 %v4702
    %v4720 = vpop.xlane.xlu0 %4719
    %4721 = vmax.xlane.f32.xlu0 %v4703
    %v4722 = vpop.xlane.xlu0 %4721
    %4723 = vmax.xlane.f32.xlu0 %v4704
    %v4724 = vpop.xlane.xlu0 %4723
    %4725 = vmax.xlane.f32.xlu0 %v4705
    %v4726 = vpop.xlane.xlu0 %4725
    %4727 = vmax.xlane.f32.xlu0 %v4706
    %v4728 = vpop.xlane.xlu0 %4727
    %4729 = vmax.xlane.f32.xlu0 %v4707
    %v4730 = vpop.xlane.xlu0 %4729
    %4731 = vmax.xlane.f32.xlu0 %v4708
    %v4732 = vpop.xlane.xlu0 %4731
    %4733 = vmax.xlane.f32.xlu0 %v4709
    %v4734 = vpop.xlane.xlu0 %4733
    %4735 = vmax.xlane.f32.xlu0 %v4710
    %v4736 = vpop.xlane.xlu0 %4735
    %4737 = vmax.xlane.f32.xlu0 %v4711
    %v4738 = vpop.xlane.xlu0 %4737
    %4739 = vmax.xlane.f32.xlu0 %v4712
    %v4740 = vpop.xlane.xlu0 %4739
    %4741 = vmax.xlane.f32.xlu0 %v4713
    %v4742 = vpop.xlane.xlu0 %4741
    %4743 = vmax.xlane.f32.xlu0 %v4714
    %v4744 = vpop.xlane.xlu0 %4743
    %4745 = vmax.xlane.f32.xlu0 %v4715
    %v4746 = vpop.xlane.xlu0 %4745
    %4747 = vmax.xlane.f32.xlu0 %v4716
    %v4748 = vpop.xlane.xlu0 %4747
    %v4749 = vsub.f32 %v4701, %v4718
    %v4750 = vsub.f32 %v4702, %v4720
    %v4751 = vsub.f32 %v4703, %v4722
    %v4752 = vsub.f32 %v4704, %v4724
    %v4753 = vsub.f32 %v4705, %v4726
    %v4754 = vsub.f32 %v4706, %v4728
    %v4755 = vsub.f32 %v4707, %v4730
    %v4756 = vsub.f32 %v4708, %v4732
    %v4757 = vsub.f32 %v4709, %v4734
    %v4758 = vsub.f32 %v4710, %v4736
    %v4759 = vsub.f32 %v4711, %v4738
    %v4760 = vsub.f32 %v4712, %v4740
    %v4761 = vsub.f32 %v4713, %v4742
    %v4762 = vsub.f32 %v4714, %v4744
    %v4763 = vsub.f32 %v4715, %v4746
    %v4764 = vsub.f32 %v4716, %v4748
    %v4765 = vmul.f32 %v4749, 1.442695
    %v4766 = vpow.pop %v4765
    %v4767 = vmul.f32 %v4750, 1.442695
    %v4768 = vpow.pop %v4767
    %v4769 = vmul.f32 %v4751, 1.442695
    %v4770 = vpow.pop %v4769
    %v4771 = vmul.f32 %v4752, 1.442695
    %v4772 = vpow.pop %v4771
    %v4773 = vmul.f32 %v4753, 1.442695
    %v4774 = vpow.pop %v4773
    %v4775 = vmul.f32 %v4754, 1.442695
    %v4776 = vpow.pop %v4775
    %v4777 = vmul.f32 %v4755, 1.442695
    %v4778 = vpow.pop %v4777
    %v4779 = vmul.f32 %v4756, 1.442695
    %v4780 = vpow.pop %v4779
    %v4781 = vmul.f32 %v4757, 1.442695
    %v4782 = vpow.pop %v4781
    %v4783 = vmul.f32 %v4758, 1.442695
    %v4784 = vpow.pop %v4783
    %v4785 = vmul.f32 %v4759, 1.442695
    %v4786 = vpow.pop %v4785
    %v4787 = vmul.f32 %v4760, 1.442695
    %v4788 = vpow.pop %v4787
    %v4789 = vmul.f32 %v4761, 1.442695
    %v4790 = vpow.pop %v4789
    %v4791 = vmul.f32 %v4762, 1.442695
    %v4792 = vpow.pop %v4791
    %v4793 = vmul.f32 %v4763, 1.442695
    %v4794 = vpow.pop %v4793
    %v4795 = vmul.f32 %v4764, 1.442695
    %v4796 = vpow.pop %v4795
    %v4797 = vmul.f32 %v4766, %v104
    %v4798 = vmul.f32 %v4768, %v105
    %v4799 = vmul.f32 %v4770, %v106
    %v4800 = vmul.f32 %v4772, %v107
    %v4801 = vmul.f32 %v4774, %v108
    %v4802 = vmul.f32 %v4776, %v109
    %v4803 = vmul.f32 %v4778, %v110
    %v4804 = vmul.f32 %v4780, %v111
    %v4805 = vmul.f32 %v4782, %v112
    %v4806 = vmul.f32 %v4784, %v113
    %v4807 = vmul.f32 %v4786, %v114
    %v4808 = vmul.f32 %v4788, %v115
    %v4809 = vmul.f32 %v4790, %v116
    %v4810 = vmul.f32 %v4792, %v117
    %v4811 = vmul.f32 %v4794, %v118
    %v4812 = vmul.f32 %v4796, %v119
    %4813 = vadd.xlane.f32.xlu0 %v4797
    %v4814 = vpop.xlane.xlu0 %4813
    %4815 = vadd.xlane.f32.xlu0 %v4798
    %v4816 = vpop.xlane.xlu0 %4815
    %4817 = vadd.xlane.f32.xlu0 %v4799
    %v4818 = vpop.xlane.xlu0 %4817
    %4819 = vadd.xlane.f32.xlu0 %v4800
    %v4820 = vpop.xlane.xlu0 %4819
    %4821 = vadd.xlane.f32.xlu0 %v4801
    %v4822 = vpop.xlane.xlu0 %4821
    %4823 = vadd.xlane.f32.xlu0 %v4802
    %v4824 = vpop.xlane.xlu0 %4823
    %4825 = vadd.xlane.f32.xlu0 %v4803
    %v4826 = vpop.xlane.xlu0 %4825
    %4827 = vadd.xlane.f32.xlu0 %v4804
    %v4828 = vpop.xlane.xlu0 %4827
    %4829 = vadd.xlane.f32.xlu0 %v4805
    %v4830 = vpop.xlane.xlu0 %4829
    %4831 = vadd.xlane.f32.xlu0 %v4806
    %v4832 = vpop.xlane.xlu0 %4831
    %4833 = vadd.xlane.f32.xlu0 %v4807
    %v4834 = vpop.xlane.xlu0 %4833
    %4835 = vadd.xlane.f32.xlu0 %v4808
    %v4836 = vpop.xlane.xlu0 %4835
    %4837 = vadd.xlane.f32.xlu0 %v4809
    %v4838 = vpop.xlane.xlu0 %4837
    %4839 = vadd.xlane.f32.xlu0 %v4810
    %v4840 = vpop.xlane.xlu0 %4839
    %4841 = vadd.xlane.f32.xlu0 %v4811
    %v4842 = vpop.xlane.xlu0 %4841
    %4843 = vadd.xlane.f32.xlu0 %v4812
    %v4844 = vpop.xlane.xlu0 %4843
    %v4845 = vrcp.pop %v4814
    %v4846 = vmul.f32 %v4797, %v4845
    %v4847 = vrcp.pop %v4816
    %v4848 = vmul.f32 %v4798, %v4847
    %v4849 = vrcp.pop %v4818
    %v4850 = vmul.f32 %v4799, %v4849
    %v4851 = vrcp.pop %v4820
    %v4852 = vmul.f32 %v4800, %v4851
    %v4853 = vrcp.pop %v4822
    %v4854 = vmul.f32 %v4801, %v4853
    %v4855 = vrcp.pop %v4824
    %v4856 = vmul.f32 %v4802, %v4855
    %v4857 = vrcp.pop %v4826
    %v4858 = vmul.f32 %v4803, %v4857
    %v4859 = vrcp.pop %v4828
    %v4860 = vmul.f32 %v4804, %v4859
    %v4861 = vrcp.pop %v4830
    %v4862 = vmul.f32 %v4805, %v4861
    %v4863 = vrcp.pop %v4832
    %v4864 = vmul.f32 %v4806, %v4863
    %v4865 = vrcp.pop %v4834
    %v4866 = vmul.f32 %v4807, %v4865
    %v4867 = vrcp.pop %v4836
    %v4868 = vmul.f32 %v4808, %v4867
    %v4869 = vrcp.pop %v4838
    %v4870 = vmul.f32 %v4809, %v4869
    %v4871 = vrcp.pop %v4840
    %v4872 = vmul.f32 %v4810, %v4871
    %v4873 = vrcp.pop %v4842
    %v4874 = vmul.f32 %v4811, %v4873
    %v4875 = vrcp.pop %v4844
    %v4876 = vmul.f32 %v4812, %v4875
    %4909 = vrot.lane.b32.xlu0 %v3507, 96
    %v4910 = vpop.permute.xlu0 %4909
    %4911 = vrot.lane.b32.xlu0 %v3508, 96
    %v4912 = vpop.permute.xlu0 %4911
    %4913 = vrot.lane.b32.xlu0 %v3509, 96
    %v4914 = vpop.permute.xlu0 %4913
    %4915 = vrot.lane.b32.xlu0 %v3510, 96
    %v4916 = vpop.permute.xlu0 %4915
    %4917 = vrot.lane.b32.xlu0 %v3511, 96
    %v4918 = vpop.permute.xlu0 %4917
    %4919 = vrot.lane.b32.xlu0 %v3512, 96
    %v4920 = vpop.permute.xlu0 %4919
    %4921 = vrot.lane.b32.xlu0 %v3513, 96
    %v4922 = vpop.permute.xlu0 %4921
    %4923 = vrot.lane.b32.xlu0 %v3514, 96
    %v4924 = vpop.permute.xlu0 %4923
    %4925 = vrot.lane.b32.xlu0 %v3515, 96
    %v4926 = vpop.permute.xlu0 %4925
    %4927 = vrot.lane.b32.xlu0 %v3516, 96
    %v4928 = vpop.permute.xlu0 %4927
    %4929 = vrot.lane.b32.xlu0 %v3517, 96
    %v4930 = vpop.permute.xlu0 %4929
    %4931 = vrot.lane.b32.xlu0 %v3518, 96
    %v4932 = vpop.permute.xlu0 %4931
    %4933 = vrot.lane.b32.xlu0 %v3519, 96
    %v4934 = vpop.permute.xlu0 %4933
    %4935 = vrot.lane.b32.xlu0 %v3520, 96
    %v4936 = vpop.permute.xlu0 %4935
    %4937 = vrot.lane.b32.xlu0 %v3521, 96
    %v4938 = vpop.permute.xlu0 %4937
    %4939 = vrot.lane.b32.xlu0 %v3522, 96
    %v4940 = vpop.permute.xlu0 %4939
    %4957 = vmatprep.subr.mxu0 0.0
    %4958 = vmatpush1.msra.mxu0 %v4362
    %4959 = vmatprep.subr.mxu0 0.0
    %4960 = vmatpush1.msra.mxu0 %v4364
    %4961 = vmatprep.subr.mxu0 0.0
    %4962 = vmatpush1.msra.mxu0 %v4366
    %4963 = vmatprep.subr.mxu0 0.0
    %4964 = vmatpush1.msra.mxu0 %v4368
    %4965 = vmatprep.subr.mxu0 0.0
    %4966 = vmatpush1.msra.mxu0 %v4370
    %4967 = vmatprep.subr.mxu0 0.0
    %4968 = vmatpush1.msra.mxu0 %v4372
    %4969 = vmatprep.subr.mxu0 0.0
    %4970 = vmatpush1.msra.mxu0 %v4374
    %4971 = vmatprep.subr.mxu0 0.0
    %4972 = vmatpush1.msra.mxu0 %v4376
    %4973 = vmatprep.subr.mxu0 0.0
    %4974 = vmatpush1.msra.mxu0 %v4378
    %4975 = vmatprep.subr.mxu0 0.0
    %4976 = vmatpush1.msra.mxu0 %v4380
    %4977 = vmatprep.subr.mxu0 0.0
    %4978 = vmatpush1.msra.mxu0 %v4382
    %4979 = vmatprep.subr.mxu0 0.0
    %4980 = vmatpush1.msra.mxu0 %v4384
    %4981 = vmatprep.subr.mxu0 0.0
    %4982 = vmatpush1.msra.mxu0 %v4386
    %4983 = vmatprep.subr.mxu0 0.0
    %4984 = vmatpush1.msra.mxu0 %v4388
    %4985 = vmatprep.subr.mxu0 0.0
    %4986 = vmatpush1.msra.mxu0 %v4390
    %4987 = vmatprep.subr.mxu0 0.0
    %4988 = vmatpush1.msra.mxu0 %v4392
    %4989 = vmatprep.subr.mxu0 0.0
    %4990 = vmatpush1.msra.mxu0 0.0
    %4991 = vmatprep.subr.mxu0 0.0
    %4992 = vmatpush1.msra.mxu0 0.0
    %4993 = vmatprep.subr.mxu0 0.0
    %4994 = vmatpush1.msra.mxu0 0.0
    %4995 = vmatprep.subr.mxu0 0.0
    %4996 = vmatpush1.msra.mxu0 0.0
    %4997 = vmatprep.subr.mxu0 0.0
    %4998 = vmatpush1.msra.mxu0 0.0
    %4999 = vmatprep.subr.mxu0 0.0
    %5000 = vmatpush1.msra.mxu0 0.0
    %5001 = vmatprep.subr.mxu0 0.0
    %5002 = vmatpush1.msra.mxu0 0.0
    %5003 = vmatprep.subr.mxu0 0.0
    %5004 = vmatpush1.msra.mxu0 0.0
    %5005 = vmatprep.subr.mxu0 0.0
    %5006 = vmatpush1.msra.mxu0 0.0
    %5007 = vmatprep.subr.mxu0 0.0
    %5008 = vmatpush1.msra.mxu0 0.0
    %5009 = vmatprep.subr.mxu0 0.0
    %5010 = vmatpush1.msra.mxu0 0.0
    %5011 = vmatprep.subr.mxu0 0.0
    %5012 = vmatpush1.msra.mxu0 0.0
    %5013 = vmatprep.subr.mxu0 0.0
    %5014 = vmatpush1.msra.mxu0 0.0
    %5015 = vmatprep.subr.mxu0 0.0
    %5016 = vmatpush1.msra.mxu0 0.0
    %5017 = vmatprep.subr.mxu0 0.0
    %5018 = vmatpush1.msra.mxu0 0.0
    %5019 = vmatprep.subr.mxu0 0.0
    %5020 = vmatpush1.msra.mxu0 0.0
    %5021 = vmatprep.mubr.f32.mxu0 0.0
    %5022 = vmatmul.mubr.f32.gmra.mrb[0].mxu0 %v4846
    %v5023 = vpop.f32.mrb[0].mxu0
    %v5024 = vadd.f32 %v4910, %v5023
    %v5025 = vpop.f32.mrb[0].mxu0
    %5026 = vmatprep.mubr.f32.mxu0 0.0
    %5027 = vmatmul.mubr.f32.gmra.mrb[0].mxu0 %v4848
    %v5028 = vpop.f32.mrb[0].mxu0
    %v5029 = vadd.f32 %v4912, %v5028
    %v5030 = vpop.f32.mrb[0].mxu0
    %5031 = vmatprep.mubr.f32.mxu0 0.0
    %5032 = vmatmul.mubr.f32.gmra.mrb[0].mxu0 %v4850
    %v5033 = vpop.f32.mrb[0].mxu0
    %v5034 = vadd.f32 %v4914, %v5033
    %v5035 = vpop.f32.mrb[0].mxu0
    %5036 = vmatprep.mubr.f32.mxu0 0.0
    %5037 = vmatmul.mubr.f32.gmra.mrb[0].mxu0 %v4852
    %v5038 = vpop.f32.mrb[0].mxu0
    %v5039 = vadd.f32 %v4916, %v5038
    %v5040 = vpop.f32.mrb[0].mxu0
    %5041 = vmatprep.mubr.f32.mxu0 0.0
    %5042 = vmatmul.mubr.f32.gmra.mrb[0].mxu0 %v4854
    %v5043 = vpop.f32.mrb[0].mxu0
    %v5044 = vadd.f32 %v4918, %v5043
    %v5045 = vpop.f32.mrb[0].mxu0
    %5046 = vmatprep.mubr.f32.mxu0 0.0
    %5047 = vmatmul.mubr.f32.gmra.mrb[0].mxu0 %v4856
    %v5048 = vpop.f32.mrb[0].mxu0
    %v5049 = vadd.f32 %v4920, %v5048
    %v5050 = vpop.f32.mrb[0].mxu0
    %5051 = vmatprep.mubr.f32.mxu0 0.0
    %5052 = vmatmul.mubr.f32.gmra.mrb[0].mxu0 %v4858
    %v5053 = vpop.f32.mrb[0].mxu0
    %v5054 = vadd.f32 %v4922, %v5053
    %v5055 = vpop.f32.mrb[0].mxu0
    %5056 = vmatprep.mubr.f32.mxu0 0.0
    %5057 = vmatmul.mubr.f32.gmra.mrb[0].mxu0 %v4860
    %v5058 = vpop.f32.mrb[0].mxu0
    %v5059 = vadd.f32 %v4924, %v5058
    %v5060 = vpop.f32.mrb[0].mxu0
    %5061 = vmatprep.mubr.f32.mxu0 0.0
    %5062 = vmatmul.mubr.f32.gmra.mrb[0].mxu0 %v4862
    %v5063 = vpop.f32.mrb[0].mxu0
    %v5064 = vadd.f32 %v4926, %v5063
    %v5065 = vpop.f32.mrb[0].mxu0
    %5066 = vmatprep.mubr.f32.mxu0 0.0
    %5067 = vmatmul.mubr.f32.gmra.mrb[0].mxu0 %v4864
    %v5068 = vpop.f32.mrb[0].mxu0
    %v5069 = vadd.f32 %v4928, %v5068
    %v5070 = vpop.f32.mrb[0].mxu0
    %5071 = vmatprep.mubr.f32.mxu0 0.0
    %5072 = vmatmul.mubr.f32.gmra.mrb[0].mxu0 %v4866
    %v5073 = vpop.f32.mrb[0].mxu0
    %v5074 = vadd.f32 %v4930, %v5073
    %v5075 = vpop.f32.mrb[0].mxu0
    %5076 = vmatprep.mubr.f32.mxu0 0.0
    %5077 = vmatmul.mubr.f32.gmra.mrb[0].mxu0 %v4868
    %v5078 = vpop.f32.mrb[0].mxu0
    %v5079 = vadd.f32 %v4932, %v5078
    %v5080 = vpop.f32.mrb[0].mxu0
    %5081 = vmatprep.mubr.f32.mxu0 0.0
    %5082 = vmatmul.mubr.f32.gmra.mrb[0].mxu0 %v4870
    %v5083 = vpop.f32.mrb[0].mxu0
    %v5084 = vadd.f32 %v4934, %v5083
    %v5085 = vpop.f32.mrb[0].mxu0
    %5086 = vmatprep.mubr.f32.mxu0 0.0
    %5087 = vmatmul.mubr.f32.gmra.mrb[0].mxu0 %v4872
    %v5088 = vpop.f32.mrb[0].mxu0
    %v5089 = vadd.f32 %v4936, %v5088
    %v5090 = vpop.f32.mrb[0].mxu0
    %5091 = vmatprep.mubr.f32.mxu0 0.0
    %5092 = vmatmul.mubr.f32.gmra.mrb[0].mxu0 %v4874
    %v5093 = vpop.f32.mrb[0].mxu0
    %v5094 = vadd.f32 %v4938, %v5093
    %v5095 = vpop.f32.mrb[0].mxu0
    %5096 = vmatprep.mubr.f32.mxu0 0.0
    %5097 = vmatmul.mubr.f32.gmra.mrb[0].mxu0 %v4876
    %v5098 = vpop.f32.mrb[0].mxu0
    %v5099 = vadd.f32 %v4940, %v5098
    %v5100 = vpop.f32.mrb[0].mxu0
    %5101 = vdwg.mxu0
    %vm5102 = vcmp.gt.f32.partialorder %v5024, 0.0
    %vm5103 = vcmp.gt.f32.partialorder %v5029, 0.0
    %vm5104 = vcmp.gt.f32.partialorder %v5034, 0.0
    %vm5105 = vcmp.gt.f32.partialorder %v5039, 0.0
    %vm5106 = vcmp.gt.f32.partialorder %v5044, 0.0
    %vm5107 = vcmp.gt.f32.partialorder %v5049, 0.0
    %vm5108 = vcmp.gt.f32.partialorder %v5054, 0.0
    %vm5109 = vcmp.gt.f32.partialorder %v5059, 0.0
    %vm5110 = vcmp.gt.f32.partialorder %v5064, 0.0
    %vm5111 = vcmp.gt.f32.partialorder %v5069, 0.0
    %vm5112 = vcmp.gt.f32.partialorder %v5074, 0.0
    %vm5113 = vcmp.gt.f32.partialorder %v5079, 0.0
    %vm5114 = vcmp.gt.f32.partialorder %v5084, 0.0
    %vm5115 = vcmp.gt.f32.partialorder %v5089, 0.0
    %vm5116 = vcmp.gt.f32.partialorder %v5094, 0.0
    %vm5117 = vcmp.gt.f32.partialorder %v5099, 0.0
    %v5118 = vmul.f32 %v5024, 1.442695
    %v5119 = vpow.pop %v5118
    %v5120 = vmul.f32 %v5029, 1.442695
    %v5121 = vpow.pop %v5120
    %v5122 = vmul.f32 %v5034, 1.442695
    %v5123 = vpow.pop %v5122
    %v5124 = vmul.f32 %v5039, 1.442695
    %v5125 = vpow.pop %v5124
    %v5126 = vmul.f32 %v5044, 1.442695
    %v5127 = vpow.pop %v5126
    %v5128 = vmul.f32 %v5049, 1.442695
    %v5129 = vpow.pop %v5128
    %v5130 = vmul.f32 %v5054, 1.442695
    %v5131 = vpow.pop %v5130
    %v5132 = vmul.f32 %v5059, 1.442695
    %v5133 = vpow.pop %v5132
    %v5134 = vmul.f32 %v5064, 1.442695
    %v5135 = vpow.pop %v5134
    %v5136 = vmul.f32 %v5069, 1.442695
    %v5137 = vpow.pop %v5136
    %v5138 = vmul.f32 %v5074, 1.442695
    %v5139 = vpow.pop %v5138
    %v5140 = vmul.f32 %v5079, 1.442695
    %v5141 = vpow.pop %v5140
    %v5142 = vmul.f32 %v5084, 1.442695
    %v5143 = vpow.pop %v5142
    %v5144 = vmul.f32 %v5089, 1.442695
    %v5145 = vpow.pop %v5144
    %v5146 = vmul.f32 %v5094, 1.442695
    %v5147 = vpow.pop %v5146
    %v5148 = vmul.f32 %v5099, 1.442695
    %v5149 = vpow.pop %v5148
    %v5150 = vsub.f32 %v5119, 1.0
    %v5151 = vsub.f32 %v5121, 1.0
    %v5152 = vsub.f32 %v5123, 1.0
    %v5153 = vsub.f32 %v5125, 1.0
    %v5154 = vsub.f32 %v5127, 1.0
    %v5155 = vsub.f32 %v5129, 1.0
    %v5156 = vsub.f32 %v5131, 1.0
    %v5157 = vsub.f32 %v5133, 1.0
    %v5158 = vsub.f32 %v5135, 1.0
    %v5159 = vsub.f32 %v5137, 1.0
    %v5160 = vsub.f32 %v5139, 1.0
    %v5161 = vsub.f32 %v5141, 1.0
    %v5162 = vsub.f32 %v5143, 1.0
    %v5163 = vsub.f32 %v5145, 1.0
    %v5164 = vsub.f32 %v5147, 1.0
    %v5165 = vsub.f32 %v5149, 1.0
    %v5166 = vsel %vm5102, %v5024, %v5150
    %v5167 = vsel %vm5103, %v5029, %v5151
    %v5168 = vsel %vm5104, %v5034, %v5152
    %v5169 = vsel %vm5105, %v5039, %v5153
    %v5170 = vsel %vm5106, %v5044, %v5154
    %v5171 = vsel %vm5107, %v5049, %v5155
    %v5172 = vsel %vm5108, %v5054, %v5156
    %v5173 = vsel %vm5109, %v5059, %v5157
    %v5174 = vsel %vm5110, %v5064, %v5158
    %v5175 = vsel %vm5111, %v5069, %v5159
    %v5176 = vsel %vm5112, %v5074, %v5160
    %v5177 = vsel %vm5113, %v5079, %v5161
    %v5178 = vsel %vm5114, %v5084, %v5162
    %v5179 = vsel %vm5115, %v5089, %v5163
    %v5180 = vsel %vm5116, %v5094, %v5164
    %v5181 = vsel %vm5117, %v5099, %v5165
    %5198 = vrot.lane.b32.xlu0 %v5166, 32
    %v5199 = vpop.permute.xlu0 %5198
    %5200 = vrot.lane.b32.xlu0 %v5167, 32
    %v5201 = vpop.permute.xlu0 %5200
    %5202 = vrot.lane.b32.xlu0 %v5168, 32
    %v5203 = vpop.permute.xlu0 %5202
    %5204 = vrot.lane.b32.xlu0 %v5169, 32
    %v5205 = vpop.permute.xlu0 %5204
    %5206 = vrot.lane.b32.xlu0 %v5170, 32
    %v5207 = vpop.permute.xlu0 %5206
    %5208 = vrot.lane.b32.xlu0 %v5171, 32
    %v5209 = vpop.permute.xlu0 %5208
    %5210 = vrot.lane.b32.xlu0 %v5172, 32
    %v5211 = vpop.permute.xlu0 %5210
    %5212 = vrot.lane.b32.xlu0 %v5173, 32
    %v5213 = vpop.permute.xlu0 %5212
    %5214 = vrot.lane.b32.xlu0 %v5174, 32
    %v5215 = vpop.permute.xlu0 %5214
    %5216 = vrot.lane.b32.xlu0 %v5175, 32
    %v5217 = vpop.permute.xlu0 %5216
    %5218 = vrot.lane.b32.xlu0 %v5176, 32
    %v5219 = vpop.permute.xlu0 %5218
    %5220 = vrot.lane.b32.xlu0 %v5177, 32
    %v5221 = vpop.permute.xlu0 %5220
    %5222 = vrot.lane.b32.xlu0 %v5178, 32
    %v5223 = vpop.permute.xlu0 %5222
    %5224 = vrot.lane.b32.xlu0 %v5179, 32
    %v5225 = vpop.permute.xlu0 %5224
    %5226 = vrot.lane.b32.xlu0 %v5180, 32
    %v5227 = vpop.permute.xlu0 %5226
    %5228 = vrot.lane.b32.xlu0 %v5181, 32
    %v5229 = vpop.permute.xlu0 %5228
    %5246 = vst.msk [vmem:[#allocation3] sm:$0xff] %vm1812, %v5199
    %5247 = vst.msk [vmem:[#allocation3 + $0x8] sm:$0xff] %vm1812, %v5201
    %5248 = vst.msk [vmem:[#allocation3 + $0x10] sm:$0xff] %vm1812, %v5203
    %5249 = vst.msk [vmem:[#allocation3 + $0x18] sm:$0xff] %vm1812, %v5205
    %5250 = vst.msk [vmem:[#allocation3 + $0x20] sm:$0xff] %vm1812, %v5207
    %5251 = vst.msk [vmem:[#allocation3 + $0x28] sm:$0xff] %vm1812, %v5209
    %5252 = vst.msk [vmem:[#allocation3 + $0x30] sm:$0xff] %vm1812, %v5211
    %5253 = vst.msk [vmem:[#allocation3 + $0x38] sm:$0xff] %vm1812, %v5213
    %5254 = vst.msk [vmem:[#allocation3 + $0x40] sm:$0xff] %vm1812, %v5215
    %5255 = vst.msk [vmem:[#allocation3 + $0x48] sm:$0xff] %vm1812, %v5217
    %5256 = vst.msk [vmem:[#allocation3 + $0x50] sm:$0xff] %vm1812, %v5219
    %5257 = vst.msk [vmem:[#allocation3 + $0x58] sm:$0xff] %vm1812, %v5221
    %5258 = vst.msk [vmem:[#allocation3 + $0x60] sm:$0xff] %vm1812, %v5223
    %5259 = vst.msk [vmem:[#allocation3 + $0x68] sm:$0xff] %vm1812, %v5225
    %5260 = vst.msk [vmem:[#allocation3 + $0x70] sm:$0xff] %vm1812, %v5227
    %5261 = vst.msk [vmem:[#allocation3 + $0x78] sm:$0xff] %vm1812, %v5229
    %v5262 = vrot.slane %v3539, 2
    %5263 = vrot.lane.b32.xlu0 %v3608, 64
    %v5264 = vpop.permute.xlu0 %5263
    %5265 = vrot.lane.b32.xlu0 %v3613, 64
    %v5266 = vpop.permute.xlu0 %5265
    %5267 = vrot.lane.b32.xlu0 %v3618, 64
    %v5268 = vpop.permute.xlu0 %5267
    %5269 = vrot.lane.b32.xlu0 %v3623, 64
    %v5270 = vpop.permute.xlu0 %5269
    %5271 = vrot.lane.b32.xlu0 %v3628, 64
    %v5272 = vpop.permute.xlu0 %5271
    %5273 = vrot.lane.b32.xlu0 %v3633, 64
    %v5274 = vpop.permute.xlu0 %5273
    %5275 = vrot.lane.b32.xlu0 %v3638, 64
    %v5276 = vpop.permute.xlu0 %5275
    %5277 = vrot.lane.b32.xlu0 %v3643, 64
    %v5278 = vpop.permute.xlu0 %5277
    %5279 = vrot.lane.b32.xlu0 %v3648, 64
    %v5280 = vpop.permute.xlu0 %5279
    %5281 = vrot.lane.b32.xlu0 %v3653, 64
    %v5282 = vpop.permute.xlu0 %5281
    %5283 = vrot.lane.b32.xlu0 %v3658, 64
    %v5284 = vpop.permute.xlu0 %5283
    %5285 = vrot.lane.b32.xlu0 %v3663, 64
    %v5286 = vpop.permute.xlu0 %5285
    %5287 = vrot.lane.b32.xlu0 %v3668, 64
    %v5288 = vpop.permute.xlu0 %5287
    %5289 = vrot.lane.b32.xlu0 %v3673, 64
    %v5290 = vpop.permute.xlu0 %5289
    %5291 = vrot.lane.b32.xlu0 %v3678, 64
    %v5292 = vpop.permute.xlu0 %5291
    %5293 = vrot.lane.b32.xlu0 %v3683, 64
    %v5294 = vpop.permute.xlu0 %5293
    %v5295 = vsel %vm299, %v5262, 0
    %v5297 = vsel %vm299, %v5264, 0
    %v5299 = vsel %vm299, %v5266, 0
    %v5301 = vsel %vm299, %v5268, 0
    %v5303 = vsel %vm299, %v5270, 0
    %v5305 = vsel %vm299, %v5272, 0
    %v5307 = vsel %vm299, %v5274, 0
    %v5309 = vsel %vm299, %v5276, 0
    %v5311 = vsel %vm299, %v5278, 0
    %v5313 = vsel %vm299, %v5280, 0
    %v5315 = vsel %vm299, %v5282, 0
    %v5317 = vsel %vm299, %v5284, 0
    %v5319 = vsel %vm299, %v5286, 0
    %v5321 = vsel %vm299, %v5288, 0
    %v5323 = vsel %vm299, %v5290, 0
    %v5325 = vsel %vm299, %v5292, 0
    %v5327 = vsel %vm299, %v5294, 0
    %5329 = vmatprep.subr.mxu0 0.0
    %5330 = vmatpush1.xpose.msra.mxu0 %v5297
    %5331 = vmatprep.subr.mxu0 0.0
    %5332 = vmatpush1.xpose.msra.mxu0 %v5299
    %5333 = vmatprep.subr.mxu0 0.0
    %5334 = vmatpush1.xpose.msra.mxu0 %v5301
    %5335 = vmatprep.subr.mxu0 0.0
    %5336 = vmatpush1.xpose.msra.mxu0 %v5303
    %5337 = vmatprep.subr.mxu0 0.0
    %5338 = vmatpush1.xpose.msra.mxu0 %v5305
    %5339 = vmatprep.subr.mxu0 0.0
    %5340 = vmatpush1.xpose.msra.mxu0 %v5307
    %5341 = vmatprep.subr.mxu0 0.0
    %5342 = vmatpush1.xpose.msra.mxu0 %v5309
    %5343 = vmatprep.subr.mxu0 0.0
    %5344 = vmatpush1.xpose.msra.mxu0 %v5311
    %5345 = vmatprep.subr.mxu0 0.0
    %5346 = vmatpush1.xpose.msra.mxu0 %v5313
    %5347 = vmatprep.subr.mxu0 0.0
    %5348 = vmatpush1.xpose.msra.mxu0 %v5315
    %5349 = vmatprep.subr.mxu0 0.0
    %5350 = vmatpush1.xpose.msra.mxu0 %v5317
    %5351 = vmatprep.subr.mxu0 0.0
    %5352 = vmatpush1.xpose.msra.mxu0 %v5319
    %5353 = vmatprep.subr.mxu0 0.0
    %5354 = vmatpush1.xpose.msra.mxu0 %v5321
    %5355 = vmatprep.subr.mxu0 0.0
    %5356 = vmatpush1.xpose.msra.mxu0 %v5323
    %5357 = vmatprep.subr.mxu0 0.0
    %5358 = vmatpush1.xpose.msra.mxu0 %v5325
    %5359 = vmatprep.subr.mxu0 0.0
    %5360 = vmatpush1.xpose.msra.mxu0 %v5327
    %5361 = vmatprep.subr.mxu0 0.0
    %5362 = vmatpush1.xpose.msra.mxu0 0.0
    %5363 = vmatprep.subr.mxu0 0.0
    %5364 = vmatpush1.xpose.msra.mxu0 0.0
    %5365 = vmatprep.subr.mxu0 0.0
    %5366 = vmatpush1.xpose.msra.mxu0 0.0
    %5367 = vmatprep.subr.mxu0 0.0
    %5368 = vmatpush1.xpose.msra.mxu0 0.0
    %5369 = vmatprep.subr.mxu0 0.0
    %5370 = vmatpush1.xpose.msra.mxu0 0.0
    %5371 = vmatprep.subr.mxu0 0.0
    %5372 = vmatpush1.xpose.msra.mxu0 0.0
    %5373 = vmatprep.subr.mxu0 0.0
    %5374 = vmatpush1.xpose.msra.mxu0 0.0
    %5375 = vmatprep.subr.mxu0 0.0
    %5376 = vmatpush1.xpose.msra.mxu0 0.0
    %5377 = vmatprep.subr.mxu0 0.0
    %5378 = vmatpush1.xpose.msra.mxu0 0.0
    %5379 = vmatprep.subr.mxu0 0.0
    %5380 = vmatpush1.xpose.msra.mxu0 0.0
    %5381 = vmatprep.subr.mxu0 0.0
    %5382 = vmatpush1.xpose.msra.mxu0 0.0
    %5383 = vmatprep.subr.mxu0 0.0
    %5384 = vmatpush1.xpose.msra.mxu0 0.0
    %5385 = vmatprep.subr.mxu0 0.0
    %5386 = vmatpush1.xpose.msra.mxu0 0.0
    %5387 = vmatprep.subr.mxu0 0.0
    %5388 = vmatpush1.xpose.msra.mxu0 0.0
    %5389 = vmatprep.subr.mxu0 0.0
    %5390 = vmatpush1.xpose.msra.mxu0 0.0
    %5391 = vmatprep.subr.mxu0 0.0
    %5392 = vmatpush1.xpose.msra.mxu0 0.0
    %5393 = vmatprep.mubr.f32.mxu0 0.0
    %5394 = vmatmul.mubr.f32.gmra.mrb[0].mxu0 %v5295
    %v5395 = vpop.f32.mrb[0].mxu0
    %v5396 = vadd.f32 0.0, %v5395
    %v5397 = vpop.f32.mrb[0].mxu0
    %5398 = vdwg.mxu0
    %v5399 = vlaneseq
    %v5400 = vshrl.u32 %v5399, 7
    %v5401 = vsub.s32 2, %v5400
    %v5402 = vrot.slane %v3540, %v5401
    %5404 = vrot.lane.b32.xlu0 %v5402, 64
    %v5405 = vpop.permute.xlu0 %5404
    %v5407 = vmul.f32 %v3608, %v5405
    %v5408 = vmul.f32 %v3613, %v5405
    %v5409 = vmul.f32 %v3618, %v5405
    %v5410 = vmul.f32 %v3623, %v5405
    %v5411 = vmul.f32 %v3628, %v5405
    %v5412 = vmul.f32 %v3633, %v5405
    %v5413 = vmul.f32 %v3638, %v5405
    %v5414 = vmul.f32 %v3643, %v5405
    %v5415 = vmul.f32 %v3648, %v5405
    %v5416 = vmul.f32 %v3653, %v5405
    %v5417 = vmul.f32 %v3658, %v5405
    %v5418 = vmul.f32 %v3663, %v5405
    %v5419 = vmul.f32 %v3668, %v5405
    %v5420 = vmul.f32 %v3673, %v5405
    %v5421 = vmul.f32 %v3678, %v5405
    %v5422 = vmul.f32 %v3683, %v5405
    %5439 = vrot.lane.b32.xlu0 %v5407, 64
    %v5440 = vpop.permute.xlu0 %5439
    %5441 = vrot.lane.b32.xlu0 %v5408, 64
    %v5442 = vpop.permute.xlu0 %5441
    %5443 = vrot.lane.b32.xlu0 %v5409, 64
    %v5444 = vpop.permute.xlu0 %5443
    %5445 = vrot.lane.b32.xlu0 %v5410, 64
    %v5446 = vpop.permute.xlu0 %5445
    %5447 = vrot.lane.b32.xlu0 %v5411, 64
    %v5448 = vpop.permute.xlu0 %5447
    %5449 = vrot.lane.b32.xlu0 %v5412, 64
    %v5450 = vpop.permute.xlu0 %5449
    %5451 = vrot.lane.b32.xlu0 %v5413, 64
    %v5452 = vpop.permute.xlu0 %5451
    %5453 = vrot.lane.b32.xlu0 %v5414, 64
    %v5454 = vpop.permute.xlu0 %5453
    %5455 = vrot.lane.b32.xlu0 %v5415, 64
    %v5456 = vpop.permute.xlu0 %5455
    %5457 = vrot.lane.b32.xlu0 %v5416, 64
    %v5458 = vpop.permute.xlu0 %5457
    %5459 = vrot.lane.b32.xlu0 %v5417, 64
    %v5460 = vpop.permute.xlu0 %5459
    %5461 = vrot.lane.b32.xlu0 %v5418, 64
    %v5462 = vpop.permute.xlu0 %5461
    %5463 = vrot.lane.b32.xlu0 %v5419, 64
    %v5464 = vpop.permute.xlu0 %5463
    %5465 = vrot.lane.b32.xlu0 %v5420, 64
    %v5466 = vpop.permute.xlu0 %5465
    %5467 = vrot.lane.b32.xlu0 %v5421, 64
    %v5468 = vpop.permute.xlu0 %5467
    %5469 = vrot.lane.b32.xlu0 %v5422, 64
    %v5470 = vpop.permute.xlu0 %5469
    %v5487 = vsel %vm299, %v5440, 0.0
    %5488 = vadd.xlane.f32.xlu0 %v5487
    %v5489 = vpop.xlane.xlu0 %5488
    %v5490 = vsel %vm299, %v5442, 0.0
    %5491 = vadd.xlane.f32.xlu0 %v5490
    %v5492 = vpop.xlane.xlu0 %5491
    %v5493 = vsel %vm299, %v5444, 0.0
    %5494 = vadd.xlane.f32.xlu0 %v5493
    %v5495 = vpop.xlane.xlu0 %5494
    %v5496 = vsel %vm299, %v5446, 0.0
    %5497 = vadd.xlane.f32.xlu0 %v5496
    %v5498 = vpop.xlane.xlu0 %5497
    %v5499 = vsel %vm299, %v5448, 0.0
    %5500 = vadd.xlane.f32.xlu0 %v5499
    %v5501 = vpop.xlane.xlu0 %5500
    %v5502 = vsel %vm299, %v5450, 0.0
    %5503 = vadd.xlane.f32.xlu0 %v5502
    %v5504 = vpop.xlane.xlu0 %5503
    %v5505 = vsel %vm299, %v5452, 0.0
    %5506 = vadd.xlane.f32.xlu0 %v5505
    %v5507 = vpop.xlane.xlu0 %5506
    %v5508 = vsel %vm299, %v5454, 0.0
    %5509 = vadd.xlane.f32.xlu0 %v5508
    %v5510 = vpop.xlane.xlu0 %5509
    %v5511 = vsel %vm299, %v5456, 0.0
    %5512 = vadd.xlane.f32.xlu0 %v5511
    %v5513 = vpop.xlane.xlu0 %5512
    %v5514 = vsel %vm299, %v5458, 0.0
    %5515 = vadd.xlane.f32.xlu0 %v5514
    %v5516 = vpop.xlane.xlu0 %5515
    %v5517 = vsel %vm299, %v5460, 0.0
    %5518 = vadd.xlane.f32.xlu0 %v5517
    %v5519 = vpop.xlane.xlu0 %5518
    %v5520 = vsel %vm299, %v5462, 0.0
    %5521 = vadd.xlane.f32.xlu0 %v5520
    %v5522 = vpop.xlane.xlu0 %5521
    %v5523 = vsel %vm299, %v5464, 0.0
    %5524 = vadd.xlane.f32.xlu0 %v5523
    %v5525 = vpop.xlane.xlu0 %5524
    %v5526 = vsel %vm299, %v5466, 0.0
    %5527 = vadd.xlane.f32.xlu0 %v5526
    %v5528 = vpop.xlane.xlu0 %5527
    %v5529 = vsel %vm299, %v5468, 0.0
    %5530 = vadd.xlane.f32.xlu0 %v5529
    %v5531 = vpop.xlane.xlu0 %5530
    %v5532 = vsel %vm299, %v5470, 0.0
    %5533 = vadd.xlane.f32.xlu0 %v5532
    %v5534 = vpop.xlane.xlu0 %5533
    %v5535 = vlaneseq
    %v5536 = vshrl.u32 %v5535, 7
    %v5537 = vsub.s32 0, %v5536
    %v5538 = vrot.slane %v5396, %v5537
    %v5539 = vadd.f32 %v5489, %v5538
    %v5540 = vadd.f32 %v5492, %v5538
    %v5541 = vadd.f32 %v5495, %v5538
    %v5542 = vadd.f32 %v5498, %v5538
    %v5543 = vadd.f32 %v5501, %v5538
    %v5544 = vadd.f32 %v5504, %v5538
    %v5545 = vadd.f32 %v5507, %v5538
    %v5546 = vadd.f32 %v5510, %v5538
    %v5547 = vadd.f32 %v5513, %v5538
    %v5548 = vadd.f32 %v5516, %v5538
    %v5549 = vadd.f32 %v5519, %v5538
    %v5550 = vadd.f32 %v5522, %v5538
    %v5551 = vadd.f32 %v5525, %v5538
    %v5552 = vadd.f32 %v5528, %v5538
    %v5553 = vadd.f32 %v5531, %v5538
    %v5554 = vadd.f32 %v5534, %v5538
    %vm5555 = vcmp.ge.f32.partialorder %v5539, 0.0
    %vm5556 = vcmp.ge.f32.partialorder %v5540, 0.0
    %vm5557 = vcmp.ge.f32.partialorder %v5541, 0.0
    %vm5558 = vcmp.ge.f32.partialorder %v5542, 0.0
    %vm5559 = vcmp.ge.f32.partialorder %v5543, 0.0
    %vm5560 = vcmp.ge.f32.partialorder %v5544, 0.0
    %vm5561 = vcmp.ge.f32.partialorder %v5545, 0.0
    %vm5562 = vcmp.ge.f32.partialorder %v5546, 0.0
    %vm5563 = vcmp.ge.f32.partialorder %v5547, 0.0
    %vm5564 = vcmp.ge.f32.partialorder %v5548, 0.0
    %vm5565 = vcmp.ge.f32.partialorder %v5549, 0.0
    %vm5566 = vcmp.ge.f32.partialorder %v5550, 0.0
    %vm5567 = vcmp.ge.f32.partialorder %v5551, 0.0
    %vm5568 = vcmp.ge.f32.partialorder %v5552, 0.0
    %vm5569 = vcmp.ge.f32.partialorder %v5553, 0.0
    %vm5570 = vcmp.ge.f32.partialorder %v5554, 0.0
    %v5571 = vmul.f32 %v5539, 0.2
    %v5572 = vmul.f32 %v5540, 0.2
    %v5573 = vmul.f32 %v5541, 0.2
    %v5574 = vmul.f32 %v5542, 0.2
    %v5575 = vmul.f32 %v5543, 0.2
    %v5576 = vmul.f32 %v5544, 0.2
    %v5577 = vmul.f32 %v5545, 0.2
    %v5578 = vmul.f32 %v5546, 0.2
    %v5579 = vmul.f32 %v5547, 0.2
    %v5580 = vmul.f32 %v5548, 0.2
    %v5581 = vmul.f32 %v5549, 0.2
    %v5582 = vmul.f32 %v5550, 0.2
    %v5583 = vmul.f32 %v5551, 0.2
    %v5584 = vmul.f32 %v5552, 0.2
    %v5585 = vmul.f32 %v5553, 0.2
    %v5586 = vmul.f32 %v5554, 0.2
    %v5587 = vsel %vm5555, %v5539, %v5571
    %v5588 = vsel %vm5556, %v5540, %v5572
    %v5589 = vsel %vm5557, %v5541, %v5573
    %v5590 = vsel %vm5558, %v5542, %v5574
    %v5591 = vsel %vm5559, %v5543, %v5575
    %v5592 = vsel %vm5560, %v5544, %v5576
    %v5593 = vsel %vm5561, %v5545, %v5577
    %v5594 = vsel %vm5562, %v5546, %v5578
    %v5595 = vsel %vm5563, %v5547, %v5579
    %v5596 = vsel %vm5564, %v5548, %v5580
    %v5597 = vsel %vm5565, %v5549, %v5581
    %v5598 = vsel %vm5566, %v5550, %v5582
    %v5599 = vsel %vm5567, %v5551, %v5583
    %v5600 = vsel %vm5568, %v5552, %v5584
    %v5601 = vsel %vm5569, %v5553, %v5585
    %v5602 = vsel %vm5570, %v5554, %v5586
    %v5603 = vsel %vm557, %v5587, -1e+30
    %v5604 = vsel %vm558, %v5588, -1e+30
    %v5605 = vsel %vm559, %v5589, -1e+30
    %v5606 = vsel %vm560, %v5590, -1e+30
    %v5607 = vsel %vm561, %v5591, -1e+30
    %v5608 = vsel %vm562, %v5592, -1e+30
    %v5609 = vsel %vm563, %v5593, -1e+30
    %v5610 = vsel %vm564, %v5594, -1e+30
    %v5611 = vsel %vm565, %v5595, -1e+30
    %v5612 = vsel %vm566, %v5596, -1e+30
    %v5613 = vsel %vm567, %v5597, -1e+30
    %v5614 = vsel %vm568, %v5598, -1e+30
    %v5615 = vsel %vm569, %v5599, -1e+30
    %v5616 = vsel %vm570, %v5600, -1e+30
    %v5617 = vsel %vm571, %v5601, -1e+30
    %v5618 = vsel %vm572, %v5602, -1e+30
    %5619 = vmax.xlane.f32.xlu0 %v5603
    %v5620 = vpop.xlane.xlu0 %5619
    %5621 = vmax.xlane.f32.xlu0 %v5604
    %v5622 = vpop.xlane.xlu0 %5621
    %5623 = vmax.xlane.f32.xlu0 %v5605
    %v5624 = vpop.xlane.xlu0 %5623
    %5625 = vmax.xlane.f32.xlu0 %v5606
    %v5626 = vpop.xlane.xlu0 %5625
    %5627 = vmax.xlane.f32.xlu0 %v5607
    %v5628 = vpop.xlane.xlu0 %5627
    %5629 = vmax.xlane.f32.xlu0 %v5608
    %v5630 = vpop.xlane.xlu0 %5629
    %5631 = vmax.xlane.f32.xlu0 %v5609
    %v5632 = vpop.xlane.xlu0 %5631
    %5633 = vmax.xlane.f32.xlu0 %v5610
    %v5634 = vpop.xlane.xlu0 %5633
    %5635 = vmax.xlane.f32.xlu0 %v5611
    %v5636 = vpop.xlane.xlu0 %5635
    %5637 = vmax.xlane.f32.xlu0 %v5612
    %v5638 = vpop.xlane.xlu0 %5637
    %5639 = vmax.xlane.f32.xlu0 %v5613
    %v5640 = vpop.xlane.xlu0 %5639
    %5641 = vmax.xlane.f32.xlu0 %v5614
    %v5642 = vpop.xlane.xlu0 %5641
    %5643 = vmax.xlane.f32.xlu0 %v5615
    %v5644 = vpop.xlane.xlu0 %5643
    %5645 = vmax.xlane.f32.xlu0 %v5616
    %v5646 = vpop.xlane.xlu0 %5645
    %5647 = vmax.xlane.f32.xlu0 %v5617
    %v5648 = vpop.xlane.xlu0 %5647
    %5649 = vmax.xlane.f32.xlu0 %v5618
    %v5650 = vpop.xlane.xlu0 %5649
    %v5651 = vsub.f32 %v5603, %v5620
    %v5652 = vsub.f32 %v5604, %v5622
    %v5653 = vsub.f32 %v5605, %v5624
    %v5654 = vsub.f32 %v5606, %v5626
    %v5655 = vsub.f32 %v5607, %v5628
    %v5656 = vsub.f32 %v5608, %v5630
    %v5657 = vsub.f32 %v5609, %v5632
    %v5658 = vsub.f32 %v5610, %v5634
    %v5659 = vsub.f32 %v5611, %v5636
    %v5660 = vsub.f32 %v5612, %v5638
    %v5661 = vsub.f32 %v5613, %v5640
    %v5662 = vsub.f32 %v5614, %v5642
    %v5663 = vsub.f32 %v5615, %v5644
    %v5664 = vsub.f32 %v5616, %v5646
    %v5665 = vsub.f32 %v5617, %v5648
    %v5666 = vsub.f32 %v5618, %v5650
    %v5667 = vmul.f32 %v5651, 1.442695
    %v5668 = vpow.pop %v5667
    %v5669 = vmul.f32 %v5652, 1.442695
    %v5670 = vpow.pop %v5669
    %v5671 = vmul.f32 %v5653, 1.442695
    %v5672 = vpow.pop %v5671
    %v5673 = vmul.f32 %v5654, 1.442695
    %v5674 = vpow.pop %v5673
    %v5675 = vmul.f32 %v5655, 1.442695
    %v5676 = vpow.pop %v5675
    %v5677 = vmul.f32 %v5656, 1.442695
    %v5678 = vpow.pop %v5677
    %v5679 = vmul.f32 %v5657, 1.442695
    %v5680 = vpow.pop %v5679
    %v5681 = vmul.f32 %v5658, 1.442695
    %v5682 = vpow.pop %v5681
    %v5683 = vmul.f32 %v5659, 1.442695
    %v5684 = vpow.pop %v5683
    %v5685 = vmul.f32 %v5660, 1.442695
    %v5686 = vpow.pop %v5685
    %v5687 = vmul.f32 %v5661, 1.442695
    %v5688 = vpow.pop %v5687
    %v5689 = vmul.f32 %v5662, 1.442695
    %v5690 = vpow.pop %v5689
    %v5691 = vmul.f32 %v5663, 1.442695
    %v5692 = vpow.pop %v5691
    %v5693 = vmul.f32 %v5664, 1.442695
    %v5694 = vpow.pop %v5693
    %v5695 = vmul.f32 %v5665, 1.442695
    %v5696 = vpow.pop %v5695
    %v5697 = vmul.f32 %v5666, 1.442695
    %v5698 = vpow.pop %v5697
    %v5699 = vmul.f32 %v5668, %v104
    %v5700 = vmul.f32 %v5670, %v105
    %v5701 = vmul.f32 %v5672, %v106
    %v5702 = vmul.f32 %v5674, %v107
    %v5703 = vmul.f32 %v5676, %v108
    %v5704 = vmul.f32 %v5678, %v109
    %v5705 = vmul.f32 %v5680, %v110
    %v5706 = vmul.f32 %v5682, %v111
    %v5707 = vmul.f32 %v5684, %v112
    %v5708 = vmul.f32 %v5686, %v113
    %v5709 = vmul.f32 %v5688, %v114
    %v5710 = vmul.f32 %v5690, %v115
    %v5711 = vmul.f32 %v5692, %v116
    %v5712 = vmul.f32 %v5694, %v117
    %v5713 = vmul.f32 %v5696, %v118
    %v5714 = vmul.f32 %v5698, %v119
    %5715 = vadd.xlane.f32.xlu0 %v5699
    %v5716 = vpop.xlane.xlu0 %5715
    %5717 = vadd.xlane.f32.xlu0 %v5700
    %v5718 = vpop.xlane.xlu0 %5717
    %5719 = vadd.xlane.f32.xlu0 %v5701
    %v5720 = vpop.xlane.xlu0 %5719
    %5721 = vadd.xlane.f32.xlu0 %v5702
    %v5722 = vpop.xlane.xlu0 %5721
    %5723 = vadd.xlane.f32.xlu0 %v5703
    %v5724 = vpop.xlane.xlu0 %5723
    %5725 = vadd.xlane.f32.xlu0 %v5704
    %v5726 = vpop.xlane.xlu0 %5725
    %5727 = vadd.xlane.f32.xlu0 %v5705
    %v5728 = vpop.xlane.xlu0 %5727
    %5729 = vadd.xlane.f32.xlu0 %v5706
    %v5730 = vpop.xlane.xlu0 %5729
    %5731 = vadd.xlane.f32.xlu0 %v5707
    %v5732 = vpop.xlane.xlu0 %5731
    %5733 = vadd.xlane.f32.xlu0 %v5708
    %v5734 = vpop.xlane.xlu0 %5733
    %5735 = vadd.xlane.f32.xlu0 %v5709
    %v5736 = vpop.xlane.xlu0 %5735
    %5737 = vadd.xlane.f32.xlu0 %v5710
    %v5738 = vpop.xlane.xlu0 %5737
    %5739 = vadd.xlane.f32.xlu0 %v5711
    %v5740 = vpop.xlane.xlu0 %5739
    %5741 = vadd.xlane.f32.xlu0 %v5712
    %v5742 = vpop.xlane.xlu0 %5741
    %5743 = vadd.xlane.f32.xlu0 %v5713
    %v5744 = vpop.xlane.xlu0 %5743
    %5745 = vadd.xlane.f32.xlu0 %v5714
    %v5746 = vpop.xlane.xlu0 %5745
    %v5747 = vrcp.pop %v5716
    %v5748 = vmul.f32 %v5699, %v5747
    %v5749 = vrcp.pop %v5718
    %v5750 = vmul.f32 %v5700, %v5749
    %v5751 = vrcp.pop %v5720
    %v5752 = vmul.f32 %v5701, %v5751
    %v5753 = vrcp.pop %v5722
    %v5754 = vmul.f32 %v5702, %v5753
    %v5755 = vrcp.pop %v5724
    %v5756 = vmul.f32 %v5703, %v5755
    %v5757 = vrcp.pop %v5726
    %v5758 = vmul.f32 %v5704, %v5757
    %v5759 = vrcp.pop %v5728
    %v5760 = vmul.f32 %v5705, %v5759
    %v5761 = vrcp.pop %v5730
    %v5762 = vmul.f32 %v5706, %v5761
    %v5763 = vrcp.pop %v5732
    %v5764 = vmul.f32 %v5707, %v5763
    %v5765 = vrcp.pop %v5734
    %v5766 = vmul.f32 %v5708, %v5765
    %v5767 = vrcp.pop %v5736
    %v5768 = vmul.f32 %v5709, %v5767
    %v5769 = vrcp.pop %v5738
    %v5770 = vmul.f32 %v5710, %v5769
    %v5771 = vrcp.pop %v5740
    %v5772 = vmul.f32 %v5711, %v5771
    %v5773 = vrcp.pop %v5742
    %v5774 = vmul.f32 %v5712, %v5773
    %v5775 = vrcp.pop %v5744
    %v5776 = vmul.f32 %v5713, %v5775
    %v5777 = vrcp.pop %v5746
    %v5778 = vmul.f32 %v5714, %v5777
    %5795 = vrot.lane.b32.xlu0 %v3507, 64
    %v5796 = vpop.permute.xlu0 %5795
    %5797 = vrot.lane.b32.xlu0 %v3508, 64
    %v5798 = vpop.permute.xlu0 %5797
    %5799 = vrot.lane.b32.xlu0 %v3509, 64
    %v5800 = vpop.permute.xlu0 %5799
    %5801 = vrot.lane.b32.xlu0 %v3510, 64
    %v5802 = vpop.permute.xlu0 %5801
    %5803 = vrot.lane.b32.xlu0 %v3511, 64
    %v5804 = vpop.permute.xlu0 %5803
    %5805 = vrot.lane.b32.xlu0 %v3512, 64
    %v5806 = vpop.permute.xlu0 %5805
    %5807 = vrot.lane.b32.xlu0 %v3513, 64
    %v5808 = vpop.permute.xlu0 %5807
    %5809 = vrot.lane.b32.xlu0 %v3514, 64
    %v5810 = vpop.permute.xlu0 %5809
    %5811 = vrot.lane.b32.xlu0 %v3515, 64
    %v5812 = vpop.permute.xlu0 %5811
    %5813 = vrot.lane.b32.xlu0 %v3516, 64
    %v5814 = vpop.permute.xlu0 %5813
    %5815 = vrot.lane.b32.xlu0 %v3517, 64
    %v5816 = vpop.permute.xlu0 %5815
    %5817 = vrot.lane.b32.xlu0 %v3518, 64
    %v5818 = vpop.permute.xlu0 %5817
    %5819 = vrot.lane.b32.xlu0 %v3519, 64
    %v5820 = vpop.permute.xlu0 %5819
    %5821 = vrot.lane.b32.xlu0 %v3520, 64
    %v5822 = vpop.permute.xlu0 %5821
    %5823 = vrot.lane.b32.xlu0 %v3521, 64
    %v5824 = vpop.permute.xlu0 %5823
    %5825 = vrot.lane.b32.xlu0 %v3522, 64
    %v5826 = vpop.permute.xlu0 %5825
    %5843 = vmatprep.subr.mxu0 0.0
    %5844 = vmatpush1.msra.mxu0 %v5264
    %5845 = vmatprep.subr.mxu0 0.0
    %5846 = vmatpush1.msra.mxu0 %v5266
    %5847 = vmatprep.subr.mxu0 0.0
    %5848 = vmatpush1.msra.mxu0 %v5268
    %5849 = vmatprep.subr.mxu0 0.0
    %5850 = vmatpush1.msra.mxu0 %v5270
    %5851 = vmatprep.subr.mxu0 0.0
    %5852 = vmatpush1.msra.mxu0 %v5272
    %5853 = vmatprep.subr.mxu0 0.0
    %5854 = vmatpush1.msra.mxu0 %v5274
    %5855 = vmatprep.subr.mxu0 0.0
    %5856 = vmatpush1.msra.mxu0 %v5276
    %5857 = vmatprep.subr.mxu0 0.0
    %5858 = vmatpush1.msra.mxu0 %v5278
    %5859 = vmatprep.subr.mxu0 0.0
    %5860 = vmatpush1.msra.mxu0 %v5280
    %5861 = vmatprep.subr.mxu0 0.0
    %5862 = vmatpush1.msra.mxu0 %v5282
    %5863 = vmatprep.subr.mxu0 0.0
    %5864 = vmatpush1.msra.mxu0 %v5284
    %5865 = vmatprep.subr.mxu0 0.0
    %5866 = vmatpush1.msra.mxu0 %v5286
    %5867 = vmatprep.subr.mxu0 0.0
    %5868 = vmatpush1.msra.mxu0 %v5288
    %5869 = vmatprep.subr.mxu0 0.0
    %5870 = vmatpush1.msra.mxu0 %v5290
    %5871 = vmatprep.subr.mxu0 0.0
    %5872 = vmatpush1.msra.mxu0 %v5292
    %5873 = vmatprep.subr.mxu0 0.0
    %5874 = vmatpush1.msra.mxu0 %v5294
    %5875 = vmatprep.subr.mxu0 0.0
    %5876 = vmatpush1.msra.mxu0 0.0
    %5877 = vmatprep.subr.mxu0 0.0
    %5878 = vmatpush1.msra.mxu0 0.0
    %5879 = vmatprep.subr.mxu0 0.0
    %5880 = vmatpush1.msra.mxu0 0.0
    %5881 = vmatprep.subr.mxu0 0.0
    %5882 = vmatpush1.msra.mxu0 0.0
    %5883 = vmatprep.subr.mxu0 0.0
    %5884 = vmatpush1.msra.mxu0 0.0
    %5885 = vmatprep.subr.mxu0 0.0
    %5886 = vmatpush1.msra.mxu0 0.0
    %5887 = vmatprep.subr.mxu0 0.0
    %5888 = vmatpush1.msra.mxu0 0.0
    %5889 = vmatprep.subr.mxu0 0.0
    %5890 = vmatpush1.msra.mxu0 0.0
    %5891 = vmatprep.subr.mxu0 0.0
    %5892 = vmatpush1.msra.mxu0 0.0
    %5893 = vmatprep.subr.mxu0 0.0
    %5894 = vmatpush1.msra.mxu0 0.0
    %5895 = vmatprep.subr.mxu0 0.0
    %5896 = vmatpush1.msra.mxu0 0.0
    %5897 = vmatprep.subr.mxu0 0.0
    %5898 = vmatpush1.msra.mxu0 0.0
    %5899 = vmatprep.subr.mxu0 0.0
    %5900 = vmatpush1.msra.mxu0 0.0
    %5901 = vmatprep.subr.mxu0 0.0
    %5902 = vmatpush1.msra.mxu0 0.0
    %5903 = vmatprep.subr.mxu0 0.0
    %5904 = vmatpush1.msra.mxu0 0.0
    %5905 = vmatprep.subr.mxu0 0.0
    %5906 = vmatpush1.msra.mxu0 0.0
    %5907 = vmatprep.mubr.f32.mxu0 0.0
    %5908 = vmatmul.mubr.f32.gmra.mrb[0].mxu0 %v5748
    %v5909 = vpop.f32.mrb[0].mxu0
    %v5910 = vadd.f32 %v5796, %v5909
    %v5911 = vpop.f32.mrb[0].mxu0
    %5912 = vmatprep.mubr.f32.mxu0 0.0
    %5913 = vmatmul.mubr.f32.gmra.mrb[0].mxu0 %v5750
    %v5914 = vpop.f32.mrb[0].mxu0
    %v5915 = vadd.f32 %v5798, %v5914
    %v5916 = vpop.f32.mrb[0].mxu0
    %5917 = vmatprep.mubr.f32.mxu0 0.0
    %5918 = vmatmul.mubr.f32.gmra.mrb[0].mxu0 %v5752
    %v5919 = vpop.f32.mrb[0].mxu0
    %v5920 = vadd.f32 %v5800, %v5919
    %v5921 = vpop.f32.mrb[0].mxu0
    %5922 = vmatprep.mubr.f32.mxu0 0.0
    %5923 = vmatmul.mubr.f32.gmra.mrb[0].mxu0 %v5754
    %v5924 = vpop.f32.mrb[0].mxu0
    %v5925 = vadd.f32 %v5802, %v5924
    %v5926 = vpop.f32.mrb[0].mxu0
    %5927 = vmatprep.mubr.f32.mxu0 0.0
    %5928 = vmatmul.mubr.f32.gmra.mrb[0].mxu0 %v5756
    %v5929 = vpop.f32.mrb[0].mxu0
    %v5930 = vadd.f32 %v5804, %v5929
    %v5931 = vpop.f32.mrb[0].mxu0
    %5932 = vmatprep.mubr.f32.mxu0 0.0
    %5933 = vmatmul.mubr.f32.gmra.mrb[0].mxu0 %v5758
    %v5934 = vpop.f32.mrb[0].mxu0
    %v5935 = vadd.f32 %v5806, %v5934
    %v5936 = vpop.f32.mrb[0].mxu0
    %5937 = vmatprep.mubr.f32.mxu0 0.0
    %5938 = vmatmul.mubr.f32.gmra.mrb[0].mxu0 %v5760
    %v5939 = vpop.f32.mrb[0].mxu0
    %v5940 = vadd.f32 %v5808, %v5939
    %v5941 = vpop.f32.mrb[0].mxu0
    %5942 = vmatprep.mubr.f32.mxu0 0.0
    %5943 = vmatmul.mubr.f32.gmra.mrb[0].mxu0 %v5762
    %v5944 = vpop.f32.mrb[0].mxu0
    %v5945 = vadd.f32 %v5810, %v5944
    %v5946 = vpop.f32.mrb[0].mxu0
    %5947 = vmatprep.mubr.f32.mxu0 0.0
    %5948 = vmatmul.mubr.f32.gmra.mrb[0].mxu0 %v5764
    %v5949 = vpop.f32.mrb[0].mxu0
    %v5950 = vadd.f32 %v5812, %v5949
    %v5951 = vpop.f32.mrb[0].mxu0
    %5952 = vmatprep.mubr.f32.mxu0 0.0
    %5953 = vmatmul.mubr.f32.gmra.mrb[0].mxu0 %v5766
    %v5954 = vpop.f32.mrb[0].mxu0
    %v5955 = vadd.f32 %v5814, %v5954
    %v5956 = vpop.f32.mrb[0].mxu0
    %5957 = vmatprep.mubr.f32.mxu0 0.0
    %5958 = vmatmul.mubr.f32.gmra.mrb[0].mxu0 %v5768
    %v5959 = vpop.f32.mrb[0].mxu0
    %v5960 = vadd.f32 %v5816, %v5959
    %v5961 = vpop.f32.mrb[0].mxu0
    %5962 = vmatprep.mubr.f32.mxu0 0.0
    %5963 = vmatmul.mubr.f32.gmra.mrb[0].mxu0 %v5770
    %v5964 = vpop.f32.mrb[0].mxu0
    %v5965 = vadd.f32 %v5818, %v5964
    %v5966 = vpop.f32.mrb[0].mxu0
    %5967 = vmatprep.mubr.f32.mxu0 0.0
    %5968 = vmatmul.mubr.f32.gmra.mrb[0].mxu0 %v5772
    %v5969 = vpop.f32.mrb[0].mxu0
    %v5970 = vadd.f32 %v5820, %v5969
    %v5971 = vpop.f32.mrb[0].mxu0
    %5972 = vmatprep.mubr.f32.mxu0 0.0
    %5973 = vmatmul.mubr.f32.gmra.mrb[0].mxu0 %v5774
    %v5974 = vpop.f32.mrb[0].mxu0
    %v5975 = vadd.f32 %v5822, %v5974
    %v5976 = vpop.f32.mrb[0].mxu0
    %5977 = vmatprep.mubr.f32.mxu0 0.0
    %5978 = vmatmul.mubr.f32.gmra.mrb[0].mxu0 %v5776
    %v5979 = vpop.f32.mrb[0].mxu0
    %v5980 = vadd.f32 %v5824, %v5979
    %v5981 = vpop.f32.mrb[0].mxu0
    %5982 = vmatprep.mubr.f32.mxu0 0.0
    %5983 = vmatmul.mubr.f32.gmra.mrb[0].mxu0 %v5778
    %v5984 = vpop.f32.mrb[0].mxu0
    %v5985 = vadd.f32 %v5826, %v5984
    %v5986 = vpop.f32.mrb[0].mxu0
    %5987 = vdwg.mxu0
    %vm5988 = vcmp.gt.f32.partialorder %v5910, 0.0
    %vm5989 = vcmp.gt.f32.partialorder %v5915, 0.0
    %vm5990 = vcmp.gt.f32.partialorder %v5920, 0.0
    %vm5991 = vcmp.gt.f32.partialorder %v5925, 0.0
    %vm5992 = vcmp.gt.f32.partialorder %v5930, 0.0
    %vm5993 = vcmp.gt.f32.partialorder %v5935, 0.0
    %vm5994 = vcmp.gt.f32.partialorder %v5940, 0.0
    %vm5995 = vcmp.gt.f32.partialorder %v5945, 0.0
    %vm5996 = vcmp.gt.f32.partialorder %v5950, 0.0
    %vm5997 = vcmp.gt.f32.partialorder %v5955, 0.0
    %vm5998 = vcmp.gt.f32.partialorder %v5960, 0.0
    %vm5999 = vcmp.gt.f32.partialorder %v5965, 0.0
    %vm6000 = vcmp.gt.f32.partialorder %v5970, 0.0
    %vm6001 = vcmp.gt.f32.partialorder %v5975, 0.0
    %vm6002 = vcmp.gt.f32.partialorder %v5980, 0.0
    %vm6003 = vcmp.gt.f32.partialorder %v5985, 0.0
    %v6004 = vmul.f32 %v5910, 1.442695
    %v6005 = vpow.pop %v6004
    %v6006 = vmul.f32 %v5915, 1.442695
    %v6007 = vpow.pop %v6006
    %v6008 = vmul.f32 %v5920, 1.442695
    %v6009 = vpow.pop %v6008
    %v6010 = vmul.f32 %v5925, 1.442695
    %v6011 = vpow.pop %v6010
    %v6012 = vmul.f32 %v5930, 1.442695
    %v6013 = vpow.pop %v6012
    %v6014 = vmul.f32 %v5935, 1.442695
    %v6015 = vpow.pop %v6014
    %v6016 = vmul.f32 %v5940, 1.442695
    %v6017 = vpow.pop %v6016
    %v6018 = vmul.f32 %v5945, 1.442695
    %v6019 = vpow.pop %v6018
    %v6020 = vmul.f32 %v5950, 1.442695
    %v6021 = vpow.pop %v6020
    %v6022 = vmul.f32 %v5955, 1.442695
    %v6023 = vpow.pop %v6022
    %v6024 = vmul.f32 %v5960, 1.442695
    %v6025 = vpow.pop %v6024
    %v6026 = vmul.f32 %v5965, 1.442695
    %v6027 = vpow.pop %v6026
    %v6028 = vmul.f32 %v5970, 1.442695
    %v6029 = vpow.pop %v6028
    %v6030 = vmul.f32 %v5975, 1.442695
    %v6031 = vpow.pop %v6030
    %v6032 = vmul.f32 %v5980, 1.442695
    %v6033 = vpow.pop %v6032
    %v6034 = vmul.f32 %v5985, 1.442695
    %v6035 = vpow.pop %v6034
    %v6036 = vsub.f32 %v6005, 1.0
    %v6037 = vsub.f32 %v6007, 1.0
    %v6038 = vsub.f32 %v6009, 1.0
    %v6039 = vsub.f32 %v6011, 1.0
    %v6040 = vsub.f32 %v6013, 1.0
    %v6041 = vsub.f32 %v6015, 1.0
    %v6042 = vsub.f32 %v6017, 1.0
    %v6043 = vsub.f32 %v6019, 1.0
    %v6044 = vsub.f32 %v6021, 1.0
    %v6045 = vsub.f32 %v6023, 1.0
    %v6046 = vsub.f32 %v6025, 1.0
    %v6047 = vsub.f32 %v6027, 1.0
    %v6048 = vsub.f32 %v6029, 1.0
    %v6049 = vsub.f32 %v6031, 1.0
    %v6050 = vsub.f32 %v6033, 1.0
    %v6051 = vsub.f32 %v6035, 1.0
    %v6052 = vsel %vm5988, %v5910, %v6036
    %v6053 = vsel %vm5989, %v5915, %v6037
    %v6054 = vsel %vm5990, %v5920, %v6038
    %v6055 = vsel %vm5991, %v5925, %v6039
    %v6056 = vsel %vm5992, %v5930, %v6040
    %v6057 = vsel %vm5993, %v5935, %v6041
    %v6058 = vsel %vm5994, %v5940, %v6042
    %v6059 = vsel %vm5995, %v5945, %v6043
    %v6060 = vsel %vm5996, %v5950, %v6044
    %v6061 = vsel %vm5997, %v5955, %v6045
    %v6062 = vsel %vm5998, %v5960, %v6046
    %v6063 = vsel %vm5999, %v5965, %v6047
    %v6064 = vsel %vm6000, %v5970, %v6048
    %v6065 = vsel %vm6001, %v5975, %v6049
    %v6066 = vsel %vm6002, %v5980, %v6050
    %v6067 = vsel %vm6003, %v5985, %v6051
    %6084 = vrot.lane.b32.xlu0 %v6052, 64
    %v6085 = vpop.permute.xlu0 %6084
    %6086 = vrot.lane.b32.xlu0 %v6053, 64
    %v6087 = vpop.permute.xlu0 %6086
    %6088 = vrot.lane.b32.xlu0 %v6054, 64
    %v6089 = vpop.permute.xlu0 %6088
    %6090 = vrot.lane.b32.xlu0 %v6055, 64
    %v6091 = vpop.permute.xlu0 %6090
    %6092 = vrot.lane.b32.xlu0 %v6056, 64
    %v6093 = vpop.permute.xlu0 %6092
    %6094 = vrot.lane.b32.xlu0 %v6057, 64
    %v6095 = vpop.permute.xlu0 %6094
    %6096 = vrot.lane.b32.xlu0 %v6058, 64
    %v6097 = vpop.permute.xlu0 %6096
    %6098 = vrot.lane.b32.xlu0 %v6059, 64
    %v6099 = vpop.permute.xlu0 %6098
    %6100 = vrot.lane.b32.xlu0 %v6060, 64
    %v6101 = vpop.permute.xlu0 %6100
    %6102 = vrot.lane.b32.xlu0 %v6061, 64
    %v6103 = vpop.permute.xlu0 %6102
    %6104 = vrot.lane.b32.xlu0 %v6062, 64
    %v6105 = vpop.permute.xlu0 %6104
    %6106 = vrot.lane.b32.xlu0 %v6063, 64
    %v6107 = vpop.permute.xlu0 %6106
    %6108 = vrot.lane.b32.xlu0 %v6064, 64
    %v6109 = vpop.permute.xlu0 %6108
    %6110 = vrot.lane.b32.xlu0 %v6065, 64
    %v6111 = vpop.permute.xlu0 %6110
    %6112 = vrot.lane.b32.xlu0 %v6066, 64
    %v6113 = vpop.permute.xlu0 %6112
    %6114 = vrot.lane.b32.xlu0 %v6067, 64
    %v6115 = vpop.permute.xlu0 %6114
    %6132 = vst.msk [vmem:[#allocation3] sm:$0xff] %vm2651, %v6085
    %6133 = vst.msk [vmem:[#allocation3 + $0x8] sm:$0xff] %vm2651, %v6087
    %6134 = vst.msk [vmem:[#allocation3 + $0x10] sm:$0xff] %vm2651, %v6089
    %6135 = vst.msk [vmem:[#allocation3 + $0x18] sm:$0xff] %vm2651, %v6091
    %6136 = vst.msk [vmem:[#allocation3 + $0x20] sm:$0xff] %vm2651, %v6093
    %6137 = vst.msk [vmem:[#allocation3 + $0x28] sm:$0xff] %vm2651, %v6095
    %6138 = vst.msk [vmem:[#allocation3 + $0x30] sm:$0xff] %vm2651, %v6097
    %6139 = vst.msk [vmem:[#allocation3 + $0x38] sm:$0xff] %vm2651, %v6099
    %6140 = vst.msk [vmem:[#allocation3 + $0x40] sm:$0xff] %vm2651, %v6101
    %6141 = vst.msk [vmem:[#allocation3 + $0x48] sm:$0xff] %vm2651, %v6103
    %6142 = vst.msk [vmem:[#allocation3 + $0x50] sm:$0xff] %vm2651, %v6105
    %6143 = vst.msk [vmem:[#allocation3 + $0x58] sm:$0xff] %vm2651, %v6107
    %6144 = vst.msk [vmem:[#allocation3 + $0x60] sm:$0xff] %vm2651, %v6109
    %6145 = vst.msk [vmem:[#allocation3 + $0x68] sm:$0xff] %vm2651, %v6111
    %6146 = vst.msk [vmem:[#allocation3 + $0x70] sm:$0xff] %vm2651, %v6113
    %6147 = vst.msk [vmem:[#allocation3 + $0x78] sm:$0xff] %vm2651, %v6115
    %v6148 = vrot.slane %v3539, 3
    %6149 = vrot.lane.b32.xlu0 %v3608, 32
    %v6150 = vpop.permute.xlu0 %6149
    %6151 = vrot.lane.b32.xlu0 %v3613, 32
    %v6152 = vpop.permute.xlu0 %6151
    %6153 = vrot.lane.b32.xlu0 %v3618, 32
    %v6154 = vpop.permute.xlu0 %6153
    %6155 = vrot.lane.b32.xlu0 %v3623, 32
    %v6156 = vpop.permute.xlu0 %6155
    %6157 = vrot.lane.b32.xlu0 %v3628, 32
    %v6158 = vpop.permute.xlu0 %6157
    %6159 = vrot.lane.b32.xlu0 %v3633, 32
    %v6160 = vpop.permute.xlu0 %6159
    %6161 = vrot.lane.b32.xlu0 %v3638, 32
    %v6162 = vpop.permute.xlu0 %6161
    %6163 = vrot.lane.b32.xlu0 %v3643, 32
    %v6164 = vpop.permute.xlu0 %6163
    %6165 = vrot.lane.b32.xlu0 %v3648, 32
    %v6166 = vpop.permute.xlu0 %6165
    %6167 = vrot.lane.b32.xlu0 %v3653, 32
    %v6168 = vpop.permute.xlu0 %6167
    %6169 = vrot.lane.b32.xlu0 %v3658, 32
    %v6170 = vpop.permute.xlu0 %6169
    %6171 = vrot.lane.b32.xlu0 %v3663, 32
    %v6172 = vpop.permute.xlu0 %6171
    %6173 = vrot.lane.b32.xlu0 %v3668, 32
    %v6174 = vpop.permute.xlu0 %6173
    %6175 = vrot.lane.b32.xlu0 %v3673, 32
    %v6176 = vpop.permute.xlu0 %6175
    %6177 = vrot.lane.b32.xlu0 %v3678, 32
    %v6178 = vpop.permute.xlu0 %6177
    %6179 = vrot.lane.b32.xlu0 %v3683, 32
    %v6180 = vpop.permute.xlu0 %6179
    %v6181 = vsel %vm299, %v6148, 0
    %v6183 = vsel %vm299, %v6150, 0
    %v6185 = vsel %vm299, %v6152, 0
    %v6187 = vsel %vm299, %v6154, 0
    %v6189 = vsel %vm299, %v6156, 0
    %v6191 = vsel %vm299, %v6158, 0
    %v6193 = vsel %vm299, %v6160, 0
    %v6195 = vsel %vm299, %v6162, 0
    %v6197 = vsel %vm299, %v6164, 0
    %v6199 = vsel %vm299, %v6166, 0
    %v6201 = vsel %vm299, %v6168, 0
    %v6203 = vsel %vm299, %v6170, 0
    %v6205 = vsel %vm299, %v6172, 0
    %v6207 = vsel %vm299, %v6174, 0
    %v6209 = vsel %vm299, %v6176, 0
    %v6211 = vsel %vm299, %v6178, 0
    %v6213 = vsel %vm299, %v6180, 0
    %6215 = vmatprep.subr.mxu0 0.0
    %6216 = vmatpush1.xpose.msra.mxu0 %v6183
    %6217 = vmatprep.subr.mxu0 0.0
    %6218 = vmatpush1.xpose.msra.mxu0 %v6185
    %6219 = vmatprep.subr.mxu0 0.0
    %6220 = vmatpush1.xpose.msra.mxu0 %v6187
    %6221 = vmatprep.subr.mxu0 0.0
    %6222 = vmatpush1.xpose.msra.mxu0 %v6189
    %6223 = vmatprep.subr.mxu0 0.0
    %6224 = vmatpush1.xpose.msra.mxu0 %v6191
    %6225 = vmatprep.subr.mxu0 0.0
    %6226 = vmatpush1.xpose.msra.mxu0 %v6193
    %6227 = vmatprep.subr.mxu0 0.0
    %6228 = vmatpush1.xpose.msra.mxu0 %v6195
    %6229 = vmatprep.subr.mxu0 0.0
    %6230 = vmatpush1.xpose.msra.mxu0 %v6197
    %6231 = vmatprep.subr.mxu0 0.0
    %6232 = vmatpush1.xpose.msra.mxu0 %v6199
    %6233 = vmatprep.subr.mxu0 0.0
    %6234 = vmatpush1.xpose.msra.mxu0 %v6201
    %6235 = vmatprep.subr.mxu0 0.0
    %6236 = vmatpush1.xpose.msra.mxu0 %v6203
    %6237 = vmatprep.subr.mxu0 0.0
    %6238 = vmatpush1.xpose.msra.mxu0 %v6205
    %6239 = vmatprep.subr.mxu0 0.0
    %6240 = vmatpush1.xpose.msra.mxu0 %v6207
    %6241 = vmatprep.subr.mxu0 0.0
    %6242 = vmatpush1.xpose.msra.mxu0 %v6209
    %6243 = vmatprep.subr.mxu0 0.0
    %6244 = vmatpush1.xpose.msra.mxu0 %v6211
    %6245 = vmatprep.subr.mxu0 0.0
    %6246 = vmatpush1.xpose.msra.mxu0 %v6213
    %6247 = vmatprep.subr.mxu0 0.0
    %6248 = vmatpush1.xpose.msra.mxu0 0.0
    %6249 = vmatprep.subr.mxu0 0.0
    %6250 = vmatpush1.xpose.msra.mxu0 0.0
    %6251 = vmatprep.subr.mxu0 0.0
    %6252 = vmatpush1.xpose.msra.mxu0 0.0
    %6253 = vmatprep.subr.mxu0 0.0
    %6254 = vmatpush1.xpose.msra.mxu0 0.0
    %6255 = vmatprep.subr.mxu0 0.0
    %6256 = vmatpush1.xpose.msra.mxu0 0.0
    %6257 = vmatprep.subr.mxu0 0.0
    %6258 = vmatpush1.xpose.msra.mxu0 0.0
    %6259 = vmatprep.subr.mxu0 0.0
    %6260 = vmatpush1.xpose.msra.mxu0 0.0
    %6261 = vmatprep.subr.mxu0 0.0
    %6262 = vmatpush1.xpose.msra.mxu0 0.0
    %6263 = vmatprep.subr.mxu0 0.0
    %6264 = vmatpush1.xpose.msra.mxu0 0.0
    %6265 = vmatprep.subr.mxu0 0.0
    %6266 = vmatpush1.xpose.msra.mxu0 0.0
    %6267 = vmatprep.subr.mxu0 0.0
    %6268 = vmatpush1.xpose.msra.mxu0 0.0
    %6269 = vmatprep.subr.mxu0 0.0
    %6270 = vmatpush1.xpose.msra.mxu0 0.0
    %6271 = vmatprep.subr.mxu0 0.0
    %6272 = vmatpush1.xpose.msra.mxu0 0.0
    %6273 = vmatprep.subr.mxu0 0.0
    %6274 = vmatpush1.xpose.msra.mxu0 0.0
    %6275 = vmatprep.subr.mxu0 0.0
    %6276 = vmatpush1.xpose.msra.mxu0 0.0
    %6277 = vmatprep.subr.mxu0 0.0
    %6278 = vmatpush1.xpose.msra.mxu0 0.0
    %6279 = vmatprep.mubr.f32.mxu0 0.0
    %6280 = vmatmul.mubr.f32.gmra.mrb[0].mxu0 %v6181
    %v6281 = vpop.f32.mrb[0].mxu0
    %v6282 = vadd.f32 0.0, %v6281
    %v6283 = vpop.f32.mrb[0].mxu0
    %6284 = vdwg.mxu0
    %v6285 = vlaneseq
    %v6286 = vshrl.u32 %v6285, 7
    %v6287 = vsub.s32 3, %v6286
    %v6288 = vrot.slane %v3540, %v6287
    %6290 = vrot.lane.b32.xlu0 %v6288, 96
    %v6291 = vpop.permute.xlu0 %6290
    %v6293 = vmul.f32 %v3608, %v6291
    %v6294 = vmul.f32 %v3613, %v6291
    %v6295 = vmul.f32 %v3618, %v6291
    %v6296 = vmul.f32 %v3623, %v6291
    %v6297 = vmul.f32 %v3628, %v6291
    %v6298 = vmul.f32 %v3633, %v6291
    %v6299 = vmul.f32 %v3638, %v6291
    %v6300 = vmul.f32 %v3643, %v6291
    %v6301 = vmul.f32 %v3648, %v6291
    %v6302 = vmul.f32 %v3653, %v6291
    %v6303 = vmul.f32 %v3658, %v6291
    %v6304 = vmul.f32 %v3663, %v6291
    %v6305 = vmul.f32 %v3668, %v6291
    %v6306 = vmul.f32 %v3673, %v6291
    %v6307 = vmul.f32 %v3678, %v6291
    %v6308 = vmul.f32 %v3683, %v6291
    %6325 = vrot.lane.b32.xlu0 %v6293, 32
    %v6326 = vpop.permute.xlu0 %6325
    %6327 = vrot.lane.b32.xlu0 %v6294, 32
    %v6328 = vpop.permute.xlu0 %6327
    %6329 = vrot.lane.b32.xlu0 %v6295, 32
    %v6330 = vpop.permute.xlu0 %6329
    %6331 = vrot.lane.b32.xlu0 %v6296, 32
    %v6332 = vpop.permute.xlu0 %6331
    %6333 = vrot.lane.b32.xlu0 %v6297, 32
    %v6334 = vpop.permute.xlu0 %6333
    %6335 = vrot.lane.b32.xlu0 %v6298, 32
    %v6336 = vpop.permute.xlu0 %6335
    %6337 = vrot.lane.b32.xlu0 %v6299, 32
    %v6338 = vpop.permute.xlu0 %6337
    %6339 = vrot.lane.b32.xlu0 %v6300, 32
    %v6340 = vpop.permute.xlu0 %6339
    %6341 = vrot.lane.b32.xlu0 %v6301, 32
    %v6342 = vpop.permute.xlu0 %6341
    %6343 = vrot.lane.b32.xlu0 %v6302, 32
    %v6344 = vpop.permute.xlu0 %6343
    %6345 = vrot.lane.b32.xlu0 %v6303, 32
    %v6346 = vpop.permute.xlu0 %6345
    %6347 = vrot.lane.b32.xlu0 %v6304, 32
    %v6348 = vpop.permute.xlu0 %6347
    %6349 = vrot.lane.b32.xlu0 %v6305, 32
    %v6350 = vpop.permute.xlu0 %6349
    %6351 = vrot.lane.b32.xlu0 %v6306, 32
    %v6352 = vpop.permute.xlu0 %6351
    %6353 = vrot.lane.b32.xlu0 %v6307, 32
    %v6354 = vpop.permute.xlu0 %6353
    %6355 = vrot.lane.b32.xlu0 %v6308, 32
    %v6356 = vpop.permute.xlu0 %6355
    %v6373 = vsel %vm299, %v6326, 0.0
    %6374 = vadd.xlane.f32.xlu0 %v6373
    %v6375 = vpop.xlane.xlu0 %6374
    %v6376 = vsel %vm299, %v6328, 0.0
    %6377 = vadd.xlane.f32.xlu0 %v6376
    %v6378 = vpop.xlane.xlu0 %6377
    %v6379 = vsel %vm299, %v6330, 0.0
    %6380 = vadd.xlane.f32.xlu0 %v6379
    %v6381 = vpop.xlane.xlu0 %6380
    %v6382 = vsel %vm299, %v6332, 0.0
    %6383 = vadd.xlane.f32.xlu0 %v6382
    %v6384 = vpop.xlane.xlu0 %6383
    %v6385 = vsel %vm299, %v6334, 0.0
    %6386 = vadd.xlane.f32.xlu0 %v6385
    %v6387 = vpop.xlane.xlu0 %6386
    %v6388 = vsel %vm299, %v6336, 0.0
    %6389 = vadd.xlane.f32.xlu0 %v6388
    %v6390 = vpop.xlane.xlu0 %6389
    %v6391 = vsel %vm299, %v6338, 0.0
    %6392 = vadd.xlane.f32.xlu0 %v6391
    %v6393 = vpop.xlane.xlu0 %6392
    %v6394 = vsel %vm299, %v6340, 0.0
    %6395 = vadd.xlane.f32.xlu0 %v6394
    %v6396 = vpop.xlane.xlu0 %6395
    %v6397 = vsel %vm299, %v6342, 0.0
    %6398 = vadd.xlane.f32.xlu0 %v6397
    %v6399 = vpop.xlane.xlu0 %6398
    %v6400 = vsel %vm299, %v6344, 0.0
    %6401 = vadd.xlane.f32.xlu0 %v6400
    %v6402 = vpop.xlane.xlu0 %6401
    %v6403 = vsel %vm299, %v6346, 0.0
    %6404 = vadd.xlane.f32.xlu0 %v6403
    %v6405 = vpop.xlane.xlu0 %6404
    %v6406 = vsel %vm299, %v6348, 0.0
    %6407 = vadd.xlane.f32.xlu0 %v6406
    %v6408 = vpop.xlane.xlu0 %6407
    %v6409 = vsel %vm299, %v6350, 0.0
    %6410 = vadd.xlane.f32.xlu0 %v6409
    %v6411 = vpop.xlane.xlu0 %6410
    %v6412 = vsel %vm299, %v6352, 0.0
    %6413 = vadd.xlane.f32.xlu0 %v6412
    %v6414 = vpop.xlane.xlu0 %6413
    %v6415 = vsel %vm299, %v6354, 0.0
    %6416 = vadd.xlane.f32.xlu0 %v6415
    %v6417 = vpop.xlane.xlu0 %6416
    %v6418 = vsel %vm299, %v6356, 0.0
    %6419 = vadd.xlane.f32.xlu0 %v6418
    %v6420 = vpop.xlane.xlu0 %6419
    %v6421 = vlaneseq
    %v6422 = vshrl.u32 %v6421, 7
    %v6423 = vsub.s32 0, %v6422
    %v6424 = vrot.slane %v6282, %v6423
    %v6425 = vadd.f32 %v6375, %v6424
    %v6426 = vadd.f32 %v6378, %v6424
    %v6427 = vadd.f32 %v6381, %v6424
    %v6428 = vadd.f32 %v6384, %v6424
    %v6429 = vadd.f32 %v6387, %v6424
    %v6430 = vadd.f32 %v6390, %v6424
    %v6431 = vadd.f32 %v6393, %v6424
    %v6432 = vadd.f32 %v6396, %v6424
    %v6433 = vadd.f32 %v6399, %v6424
    %v6434 = vadd.f32 %v6402, %v6424
    %v6435 = vadd.f32 %v6405, %v6424
    %v6436 = vadd.f32 %v6408, %v6424
    %v6437 = vadd.f32 %v6411, %v6424
    %v6438 = vadd.f32 %v6414, %v6424
    %v6439 = vadd.f32 %v6417, %v6424
    %v6440 = vadd.f32 %v6420, %v6424
    %vm6441 = vcmp.ge.f32.partialorder %v6425, 0.0
    %vm6442 = vcmp.ge.f32.partialorder %v6426, 0.0
    %vm6443 = vcmp.ge.f32.partialorder %v6427, 0.0
    %vm6444 = vcmp.ge.f32.partialorder %v6428, 0.0
    %vm6445 = vcmp.ge.f32.partialorder %v6429, 0.0
    %vm6446 = vcmp.ge.f32.partialorder %v6430, 0.0
    %vm6447 = vcmp.ge.f32.partialorder %v6431, 0.0
    %vm6448 = vcmp.ge.f32.partialorder %v6432, 0.0
    %vm6449 = vcmp.ge.f32.partialorder %v6433, 0.0
    %vm6450 = vcmp.ge.f32.partialorder %v6434, 0.0
    %vm6451 = vcmp.ge.f32.partialorder %v6435, 0.0
    %vm6452 = vcmp.ge.f32.partialorder %v6436, 0.0
    %vm6453 = vcmp.ge.f32.partialorder %v6437, 0.0
    %vm6454 = vcmp.ge.f32.partialorder %v6438, 0.0
    %vm6455 = vcmp.ge.f32.partialorder %v6439, 0.0
    %vm6456 = vcmp.ge.f32.partialorder %v6440, 0.0
    %v6457 = vmul.f32 %v6425, 0.2
    %v6458 = vmul.f32 %v6426, 0.2
    %v6459 = vmul.f32 %v6427, 0.2
    %v6460 = vmul.f32 %v6428, 0.2
    %v6461 = vmul.f32 %v6429, 0.2
    %v6462 = vmul.f32 %v6430, 0.2
    %v6463 = vmul.f32 %v6431, 0.2
    %v6464 = vmul.f32 %v6432, 0.2
    %v6465 = vmul.f32 %v6433, 0.2
    %v6466 = vmul.f32 %v6434, 0.2
    %v6467 = vmul.f32 %v6435, 0.2
    %v6468 = vmul.f32 %v6436, 0.2
    %v6469 = vmul.f32 %v6437, 0.2
    %v6470 = vmul.f32 %v6438, 0.2
    %v6471 = vmul.f32 %v6439, 0.2
    %v6472 = vmul.f32 %v6440, 0.2
    %v6473 = vsel %vm6441, %v6425, %v6457
    %v6474 = vsel %vm6442, %v6426, %v6458
    %v6475 = vsel %vm6443, %v6427, %v6459
    %v6476 = vsel %vm6444, %v6428, %v6460
    %v6477 = vsel %vm6445, %v6429, %v6461
    %v6478 = vsel %vm6446, %v6430, %v6462
    %v6479 = vsel %vm6447, %v6431, %v6463
    %v6480 = vsel %vm6448, %v6432, %v6464
    %v6481 = vsel %vm6449, %v6433, %v6465
    %v6482 = vsel %vm6450, %v6434, %v6466
    %v6483 = vsel %vm6451, %v6435, %v6467
    %v6484 = vsel %vm6452, %v6436, %v6468
    %v6485 = vsel %vm6453, %v6437, %v6469
    %v6486 = vsel %vm6454, %v6438, %v6470
    %v6487 = vsel %vm6455, %v6439, %v6471
    %v6488 = vsel %vm6456, %v6440, %v6472
    %v6489 = vsel %vm557, %v6473, -1e+30
    %v6490 = vsel %vm558, %v6474, -1e+30
    %v6491 = vsel %vm559, %v6475, -1e+30
    %v6492 = vsel %vm560, %v6476, -1e+30
    %v6493 = vsel %vm561, %v6477, -1e+30
    %v6494 = vsel %vm562, %v6478, -1e+30
    %v6495 = vsel %vm563, %v6479, -1e+30
    %v6496 = vsel %vm564, %v6480, -1e+30
    %v6497 = vsel %vm565, %v6481, -1e+30
    %v6498 = vsel %vm566, %v6482, -1e+30
    %v6499 = vsel %vm567, %v6483, -1e+30
    %v6500 = vsel %vm568, %v6484, -1e+30
    %v6501 = vsel %vm569, %v6485, -1e+30
    %v6502 = vsel %vm570, %v6486, -1e+30
    %v6503 = vsel %vm571, %v6487, -1e+30
    %v6504 = vsel %vm572, %v6488, -1e+30
    %6505 = vmax.xlane.f32.xlu0 %v6489
    %v6506 = vpop.xlane.xlu0 %6505
    %6507 = vmax.xlane.f32.xlu0 %v6490
    %v6508 = vpop.xlane.xlu0 %6507
    %6509 = vmax.xlane.f32.xlu0 %v6491
    %v6510 = vpop.xlane.xlu0 %6509
    %6511 = vmax.xlane.f32.xlu0 %v6492
    %v6512 = vpop.xlane.xlu0 %6511
    %6513 = vmax.xlane.f32.xlu0 %v6493
    %v6514 = vpop.xlane.xlu0 %6513
    %6515 = vmax.xlane.f32.xlu0 %v6494
    %v6516 = vpop.xlane.xlu0 %6515
    %6517 = vmax.xlane.f32.xlu0 %v6495
    %v6518 = vpop.xlane.xlu0 %6517
    %6519 = vmax.xlane.f32.xlu0 %v6496
    %v6520 = vpop.xlane.xlu0 %6519
    %6521 = vmax.xlane.f32.xlu0 %v6497
    %v6522 = vpop.xlane.xlu0 %6521
    %6523 = vmax.xlane.f32.xlu0 %v6498
    %v6524 = vpop.xlane.xlu0 %6523
    %6525 = vmax.xlane.f32.xlu0 %v6499
    %v6526 = vpop.xlane.xlu0 %6525
    %6527 = vmax.xlane.f32.xlu0 %v6500
    %v6528 = vpop.xlane.xlu0 %6527
    %6529 = vmax.xlane.f32.xlu0 %v6501
    %v6530 = vpop.xlane.xlu0 %6529
    %6531 = vmax.xlane.f32.xlu0 %v6502
    %v6532 = vpop.xlane.xlu0 %6531
    %6533 = vmax.xlane.f32.xlu0 %v6503
    %v6534 = vpop.xlane.xlu0 %6533
    %6535 = vmax.xlane.f32.xlu0 %v6504
    %v6536 = vpop.xlane.xlu0 %6535
    %v6537 = vsub.f32 %v6489, %v6506
    %v6538 = vsub.f32 %v6490, %v6508
    %v6539 = vsub.f32 %v6491, %v6510
    %v6540 = vsub.f32 %v6492, %v6512
    %v6541 = vsub.f32 %v6493, %v6514
    %v6542 = vsub.f32 %v6494, %v6516
    %v6543 = vsub.f32 %v6495, %v6518
    %v6544 = vsub.f32 %v6496, %v6520
    %v6545 = vsub.f32 %v6497, %v6522
    %v6546 = vsub.f32 %v6498, %v6524
    %v6547 = vsub.f32 %v6499, %v6526
    %v6548 = vsub.f32 %v6500, %v6528
    %v6549 = vsub.f32 %v6501, %v6530
    %v6550 = vsub.f32 %v6502, %v6532
    %v6551 = vsub.f32 %v6503, %v6534
    %v6552 = vsub.f32 %v6504, %v6536
    %v6553 = vmul.f32 %v6537, 1.442695
    %v6554 = vpow.pop %v6553
    %v6555 = vmul.f32 %v6538, 1.442695
    %v6556 = vpow.pop %v6555
    %v6557 = vmul.f32 %v6539, 1.442695
    %v6558 = vpow.pop %v6557
    %v6559 = vmul.f32 %v6540, 1.442695
    %v6560 = vpow.pop %v6559
    %v6561 = vmul.f32 %v6541, 1.442695
    %v6562 = vpow.pop %v6561
    %v6563 = vmul.f32 %v6542, 1.442695
    %v6564 = vpow.pop %v6563
    %v6565 = vmul.f32 %v6543, 1.442695
    %v6566 = vpow.pop %v6565
    %v6567 = vmul.f32 %v6544, 1.442695
    %v6568 = vpow.pop %v6567
    %v6569 = vmul.f32 %v6545, 1.442695
    %v6570 = vpow.pop %v6569
    %v6571 = vmul.f32 %v6546, 1.442695
    %v6572 = vpow.pop %v6571
    %v6573 = vmul.f32 %v6547, 1.442695
    %v6574 = vpow.pop %v6573
    %v6575 = vmul.f32 %v6548, 1.442695
    %v6576 = vpow.pop %v6575
    %v6577 = vmul.f32 %v6549, 1.442695
    %v6578 = vpow.pop %v6577
    %v6579 = vmul.f32 %v6550, 1.442695
    %v6580 = vpow.pop %v6579
    %v6581 = vmul.f32 %v6551, 1.442695
    %v6582 = vpow.pop %v6581
    %v6583 = vmul.f32 %v6552, 1.442695
    %v6584 = vpow.pop %v6583
    %v6585 = vmul.f32 %v6554, %v104
    %v6586 = vmul.f32 %v6556, %v105
    %v6587 = vmul.f32 %v6558, %v106
    %v6588 = vmul.f32 %v6560, %v107
    %v6589 = vmul.f32 %v6562, %v108
    %v6590 = vmul.f32 %v6564, %v109
    %v6591 = vmul.f32 %v6566, %v110
    %v6592 = vmul.f32 %v6568, %v111
    %v6593 = vmul.f32 %v6570, %v112
    %v6594 = vmul.f32 %v6572, %v113
    %v6595 = vmul.f32 %v6574, %v114
    %v6596 = vmul.f32 %v6576, %v115
    %v6597 = vmul.f32 %v6578, %v116
    %v6598 = vmul.f32 %v6580, %v117
    %v6599 = vmul.f32 %v6582, %v118
    %v6600 = vmul.f32 %v6584, %v119
    %6601 = vadd.xlane.f32.xlu0 %v6585
    %v6602 = vpop.xlane.xlu0 %6601
    %6603 = vadd.xlane.f32.xlu0 %v6586
    %v6604 = vpop.xlane.xlu0 %6603
    %6605 = vadd.xlane.f32.xlu0 %v6587
    %v6606 = vpop.xlane.xlu0 %6605
    %6607 = vadd.xlane.f32.xlu0 %v6588
    %v6608 = vpop.xlane.xlu0 %6607
    %6609 = vadd.xlane.f32.xlu0 %v6589
    %v6610 = vpop.xlane.xlu0 %6609
    %6611 = vadd.xlane.f32.xlu0 %v6590
    %v6612 = vpop.xlane.xlu0 %6611
    %6613 = vadd.xlane.f32.xlu0 %v6591
    %v6614 = vpop.xlane.xlu0 %6613
    %6615 = vadd.xlane.f32.xlu0 %v6592
    %v6616 = vpop.xlane.xlu0 %6615
    %6617 = vadd.xlane.f32.xlu0 %v6593
    %v6618 = vpop.xlane.xlu0 %6617
    %6619 = vadd.xlane.f32.xlu0 %v6594
    %v6620 = vpop.xlane.xlu0 %6619
    %6621 = vadd.xlane.f32.xlu0 %v6595
    %v6622 = vpop.xlane.xlu0 %6621
    %6623 = vadd.xlane.f32.xlu0 %v6596
    %v6624 = vpop.xlane.xlu0 %6623
    %6625 = vadd.xlane.f32.xlu0 %v6597
    %v6626 = vpop.xlane.xlu0 %6625
    %6627 = vadd.xlane.f32.xlu0 %v6598
    %v6628 = vpop.xlane.xlu0 %6627
    %6629 = vadd.xlane.f32.xlu0 %v6599
    %v6630 = vpop.xlane.xlu0 %6629
    %6631 = vadd.xlane.f32.xlu0 %v6600
    %v6632 = vpop.xlane.xlu0 %6631
    %v6633 = vrcp.pop %v6602
    %v6634 = vmul.f32 %v6585, %v6633
    %v6635 = vrcp.pop %v6604
    %v6636 = vmul.f32 %v6586, %v6635
    %v6637 = vrcp.pop %v6606
    %v6638 = vmul.f32 %v6587, %v6637
    %v6639 = vrcp.pop %v6608
    %v6640 = vmul.f32 %v6588, %v6639
    %v6641 = vrcp.pop %v6610
    %v6642 = vmul.f32 %v6589, %v6641
    %v6643 = vrcp.pop %v6612
    %v6644 = vmul.f32 %v6590, %v6643
    %v6645 = vrcp.pop %v6614
    %v6646 = vmul.f32 %v6591, %v6645
    %v6647 = vrcp.pop %v6616
    %v6648 = vmul.f32 %v6592, %v6647
    %v6649 = vrcp.pop %v6618
    %v6650 = vmul.f32 %v6593, %v6649
    %v6651 = vrcp.pop %v6620
    %v6652 = vmul.f32 %v6594, %v6651
    %v6653 = vrcp.pop %v6622
    %v6654 = vmul.f32 %v6595, %v6653
    %v6655 = vrcp.pop %v6624
    %v6656 = vmul.f32 %v6596, %v6655
    %v6657 = vrcp.pop %v6626
    %v6658 = vmul.f32 %v6597, %v6657
    %v6659 = vrcp.pop %v6628
    %v6660 = vmul.f32 %v6598, %v6659
    %v6661 = vrcp.pop %v6630
    %v6662 = vmul.f32 %v6599, %v6661
    %v6663 = vrcp.pop %v6632
    %v6664 = vmul.f32 %v6600, %v6663
    %6681 = vrot.lane.b32.xlu0 %v3507, 32
    %v6682 = vpop.permute.xlu0 %6681
    %6683 = vrot.lane.b32.xlu0 %v3508, 32
    %v6684 = vpop.permute.xlu0 %6683
    %6685 = vrot.lane.b32.xlu0 %v3509, 32
    %v6686 = vpop.permute.xlu0 %6685
    %6687 = vrot.lane.b32.xlu0 %v3510, 32
    %v6688 = vpop.permute.xlu0 %6687
    %6689 = vrot.lane.b32.xlu0 %v3511, 32
    %v6690 = vpop.permute.xlu0 %6689
    %6691 = vrot.lane.b32.xlu0 %v3512, 32
    %v6692 = vpop.permute.xlu0 %6691
    %6693 = vrot.lane.b32.xlu0 %v3513, 32
    %v6694 = vpop.permute.xlu0 %6693
    %6695 = vrot.lane.b32.xlu0 %v3514, 32
    %v6696 = vpop.permute.xlu0 %6695
    %6697 = vrot.lane.b32.xlu0 %v3515, 32
    %v6698 = vpop.permute.xlu0 %6697
    %6699 = vrot.lane.b32.xlu0 %v3516, 32
    %v6700 = vpop.permute.xlu0 %6699
    %6701 = vrot.lane.b32.xlu0 %v3517, 32
    %v6702 = vpop.permute.xlu0 %6701
    %6703 = vrot.lane.b32.xlu0 %v3518, 32
    %v6704 = vpop.permute.xlu0 %6703
    %6705 = vrot.lane.b32.xlu0 %v3519, 32
    %v6706 = vpop.permute.xlu0 %6705
    %6707 = vrot.lane.b32.xlu0 %v3520, 32
    %v6708 = vpop.permute.xlu0 %6707
    %6709 = vrot.lane.b32.xlu0 %v3521, 32
    %v6710 = vpop.permute.xlu0 %6709
    %6711 = vrot.lane.b32.xlu0 %v3522, 32
    %v6712 = vpop.permute.xlu0 %6711
    %6729 = vmatprep.subr.mxu0 0.0
    %6730 = vmatpush1.msra.mxu0 %v6150
    %6731 = vmatprep.subr.mxu0 0.0
    %6732 = vmatpush1.msra.mxu0 %v6152
    %6733 = vmatprep.subr.mxu0 0.0
    %6734 = vmatpush1.msra.mxu0 %v6154
    %6735 = vmatprep.subr.mxu0 0.0
    %6736 = vmatpush1.msra.mxu0 %v6156
    %6737 = vmatprep.subr.mxu0 0.0
    %6738 = vmatpush1.msra.mxu0 %v6158
    %6739 = vmatprep.subr.mxu0 0.0
    %6740 = vmatpush1.msra.mxu0 %v6160
    %6741 = vmatprep.subr.mxu0 0.0
    %6742 = vmatpush1.msra.mxu0 %v6162
    %6743 = vmatprep.subr.mxu0 0.0
    %6744 = vmatpush1.msra.mxu0 %v6164
    %6745 = vmatprep.subr.mxu0 0.0
    %6746 = vmatpush1.msra.mxu0 %v6166
    %6747 = vmatprep.subr.mxu0 0.0
    %6748 = vmatpush1.msra.mxu0 %v6168
    %6749 = vmatprep.subr.mxu0 0.0
    %6750 = vmatpush1.msra.mxu0 %v6170
    %6751 = vmatprep.subr.mxu0 0.0
    %6752 = vmatpush1.msra.mxu0 %v6172
    %6753 = vmatprep.subr.mxu0 0.0
    %6754 = vmatpush1.msra.mxu0 %v6174
    %6755 = vmatprep.subr.mxu0 0.0
    %6756 = vmatpush1.msra.mxu0 %v6176
    %6757 = vmatprep.subr.mxu0 0.0
    %6758 = vmatpush1.msra.mxu0 %v6178
    %6759 = vmatprep.subr.mxu0 0.0
    %6760 = vmatpush1.msra.mxu0 %v6180
    %6761 = vmatprep.subr.mxu0 0.0
    %6762 = vmatpush1.msra.mxu0 0.0
    %6763 = vmatprep.subr.mxu0 0.0
    %6764 = vmatpush1.msra.mxu0 0.0
    %6765 = vmatprep.subr.mxu0 0.0
    %6766 = vmatpush1.msra.mxu0 0.0
    %6767 = vmatprep.subr.mxu0 0.0
    %6768 = vmatpush1.msra.mxu0 0.0
    %6769 = vmatprep.subr.mxu0 0.0
    %6770 = vmatpush1.msra.mxu0 0.0
    %6771 = vmatprep.subr.mxu0 0.0
    %6772 = vmatpush1.msra.mxu0 0.0
    %6773 = vmatprep.subr.mxu0 0.0
    %6774 = vmatpush1.msra.mxu0 0.0
    %6775 = vmatprep.subr.mxu0 0.0
    %6776 = vmatpush1.msra.mxu0 0.0
    %6777 = vmatprep.subr.mxu0 0.0
    %6778 = vmatpush1.msra.mxu0 0.0
    %6779 = vmatprep.subr.mxu0 0.0
    %6780 = vmatpush1.msra.mxu0 0.0
    %6781 = vmatprep.subr.mxu0 0.0
    %6782 = vmatpush1.msra.mxu0 0.0
    %6783 = vmatprep.subr.mxu0 0.0
    %6784 = vmatpush1.msra.mxu0 0.0
    %6785 = vmatprep.subr.mxu0 0.0
    %6786 = vmatpush1.msra.mxu0 0.0
    %6787 = vmatprep.subr.mxu0 0.0
    %6788 = vmatpush1.msra.mxu0 0.0
    %6789 = vmatprep.subr.mxu0 0.0
    %6790 = vmatpush1.msra.mxu0 0.0
    %6791 = vmatprep.subr.mxu0 0.0
    %6792 = vmatpush1.msra.mxu0 0.0
    %6793 = vmatprep.mubr.f32.mxu0 0.0
    %6794 = vmatmul.mubr.f32.gmra.mrb[0].mxu0 %v6634
    %v6795 = vpop.f32.mrb[0].mxu0
    %v6796 = vadd.f32 %v6682, %v6795
    %v6797 = vpop.f32.mrb[0].mxu0
    %6798 = vmatprep.mubr.f32.mxu0 0.0
    %6799 = vmatmul.mubr.f32.gmra.mrb[0].mxu0 %v6636
    %v6800 = vpop.f32.mrb[0].mxu0
    %v6801 = vadd.f32 %v6684, %v6800
    %v6802 = vpop.f32.mrb[0].mxu0
    %6803 = vmatprep.mubr.f32.mxu0 0.0
    %6804 = vmatmul.mubr.f32.gmra.mrb[0].mxu0 %v6638
    %v6805 = vpop.f32.mrb[0].mxu0
    %v6806 = vadd.f32 %v6686, %v6805
    %v6807 = vpop.f32.mrb[0].mxu0
    %6808 = vmatprep.mubr.f32.mxu0 0.0
    %6809 = vmatmul.mubr.f32.gmra.mrb[0].mxu0 %v6640
    %v6810 = vpop.f32.mrb[0].mxu0
    %v6811 = vadd.f32 %v6688, %v6810
    %v6812 = vpop.f32.mrb[0].mxu0
    %6813 = vmatprep.mubr.f32.mxu0 0.0
    %6814 = vmatmul.mubr.f32.gmra.mrb[0].mxu0 %v6642
    %v6815 = vpop.f32.mrb[0].mxu0
    %v6816 = vadd.f32 %v6690, %v6815
    %v6817 = vpop.f32.mrb[0].mxu0
    %6818 = vmatprep.mubr.f32.mxu0 0.0
    %6819 = vmatmul.mubr.f32.gmra.mrb[0].mxu0 %v6644
    %v6820 = vpop.f32.mrb[0].mxu0
    %v6821 = vadd.f32 %v6692, %v6820
    %v6822 = vpop.f32.mrb[0].mxu0
    %6823 = vmatprep.mubr.f32.mxu0 0.0
    %6824 = vmatmul.mubr.f32.gmra.mrb[0].mxu0 %v6646
    %v6825 = vpop.f32.mrb[0].mxu0
    %v6826 = vadd.f32 %v6694, %v6825
    %v6827 = vpop.f32.mrb[0].mxu0
    %6828 = vmatprep.mubr.f32.mxu0 0.0
    %6829 = vmatmul.mubr.f32.gmra.mrb[0].mxu0 %v6648
    %v6830 = vpop.f32.mrb[0].mxu0
    %v6831 = vadd.f32 %v6696, %v6830
    %v6832 = vpop.f32.mrb[0].mxu0
    %6833 = vmatprep.mubr.f32.mxu0 0.0
    %6834 = vmatmul.mubr.f32.gmra.mrb[0].mxu0 %v6650
    %v6835 = vpop.f32.mrb[0].mxu0
    %v6836 = vadd.f32 %v6698, %v6835
    %v6837 = vpop.f32.mrb[0].mxu0
    %6838 = vmatprep.mubr.f32.mxu0 0.0
    %6839 = vmatmul.mubr.f32.gmra.mrb[0].mxu0 %v6652
    %v6840 = vpop.f32.mrb[0].mxu0
    %v6841 = vadd.f32 %v6700, %v6840
    %v6842 = vpop.f32.mrb[0].mxu0
    %6843 = vmatprep.mubr.f32.mxu0 0.0
    %6844 = vmatmul.mubr.f32.gmra.mrb[0].mxu0 %v6654
    %v6845 = vpop.f32.mrb[0].mxu0
    %v6846 = vadd.f32 %v6702, %v6845
    %v6847 = vpop.f32.mrb[0].mxu0
    %6848 = vmatprep.mubr.f32.mxu0 0.0
    %6849 = vmatmul.mubr.f32.gmra.mrb[0].mxu0 %v6656
    %v6850 = vpop.f32.mrb[0].mxu0
    %v6851 = vadd.f32 %v6704, %v6850
    %v6852 = vpop.f32.mrb[0].mxu0
    %6853 = vmatprep.mubr.f32.mxu0 0.0
    %6854 = vmatmul.mubr.f32.gmra.mrb[0].mxu0 %v6658
    %v6855 = vpop.f32.mrb[0].mxu0
    %v6856 = vadd.f32 %v6706, %v6855
    %v6857 = vpop.f32.mrb[0].mxu0
    %6858 = vmatprep.mubr.f32.mxu0 0.0
    %6859 = vmatmul.mubr.f32.gmra.mrb[0].mxu0 %v6660
    %v6860 = vpop.f32.mrb[0].mxu0
    %v6861 = vadd.f32 %v6708, %v6860
    %v6862 = vpop.f32.mrb[0].mxu0
    %6863 = vmatprep.mubr.f32.mxu0 0.0
    %6864 = vmatmul.mubr.f32.gmra.mrb[0].mxu0 %v6662
    %v6865 = vpop.f32.mrb[0].mxu0
    %v6866 = vadd.f32 %v6710, %v6865
    %v6867 = vpop.f32.mrb[0].mxu0
    %6868 = vmatprep.mubr.f32.mxu0 0.0
    %6869 = vmatmul.mubr.f32.gmra.mrb[0].mxu0 %v6664
    %v6870 = vpop.f32.mrb[0].mxu0
    %v6871 = vadd.f32 %v6712, %v6870
    %v6872 = vpop.f32.mrb[0].mxu0
    %6873 = vdwg.mxu0
    %vm6874 = vcmp.gt.f32.partialorder %v6796, 0.0
    %vm6875 = vcmp.gt.f32.partialorder %v6801, 0.0
    %vm6876 = vcmp.gt.f32.partialorder %v6806, 0.0
    %vm6877 = vcmp.gt.f32.partialorder %v6811, 0.0
    %vm6878 = vcmp.gt.f32.partialorder %v6816, 0.0
    %vm6879 = vcmp.gt.f32.partialorder %v6821, 0.0
    %vm6880 = vcmp.gt.f32.partialorder %v6826, 0.0
    %vm6881 = vcmp.gt.f32.partialorder %v6831, 0.0
    %vm6882 = vcmp.gt.f32.partialorder %v6836, 0.0
    %vm6883 = vcmp.gt.f32.partialorder %v6841, 0.0
    %vm6884 = vcmp.gt.f32.partialorder %v6846, 0.0
    %vm6885 = vcmp.gt.f32.partialorder %v6851, 0.0
    %vm6886 = vcmp.gt.f32.partialorder %v6856, 0.0
    %vm6887 = vcmp.gt.f32.partialorder %v6861, 0.0
    %vm6888 = vcmp.gt.f32.partialorder %v6866, 0.0
    %vm6889 = vcmp.gt.f32.partialorder %v6871, 0.0
    %v6890 = vmul.f32 %v6796, 1.442695
    %v6891 = vpow.pop %v6890
    %v6892 = vmul.f32 %v6801, 1.442695
    %v6893 = vpow.pop %v6892
    %v6894 = vmul.f32 %v6806, 1.442695
    %v6895 = vpow.pop %v6894
    %v6896 = vmul.f32 %v6811, 1.442695
    %v6897 = vpow.pop %v6896
    %v6898 = vmul.f32 %v6816, 1.442695
    %v6899 = vpow.pop %v6898
    %v6900 = vmul.f32 %v6821, 1.442695
    %v6901 = vpow.pop %v6900
    %v6902 = vmul.f32 %v6826, 1.442695
    %v6903 = vpow.pop %v6902
    %v6904 = vmul.f32 %v6831, 1.442695
    %v6905 = vpow.pop %v6904
    %v6906 = vmul.f32 %v6836, 1.442695
    %v6907 = vpow.pop %v6906
    %v6908 = vmul.f32 %v6841, 1.442695
    %v6909 = vpow.pop %v6908
    %v6910 = vmul.f32 %v6846, 1.442695
    %v6911 = vpow.pop %v6910
    %v6912 = vmul.f32 %v6851, 1.442695
    %v6913 = vpow.pop %v6912
    %v6914 = vmul.f32 %v6856, 1.442695
    %v6915 = vpow.pop %v6914
    %v6916 = vmul.f32 %v6861, 1.442695
    %v6917 = vpow.pop %v6916
    %v6918 = vmul.f32 %v6866, 1.442695
    %v6919 = vpow.pop %v6918
    %v6920 = vmul.f32 %v6871, 1.442695
    %v6921 = vpow.pop %v6920
    %v6922 = vsub.f32 %v6891, 1.0
    %v6923 = vsub.f32 %v6893, 1.0
    %v6924 = vsub.f32 %v6895, 1.0
    %v6925 = vsub.f32 %v6897, 1.0
    %v6926 = vsub.f32 %v6899, 1.0
    %v6927 = vsub.f32 %v6901, 1.0
    %v6928 = vsub.f32 %v6903, 1.0
    %v6929 = vsub.f32 %v6905, 1.0
    %v6930 = vsub.f32 %v6907, 1.0
    %v6931 = vsub.f32 %v6909, 1.0
    %v6932 = vsub.f32 %v6911, 1.0
    %v6933 = vsub.f32 %v6913, 1.0
    %v6934 = vsub.f32 %v6915, 1.0
    %v6935 = vsub.f32 %v6917, 1.0
    %v6936 = vsub.f32 %v6919, 1.0
    %v6937 = vsub.f32 %v6921, 1.0
    %v6938 = vsel %vm6874, %v6796, %v6922
    %v6939 = vsel %vm6875, %v6801, %v6923
    %v6940 = vsel %vm6876, %v6806, %v6924
    %v6941 = vsel %vm6877, %v6811, %v6925
    %v6942 = vsel %vm6878, %v6816, %v6926
    %v6943 = vsel %vm6879, %v6821, %v6927
    %v6944 = vsel %vm6880, %v6826, %v6928
    %v6945 = vsel %vm6881, %v6831, %v6929
    %v6946 = vsel %vm6882, %v6836, %v6930
    %v6947 = vsel %vm6883, %v6841, %v6931
    %v6948 = vsel %vm6884, %v6846, %v6932
    %v6949 = vsel %vm6885, %v6851, %v6933
    %v6950 = vsel %vm6886, %v6856, %v6934
    %v6951 = vsel %vm6887, %v6861, %v6935
    %v6952 = vsel %vm6888, %v6866, %v6936
    %v6953 = vsel %vm6889, %v6871, %v6937
    %6970 = vrot.lane.b32.xlu0 %v6938, 96
    %v6971 = vpop.permute.xlu0 %6970
    %6972 = vrot.lane.b32.xlu0 %v6939, 96
    %v6973 = vpop.permute.xlu0 %6972
    %6974 = vrot.lane.b32.xlu0 %v6940, 96
    %v6975 = vpop.permute.xlu0 %6974
    %6976 = vrot.lane.b32.xlu0 %v6941, 96
    %v6977 = vpop.permute.xlu0 %6976
    %6978 = vrot.lane.b32.xlu0 %v6942, 96
    %v6979 = vpop.permute.xlu0 %6978
    %6980 = vrot.lane.b32.xlu0 %v6943, 96
    %v6981 = vpop.permute.xlu0 %6980
    %6982 = vrot.lane.b32.xlu0 %v6944, 96
    %v6983 = vpop.permute.xlu0 %6982
    %6984 = vrot.lane.b32.xlu0 %v6945, 96
    %v6985 = vpop.permute.xlu0 %6984
    %6986 = vrot.lane.b32.xlu0 %v6946, 96
    %v6987 = vpop.permute.xlu0 %6986
    %6988 = vrot.lane.b32.xlu0 %v6947, 96
    %v6989 = vpop.permute.xlu0 %6988
    %6990 = vrot.lane.b32.xlu0 %v6948, 96
    %v6991 = vpop.permute.xlu0 %6990
    %6992 = vrot.lane.b32.xlu0 %v6949, 96
    %v6993 = vpop.permute.xlu0 %6992
    %6994 = vrot.lane.b32.xlu0 %v6950, 96
    %v6995 = vpop.permute.xlu0 %6994
    %6996 = vrot.lane.b32.xlu0 %v6951, 96
    %v6997 = vpop.permute.xlu0 %6996
    %6998 = vrot.lane.b32.xlu0 %v6952, 96
    %v6999 = vpop.permute.xlu0 %6998
    %7000 = vrot.lane.b32.xlu0 %v6953, 96
    %v7001 = vpop.permute.xlu0 %7000
    %7018 = vst.msk [vmem:[#allocation3] sm:$0xff] %vm3490, %v6971
    %7019 = vst.msk [vmem:[#allocation3 + $0x8] sm:$0xff] %vm3490, %v6973
    %7020 = vst.msk [vmem:[#allocation3 + $0x10] sm:$0xff] %vm3490, %v6975
    %7021 = vst.msk [vmem:[#allocation3 + $0x18] sm:$0xff] %vm3490, %v6977
    %7022 = vst.msk [vmem:[#allocation3 + $0x20] sm:$0xff] %vm3490, %v6979
    %7023 = vst.msk [vmem:[#allocation3 + $0x28] sm:$0xff] %vm3490, %v6981
    %7024 = vst.msk [vmem:[#allocation3 + $0x30] sm:$0xff] %vm3490, %v6983
    %7025 = vst.msk [vmem:[#allocation3 + $0x38] sm:$0xff] %vm3490, %v6985
    %7026 = vst.msk [vmem:[#allocation3 + $0x40] sm:$0xff] %vm3490, %v6987
    %7027 = vst.msk [vmem:[#allocation3 + $0x48] sm:$0xff] %vm3490, %v6989
    %7028 = vst.msk [vmem:[#allocation3 + $0x50] sm:$0xff] %vm3490, %v6991
    %7029 = vst.msk [vmem:[#allocation3 + $0x58] sm:$0xff] %vm3490, %v6993
    %7030 = vst.msk [vmem:[#allocation3 + $0x60] sm:$0xff] %vm3490, %v6995
    %7031 = vst.msk [vmem:[#allocation3 + $0x68] sm:$0xff] %vm3490, %v6997
    %7032 = vst.msk [vmem:[#allocation3 + $0x70] sm:$0xff] %vm3490, %v6999
    %7033 = vst.msk [vmem:[#allocation3 + $0x78] sm:$0xff] %vm3490, %v7001
    %v7034 = vld [vmem:[#allocation3] sm:$0xff]
    %v7035 = vld [vmem:[#allocation3 + $0x8] sm:$0xff]
    %v7036 = vld [vmem:[#allocation3 + $0x10] sm:$0xff]
    %v7037 = vld [vmem:[#allocation3 + $0x18] sm:$0xff]
    %v7038 = vld [vmem:[#allocation3 + $0x20] sm:$0xff]
    %v7039 = vld [vmem:[#allocation3 + $0x28] sm:$0xff]
    %v7040 = vld [vmem:[#allocation3 + $0x30] sm:$0xff]
    %v7041 = vld [vmem:[#allocation3 + $0x38] sm:$0xff]
    %v7042 = vld [vmem:[#allocation3 + $0x40] sm:$0xff]
    %v7043 = vld [vmem:[#allocation3 + $0x48] sm:$0xff]
    %v7044 = vld [vmem:[#allocation3 + $0x50] sm:$0xff]
    %v7045 = vld [vmem:[#allocation3 + $0x58] sm:$0xff]
    %v7046 = vld [vmem:[#allocation3 + $0x60] sm:$0xff]
    %v7047 = vld [vmem:[#allocation3 + $0x68] sm:$0xff]
    %v7048 = vld [vmem:[#allocation3 + $0x70] sm:$0xff]
    %v7049 = vld [vmem:[#allocation3 + $0x78] sm:$0xff]
    %v7050 = vld [vmem:[#allocation12] sm:$0xff]
    %v7051 = vld [vmem:[#allocation12 + $0x8] sm:$0xff]
    %v7052 = vld [vmem:[#allocation12 + $0x10] sm:$0xff]
    %v7053 = vld [vmem:[#allocation12 + $0x18] sm:$0xff]
    %v7054 = vld [vmem:[#allocation12 + $0x20] sm:$0xff]
    %v7055 = vld [vmem:[#allocation12 + $0x28] sm:$0xff]
    %v7056 = vld [vmem:[#allocation12 + $0x30] sm:$0xff]
    %v7057 = vld [vmem:[#allocation12 + $0x38] sm:$0xff]
    %v7058 = vld [vmem:[#allocation12 + $0x40] sm:$0xff]
    %v7059 = vld [vmem:[#allocation12 + $0x48] sm:$0xff]
    %v7060 = vld [vmem:[#allocation12 + $0x50] sm:$0xff]
    %v7061 = vld [vmem:[#allocation12 + $0x58] sm:$0xff]
    %v7062 = vld [vmem:[#allocation12 + $0x60] sm:$0xff]
    %v7063 = vld [vmem:[#allocation12 + $0x68] sm:$0xff]
    %v7064 = vld [vmem:[#allocation12 + $0x70] sm:$0xff]
    %v7065 = vld [vmem:[#allocation12 + $0x78] sm:$0xff]
    %v7066 = vld [vmem:[%s9] sm:$0x1]
    %v7068 = vlaneseq
    %v7069 = vshrl.u32 %v7068, 7
    %v7070 = vsub.s32 0, %v7069
    %v7071 = vrot.slane %v7066, %v7070
    %7073 = vmatprep.subr.mxu0 0.0
    %7074 = vmatpush1.msra.mxu0 %v7050
    %7075 = vmatprep.subr.mxu0 0.0
    %7076 = vmatpush1.msra.mxu0 %v7051
    %7077 = vmatprep.subr.mxu0 0.0
    %7078 = vmatpush1.msra.mxu0 %v7052
    %7079 = vmatprep.subr.mxu0 0.0
    %7080 = vmatpush1.msra.mxu0 %v7053
    %7081 = vmatprep.subr.mxu0 0.0
    %7082 = vmatpush1.msra.mxu0 %v7054
    %7083 = vmatprep.subr.mxu0 0.0
    %7084 = vmatpush1.msra.mxu0 %v7055
    %7085 = vmatprep.subr.mxu0 0.0
    %7086 = vmatpush1.msra.mxu0 %v7056
    %7087 = vmatprep.subr.mxu0 0.0
    %7088 = vmatpush1.msra.mxu0 %v7057
    %7089 = vmatprep.subr.mxu0 0.0
    %7090 = vmatpush1.msra.mxu0 %v7058
    %7091 = vmatprep.subr.mxu0 0.0
    %7092 = vmatpush1.msra.mxu0 %v7059
    %7093 = vmatprep.subr.mxu0 0.0
    %7094 = vmatpush1.msra.mxu0 %v7060
    %7095 = vmatprep.subr.mxu0 0.0
    %7096 = vmatpush1.msra.mxu0 %v7061
    %7097 = vmatprep.subr.mxu0 0.0
    %7098 = vmatpush1.msra.mxu0 %v7062
    %7099 = vmatprep.subr.mxu0 0.0
    %7100 = vmatpush1.msra.mxu0 %v7063
    %7101 = vmatprep.subr.mxu0 0.0
    %7102 = vmatpush1.msra.mxu0 %v7064
    %7103 = vmatprep.subr.mxu0 0.0
    %7104 = vmatpush1.msra.mxu0 %v7065
    %7105 = vmatprep.subr.mxu0 0.0
    %7106 = vmatpush1.msra.mxu0 0.0
    %7107 = vmatprep.subr.mxu0 0.0
    %7108 = vmatpush1.msra.mxu0 0.0
    %7109 = vmatprep.subr.mxu0 0.0
    %7110 = vmatpush1.msra.mxu0 0.0
    %7111 = vmatprep.subr.mxu0 0.0
    %7112 = vmatpush1.msra.mxu0 0.0
    %7113 = vmatprep.subr.mxu0 0.0
    %7114 = vmatpush1.msra.mxu0 0.0
    %7115 = vmatprep.subr.mxu0 0.0
    %7116 = vmatpush1.msra.mxu0 0.0
    %7117 = vmatprep.subr.mxu0 0.0
    %7118 = vmatpush1.msra.mxu0 0.0
    %7119 = vmatprep.subr.mxu0 0.0
    %7120 = vmatpush1.msra.mxu0 0.0
    %7121 = vmatprep.subr.mxu0 0.0
    %7122 = vmatpush1.msra.mxu0 0.0
    %7123 = vmatprep.subr.mxu0 0.0
    %7124 = vmatpush1.msra.mxu0 0.0
    %7125 = vmatprep.subr.mxu0 0.0
    %7126 = vmatpush1.msra.mxu0 0.0
    %7127 = vmatprep.subr.mxu0 0.0
    %7128 = vmatpush1.msra.mxu0 0.0
    %7129 = vmatprep.subr.mxu0 0.0
    %7130 = vmatpush1.msra.mxu0 0.0
    %7131 = vmatprep.subr.mxu0 0.0
    %7132 = vmatpush1.msra.mxu0 0.0
    %7133 = vmatprep.subr.mxu0 0.0
    %7134 = vmatpush1.msra.mxu0 0.0
    %7135 = vmatprep.subr.mxu0 0.0
    %7136 = vmatpush1.msra.mxu0 0.0
    %7137 = vmatprep.mubr.f32.mxu0 0.0
    %7138 = vmatmul.mubr.f32.gmra.mrb[0].mxu0 %v7034
    %v7139 = vpop.f32.mrb[0].mxu0
    %v7140 = vadd.f32 %v7071, %v7139
    %v7141 = vpop.f32.mrb[0].mxu0
    %7142 = vmatprep.mubr.f32.mxu0 0.0
    %7143 = vmatmul.mubr.f32.gmra.mrb[0].mxu0 %v7035
    %v7144 = vpop.f32.mrb[0].mxu0
    %v7145 = vadd.f32 %v7071, %v7144
    %v7146 = vpop.f32.mrb[0].mxu0
    %7147 = vmatprep.mubr.f32.mxu0 0.0
    %7148 = vmatmul.mubr.f32.gmra.mrb[0].mxu0 %v7036
    %v7149 = vpop.f32.mrb[0].mxu0
    %v7150 = vadd.f32 %v7071, %v7149
    %v7151 = vpop.f32.mrb[0].mxu0
    %7152 = vmatprep.mubr.f32.mxu0 0.0
    %7153 = vmatmul.mubr.f32.gmra.mrb[0].mxu0 %v7037
    %v7154 = vpop.f32.mrb[0].mxu0
    %v7155 = vadd.f32 %v7071, %v7154
    %v7156 = vpop.f32.mrb[0].mxu0
    %7157 = vmatprep.mubr.f32.mxu0 0.0
    %7158 = vmatmul.mubr.f32.gmra.mrb[0].mxu0 %v7038
    %v7159 = vpop.f32.mrb[0].mxu0
    %v7160 = vadd.f32 %v7071, %v7159
    %v7161 = vpop.f32.mrb[0].mxu0
    %7162 = vmatprep.mubr.f32.mxu0 0.0
    %7163 = vmatmul.mubr.f32.gmra.mrb[0].mxu0 %v7039
    %v7164 = vpop.f32.mrb[0].mxu0
    %v7165 = vadd.f32 %v7071, %v7164
    %v7166 = vpop.f32.mrb[0].mxu0
    %7167 = vmatprep.mubr.f32.mxu0 0.0
    %7168 = vmatmul.mubr.f32.gmra.mrb[0].mxu0 %v7040
    %v7169 = vpop.f32.mrb[0].mxu0
    %v7170 = vadd.f32 %v7071, %v7169
    %v7171 = vpop.f32.mrb[0].mxu0
    %7172 = vmatprep.mubr.f32.mxu0 0.0
    %7173 = vmatmul.mubr.f32.gmra.mrb[0].mxu0 %v7041
    %v7174 = vpop.f32.mrb[0].mxu0
    %v7175 = vadd.f32 %v7071, %v7174
    %v7176 = vpop.f32.mrb[0].mxu0
    %7177 = vmatprep.mubr.f32.mxu0 0.0
    %7178 = vmatmul.mubr.f32.gmra.mrb[0].mxu0 %v7042
    %v7179 = vpop.f32.mrb[0].mxu0
    %v7180 = vadd.f32 %v7071, %v7179
    %v7181 = vpop.f32.mrb[0].mxu0
    %7182 = vmatprep.mubr.f32.mxu0 0.0
    %7183 = vmatmul.mubr.f32.gmra.mrb[0].mxu0 %v7043
    %v7184 = vpop.f32.mrb[0].mxu0
    %v7185 = vadd.f32 %v7071, %v7184
    %v7186 = vpop.f32.mrb[0].mxu0
    %7187 = vmatprep.mubr.f32.mxu0 0.0
    %7188 = vmatmul.mubr.f32.gmra.mrb[0].mxu0 %v7044
    %v7189 = vpop.f32.mrb[0].mxu0
    %v7190 = vadd.f32 %v7071, %v7189
    %v7191 = vpop.f32.mrb[0].mxu0
    %7192 = vmatprep.mubr.f32.mxu0 0.0
    %7193 = vmatmul.mubr.f32.gmra.mrb[0].mxu0 %v7045
    %v7194 = vpop.f32.mrb[0].mxu0
    %v7195 = vadd.f32 %v7071, %v7194
    %v7196 = vpop.f32.mrb[0].mxu0
    %7197 = vmatprep.mubr.f32.mxu0 0.0
    %7198 = vmatmul.mubr.f32.gmra.mrb[0].mxu0 %v7046
    %v7199 = vpop.f32.mrb[0].mxu0
    %v7200 = vadd.f32 %v7071, %v7199
    %v7201 = vpop.f32.mrb[0].mxu0
    %7202 = vmatprep.mubr.f32.mxu0 0.0
    %7203 = vmatmul.mubr.f32.gmra.mrb[0].mxu0 %v7047
    %v7204 = vpop.f32.mrb[0].mxu0
    %v7205 = vadd.f32 %v7071, %v7204
    %v7206 = vpop.f32.mrb[0].mxu0
    %7207 = vmatprep.mubr.f32.mxu0 0.0
    %7208 = vmatmul.mubr.f32.gmra.mrb[0].mxu0 %v7048
    %v7209 = vpop.f32.mrb[0].mxu0
    %v7210 = vadd.f32 %v7071, %v7209
    %v7211 = vpop.f32.mrb[0].mxu0
    %7212 = vmatprep.mubr.f32.mxu0 0.0
    %7213 = vmatmul.mubr.f32.gmra.mrb[0].mxu0 %v7049
    %v7214 = vpop.f32.mrb[0].mxu0
    %v7215 = vadd.f32 %v7071, %v7214
    %v7216 = vpop.f32.mrb[0].mxu0
    %7217 = vdwg.mxu0
    %7218 = vst [vmem:[#allocation13] sm:$0xff] %v7140
    %7219 = vst [vmem:[#allocation13 + $0x8] sm:$0xff] %v7145
    %7220 = vst [vmem:[#allocation13 + $0x10] sm:$0xff] %v7150
    %7221 = vst [vmem:[#allocation13 + $0x18] sm:$0xff] %v7155
    %7222 = vst [vmem:[#allocation13 + $0x20] sm:$0xff] %v7160
    %7223 = vst [vmem:[#allocation13 + $0x28] sm:$0xff] %v7165
    %7224 = vst [vmem:[#allocation13 + $0x30] sm:$0xff] %v7170
    %7225 = vst [vmem:[#allocation13 + $0x38] sm:$0xff] %v7175
    %7226 = vst [vmem:[#allocation13 + $0x40] sm:$0xff] %v7180
    %7227 = vst [vmem:[#allocation13 + $0x48] sm:$0xff] %v7185
    %7228 = vst [vmem:[#allocation13 + $0x50] sm:$0xff] %v7190
    %7229 = vst [vmem:[#allocation13 + $0x58] sm:$0xff] %v7195
    %7230 = vst [vmem:[#allocation13 + $0x60] sm:$0xff] %v7200
    %7231 = vst [vmem:[#allocation13 + $0x68] sm:$0xff] %v7205
    %7232 = vst [vmem:[#allocation13 + $0x70] sm:$0xff] %v7210
    %7233 = vst [vmem:[#allocation13 + $0x78] sm:$0xff] %v7215
    // Predicated region
    $region62: #{tpu_custom_call.1} parent=1 // pred_check
      _
    $region63: #{tpu_custom_call.1} parent=1 // pred_check_branch
      %7235 = sbr.rel (0) target = $region65
    $region64: #{tpu_custom_call.1} parent=1 // pred_region
      %s7237 = ssub.s32 2048, 2048
      %7238 = vsyncadd [#allocation6], %s7237
      %s7239 = sshll.u32 [#allocation13], 4
      %s7240 = int_to_ptr.vmem [resolvable:$true] %s7239
      %7245 = dma.vmem_to_hbm [thread:$0]  %s7240, 2048, %s10, [#allocation6], 128, 128, 8
    $region65: #{tpu_custom_call.1} parent=1 // pred_fallthru
      _
    // Predicated region
    $region66: #{tpu_custom_call.1} parent=1 // pred_check
      _
    $region67: #{tpu_custom_call.1} parent=1 // pred_check_branch
      %7247 = sbr.rel (0) target = $region69
    $region68: #{tpu_custom_call.1} parent=1 // pred_region
      %7248 = dma.done [#allocation6], 2048
    $region69: #{tpu_custom_call.1} parent=1 // pred_fallthru
      _
    %7249 = vsyncpa [#allocation5], 1
    %7250 = vsyncpa [#allocation8], 1
    %7251 = vsyncpa [#allocation11], 1
    %7252 = vsyncpa [#allocation6], 1

</llo_original>
